<compile_context>
chip_gen: v7x
topology: tpu7x:2x2x1
jax: 0.10.0
libtpu: 0.0.40
codegen_flags: <defaults>
</compile_context>

<pallas_src>
import jax
import jax.numpy as jnp
from jax import lax
from jax.experimental import pallas as pl
from jax.experimental.pallas import tpu as pltpu


# ----------------------------------------------------------------------------
# Fused Pallas kernel: 5 GRU layers + FC, all VMEM-resident
# ----------------------------------------------------------------------------
def make_fused_gru_kernel(num_layers, T, B, H):
    """Kernel args (in order):
         x_ref                               (B, T, D_in)  batch-first input
         per layer l in [0, num_layers):
           w_ih_l   (D_l, 3H)   input-projection weights (gates r|z|n)
           w_hh_l   (H, 3H)     recurrent weights (gates r|z|n, original layout)
           b_x_l    (1, 3H)     b_ih + [b_hh_r, b_hh_z, 0]   (pre-folded)
           b_hn_l   (1, H)      b_hh_n (must stay inside r*(...))
         fc_w (H, 1), fc_b (1, 1)
         out_ref (B, 1)
         hseq_ref (T*B, H) VMEM scratch (time-major hidden-sequence slab)
    """

    def kernel(*refs):
        x_ref = refs[0]
        fc_w_ref = refs[1 + 4 * num_layers]
        fc_b_ref = refs[2 + 4 * num_layers]
        out_ref = refs[3 + 4 * num_layers]
        hseq_ref = refs[4 + 4 * num_layers]

        # --- One-time re-layout of the batch-first input to time-major 2D ---
        # Rows of inp0 are ordered (t, b): row t*B + b == x[b, t, :].
        # Done once at kernel entry, off the serial chain.
        x_bf = x_ref[...]                                     # (B, T, D)
        inp0 = jnp.concatenate([x_bf[:, t, :] for t in range(T)], axis=0)  # (T*B, D)

        h = jnp.zeros((B, H), jnp.float32)
        for l in range(num_layers):
            w_ih = refs[1 + 4 * l][...]                       # (D_l, 3H)
            w_hh = refs[2 + 4 * l][...]                       # (H, 3H)
            b_x = refs[3 + 4 * l][...]                        # (1, 3H)
            # Hoisted broadcast: emitted once per layer, not once per step.
            b_hn = jnp.broadcast_to(refs[4 + 4 * l][...], (B, H))

            # --- Hoisted, time-parallel input projection (one matmul/layer) ---
            inp = inp0 if l == 0 else hseq_ref[...]           # (T*B, D_l), time-major
            gi = jnp.dot(inp, w_ih, preferred_element_type=jnp.float32) + b_x  # (T*B, 3H)

            last_layer = l == num_layers - 1
            h = jnp.zeros((B, H), jnp.float32)                # h0 = 0 (torch default)

            # --- Recurrence: fully unrolled (T is small and static) ---
            for t in range(T):
                gi_t = gi[t * B:(t + 1) * B, :]               # (B, 3H), hoistable
                # Single fused recurrent matmul for all three gates.
                gh = jnp.dot(h, w_hh, preferred_element_type=jnp.float32)   # (B, 3H)
                # One EUP trip for the 64-lane [r|z] slab.
                rz = jax.nn.sigmoid(gi_t[:, :2 * H] + gh[:, :2 * H])
                r = rz[:, :H]
                z = rz[:, H:]
                n = jnp.tanh(gi_t[:, 2 * H:] + r * (gh[:, 2 * H:] + b_hn))
                h = n + z * (h - n)                           # == (1-z)*n + z*h
                if not last_layer:
                    hseq_ref[t * B:(t + 1) * B, :] = h        # stays in VMEM

        # Final FC on the last layer's last timestep.
        out_ref[...] = (
            jnp.dot(h, fc_w_ref[...], preferred_element_type=jnp.float32)
            + fc_b_ref[...]
        )

    return kernel


# ----------------------------------------------------------------------------
# Wrapper
# ----------------------------------------------------------------------------
def _gru_model_forward(x, packed):
    """x: (B, T, input_size) batch-first like PyTorch.  Returns (B, 1)."""
    B, T, _ = x.shape
    layers = packed["layers"]
    num_layers = len(layers)
    H = packed["fc_w"].shape[0]

    args = [x]
    for lp in layers:
        args += [lp["w_ih"], lp["w_hh"], lp["b_x"], lp["b_hn"]]
    args += [packed["fc_w"], packed["fc_b"]]

    vmem = pl.BlockSpec(memory_space=pltpu.MemorySpace.VMEM)
    # TODO(synk): on v7x, if batch grows beyond a few rows, add a 'parallel'
    # batch grid axis (weights with constant index_maps) to use both TCs.
    return pl.pallas_call(
        make_fused_gru_kernel(num_layers, T, B, H),
        out_shape=jax.ShapeDtypeStruct((B, 1), jnp.float32),
        in_specs=[vmem] * len(args),
        out_specs=vmem,
        scratch_shapes=[pltpu.VMEM((T * B, H), jnp.float32)],
    )(*args)


gru_model_forward = jax.jit(_gru_model_forward)


# ----------------------------------------------------------------------------
# Parameter init (torch-equivalent layout, transposed for right-multiply)
# ----------------------------------------------------------------------------
def init_params(key, input_size, hidden_size, num_layers=5):
    params = {"gru_layers": []}
    scale = 1.0 / jnp.sqrt(hidden_size)
    for layer in range(num_layers):
        d_in = input_size if layer == 0 else hidden_size
        key, k1, k2, k3, k4 = jax.random.split(key, 5)
        w_ih = jax.random.uniform(k1, (d_in, 3 * hidden_size), jnp.float32, -scale, scale)
        w_hh = jax.random.uniform(k2, (hidden_size, 3 * hidden_size), jnp.float32, -scale, scale)
        b_ih = jax.random.uniform(k3, (1, 3 * hidden_size), jnp.float32, -scale, scale)
        b_hh = jax.random.uniform(k4, (1, 3 * hidden_size), jnp.float32, -scale, scale)
        params["gru_layers"].append({"w_ih": w_ih, "w_hh": w_hh, "b_ih": b_ih, "b_hh": b_hh})
    key, k1, k2 = jax.random.split(key, 3)
    params["fc_w"] = jax.random.uniform(k1, (hidden_size, 1), jnp.float32, -scale, scale)
    params["fc_b"] = jax.random.uniform(k2, (1, 1), jnp.float32, -scale, scale)
    return params


def pack_kernel_params(params):
    """Re-layout params for the fused kernel: folded biases; w_hh kept (H,3H)."""
    H = params["fc_w"].shape[0]
    packed = {"layers": [], "fc_w": params["fc_w"], "fc_b": params["fc_b"]}
    for lp in params["gru_layers"]:
        b_ih, b_hh = lp["b_ih"], lp["b_hh"]                   # (1, 3H)
        b_x = b_ih + jnp.concatenate(
            [b_hh[:, 0:H], b_hh[:, H:2 * H], jnp.zeros((1, H), jnp.float32)], axis=1
        )                                                     # (1, 3H)
        b_hn = b_hh[:, 2 * H:3 * H]                           # (1, H)
        packed["layers"].append(
            {"w_ih": lp["w_ih"], "w_hh": lp["w_hh"], "b_x": b_x, "b_hn": b_hn}
        )
    return packed


# ----------------------------------------------------------------------------
# Pure-JAX reference (matches torch.nn.GRU math) for correctness check
# ----------------------------------------------------------------------------
def gru_model_reference(x, params):
    h_seq = jnp.transpose(x, (1, 0, 2))  # (T, B, D)
    for lp in params["gru_layers"]:
        H = lp["w_hh"].shape[0]
        B = h_seq.shape[1]

        def step(h_prev, x_t, lp=lp, H=H):
            gi = x_t @ lp["w_ih"] + lp["b_ih"]
            gh = h_prev @ lp["w_hh"] + lp["b_hh"]
            r = jax.nn.sigmoid(gi[:, :H] + gh[:, :H])
            z = jax.nn.sigmoid(gi[:, H:2 * H] + gh[:, H:2 * H])
            n = jnp.tanh(gi[:, 2 * H:] + r * gh[:, 2 * H:])
            h_new = (1.0 - z) * n + z * h_prev
            return h_new, h_new

        h0 = jnp.zeros((B, H), jnp.float32)
        _, h_seq = lax.scan(step, h0, h_seq)
    last = h_seq[-1]
    return last @ params["fc_w"] + params["fc_b"]


# ----------------------------------------------------------------------------
if __name__ == "__main__":
    INPUT_SIZE = 8
    HIDDEN_SIZE = 32
    BATCH = 2
    SEQ = 8

    key = jax.random.PRNGKey(0)
    key, pkey, xkey = jax.random.split(key, 3)
    params = init_params(pkey, INPUT_SIZE, HIDDEN_SIZE, num_layers=5)
    packed = pack_kernel_params(params)
    x = jax.random.normal(xkey, (BATCH, SEQ, INPUT_SIZE), jnp.float32)

    out = gru_model_forward(x, packed)
    out = jax.block_until_ready(out)

    ref = jax.block_until_ready(gru_model_reference(x, params))
    assert out.shape == (BATCH, 1), out.shape
    assert jnp.allclose(out, ref, atol=1e-4, rtol=1e-4), (out, ref)

    print("KERNEL_OK")
</pallas_src>

<mosaic_0001>
module attributes {stable_mosaic.version = 11 : i64} {
  func.func @kernel(%arg0: memref<2x8x8xf32, #tpu.memory_space<vmem>>, %arg1: memref<8x96xf32, #tpu.memory_space<vmem>>, %arg2: memref<32x96xf32, #tpu.memory_space<vmem>>, %arg3: memref<1x96xf32, #tpu.memory_space<vmem>>, %arg4: memref<1x32xf32, #tpu.memory_space<vmem>>, %arg5: memref<32x96xf32, #tpu.memory_space<vmem>>, %arg6: memref<32x96xf32, #tpu.memory_space<vmem>>, %arg7: memref<1x96xf32, #tpu.memory_space<vmem>>, %arg8: memref<1x32xf32, #tpu.memory_space<vmem>>, %arg9: memref<32x96xf32, #tpu.memory_space<vmem>>, %arg10: memref<32x96xf32, #tpu.memory_space<vmem>>, %arg11: memref<1x96xf32, #tpu.memory_space<vmem>>, %arg12: memref<1x32xf32, #tpu.memory_space<vmem>>, %arg13: memref<32x96xf32, #tpu.memory_space<vmem>>, %arg14: memref<32x96xf32, #tpu.memory_space<vmem>>, %arg15: memref<1x96xf32, #tpu.memory_space<vmem>>, %arg16: memref<1x32xf32, #tpu.memory_space<vmem>>, %arg17: memref<32x96xf32, #tpu.memory_space<vmem>>, %arg18: memref<32x96xf32, #tpu.memory_space<vmem>>, %arg19: memref<1x96xf32, #tpu.memory_space<vmem>>, %arg20: memref<1x32xf32, #tpu.memory_space<vmem>>, %arg21: memref<32x1xf32, #tpu.memory_space<vmem>>, %arg22: memref<1x1xf32, #tpu.memory_space<vmem>>, %arg23: memref<2x1xf32, #tpu.memory_space<vmem>>, %arg24: memref<16x32xf32, #tpu.memory_space<vmem>>) attributes {dimension_semantics = [], scalar_prefetch = 0 : i64, scratch_operands = 1 : i64, tpu.core_type = #tpu.core_type<tc>} {
    %c0 = arith.constant 0 : index
    %c0_0 = arith.constant 0 : index
    %c0_1 = arith.constant 0 : index
    %0 = vector.load %arg0[%c0, %c0_0, %c0_1] : memref<2x8x8xf32, #tpu.memory_space<vmem>>, vector<2x8x8xf32>
    %1 = vector.extract_strided_slice %0 {offsets = [0, 0, 0], sizes = [2, 1, 8], strides = [1, 1, 1]} : vector<2x8x8xf32> to vector<2x1x8xf32>
    %2 = vector.shape_cast %1 : vector<2x1x8xf32> to vector<2x8xf32>
    %3 = vector.extract_strided_slice %0 {offsets = [0, 1, 0], sizes = [2, 1, 8], strides = [1, 1, 1]} : vector<2x8x8xf32> to vector<2x1x8xf32>
    %4 = vector.shape_cast %3 : vector<2x1x8xf32> to vector<2x8xf32>
    %5 = vector.extract_strided_slice %0 {offsets = [0, 2, 0], sizes = [2, 1, 8], strides = [1, 1, 1]} : vector<2x8x8xf32> to vector<2x1x8xf32>
    %6 = vector.shape_cast %5 : vector<2x1x8xf32> to vector<2x8xf32>
    %7 = vector.extract_strided_slice %0 {offsets = [0, 3, 0], sizes = [2, 1, 8], strides = [1, 1, 1]} : vector<2x8x8xf32> to vector<2x1x8xf32>
    %8 = vector.shape_cast %7 : vector<2x1x8xf32> to vector<2x8xf32>
    %9 = vector.extract_strided_slice %0 {offsets = [0, 4, 0], sizes = [2, 1, 8], strides = [1, 1, 1]} : vector<2x8x8xf32> to vector<2x1x8xf32>
    %10 = vector.shape_cast %9 : vector<2x1x8xf32> to vector<2x8xf32>
    %11 = vector.extract_strided_slice %0 {offsets = [0, 5, 0], sizes = [2, 1, 8], strides = [1, 1, 1]} : vector<2x8x8xf32> to vector<2x1x8xf32>
    %12 = vector.shape_cast %11 : vector<2x1x8xf32> to vector<2x8xf32>
    %13 = vector.extract_strided_slice %0 {offsets = [0, 6, 0], sizes = [2, 1, 8], strides = [1, 1, 1]} : vector<2x8x8xf32> to vector<2x1x8xf32>
    %14 = vector.shape_cast %13 : vector<2x1x8xf32> to vector<2x8xf32>
    %15 = vector.extract_strided_slice %0 {offsets = [0, 7, 0], sizes = [2, 1, 8], strides = [1, 1, 1]} : vector<2x8x8xf32> to vector<2x1x8xf32>
    %16 = vector.shape_cast %15 : vector<2x1x8xf32> to vector<2x8xf32>
    %17 = tpu.concatenate %2, %4, %6, %8, %10, %12, %14, %16 in 0 : vector<2x8xf32>, vector<2x8xf32>, vector<2x8xf32>, vector<2x8xf32>, vector<2x8xf32>, vector<2x8xf32>, vector<2x8xf32>, vector<2x8xf32> -> vector<16x8xf32>
    %c0_2 = arith.constant 0 : index
    %c0_3 = arith.constant 0 : index
    %18 = vector.load %arg1[%c0_2, %c0_3] : memref<8x96xf32, #tpu.memory_space<vmem>>, vector<8x96xf32>
    %c0_4 = arith.constant 0 : index
    %c0_5 = arith.constant 0 : index
    %19 = vector.load %arg2[%c0_4, %c0_5] : memref<32x96xf32, #tpu.memory_space<vmem>>, vector<32x96xf32>
    %c0_6 = arith.constant 0 : index
    %c0_7 = arith.constant 0 : index
    %20 = vector.load %arg3[%c0_6, %c0_7] : memref<1x96xf32, #tpu.memory_space<vmem>>, vector<1x96xf32>
    %c0_8 = arith.constant 0 : index
    %c0_9 = arith.constant 0 : index
    %21 = vector.load %arg4[%c0_8, %c0_9] : memref<1x32xf32, #tpu.memory_space<vmem>>, vector<1x32xf32>
    %22 = vector.shape_cast %21 : vector<1x32xf32> to vector<1x32xf32>
    %23 = vector.broadcast %22 : vector<1x32xf32> to vector<2x32xf32>
    %cst = arith.constant dense<0.000000e+00> : vector<16x96xf32>
    %24 = tpu.matmul %17, %18, %cst {dimension_numbers = #tpu.dot_dimension_numbers<[1], [0], [0], [1], [0, 0, 1, 1], [], []>} : vector<16x8xf32>, vector<8x96xf32>, vector<16x96xf32> -> vector<16x96xf32>
    %25 = vector.broadcast %20 : vector<1x96xf32> to vector<16x96xf32>
    %26 = arith.addf %24, %25 : vector<16x96xf32>
    %cst_10 = arith.constant 0.000000e+00 : f32
    %27 = vector.broadcast %cst_10 : f32 to vector<2x32xf32>
    %28 = vector.extract_strided_slice %26 {offsets = [0, 0], sizes = [2, 96], strides = [1, 1]} : vector<16x96xf32> to vector<2x96xf32>
    %cst_11 = arith.constant dense<0.000000e+00> : vector<2x96xf32>
    %29 = tpu.matmul %27, %19, %cst_11 {dimension_numbers = #tpu.dot_dimension_numbers<[1], [0], [0], [1], [0, 0, 1, 1], [], []>} : vector<2x32xf32>, vector<32x96xf32>, vector<2x96xf32> -> vector<2x96xf32>
    %30 = vector.extract_strided_slice %28 {offsets = [0, 0], sizes = [2, 64], strides = [1, 1]} : vector<2x96xf32> to vector<2x64xf32>
    %31 = vector.extract_strided_slice %29 {offsets = [0, 0], sizes = [2, 64], strides = [1, 1]} : vector<2x96xf32> to vector<2x64xf32>
    %32 = arith.addf %30, %31 : vector<2x64xf32>
    %33 = arith.negf %32 : vector<2x64xf32>
    %34 = math.exp %33 : vector<2x64xf32>
    %cst_12 = arith.constant 1.000000e+00 : f32
    %35 = vector.broadcast %cst_12 : f32 to vector<2x64xf32>
    %36 = arith.addf %35, %34 : vector<2x64xf32>
    %37 = arith.divf %35, %36 : vector<2x64xf32>
    %38 = vector.extract_strided_slice %37 {offsets = [0, 0], sizes = [2, 32], strides = [1, 1]} : vector<2x64xf32> to vector<2x32xf32>
    %39 = vector.extract_strided_slice %37 {offsets = [0, 32], sizes = [2, 32], strides = [1, 1]} : vector<2x64xf32> to vector<2x32xf32>
    %40 = vector.extract_strided_slice %28 {offsets = [0, 64], sizes = [2, 32], strides = [1, 1]} : vector<2x96xf32> to vector<2x32xf32>
    %41 = vector.extract_strided_slice %29 {offsets = [0, 64], sizes = [2, 32], strides = [1, 1]} : vector<2x96xf32> to vector<2x32xf32>
    %42 = arith.addf %41, %23 : vector<2x32xf32>
    %43 = arith.mulf %38, %42 : vector<2x32xf32>
    %44 = arith.addf %40, %43 : vector<2x32xf32>
    %45 = math.tanh %44 : vector<2x32xf32>
    %46 = arith.subf %27, %45 : vector<2x32xf32>
    %47 = arith.mulf %39, %46 : vector<2x32xf32>
    %48 = arith.addf %45, %47 : vector<2x32xf32>
    %c0_13 = arith.constant 0 : index
    %c0_14 = arith.constant 0 : index
    %49 = vector.load %arg24[%c0_13, %c0_14] : memref<16x32xf32, #tpu.memory_space<vmem>>, vector<2x32xf32>
    tpu.vector_store %arg24[%c0_13, %c0_14], %48 {strides = array<i32>} : memref<16x32xf32, #tpu.memory_space<vmem>>, vector<2x32xf32>,
    %50 = vector.extract_strided_slice %26 {offsets = [2, 0], sizes = [2, 96], strides = [1, 1]} : vector<16x96xf32> to vector<2x96xf32>
    %cst_15 = arith.constant dense<0.000000e+00> : vector<2x96xf32>
    %51 = tpu.matmul %48, %19, %cst_15 {dimension_numbers = #tpu.dot_dimension_numbers<[1], [0], [0], [1], [0, 0, 1, 1], [], []>} : vector<2x32xf32>, vector<32x96xf32>, vector<2x96xf32> -> vector<2x96xf32>
    %52 = vector.extract_strided_slice %50 {offsets = [0, 0], sizes = [2, 64], strides = [1, 1]} : vector<2x96xf32> to vector<2x64xf32>
    %53 = vector.extract_strided_slice %51 {offsets = [0, 0], sizes = [2, 64], strides = [1, 1]} : vector<2x96xf32> to vector<2x64xf32>
    %54 = arith.addf %52, %53 : vector<2x64xf32>
    %55 = arith.negf %54 : vector<2x64xf32>
    %56 = math.exp %55 : vector<2x64xf32>
    %cst_16 = arith.constant 1.000000e+00 : f32
    %57 = vector.broadcast %cst_16 : f32 to vector<2x64xf32>
    %58 = arith.addf %57, %56 : vector<2x64xf32>
    %59 = arith.divf %57, %58 : vector<2x64xf32>
    %60 = vector.extract_strided_slice %59 {offsets = [0, 0], sizes = [2, 32], strides = [1, 1]} : vector<2x64xf32> to vector<2x32xf32>
    %61 = vector.extract_strided_slice %59 {offsets = [0, 32], sizes = [2, 32], strides = [1, 1]} : vector<2x64xf32> to vector<2x32xf32>
    %62 = vector.extract_strided_slice %50 {offsets = [0, 64], sizes = [2, 32], strides = [1, 1]} : vector<2x96xf32> to vector<2x32xf32>
    %63 = vector.extract_strided_slice %51 {offsets = [0, 64], sizes = [2, 32], strides = [1, 1]} : vector<2x96xf32> to vector<2x32xf32>
    %64 = arith.addf %63, %23 : vector<2x32xf32>
    %65 = arith.mulf %60, %64 : vector<2x32xf32>
    %66 = arith.addf %62, %65 : vector<2x32xf32>
    %67 = math.tanh %66 : vector<2x32xf32>
    %68 = arith.subf %48, %67 : vector<2x32xf32>
    %69 = arith.mulf %61, %68 : vector<2x32xf32>
    %70 = arith.addf %67, %69 : vector<2x32xf32>
    %c2 = arith.constant 2 : index
    %c0_17 = arith.constant 0 : index
    %71 = vector.load %arg24[%c2, %c0_17] : memref<16x32xf32, #tpu.memory_space<vmem>>, vector<2x32xf32>
    tpu.vector_store %arg24[%c2, %c0_17], %70 {strides = array<i32>} : memref<16x32xf32, #tpu.memory_space<vmem>>, vector<2x32xf32>,
    %72 = vector.extract_strided_slice %26 {offsets = [4, 0], sizes = [2, 96], strides = [1, 1]} : vector<16x96xf32> to vector<2x96xf32>
    %cst_18 = arith.constant dense<0.000000e+00> : vector<2x96xf32>
    %73 = tpu.matmul %70, %19, %cst_18 {dimension_numbers = #tpu.dot_dimension_numbers<[1], [0], [0], [1], [0, 0, 1, 1], [], []>} : vector<2x32xf32>, vector<32x96xf32>, vector<2x96xf32> -> vector<2x96xf32>
    %74 = vector.extract_strided_slice %72 {offsets = [0, 0], sizes = [2, 64], strides = [1, 1]} : vector<2x96xf32> to vector<2x64xf32>
    %75 = vector.extract_strided_slice %73 {offsets = [0, 0], sizes = [2, 64], strides = [1, 1]} : vector<2x96xf32> to vector<2x64xf32>
    %76 = arith.addf %74, %75 : vector<2x64xf32>
    %77 = arith.negf %76 : vector<2x64xf32>
    %78 = math.exp %77 : vector<2x64xf32>
    %cst_19 = arith.constant 1.000000e+00 : f32
    %79 = vector.broadcast %cst_19 : f32 to vector<2x64xf32>
    %80 = arith.addf %79, %78 : vector<2x64xf32>
    %81 = arith.divf %79, %80 : vector<2x64xf32>
    %82 = vector.extract_strided_slice %81 {offsets = [0, 0], sizes = [2, 32], strides = [1, 1]} : vector<2x64xf32> to vector<2x32xf32>
    %83 = vector.extract_strided_slice %81 {offsets = [0, 32], sizes = [2, 32], strides = [1, 1]} : vector<2x64xf32> to vector<2x32xf32>
    %84 = vector.extract_strided_slice %72 {offsets = [0, 64], sizes = [2, 32], strides = [1, 1]} : vector<2x96xf32> to vector<2x32xf32>
    %85 = vector.extract_strided_slice %73 {offsets = [0, 64], sizes = [2, 32], strides = [1, 1]} : vector<2x96xf32> to vector<2x32xf32>
    %86 = arith.addf %85, %23 : vector<2x32xf32>
    %87 = arith.mulf %82, %86 : vector<2x32xf32>
    %88 = arith.addf %84, %87 : vector<2x32xf32>
    %89 = math.tanh %88 : vector<2x32xf32>
    %90 = arith.subf %70, %89 : vector<2x32xf32>
    %91 = arith.mulf %83, %90 : vector<2x32xf32>
    %92 = arith.addf %89, %91 : vector<2x32xf32>
    %c4 = arith.constant 4 : index
    %c0_20 = arith.constant 0 : index
    %93 = vector.load %arg24[%c4, %c0_20] : memref<16x32xf32, #tpu.memory_space<vmem>>, vector<2x32xf32>
    tpu.vector_store %arg24[%c4, %c0_20], %92 {strides = array<i32>} : memref<16x32xf32, #tpu.memory_space<vmem>>, vector<2x32xf32>,
    %94 = vector.extract_strided_slice %26 {offsets = [6, 0], sizes = [2, 96], strides = [1, 1]} : vector<16x96xf32> to vector<2x96xf32>
    %cst_21 = arith.constant dense<0.000000e+00> : vector<2x96xf32>
    %95 = tpu.matmul %92, %19, %cst_21 {dimension_numbers = #tpu.dot_dimension_numbers<[1], [0], [0], [1], [0, 0, 1, 1], [], []>} : vector<2x32xf32>, vector<32x96xf32>, vector<2x96xf32> -> vector<2x96xf32>
    %96 = vector.extract_strided_slice %94 {offsets = [0, 0], sizes = [2, 64], strides = [1, 1]} : vector<2x96xf32> to vector<2x64xf32>
    %97 = vector.extract_strided_slice %95 {offsets = [0, 0], sizes = [2, 64], strides = [1, 1]} : vector<2x96xf32> to vector<2x64xf32>
    %98 = arith.addf %96, %97 : vector<2x64xf32>
    %99 = arith.negf %98 : vector<2x64xf32>
    %100 = math.exp %99 : vector<2x64xf32>
    %cst_22 = arith.constant 1.000000e+00 : f32
    %101 = vector.broadcast %cst_22 : f32 to vector<2x64xf32>
    %102 = arith.addf %101, %100 : vector<2x64xf32>
    %103 = arith.divf %101, %102 : vector<2x64xf32>
    %104 = vector.extract_strided_slice %103 {offsets = [0, 0], sizes = [2, 32], strides = [1, 1]} : vector<2x64xf32> to vector<2x32xf32>
    %105 = vector.extract_strided_slice %103 {offsets = [0, 32], sizes = [2, 32], strides = [1, 1]} : vector<2x64xf32> to vector<2x32xf32>
    %106 = vector.extract_strided_slice %94 {offsets = [0, 64], sizes = [2, 32], strides = [1, 1]} : vector<2x96xf32> to vector<2x32xf32>
    %107 = vector.extract_strided_slice %95 {offsets = [0, 64], sizes = [2, 32], strides = [1, 1]} : vector<2x96xf32> to vector<2x32xf32>
    %108 = arith.addf %107, %23 : vector<2x32xf32>
    %109 = arith.mulf %104, %108 : vector<2x32xf32>
    %110 = arith.addf %106, %109 : vector<2x32xf32>
    %111 = math.tanh %110 : vector<2x32xf32>
    %112 = arith.subf %92, %111 : vector<2x32xf32>
    %113 = arith.mulf %105, %112 : vector<2x32xf32>
    %114 = arith.addf %111, %113 : vector<2x32xf32>
    %c6 = arith.constant 6 : index
    %c0_23 = arith.constant 0 : index
    %115 = vector.load %arg24[%c6, %c0_23] : memref<16x32xf32, #tpu.memory_space<vmem>>, vector<2x32xf32>
    tpu.vector_store %arg24[%c6, %c0_23], %114 {strides = array<i32>} : memref<16x32xf32, #tpu.memory_space<vmem>>, vector<2x32xf32>,
    %116 = vector.extract_strided_slice %26 {offsets = [8, 0], sizes = [2, 96], strides = [1, 1]} : vector<16x96xf32> to vector<2x96xf32>
    %cst_24 = arith.constant dense<0.000000e+00> : vector<2x96xf32>
    %117 = tpu.matmul %114, %19, %cst_24 {dimension_numbers = #tpu.dot_dimension_numbers<[1], [0], [0], [1], [0, 0, 1, 1], [], []>} : vector<2x32xf32>, vector<32x96xf32>, vector<2x96xf32> -> vector<2x96xf32>
    %118 = vector.extract_strided_slice %116 {offsets = [0, 0], sizes = [2, 64], strides = [1, 1]} : vector<2x96xf32> to vector<2x64xf32>
    %119 = vector.extract_strided_slice %117 {offsets = [0, 0], sizes = [2, 64], strides = [1, 1]} : vector<2x96xf32> to vector<2x64xf32>
    %120 = arith.addf %118, %119 : vector<2x64xf32>
    %121 = arith.negf %120 : vector<2x64xf32>
    %122 = math.exp %121 : vector<2x64xf32>
    %cst_25 = arith.constant 1.000000e+00 : f32
    %123 = vector.broadcast %cst_25 : f32 to vector<2x64xf32>
    %124 = arith.addf %123, %122 : vector<2x64xf32>
    %125 = arith.divf %123, %124 : vector<2x64xf32>
    %126 = vector.extract_strided_slice %125 {offsets = [0, 0], sizes = [2, 32], strides = [1, 1]} : vector<2x64xf32> to vector<2x32xf32>
    %127 = vector.extract_strided_slice %125 {offsets = [0, 32], sizes = [2, 32], strides = [1, 1]} : vector<2x64xf32> to vector<2x32xf32>
    %128 = vector.extract_strided_slice %116 {offsets = [0, 64], sizes = [2, 32], strides = [1, 1]} : vector<2x96xf32> to vector<2x32xf32>
    %129 = vector.extract_strided_slice %117 {offsets = [0, 64], sizes = [2, 32], strides = [1, 1]} : vector<2x96xf32> to vector<2x32xf32>
    %130 = arith.addf %129, %23 : vector<2x32xf32>
    %131 = arith.mulf %126, %130 : vector<2x32xf32>
    %132 = arith.addf %128, %131 : vector<2x32xf32>
    %133 = math.tanh %132 : vector<2x32xf32>
    %134 = arith.subf %114, %133 : vector<2x32xf32>
    %135 = arith.mulf %127, %134 : vector<2x32xf32>
    %136 = arith.addf %133, %135 : vector<2x32xf32>
    %c8 = arith.constant 8 : index
    %c0_26 = arith.constant 0 : index
    %137 = vector.load %arg24[%c8, %c0_26] : memref<16x32xf32, #tpu.memory_space<vmem>>, vector<2x32xf32>
    tpu.vector_store %arg24[%c8, %c0_26], %136 {strides = array<i32>} : memref<16x32xf32, #tpu.memory_space<vmem>>, vector<2x32xf32>,
    %138 = vector.extract_strided_slice %26 {offsets = [10, 0], sizes = [2, 96], strides = [1, 1]} : vector<16x96xf32> to vector<2x96xf32>
    %cst_27 = arith.constant dense<0.000000e+00> : vector<2x96xf32>
    %139 = tpu.matmul %136, %19, %cst_27 {dimension_numbers = #tpu.dot_dimension_numbers<[1], [0], [0], [1], [0, 0, 1, 1], [], []>} : vector<2x32xf32>, vector<32x96xf32>, vector<2x96xf32> -> vector<2x96xf32>
    %140 = vector.extract_strided_slice %138 {offsets = [0, 0], sizes = [2, 64], strides = [1, 1]} : vector<2x96xf32> to vector<2x64xf32>
    %141 = vector.extract_strided_slice %139 {offsets = [0, 0], sizes = [2, 64], strides = [1, 1]} : vector<2x96xf32> to vector<2x64xf32>
    %142 = arith.addf %140, %141 : vector<2x64xf32>
    %143 = arith.negf %142 : vector<2x64xf32>
    %144 = math.exp %143 : vector<2x64xf32>
    %cst_28 = arith.constant 1.000000e+00 : f32
    %145 = vector.broadcast %cst_28 : f32 to vector<2x64xf32>
    %146 = arith.addf %145, %144 : vector<2x64xf32>
    %147 = arith.divf %145, %146 : vector<2x64xf32>
    %148 = vector.extract_strided_slice %147 {offsets = [0, 0], sizes = [2, 32], strides = [1, 1]} : vector<2x64xf32> to vector<2x32xf32>
    %149 = vector.extract_strided_slice %147 {offsets = [0, 32], sizes = [2, 32], strides = [1, 1]} : vector<2x64xf32> to vector<2x32xf32>
    %150 = vector.extract_strided_slice %138 {offsets = [0, 64], sizes = [2, 32], strides = [1, 1]} : vector<2x96xf32> to vector<2x32xf32>
    %151 = vector.extract_strided_slice %139 {offsets = [0, 64], sizes = [2, 32], strides = [1, 1]} : vector<2x96xf32> to vector<2x32xf32>
    %152 = arith.addf %151, %23 : vector<2x32xf32>
    %153 = arith.mulf %148, %152 : vector<2x32xf32>
    %154 = arith.addf %150, %153 : vector<2x32xf32>
    %155 = math.tanh %154 : vector<2x32xf32>
    %156 = arith.subf %136, %155 : vector<2x32xf32>
    %157 = arith.mulf %149, %156 : vector<2x32xf32>
    %158 = arith.addf %155, %157 : vector<2x32xf32>
    %c10 = arith.constant 10 : index
    %c0_29 = arith.constant 0 : index
    %159 = vector.load %arg24[%c10, %c0_29] : memref<16x32xf32, #tpu.memory_space<vmem>>, vector<2x32xf32>
    tpu.vector_store %arg24[%c10, %c0_29], %158 {strides = array<i32>} : memref<16x32xf32, #tpu.memory_space<vmem>>, vector<2x32xf32>,
    %160 = vector.extract_strided_slice %26 {offsets = [12, 0], sizes = [2, 96], strides = [1, 1]} : vector<16x96xf32> to vector<2x96xf32>
    %cst_30 = arith.constant dense<0.000000e+00> : vector<2x96xf32>
    %161 = tpu.matmul %158, %19, %cst_30 {dimension_numbers = #tpu.dot_dimension_numbers<[1], [0], [0], [1], [0, 0, 1, 1], [], []>} : vector<2x32xf32>, vector<32x96xf32>, vector<2x96xf32> -> vector<2x96xf32>
    %162 = vector.extract_strided_slice %160 {offsets = [0, 0], sizes = [2, 64], strides = [1, 1]} : vector<2x96xf32> to vector<2x64xf32>
    %163 = vector.extract_strided_slice %161 {offsets = [0, 0], sizes = [2, 64], strides = [1, 1]} : vector<2x96xf32> to vector<2x64xf32>
    %164 = arith.addf %162, %163 : vector<2x64xf32>
    %165 = arith.negf %164 : vector<2x64xf32>
    %166 = math.exp %165 : vector<2x64xf32>
    %cst_31 = arith.constant 1.000000e+00 : f32
    %167 = vector.broadcast %cst_31 : f32 to vector<2x64xf32>
    %168 = arith.addf %167, %166 : vector<2x64xf32>
    %169 = arith.divf %167, %168 : vector<2x64xf32>
    %170 = vector.extract_strided_slice %169 {offsets = [0, 0], sizes = [2, 32], strides = [1, 1]} : vector<2x64xf32> to vector<2x32xf32>
    %171 = vector.extract_strided_slice %169 {offsets = [0, 32], sizes = [2, 32], strides = [1, 1]} : vector<2x64xf32> to vector<2x32xf32>
    %172 = vector.extract_strided_slice %160 {offsets = [0, 64], sizes = [2, 32], strides = [1, 1]} : vector<2x96xf32> to vector<2x32xf32>
    %173 = vector.extract_strided_slice %161 {offsets = [0, 64], sizes = [2, 32], strides = [1, 1]} : vector<2x96xf32> to vector<2x32xf32>
    %174 = arith.addf %173, %23 : vector<2x32xf32>
    %175 = arith.mulf %170, %174 : vector<2x32xf32>
    %176 = arith.addf %172, %175 : vector<2x32xf32>
    %177 = math.tanh %176 : vector<2x32xf32>
    %178 = arith.subf %158, %177 : vector<2x32xf32>
    %179 = arith.mulf %171, %178 : vector<2x32xf32>
    %180 = arith.addf %177, %179 : vector<2x32xf32>
    %c12 = arith.constant 12 : index
    %c0_32 = arith.constant 0 : index
    %181 = vector.load %arg24[%c12, %c0_32] : memref<16x32xf32, #tpu.memory_space<vmem>>, vector<2x32xf32>
    tpu.vector_store %arg24[%c12, %c0_32], %180 {strides = array<i32>} : memref<16x32xf32, #tpu.memory_space<vmem>>, vector<2x32xf32>,
    %182 = vector.extract_strided_slice %26 {offsets = [14, 0], sizes = [2, 96], strides = [1, 1]} : vector<16x96xf32> to vector<2x96xf32>
    %cst_33 = arith.constant dense<0.000000e+00> : vector<2x96xf32>
    %183 = tpu.matmul %180, %19, %cst_33 {dimension_numbers = #tpu.dot_dimension_numbers<[1], [0], [0], [1], [0, 0, 1, 1], [], []>} : vector<2x32xf32>, vector<32x96xf32>, vector<2x96xf32> -> vector<2x96xf32>
    %184 = vector.extract_strided_slice %182 {offsets = [0, 0], sizes = [2, 64], strides = [1, 1]} : vector<2x96xf32> to vector<2x64xf32>
    %185 = vector.extract_strided_slice %183 {offsets = [0, 0], sizes = [2, 64], strides = [1, 1]} : vector<2x96xf32> to vector<2x64xf32>
    %186 = arith.addf %184, %185 : vector<2x64xf32>
    %187 = arith.negf %186 : vector<2x64xf32>
    %188 = math.exp %187 : vector<2x64xf32>
    %cst_34 = arith.constant 1.000000e+00 : f32
    %189 = vector.broadcast %cst_34 : f32 to vector<2x64xf32>
    %190 = arith.addf %189, %188 : vector<2x64xf32>
    %191 = arith.divf %189, %190 : vector<2x64xf32>
    %192 = vector.extract_strided_slice %191 {offsets = [0, 0], sizes = [2, 32], strides = [1, 1]} : vector<2x64xf32> to vector<2x32xf32>
    %193 = vector.extract_strided_slice %191 {offsets = [0, 32], sizes = [2, 32], strides = [1, 1]} : vector<2x64xf32> to vector<2x32xf32>
    %194 = vector.extract_strided_slice %182 {offsets = [0, 64], sizes = [2, 32], strides = [1, 1]} : vector<2x96xf32> to vector<2x32xf32>
    %195 = vector.extract_strided_slice %183 {offsets = [0, 64], sizes = [2, 32], strides = [1, 1]} : vector<2x96xf32> to vector<2x32xf32>
    %196 = arith.addf %195, %23 : vector<2x32xf32>
    %197 = arith.mulf %192, %196 : vector<2x32xf32>
    %198 = arith.addf %194, %197 : vector<2x32xf32>
    %199 = math.tanh %198 : vector<2x32xf32>
    %200 = arith.subf %180, %199 : vector<2x32xf32>
    %201 = arith.mulf %193, %200 : vector<2x32xf32>
    %202 = arith.addf %199, %201 : vector<2x32xf32>
    %c14 = arith.constant 14 : index
    %c0_35 = arith.constant 0 : index
    %203 = vector.load %arg24[%c14, %c0_35] : memref<16x32xf32, #tpu.memory_space<vmem>>, vector<2x32xf32>
    tpu.vector_store %arg24[%c14, %c0_35], %202 {strides = array<i32>} : memref<16x32xf32, #tpu.memory_space<vmem>>, vector<2x32xf32>,
    %c0_36 = arith.constant 0 : index
    %c0_37 = arith.constant 0 : index
    %204 = vector.load %arg5[%c0_36, %c0_37] : memref<32x96xf32, #tpu.memory_space<vmem>>, vector<32x96xf32>
    %c0_38 = arith.constant 0 : index
    %c0_39 = arith.constant 0 : index
    %205 = vector.load %arg6[%c0_38, %c0_39] : memref<32x96xf32, #tpu.memory_space<vmem>>, vector<32x96xf32>
    %c0_40 = arith.constant 0 : index
    %c0_41 = arith.constant 0 : index
    %206 = vector.load %arg7[%c0_40, %c0_41] : memref<1x96xf32, #tpu.memory_space<vmem>>, vector<1x96xf32>
    %c0_42 = arith.constant 0 : index
    %c0_43 = arith.constant 0 : index
    %207 = vector.load %arg8[%c0_42, %c0_43] : memref<1x32xf32, #tpu.memory_space<vmem>>, vector<1x32xf32>
    %208 = vector.shape_cast %207 : vector<1x32xf32> to vector<1x32xf32>
    %209 = vector.broadcast %208 : vector<1x32xf32> to vector<2x32xf32>
    %c0_44 = arith.constant 0 : index
    %c0_45 = arith.constant 0 : index
    %210 = vector.load %arg24[%c0_44, %c0_45] : memref<16x32xf32, #tpu.memory_space<vmem>>, vector<16x32xf32>
    %cst_46 = arith.constant dense<0.000000e+00> : vector<16x96xf32>
    %211 = tpu.matmul %210, %204, %cst_46 {dimension_numbers = #tpu.dot_dimension_numbers<[1], [0], [0], [1], [0, 0, 1, 1], [], []>} : vector<16x32xf32>, vector<32x96xf32>, vector<16x96xf32> -> vector<16x96xf32>
    %212 = vector.broadcast %206 : vector<1x96xf32> to vector<16x96xf32>
    %213 = arith.addf %211, %212 : vector<16x96xf32>
    %cst_47 = arith.constant 0.000000e+00 : f32
    %214 = vector.broadcast %cst_47 : f32 to vector<2x32xf32>
    %215 = vector.extract_strided_slice %213 {offsets = [0, 0], sizes = [2, 96], strides = [1, 1]} : vector<16x96xf32> to vector<2x96xf32>
    %cst_48 = arith.constant dense<0.000000e+00> : vector<2x96xf32>
    %216 = tpu.matmul %214, %205, %cst_48 {dimension_numbers = #tpu.dot_dimension_numbers<[1], [0], [0], [1], [0, 0, 1, 1], [], []>} : vector<2x32xf32>, vector<32x96xf32>, vector<2x96xf32> -> vector<2x96xf32>
    %217 = vector.extract_strided_slice %215 {offsets = [0, 0], sizes = [2, 64], strides = [1, 1]} : vector<2x96xf32> to vector<2x64xf32>
    %218 = vector.extract_strided_slice %216 {offsets = [0, 0], sizes = [2, 64], strides = [1, 1]} : vector<2x96xf32> to vector<2x64xf32>
    %219 = arith.addf %217, %218 : vector<2x64xf32>
    %220 = arith.negf %219 : vector<2x64xf32>
    %221 = math.exp %220 : vector<2x64xf32>
    %cst_49 = arith.constant 1.000000e+00 : f32
    %222 = vector.broadcast %cst_49 : f32 to vector<2x64xf32>
    %223 = arith.addf %222, %221 : vector<2x64xf32>
    %224 = arith.divf %222, %223 : vector<2x64xf32>
    %225 = vector.extract_strided_slice %224 {offsets = [0, 0], sizes = [2, 32], strides = [1, 1]} : vector<2x64xf32> to vector<2x32xf32>
    %226 = vector.extract_strided_slice %224 {offsets = [0, 32], sizes = [2, 32], strides = [1, 1]} : vector<2x64xf32> to vector<2x32xf32>
    %227 = vector.extract_strided_slice %215 {offsets = [0, 64], sizes = [2, 32], strides = [1, 1]} : vector<2x96xf32> to vector<2x32xf32>
    %228 = vector.extract_strided_slice %216 {offsets = [0, 64], sizes = [2, 32], strides = [1, 1]} : vector<2x96xf32> to vector<2x32xf32>
    %229 = arith.addf %228, %209 : vector<2x32xf32>
    %230 = arith.mulf %225, %229 : vector<2x32xf32>
    %231 = arith.addf %227, %230 : vector<2x32xf32>
    %232 = math.tanh %231 : vector<2x32xf32>
    %233 = arith.subf %214, %232 : vector<2x32xf32>
    %234 = arith.mulf %226, %233 : vector<2x32xf32>
    %235 = arith.addf %232, %234 : vector<2x32xf32>
    %c0_50 = arith.constant 0 : index
    %c0_51 = arith.constant 0 : index
    %236 = vector.load %arg24[%c0_50, %c0_51] : memref<16x32xf32, #tpu.memory_space<vmem>>, vector<2x32xf32>
    tpu.vector_store %arg24[%c0_50, %c0_51], %235 {strides = array<i32>} : memref<16x32xf32, #tpu.memory_space<vmem>>, vector<2x32xf32>,
    %237 = vector.extract_strided_slice %213 {offsets = [2, 0], sizes = [2, 96], strides = [1, 1]} : vector<16x96xf32> to vector<2x96xf32>
    %cst_52 = arith.constant dense<0.000000e+00> : vector<2x96xf32>
    %238 = tpu.matmul %235, %205, %cst_52 {dimension_numbers = #tpu.dot_dimension_numbers<[1], [0], [0], [1], [0, 0, 1, 1], [], []>} : vector<2x32xf32>, vector<32x96xf32>, vector<2x96xf32> -> vector<2x96xf32>
    %239 = vector.extract_strided_slice %237 {offsets = [0, 0], sizes = [2, 64], strides = [1, 1]} : vector<2x96xf32> to vector<2x64xf32>
    %240 = vector.extract_strided_slice %238 {offsets = [0, 0], sizes = [2, 64], strides = [1, 1]} : vector<2x96xf32> to vector<2x64xf32>
    %241 = arith.addf %239, %240 : vector<2x64xf32>
    %242 = arith.negf %241 : vector<2x64xf32>
    %243 = math.exp %242 : vector<2x64xf32>
    %cst_53 = arith.constant 1.000000e+00 : f32
    %244 = vector.broadcast %cst_53 : f32 to vector<2x64xf32>
    %245 = arith.addf %244, %243 : vector<2x64xf32>
    %246 = arith.divf %244, %245 : vector<2x64xf32>
    %247 = vector.extract_strided_slice %246 {offsets = [0, 0], sizes = [2, 32], strides = [1, 1]} : vector<2x64xf32> to vector<2x32xf32>
    %248 = vector.extract_strided_slice %246 {offsets = [0, 32], sizes = [2, 32], strides = [1, 1]} : vector<2x64xf32> to vector<2x32xf32>
    %249 = vector.extract_strided_slice %237 {offsets = [0, 64], sizes = [2, 32], strides = [1, 1]} : vector<2x96xf32> to vector<2x32xf32>
    %250 = vector.extract_strided_slice %238 {offsets = [0, 64], sizes = [2, 32], strides = [1, 1]} : vector<2x96xf32> to vector<2x32xf32>
    %251 = arith.addf %250, %209 : vector<2x32xf32>
    %252 = arith.mulf %247, %251 : vector<2x32xf32>
    %253 = arith.addf %249, %252 : vector<2x32xf32>
    %254 = math.tanh %253 : vector<2x32xf32>
    %255 = arith.subf %235, %254 : vector<2x32xf32>
    %256 = arith.mulf %248, %255 : vector<2x32xf32>
    %257 = arith.addf %254, %256 : vector<2x32xf32>
    %c2_54 = arith.constant 2 : index
    %c0_55 = arith.constant 0 : index
    %258 = vector.load %arg24[%c2_54, %c0_55] : memref<16x32xf32, #tpu.memory_space<vmem>>, vector<2x32xf32>
    tpu.vector_store %arg24[%c2_54, %c0_55], %257 {strides = array<i32>} : memref<16x32xf32, #tpu.memory_space<vmem>>, vector<2x32xf32>,
    %259 = vector.extract_strided_slice %213 {offsets = [4, 0], sizes = [2, 96], strides = [1, 1]} : vector<16x96xf32> to vector<2x96xf32>
    %cst_56 = arith.constant dense<0.000000e+00> : vector<2x96xf32>
    %260 = tpu.matmul %257, %205, %cst_56 {dimension_numbers = #tpu.dot_dimension_numbers<[1], [0], [0], [1], [0, 0, 1, 1], [], []>} : vector<2x32xf32>, vector<32x96xf32>, vector<2x96xf32> -> vector<2x96xf32>
    %261 = vector.extract_strided_slice %259 {offsets = [0, 0], sizes = [2, 64], strides = [1, 1]} : vector<2x96xf32> to vector<2x64xf32>
    %262 = vector.extract_strided_slice %260 {offsets = [0, 0], sizes = [2, 64], strides = [1, 1]} : vector<2x96xf32> to vector<2x64xf32>
    %263 = arith.addf %261, %262 : vector<2x64xf32>
    %264 = arith.negf %263 : vector<2x64xf32>
    %265 = math.exp %264 : vector<2x64xf32>
    %cst_57 = arith.constant 1.000000e+00 : f32
    %266 = vector.broadcast %cst_57 : f32 to vector<2x64xf32>
    %267 = arith.addf %266, %265 : vector<2x64xf32>
    %268 = arith.divf %266, %267 : vector<2x64xf32>
    %269 = vector.extract_strided_slice %268 {offsets = [0, 0], sizes = [2, 32], strides = [1, 1]} : vector<2x64xf32> to vector<2x32xf32>
    %270 = vector.extract_strided_slice %268 {offsets = [0, 32], sizes = [2, 32], strides = [1, 1]} : vector<2x64xf32> to vector<2x32xf32>
    %271 = vector.extract_strided_slice %259 {offsets = [0, 64], sizes = [2, 32], strides = [1, 1]} : vector<2x96xf32> to vector<2x32xf32>
    %272 = vector.extract_strided_slice %260 {offsets = [0, 64], sizes = [2, 32], strides = [1, 1]} : vector<2x96xf32> to vector<2x32xf32>
    %273 = arith.addf %272, %209 : vector<2x32xf32>
    %274 = arith.mulf %269, %273 : vector<2x32xf32>
    %275 = arith.addf %271, %274 : vector<2x32xf32>
    %276 = math.tanh %275 : vector<2x32xf32>
    %277 = arith.subf %257, %276 : vector<2x32xf32>
    %278 = arith.mulf %270, %277 : vector<2x32xf32>
    %279 = arith.addf %276, %278 : vector<2x32xf32>
    %c4_58 = arith.constant 4 : index
    %c0_59 = arith.constant 0 : index
    %280 = vector.load %arg24[%c4_58, %c0_59] : memref<16x32xf32, #tpu.memory_space<vmem>>, vector<2x32xf32>
    tpu.vector_store %arg24[%c4_58, %c0_59], %279 {strides = array<i32>} : memref<16x32xf32, #tpu.memory_space<vmem>>, vector<2x32xf32>,
    %281 = vector.extract_strided_slice %213 {offsets = [6, 0], sizes = [2, 96], strides = [1, 1]} : vector<16x96xf32> to vector<2x96xf32>
    %cst_60 = arith.constant dense<0.000000e+00> : vector<2x96xf32>
    %282 = tpu.matmul %279, %205, %cst_60 {dimension_numbers = #tpu.dot_dimension_numbers<[1], [0], [0], [1], [0, 0, 1, 1], [], []>} : vector<2x32xf32>, vector<32x96xf32>, vector<2x96xf32> -> vector<2x96xf32>
    %283 = vector.extract_strided_slice %281 {offsets = [0, 0], sizes = [2, 64], strides = [1, 1]} : vector<2x96xf32> to vector<2x64xf32>
    %284 = vector.extract_strided_slice %282 {offsets = [0, 0], sizes = [2, 64], strides = [1, 1]} : vector<2x96xf32> to vector<2x64xf32>
    %285 = arith.addf %283, %284 : vector<2x64xf32>
    %286 = arith.negf %285 : vector<2x64xf32>
    %287 = math.exp %286 : vector<2x64xf32>
    %cst_61 = arith.constant 1.000000e+00 : f32
    %288 = vector.broadcast %cst_61 : f32 to vector<2x64xf32>
    %289 = arith.addf %288, %287 : vector<2x64xf32>
    %290 = arith.divf %288, %289 : vector<2x64xf32>
    %291 = vector.extract_strided_slice %290 {offsets = [0, 0], sizes = [2, 32], strides = [1, 1]} : vector<2x64xf32> to vector<2x32xf32>
    %292 = vector.extract_strided_slice %290 {offsets = [0, 32], sizes = [2, 32], strides = [1, 1]} : vector<2x64xf32> to vector<2x32xf32>
    %293 = vector.extract_strided_slice %281 {offsets = [0, 64], sizes = [2, 32], strides = [1, 1]} : vector<2x96xf32> to vector<2x32xf32>
    %294 = vector.extract_strided_slice %282 {offsets = [0, 64], sizes = [2, 32], strides = [1, 1]} : vector<2x96xf32> to vector<2x32xf32>
    %295 = arith.addf %294, %209 : vector<2x32xf32>
    %296 = arith.mulf %291, %295 : vector<2x32xf32>
    %297 = arith.addf %293, %296 : vector<2x32xf32>
    %298 = math.tanh %297 : vector<2x32xf32>
    %299 = arith.subf %279, %298 : vector<2x32xf32>
    %300 = arith.mulf %292, %299 : vector<2x32xf32>
    %301 = arith.addf %298, %300 : vector<2x32xf32>
    %c6_62 = arith.constant 6 : index
    %c0_63 = arith.constant 0 : index
    %302 = vector.load %arg24[%c6_62, %c0_63] : memref<16x32xf32, #tpu.memory_space<vmem>>, vector<2x32xf32>
    tpu.vector_store %arg24[%c6_62, %c0_63], %301 {strides = array<i32>} : memref<16x32xf32, #tpu.memory_space<vmem>>, vector<2x32xf32>,
    %303 = vector.extract_strided_slice %213 {offsets = [8, 0], sizes = [2, 96], strides = [1, 1]} : vector<16x96xf32> to vector<2x96xf32>
    %cst_64 = arith.constant dense<0.000000e+00> : vector<2x96xf32>
    %304 = tpu.matmul %301, %205, %cst_64 {dimension_numbers = #tpu.dot_dimension_numbers<[1], [0], [0], [1], [0, 0, 1, 1], [], []>} : vector<2x32xf32>, vector<32x96xf32>, vector<2x96xf32> -> vector<2x96xf32>
    %305 = vector.extract_strided_slice %303 {offsets = [0, 0], sizes = [2, 64], strides = [1, 1]} : vector<2x96xf32> to vector<2x64xf32>
    %306 = vector.extract_strided_slice %304 {offsets = [0, 0], sizes = [2, 64], strides = [1, 1]} : vector<2x96xf32> to vector<2x64xf32>
    %307 = arith.addf %305, %306 : vector<2x64xf32>
    %308 = arith.negf %307 : vector<2x64xf32>
    %309 = math.exp %308 : vector<2x64xf32>
    %cst_65 = arith.constant 1.000000e+00 : f32
    %310 = vector.broadcast %cst_65 : f32 to vector<2x64xf32>
    %311 = arith.addf %310, %309 : vector<2x64xf32>
    %312 = arith.divf %310, %311 : vector<2x64xf32>
    %313 = vector.extract_strided_slice %312 {offsets = [0, 0], sizes = [2, 32], strides = [1, 1]} : vector<2x64xf32> to vector<2x32xf32>
    %314 = vector.extract_strided_slice %312 {offsets = [0, 32], sizes = [2, 32], strides = [1, 1]} : vector<2x64xf32> to vector<2x32xf32>
    %315 = vector.extract_strided_slice %303 {offsets = [0, 64], sizes = [2, 32], strides = [1, 1]} : vector<2x96xf32> to vector<2x32xf32>
    %316 = vector.extract_strided_slice %304 {offsets = [0, 64], sizes = [2, 32], strides = [1, 1]} : vector<2x96xf32> to vector<2x32xf32>
    %317 = arith.addf %316, %209 : vector<2x32xf32>
    %318 = arith.mulf %313, %317 : vector<2x32xf32>
    %319 = arith.addf %315, %318 : vector<2x32xf32>
    %320 = math.tanh %319 : vector<2x32xf32>
    %321 = arith.subf %301, %320 : vector<2x32xf32>
    %322 = arith.mulf %314, %321 : vector<2x32xf32>
    %323 = arith.addf %320, %322 : vector<2x32xf32>
    %c8_66 = arith.constant 8 : index
    %c0_67 = arith.constant 0 : index
    %324 = vector.load %arg24[%c8_66, %c0_67] : memref<16x32xf32, #tpu.memory_space<vmem>>, vector<2x32xf32>
    tpu.vector_store %arg24[%c8_66, %c0_67], %323 {strides = array<i32>} : memref<16x32xf32, #tpu.memory_space<vmem>>, vector<2x32xf32>,
    %325 = vector.extract_strided_slice %213 {offsets = [10, 0], sizes = [2, 96], strides = [1, 1]} : vector<16x96xf32> to vector<2x96xf32>
    %cst_68 = arith.constant dense<0.000000e+00> : vector<2x96xf32>
    %326 = tpu.matmul %323, %205, %cst_68 {dimension_numbers = #tpu.dot_dimension_numbers<[1], [0], [0], [1], [0, 0, 1, 1], [], []>} : vector<2x32xf32>, vector<32x96xf32>, vector<2x96xf32> -> vector<2x96xf32>
    %327 = vector.extract_strided_slice %325 {offsets = [0, 0], sizes = [2, 64], strides = [1, 1]} : vector<2x96xf32> to vector<2x64xf32>
    %328 = vector.extract_strided_slice %326 {offsets = [0, 0], sizes = [2, 64], strides = [1, 1]} : vector<2x96xf32> to vector<2x64xf32>
    %329 = arith.addf %327, %328 : vector<2x64xf32>
    %330 = arith.negf %329 : vector<2x64xf32>
    %331 = math.exp %330 : vector<2x64xf32>
    %cst_69 = arith.constant 1.000000e+00 : f32
    %332 = vector.broadcast %cst_69 : f32 to vector<2x64xf32>
    %333 = arith.addf %332, %331 : vector<2x64xf32>
    %334 = arith.divf %332, %333 : vector<2x64xf32>
    %335 = vector.extract_strided_slice %334 {offsets = [0, 0], sizes = [2, 32], strides = [1, 1]} : vector<2x64xf32> to vector<2x32xf32>
    %336 = vector.extract_strided_slice %334 {offsets = [0, 32], sizes = [2, 32], strides = [1, 1]} : vector<2x64xf32> to vector<2x32xf32>
    %337 = vector.extract_strided_slice %325 {offsets = [0, 64], sizes = [2, 32], strides = [1, 1]} : vector<2x96xf32> to vector<2x32xf32>
    %338 = vector.extract_strided_slice %326 {offsets = [0, 64], sizes = [2, 32], strides = [1, 1]} : vector<2x96xf32> to vector<2x32xf32>
    %339 = arith.addf %338, %209 : vector<2x32xf32>
    %340 = arith.mulf %335, %339 : vector<2x32xf32>
    %341 = arith.addf %337, %340 : vector<2x32xf32>
    %342 = math.tanh %341 : vector<2x32xf32>
    %343 = arith.subf %323, %342 : vector<2x32xf32>
    %344 = arith.mulf %336, %343 : vector<2x32xf32>
    %345 = arith.addf %342, %344 : vector<2x32xf32>
    %c10_70 = arith.constant 10 : index
    %c0_71 = arith.constant 0 : index
    %346 = vector.load %arg24[%c10_70, %c0_71] : memref<16x32xf32, #tpu.memory_space<vmem>>, vector<2x32xf32>
    tpu.vector_store %arg24[%c10_70, %c0_71], %345 {strides = array<i32>} : memref<16x32xf32, #tpu.memory_space<vmem>>, vector<2x32xf32>,
    %347 = vector.extract_strided_slice %213 {offsets = [12, 0], sizes = [2, 96], strides = [1, 1]} : vector<16x96xf32> to vector<2x96xf32>
    %cst_72 = arith.constant dense<0.000000e+00> : vector<2x96xf32>
    %348 = tpu.matmul %345, %205, %cst_72 {dimension_numbers = #tpu.dot_dimension_numbers<[1], [0], [0], [1], [0, 0, 1, 1], [], []>} : vector<2x32xf32>, vector<32x96xf32>, vector<2x96xf32> -> vector<2x96xf32>
    %349 = vector.extract_strided_slice %347 {offsets = [0, 0], sizes = [2, 64], strides = [1, 1]} : vector<2x96xf32> to vector<2x64xf32>
    %350 = vector.extract_strided_slice %348 {offsets = [0, 0], sizes = [2, 64], strides = [1, 1]} : vector<2x96xf32> to vector<2x64xf32>
    %351 = arith.addf %349, %350 : vector<2x64xf32>
    %352 = arith.negf %351 : vector<2x64xf32>
    %353 = math.exp %352 : vector<2x64xf32>
    %cst_73 = arith.constant 1.000000e+00 : f32
    %354 = vector.broadcast %cst_73 : f32 to vector<2x64xf32>
    %355 = arith.addf %354, %353 : vector<2x64xf32>
    %356 = arith.divf %354, %355 : vector<2x64xf32>
    %357 = vector.extract_strided_slice %356 {offsets = [0, 0], sizes = [2, 32], strides = [1, 1]} : vector<2x64xf32> to vector<2x32xf32>
    %358 = vector.extract_strided_slice %356 {offsets = [0, 32], sizes = [2, 32], strides = [1, 1]} : vector<2x64xf32> to vector<2x32xf32>
    %359 = vector.extract_strided_slice %347 {offsets = [0, 64], sizes = [2, 32], strides = [1, 1]} : vector<2x96xf32> to vector<2x32xf32>
    %360 = vector.extract_strided_slice %348 {offsets = [0, 64], sizes = [2, 32], strides = [1, 1]} : vector<2x96xf32> to vector<2x32xf32>
    %361 = arith.addf %360, %209 : vector<2x32xf32>
    %362 = arith.mulf %357, %361 : vector<2x32xf32>
    %363 = arith.addf %359, %362 : vector<2x32xf32>
    %364 = math.tanh %363 : vector<2x32xf32>
    %365 = arith.subf %345, %364 : vector<2x32xf32>
    %366 = arith.mulf %358, %365 : vector<2x32xf32>
    %367 = arith.addf %364, %366 : vector<2x32xf32>
    %c12_74 = arith.constant 12 : index
    %c0_75 = arith.constant 0 : index
    %368 = vector.load %arg24[%c12_74, %c0_75] : memref<16x32xf32, #tpu.memory_space<vmem>>, vector<2x32xf32>
    tpu.vector_store %arg24[%c12_74, %c0_75], %367 {strides = array<i32>} : memref<16x32xf32, #tpu.memory_space<vmem>>, vector<2x32xf32>,
    %369 = vector.extract_strided_slice %213 {offsets = [14, 0], sizes = [2, 96], strides = [1, 1]} : vector<16x96xf32> to vector<2x96xf32>
    %cst_76 = arith.constant dense<0.000000e+00> : vector<2x96xf32>
    %370 = tpu.matmul %367, %205, %cst_76 {dimension_numbers = #tpu.dot_dimension_numbers<[1], [0], [0], [1], [0, 0, 1, 1], [], []>} : vector<2x32xf32>, vector<32x96xf32>, vector<2x96xf32> -> vector<2x96xf32>
    %371 = vector.extract_strided_slice %369 {offsets = [0, 0], sizes = [2, 64], strides = [1, 1]} : vector<2x96xf32> to vector<2x64xf32>
    %372 = vector.extract_strided_slice %370 {offsets = [0, 0], sizes = [2, 64], strides = [1, 1]} : vector<2x96xf32> to vector<2x64xf32>
    %373 = arith.addf %371, %372 : vector<2x64xf32>
    %374 = arith.negf %373 : vector<2x64xf32>
    %375 = math.exp %374 : vector<2x64xf32>
    %cst_77 = arith.constant 1.000000e+00 : f32
    %376 = vector.broadcast %cst_77 : f32 to vector<2x64xf32>
    %377 = arith.addf %376, %375 : vector<2x64xf32>
    %378 = arith.divf %376, %377 : vector<2x64xf32>
    %379 = vector.extract_strided_slice %378 {offsets = [0, 0], sizes = [2, 32], strides = [1, 1]} : vector<2x64xf32> to vector<2x32xf32>
    %380 = vector.extract_strided_slice %378 {offsets = [0, 32], sizes = [2, 32], strides = [1, 1]} : vector<2x64xf32> to vector<2x32xf32>
    %381 = vector.extract_strided_slice %369 {offsets = [0, 64], sizes = [2, 32], strides = [1, 1]} : vector<2x96xf32> to vector<2x32xf32>
    %382 = vector.extract_strided_slice %370 {offsets = [0, 64], sizes = [2, 32], strides = [1, 1]} : vector<2x96xf32> to vector<2x32xf32>
    %383 = arith.addf %382, %209 : vector<2x32xf32>
    %384 = arith.mulf %379, %383 : vector<2x32xf32>
    %385 = arith.addf %381, %384 : vector<2x32xf32>
    %386 = math.tanh %385 : vector<2x32xf32>
    %387 = arith.subf %367, %386 : vector<2x32xf32>
    %388 = arith.mulf %380, %387 : vector<2x32xf32>
    %389 = arith.addf %386, %388 : vector<2x32xf32>
    %c14_78 = arith.constant 14 : index
    %c0_79 = arith.constant 0 : index
    %390 = vector.load %arg24[%c14_78, %c0_79] : memref<16x32xf32, #tpu.memory_space<vmem>>, vector<2x32xf32>
    tpu.vector_store %arg24[%c14_78, %c0_79], %389 {strides = array<i32>} : memref<16x32xf32, #tpu.memory_space<vmem>>, vector<2x32xf32>,
    %c0_80 = arith.constant 0 : index
    %c0_81 = arith.constant 0 : index
    %391 = vector.load %arg9[%c0_80, %c0_81] : memref<32x96xf32, #tpu.memory_space<vmem>>, vector<32x96xf32>
    %c0_82 = arith.constant 0 : index
    %c0_83 = arith.constant 0 : index
    %392 = vector.load %arg10[%c0_82, %c0_83] : memref<32x96xf32, #tpu.memory_space<vmem>>, vector<32x96xf32>
    %c0_84 = arith.constant 0 : index
    %c0_85 = arith.constant 0 : index
    %393 = vector.load %arg11[%c0_84, %c0_85] : memref<1x96xf32, #tpu.memory_space<vmem>>, vector<1x96xf32>
    %c0_86 = arith.constant 0 : index
    %c0_87 = arith.constant 0 : index
    %394 = vector.load %arg12[%c0_86, %c0_87] : memref<1x32xf32, #tpu.memory_space<vmem>>, vector<1x32xf32>
    %395 = vector.shape_cast %394 : vector<1x32xf32> to vector<1x32xf32>
    %396 = vector.broadcast %395 : vector<1x32xf32> to vector<2x32xf32>
    %c0_88 = arith.constant 0 : index
    %c0_89 = arith.constant 0 : index
    %397 = vector.load %arg24[%c0_88, %c0_89] : memref<16x32xf32, #tpu.memory_space<vmem>>, vector<16x32xf32>
    %cst_90 = arith.constant dense<0.000000e+00> : vector<16x96xf32>
    %398 = tpu.matmul %397, %391, %cst_90 {dimension_numbers = #tpu.dot_dimension_numbers<[1], [0], [0], [1], [0, 0, 1, 1], [], []>} : vector<16x32xf32>, vector<32x96xf32>, vector<16x96xf32> -> vector<16x96xf32>
    %399 = vector.broadcast %393 : vector<1x96xf32> to vector<16x96xf32>
    %400 = arith.addf %398, %399 : vector<16x96xf32>
    %cst_91 = arith.constant 0.000000e+00 : f32
    %401 = vector.broadcast %cst_91 : f32 to vector<2x32xf32>
    %402 = vector.extract_strided_slice %400 {offsets = [0, 0], sizes = [2, 96], strides = [1, 1]} : vector<16x96xf32> to vector<2x96xf32>
    %cst_92 = arith.constant dense<0.000000e+00> : vector<2x96xf32>
    %403 = tpu.matmul %401, %392, %cst_92 {dimension_numbers = #tpu.dot_dimension_numbers<[1], [0], [0], [1], [0, 0, 1, 1], [], []>} : vector<2x32xf32>, vector<32x96xf32>, vector<2x96xf32> -> vector<2x96xf32>
    %404 = vector.extract_strided_slice %402 {offsets = [0, 0], sizes = [2, 64], strides = [1, 1]} : vector<2x96xf32> to vector<2x64xf32>
    %405 = vector.extract_strided_slice %403 {offsets = [0, 0], sizes = [2, 64], strides = [1, 1]} : vector<2x96xf32> to vector<2x64xf32>
    %406 = arith.addf %404, %405 : vector<2x64xf32>
    %407 = arith.negf %406 : vector<2x64xf32>
    %408 = math.exp %407 : vector<2x64xf32>
    %cst_93 = arith.constant 1.000000e+00 : f32
    %409 = vector.broadcast %cst_93 : f32 to vector<2x64xf32>
    %410 = arith.addf %409, %408 : vector<2x64xf32>
    %411 = arith.divf %409, %410 : vector<2x64xf32>
    %412 = vector.extract_strided_slice %411 {offsets = [0, 0], sizes = [2, 32], strides = [1, 1]} : vector<2x64xf32> to vector<2x32xf32>
    %413 = vector.extract_strided_slice %411 {offsets = [0, 32], sizes = [2, 32], strides = [1, 1]} : vector<2x64xf32> to vector<2x32xf32>
    %414 = vector.extract_strided_slice %402 {offsets = [0, 64], sizes = [2, 32], strides = [1, 1]} : vector<2x96xf32> to vector<2x32xf32>
    %415 = vector.extract_strided_slice %403 {offsets = [0, 64], sizes = [2, 32], strides = [1, 1]} : vector<2x96xf32> to vector<2x32xf32>
    %416 = arith.addf %415, %396 : vector<2x32xf32>
    %417 = arith.mulf %412, %416 : vector<2x32xf32>
    %418 = arith.addf %414, %417 : vector<2x32xf32>
    %419 = math.tanh %418 : vector<2x32xf32>
    %420 = arith.subf %401, %419 : vector<2x32xf32>
    %421 = arith.mulf %413, %420 : vector<2x32xf32>
    %422 = arith.addf %419, %421 : vector<2x32xf32>
    %c0_94 = arith.constant 0 : index
    %c0_95 = arith.constant 0 : index
    %423 = vector.load %arg24[%c0_94, %c0_95] : memref<16x32xf32, #tpu.memory_space<vmem>>, vector<2x32xf32>
    tpu.vector_store %arg24[%c0_94, %c0_95], %422 {strides = array<i32>} : memref<16x32xf32, #tpu.memory_space<vmem>>, vector<2x32xf32>,
    %424 = vector.extract_strided_slice %400 {offsets = [2, 0], sizes = [2, 96], strides = [1, 1]} : vector<16x96xf32> to vector<2x96xf32>
    %cst_96 = arith.constant dense<0.000000e+00> : vector<2x96xf32>
    %425 = tpu.matmul %422, %392, %cst_96 {dimension_numbers = #tpu.dot_dimension_numbers<[1], [0], [0], [1], [0, 0, 1, 1], [], []>} : vector<2x32xf32>, vector<32x96xf32>, vector<2x96xf32> -> vector<2x96xf32>
    %426 = vector.extract_strided_slice %424 {offsets = [0, 0], sizes = [2, 64], strides = [1, 1]} : vector<2x96xf32> to vector<2x64xf32>
    %427 = vector.extract_strided_slice %425 {offsets = [0, 0], sizes = [2, 64], strides = [1, 1]} : vector<2x96xf32> to vector<2x64xf32>
    %428 = arith.addf %426, %427 : vector<2x64xf32>
    %429 = arith.negf %428 : vector<2x64xf32>
    %430 = math.exp %429 : vector<2x64xf32>
    %cst_97 = arith.constant 1.000000e+00 : f32
    %431 = vector.broadcast %cst_97 : f32 to vector<2x64xf32>
    %432 = arith.addf %431, %430 : vector<2x64xf32>
    %433 = arith.divf %431, %432 : vector<2x64xf32>
    %434 = vector.extract_strided_slice %433 {offsets = [0, 0], sizes = [2, 32], strides = [1, 1]} : vector<2x64xf32> to vector<2x32xf32>
    %435 = vector.extract_strided_slice %433 {offsets = [0, 32], sizes = [2, 32], strides = [1, 1]} : vector<2x64xf32> to vector<2x32xf32>
    %436 = vector.extract_strided_slice %424 {offsets = [0, 64], sizes = [2, 32], strides = [1, 1]} : vector<2x96xf32> to vector<2x32xf32>
    %437 = vector.extract_strided_slice %425 {offsets = [0, 64], sizes = [2, 32], strides = [1, 1]} : vector<2x96xf32> to vector<2x32xf32>
    %438 = arith.addf %437, %396 : vector<2x32xf32>
    %439 = arith.mulf %434, %438 : vector<2x32xf32>
    %440 = arith.addf %436, %439 : vector<2x32xf32>
    %441 = math.tanh %440 : vector<2x32xf32>
    %442 = arith.subf %422, %441 : vector<2x32xf32>
    %443 = arith.mulf %435, %442 : vector<2x32xf32>
    %444 = arith.addf %441, %443 : vector<2x32xf32>
    %c2_98 = arith.constant 2 : index
    %c0_99 = arith.constant 0 : index
    %445 = vector.load %arg24[%c2_98, %c0_99] : memref<16x32xf32, #tpu.memory_space<vmem>>, vector<2x32xf32>
    tpu.vector_store %arg24[%c2_98, %c0_99], %444 {strides = array<i32>} : memref<16x32xf32, #tpu.memory_space<vmem>>, vector<2x32xf32>,
    %446 = vector.extract_strided_slice %400 {offsets = [4, 0], sizes = [2, 96], strides = [1, 1]} : vector<16x96xf32> to vector<2x96xf32>
    %cst_100 = arith.constant dense<0.000000e+00> : vector<2x96xf32>
    %447 = tpu.matmul %444, %392, %cst_100 {dimension_numbers = #tpu.dot_dimension_numbers<[1], [0], [0], [1], [0, 0, 1, 1], [], []>} : vector<2x32xf32>, vector<32x96xf32>, vector<2x96xf32> -> vector<2x96xf32>
    %448 = vector.extract_strided_slice %446 {offsets = [0, 0], sizes = [2, 64], strides = [1, 1]} : vector<2x96xf32> to vector<2x64xf32>
    %449 = vector.extract_strided_slice %447 {offsets = [0, 0], sizes = [2, 64], strides = [1, 1]} : vector<2x96xf32> to vector<2x64xf32>
    %450 = arith.addf %448, %449 : vector<2x64xf32>
    %451 = arith.negf %450 : vector<2x64xf32>
    %452 = math.exp %451 : vector<2x64xf32>
    %cst_101 = arith.constant 1.000000e+00 : f32
    %453 = vector.broadcast %cst_101 : f32 to vector<2x64xf32>
    %454 = arith.addf %453, %452 : vector<2x64xf32>
    %455 = arith.divf %453, %454 : vector<2x64xf32>
    %456 = vector.extract_strided_slice %455 {offsets = [0, 0], sizes = [2, 32], strides = [1, 1]} : vector<2x64xf32> to vector<2x32xf32>
    %457 = vector.extract_strided_slice %455 {offsets = [0, 32], sizes = [2, 32], strides = [1, 1]} : vector<2x64xf32> to vector<2x32xf32>
    %458 = vector.extract_strided_slice %446 {offsets = [0, 64], sizes = [2, 32], strides = [1, 1]} : vector<2x96xf32> to vector<2x32xf32>
    %459 = vector.extract_strided_slice %447 {offsets = [0, 64], sizes = [2, 32], strides = [1, 1]} : vector<2x96xf32> to vector<2x32xf32>
    %460 = arith.addf %459, %396 : vector<2x32xf32>
    %461 = arith.mulf %456, %460 : vector<2x32xf32>
    %462 = arith.addf %458, %461 : vector<2x32xf32>
    %463 = math.tanh %462 : vector<2x32xf32>
    %464 = arith.subf %444, %463 : vector<2x32xf32>
    %465 = arith.mulf %457, %464 : vector<2x32xf32>
    %466 = arith.addf %463, %465 : vector<2x32xf32>
    %c4_102 = arith.constant 4 : index
    %c0_103 = arith.constant 0 : index
    %467 = vector.load %arg24[%c4_102, %c0_103] : memref<16x32xf32, #tpu.memory_space<vmem>>, vector<2x32xf32>
    tpu.vector_store %arg24[%c4_102, %c0_103], %466 {strides = array<i32>} : memref<16x32xf32, #tpu.memory_space<vmem>>, vector<2x32xf32>,
    %468 = vector.extract_strided_slice %400 {offsets = [6, 0], sizes = [2, 96], strides = [1, 1]} : vector<16x96xf32> to vector<2x96xf32>
    %cst_104 = arith.constant dense<0.000000e+00> : vector<2x96xf32>
    %469 = tpu.matmul %466, %392, %cst_104 {dimension_numbers = #tpu.dot_dimension_numbers<[1], [0], [0], [1], [0, 0, 1, 1], [], []>} : vector<2x32xf32>, vector<32x96xf32>, vector<2x96xf32> -> vector<2x96xf32>
    %470 = vector.extract_strided_slice %468 {offsets = [0, 0], sizes = [2, 64], strides = [1, 1]} : vector<2x96xf32> to vector<2x64xf32>
    %471 = vector.extract_strided_slice %469 {offsets = [0, 0], sizes = [2, 64], strides = [1, 1]} : vector<2x96xf32> to vector<2x64xf32>
    %472 = arith.addf %470, %471 : vector<2x64xf32>
    %473 = arith.negf %472 : vector<2x64xf32>
    %474 = math.exp %473 : vector<2x64xf32>
    %cst_105 = arith.constant 1.000000e+00 : f32
    %475 = vector.broadcast %cst_105 : f32 to vector<2x64xf32>
    %476 = arith.addf %475, %474 : vector<2x64xf32>
    %477 = arith.divf %475, %476 : vector<2x64xf32>
    %478 = vector.extract_strided_slice %477 {offsets = [0, 0], sizes = [2, 32], strides = [1, 1]} : vector<2x64xf32> to vector<2x32xf32>
    %479 = vector.extract_strided_slice %477 {offsets = [0, 32], sizes = [2, 32], strides = [1, 1]} : vector<2x64xf32> to vector<2x32xf32>
    %480 = vector.extract_strided_slice %468 {offsets = [0, 64], sizes = [2, 32], strides = [1, 1]} : vector<2x96xf32> to vector<2x32xf32>
    %481 = vector.extract_strided_slice %469 {offsets = [0, 64], sizes = [2, 32], strides = [1, 1]} : vector<2x96xf32> to vector<2x32xf32>
    %482 = arith.addf %481, %396 : vector<2x32xf32>
    %483 = arith.mulf %478, %482 : vector<2x32xf32>
    %484 = arith.addf %480, %483 : vector<2x32xf32>
    %485 = math.tanh %484 : vector<2x32xf32>
    %486 = arith.subf %466, %485 : vector<2x32xf32>
    %487 = arith.mulf %479, %486 : vector<2x32xf32>
    %488 = arith.addf %485, %487 : vector<2x32xf32>
    %c6_106 = arith.constant 6 : index
    %c0_107 = arith.constant 0 : index
    %489 = vector.load %arg24[%c6_106, %c0_107] : memref<16x32xf32, #tpu.memory_space<vmem>>, vector<2x32xf32>
    tpu.vector_store %arg24[%c6_106, %c0_107], %488 {strides = array<i32>} : memref<16x32xf32, #tpu.memory_space<vmem>>, vector<2x32xf32>,
    %490 = vector.extract_strided_slice %400 {offsets = [8, 0], sizes = [2, 96], strides = [1, 1]} : vector<16x96xf32> to vector<2x96xf32>
    %cst_108 = arith.constant dense<0.000000e+00> : vector<2x96xf32>
    %491 = tpu.matmul %488, %392, %cst_108 {dimension_numbers = #tpu.dot_dimension_numbers<[1], [0], [0], [1], [0, 0, 1, 1], [], []>} : vector<2x32xf32>, vector<32x96xf32>, vector<2x96xf32> -> vector<2x96xf32>
    %492 = vector.extract_strided_slice %490 {offsets = [0, 0], sizes = [2, 64], strides = [1, 1]} : vector<2x96xf32> to vector<2x64xf32>
    %493 = vector.extract_strided_slice %491 {offsets = [0, 0], sizes = [2, 64], strides = [1, 1]} : vector<2x96xf32> to vector<2x64xf32>
    %494 = arith.addf %492, %493 : vector<2x64xf32>
    %495 = arith.negf %494 : vector<2x64xf32>
    %496 = math.exp %495 : vector<2x64xf32>
    %cst_109 = arith.constant 1.000000e+00 : f32
    %497 = vector.broadcast %cst_109 : f32 to vector<2x64xf32>
    %498 = arith.addf %497, %496 : vector<2x64xf32>
    %499 = arith.divf %497, %498 : vector<2x64xf32>
    %500 = vector.extract_strided_slice %499 {offsets = [0, 0], sizes = [2, 32], strides = [1, 1]} : vector<2x64xf32> to vector<2x32xf32>
    %501 = vector.extract_strided_slice %499 {offsets = [0, 32], sizes = [2, 32], strides = [1, 1]} : vector<2x64xf32> to vector<2x32xf32>
    %502 = vector.extract_strided_slice %490 {offsets = [0, 64], sizes = [2, 32], strides = [1, 1]} : vector<2x96xf32> to vector<2x32xf32>
    %503 = vector.extract_strided_slice %491 {offsets = [0, 64], sizes = [2, 32], strides = [1, 1]} : vector<2x96xf32> to vector<2x32xf32>
    %504 = arith.addf %503, %396 : vector<2x32xf32>
    %505 = arith.mulf %500, %504 : vector<2x32xf32>
    %506 = arith.addf %502, %505 : vector<2x32xf32>
    %507 = math.tanh %506 : vector<2x32xf32>
    %508 = arith.subf %488, %507 : vector<2x32xf32>
    %509 = arith.mulf %501, %508 : vector<2x32xf32>
    %510 = arith.addf %507, %509 : vector<2x32xf32>
    %c8_110 = arith.constant 8 : index
    %c0_111 = arith.constant 0 : index
    %511 = vector.load %arg24[%c8_110, %c0_111] : memref<16x32xf32, #tpu.memory_space<vmem>>, vector<2x32xf32>
    tpu.vector_store %arg24[%c8_110, %c0_111], %510 {strides = array<i32>} : memref<16x32xf32, #tpu.memory_space<vmem>>, vector<2x32xf32>,
    %512 = vector.extract_strided_slice %400 {offsets = [10, 0], sizes = [2, 96], strides = [1, 1]} : vector<16x96xf32> to vector<2x96xf32>
    %cst_112 = arith.constant dense<0.000000e+00> : vector<2x96xf32>
    %513 = tpu.matmul %510, %392, %cst_112 {dimension_numbers = #tpu.dot_dimension_numbers<[1], [0], [0], [1], [0, 0, 1, 1], [], []>} : vector<2x32xf32>, vector<32x96xf32>, vector<2x96xf32> -> vector<2x96xf32>
    %514 = vector.extract_strided_slice %512 {offsets = [0, 0], sizes = [2, 64], strides = [1, 1]} : vector<2x96xf32> to vector<2x64xf32>
    %515 = vector.extract_strided_slice %513 {offsets = [0, 0], sizes = [2, 64], strides = [1, 1]} : vector<2x96xf32> to vector<2x64xf32>
    %516 = arith.addf %514, %515 : vector<2x64xf32>
    %517 = arith.negf %516 : vector<2x64xf32>
    %518 = math.exp %517 : vector<2x64xf32>
    %cst_113 = arith.constant 1.000000e+00 : f32
    %519 = vector.broadcast %cst_113 : f32 to vector<2x64xf32>
    %520 = arith.addf %519, %518 : vector<2x64xf32>
    %521 = arith.divf %519, %520 : vector<2x64xf32>
    %522 = vector.extract_strided_slice %521 {offsets = [0, 0], sizes = [2, 32], strides = [1, 1]} : vector<2x64xf32> to vector<2x32xf32>
    %523 = vector.extract_strided_slice %521 {offsets = [0, 32], sizes = [2, 32], strides = [1, 1]} : vector<2x64xf32> to vector<2x32xf32>
    %524 = vector.extract_strided_slice %512 {offsets = [0, 64], sizes = [2, 32], strides = [1, 1]} : vector<2x96xf32> to vector<2x32xf32>
    %525 = vector.extract_strided_slice %513 {offsets = [0, 64], sizes = [2, 32], strides = [1, 1]} : vector<2x96xf32> to vector<2x32xf32>
    %526 = arith.addf %525, %396 : vector<2x32xf32>
    %527 = arith.mulf %522, %526 : vector<2x32xf32>
    %528 = arith.addf %524, %527 : vector<2x32xf32>
    %529 = math.tanh %528 : vector<2x32xf32>
    %530 = arith.subf %510, %529 : vector<2x32xf32>
    %531 = arith.mulf %523, %530 : vector<2x32xf32>
    %532 = arith.addf %529, %531 : vector<2x32xf32>
    %c10_114 = arith.constant 10 : index
    %c0_115 = arith.constant 0 : index
    %533 = vector.load %arg24[%c10_114, %c0_115] : memref<16x32xf32, #tpu.memory_space<vmem>>, vector<2x32xf32>
    tpu.vector_store %arg24[%c10_114, %c0_115], %532 {strides = array<i32>} : memref<16x32xf32, #tpu.memory_space<vmem>>, vector<2x32xf32>,
    %534 = vector.extract_strided_slice %400 {offsets = [12, 0], sizes = [2, 96], strides = [1, 1]} : vector<16x96xf32> to vector<2x96xf32>
    %cst_116 = arith.constant dense<0.000000e+00> : vector<2x96xf32>
    %535 = tpu.matmul %532, %392, %cst_116 {dimension_numbers = #tpu.dot_dimension_numbers<[1], [0], [0], [1], [0, 0, 1, 1], [], []>} : vector<2x32xf32>, vector<32x96xf32>, vector<2x96xf32> -> vector<2x96xf32>
    %536 = vector.extract_strided_slice %534 {offsets = [0, 0], sizes = [2, 64], strides = [1, 1]} : vector<2x96xf32> to vector<2x64xf32>
    %537 = vector.extract_strided_slice %535 {offsets = [0, 0], sizes = [2, 64], strides = [1, 1]} : vector<2x96xf32> to vector<2x64xf32>
    %538 = arith.addf %536, %537 : vector<2x64xf32>
    %539 = arith.negf %538 : vector<2x64xf32>
    %540 = math.exp %539 : vector<2x64xf32>
    %cst_117 = arith.constant 1.000000e+00 : f32
    %541 = vector.broadcast %cst_117 : f32 to vector<2x64xf32>
    %542 = arith.addf %541, %540 : vector<2x64xf32>
    %543 = arith.divf %541, %542 : vector<2x64xf32>
    %544 = vector.extract_strided_slice %543 {offsets = [0, 0], sizes = [2, 32], strides = [1, 1]} : vector<2x64xf32> to vector<2x32xf32>
    %545 = vector.extract_strided_slice %543 {offsets = [0, 32], sizes = [2, 32], strides = [1, 1]} : vector<2x64xf32> to vector<2x32xf32>
    %546 = vector.extract_strided_slice %534 {offsets = [0, 64], sizes = [2, 32], strides = [1, 1]} : vector<2x96xf32> to vector<2x32xf32>
    %547 = vector.extract_strided_slice %535 {offsets = [0, 64], sizes = [2, 32], strides = [1, 1]} : vector<2x96xf32> to vector<2x32xf32>
    %548 = arith.addf %547, %396 : vector<2x32xf32>
    %549 = arith.mulf %544, %548 : vector<2x32xf32>
    %550 = arith.addf %546, %549 : vector<2x32xf32>
    %551 = math.tanh %550 : vector<2x32xf32>
    %552 = arith.subf %532, %551 : vector<2x32xf32>
    %553 = arith.mulf %545, %552 : vector<2x32xf32>
    %554 = arith.addf %551, %553 : vector<2x32xf32>
    %c12_118 = arith.constant 12 : index
    %c0_119 = arith.constant 0 : index
    %555 = vector.load %arg24[%c12_118, %c0_119] : memref<16x32xf32, #tpu.memory_space<vmem>>, vector<2x32xf32>
    tpu.vector_store %arg24[%c12_118, %c0_119], %554 {strides = array<i32>} : memref<16x32xf32, #tpu.memory_space<vmem>>, vector<2x32xf32>,
    %556 = vector.extract_strided_slice %400 {offsets = [14, 0], sizes = [2, 96], strides = [1, 1]} : vector<16x96xf32> to vector<2x96xf32>
    %cst_120 = arith.constant dense<0.000000e+00> : vector<2x96xf32>
    %557 = tpu.matmul %554, %392, %cst_120 {dimension_numbers = #tpu.dot_dimension_numbers<[1], [0], [0], [1], [0, 0, 1, 1], [], []>} : vector<2x32xf32>, vector<32x96xf32>, vector<2x96xf32> -> vector<2x96xf32>
    %558 = vector.extract_strided_slice %556 {offsets = [0, 0], sizes = [2, 64], strides = [1, 1]} : vector<2x96xf32> to vector<2x64xf32>
    %559 = vector.extract_strided_slice %557 {offsets = [0, 0], sizes = [2, 64], strides = [1, 1]} : vector<2x96xf32> to vector<2x64xf32>
    %560 = arith.addf %558, %559 : vector<2x64xf32>
    %561 = arith.negf %560 : vector<2x64xf32>
    %562 = math.exp %561 : vector<2x64xf32>
    %cst_121 = arith.constant 1.000000e+00 : f32
    %563 = vector.broadcast %cst_121 : f32 to vector<2x64xf32>
    %564 = arith.addf %563, %562 : vector<2x64xf32>
    %565 = arith.divf %563, %564 : vector<2x64xf32>
    %566 = vector.extract_strided_slice %565 {offsets = [0, 0], sizes = [2, 32], strides = [1, 1]} : vector<2x64xf32> to vector<2x32xf32>
    %567 = vector.extract_strided_slice %565 {offsets = [0, 32], sizes = [2, 32], strides = [1, 1]} : vector<2x64xf32> to vector<2x32xf32>
    %568 = vector.extract_strided_slice %556 {offsets = [0, 64], sizes = [2, 32], strides = [1, 1]} : vector<2x96xf32> to vector<2x32xf32>
    %569 = vector.extract_strided_slice %557 {offsets = [0, 64], sizes = [2, 32], strides = [1, 1]} : vector<2x96xf32> to vector<2x32xf32>
    %570 = arith.addf %569, %396 : vector<2x32xf32>
    %571 = arith.mulf %566, %570 : vector<2x32xf32>
    %572 = arith.addf %568, %571 : vector<2x32xf32>
    %573 = math.tanh %572 : vector<2x32xf32>
    %574 = arith.subf %554, %573 : vector<2x32xf32>
    %575 = arith.mulf %567, %574 : vector<2x32xf32>
    %576 = arith.addf %573, %575 : vector<2x32xf32>
    %c14_122 = arith.constant 14 : index
    %c0_123 = arith.constant 0 : index
    %577 = vector.load %arg24[%c14_122, %c0_123] : memref<16x32xf32, #tpu.memory_space<vmem>>, vector<2x32xf32>
    tpu.vector_store %arg24[%c14_122, %c0_123], %576 {strides = array<i32>} : memref<16x32xf32, #tpu.memory_space<vmem>>, vector<2x32xf32>,
    %c0_124 = arith.constant 0 : index
    %c0_125 = arith.constant 0 : index
    %578 = vector.load %arg13[%c0_124, %c0_125] : memref<32x96xf32, #tpu.memory_space<vmem>>, vector<32x96xf32>
    %c0_126 = arith.constant 0 : index
    %c0_127 = arith.constant 0 : index
    %579 = vector.load %arg14[%c0_126, %c0_127] : memref<32x96xf32, #tpu.memory_space<vmem>>, vector<32x96xf32>
    %c0_128 = arith.constant 0 : index
    %c0_129 = arith.constant 0 : index
    %580 = vector.load %arg15[%c0_128, %c0_129] : memref<1x96xf32, #tpu.memory_space<vmem>>, vector<1x96xf32>
    %c0_130 = arith.constant 0 : index
    %c0_131 = arith.constant 0 : index
    %581 = vector.load %arg16[%c0_130, %c0_131] : memref<1x32xf32, #tpu.memory_space<vmem>>, vector<1x32xf32>
    %582 = vector.shape_cast %581 : vector<1x32xf32> to vector<1x32xf32>
    %583 = vector.broadcast %582 : vector<1x32xf32> to vector<2x32xf32>
    %c0_132 = arith.constant 0 : index
    %c0_133 = arith.constant 0 : index
    %584 = vector.load %arg24[%c0_132, %c0_133] : memref<16x32xf32, #tpu.memory_space<vmem>>, vector<16x32xf32>
    %cst_134 = arith.constant dense<0.000000e+00> : vector<16x96xf32>
    %585 = tpu.matmul %584, %578, %cst_134 {dimension_numbers = #tpu.dot_dimension_numbers<[1], [0], [0], [1], [0, 0, 1, 1], [], []>} : vector<16x32xf32>, vector<32x96xf32>, vector<16x96xf32> -> vector<16x96xf32>
    %586 = vector.broadcast %580 : vector<1x96xf32> to vector<16x96xf32>
    %587 = arith.addf %585, %586 : vector<16x96xf32>
    %cst_135 = arith.constant 0.000000e+00 : f32
    %588 = vector.broadcast %cst_135 : f32 to vector<2x32xf32>
    %589 = vector.extract_strided_slice %587 {offsets = [0, 0], sizes = [2, 96], strides = [1, 1]} : vector<16x96xf32> to vector<2x96xf32>
    %cst_136 = arith.constant dense<0.000000e+00> : vector<2x96xf32>
    %590 = tpu.matmul %588, %579, %cst_136 {dimension_numbers = #tpu.dot_dimension_numbers<[1], [0], [0], [1], [0, 0, 1, 1], [], []>} : vector<2x32xf32>, vector<32x96xf32>, vector<2x96xf32> -> vector<2x96xf32>
    %591 = vector.extract_strided_slice %589 {offsets = [0, 0], sizes = [2, 64], strides = [1, 1]} : vector<2x96xf32> to vector<2x64xf32>
    %592 = vector.extract_strided_slice %590 {offsets = [0, 0], sizes = [2, 64], strides = [1, 1]} : vector<2x96xf32> to vector<2x64xf32>
    %593 = arith.addf %591, %592 : vector<2x64xf32>
    %594 = arith.negf %593 : vector<2x64xf32>
    %595 = math.exp %594 : vector<2x64xf32>
    %cst_137 = arith.constant 1.000000e+00 : f32
    %596 = vector.broadcast %cst_137 : f32 to vector<2x64xf32>
    %597 = arith.addf %596, %595 : vector<2x64xf32>
    %598 = arith.divf %596, %597 : vector<2x64xf32>
    %599 = vector.extract_strided_slice %598 {offsets = [0, 0], sizes = [2, 32], strides = [1, 1]} : vector<2x64xf32> to vector<2x32xf32>
    %600 = vector.extract_strided_slice %598 {offsets = [0, 32], sizes = [2, 32], strides = [1, 1]} : vector<2x64xf32> to vector<2x32xf32>
    %601 = vector.extract_strided_slice %589 {offsets = [0, 64], sizes = [2, 32], strides = [1, 1]} : vector<2x96xf32> to vector<2x32xf32>
    %602 = vector.extract_strided_slice %590 {offsets = [0, 64], sizes = [2, 32], strides = [1, 1]} : vector<2x96xf32> to vector<2x32xf32>
    %603 = arith.addf %602, %583 : vector<2x32xf32>
    %604 = arith.mulf %599, %603 : vector<2x32xf32>
    %605 = arith.addf %601, %604 : vector<2x32xf32>
    %606 = math.tanh %605 : vector<2x32xf32>
    %607 = arith.subf %588, %606 : vector<2x32xf32>
    %608 = arith.mulf %600, %607 : vector<2x32xf32>
    %609 = arith.addf %606, %608 : vector<2x32xf32>
    %c0_138 = arith.constant 0 : index
    %c0_139 = arith.constant 0 : index
    %610 = vector.load %arg24[%c0_138, %c0_139] : memref<16x32xf32, #tpu.memory_space<vmem>>, vector<2x32xf32>
    tpu.vector_store %arg24[%c0_138, %c0_139], %609 {strides = array<i32>} : memref<16x32xf32, #tpu.memory_space<vmem>>, vector<2x32xf32>,
    %611 = vector.extract_strided_slice %587 {offsets = [2, 0], sizes = [2, 96], strides = [1, 1]} : vector<16x96xf32> to vector<2x96xf32>
    %cst_140 = arith.constant dense<0.000000e+00> : vector<2x96xf32>
    %612 = tpu.matmul %609, %579, %cst_140 {dimension_numbers = #tpu.dot_dimension_numbers<[1], [0], [0], [1], [0, 0, 1, 1], [], []>} : vector<2x32xf32>, vector<32x96xf32>, vector<2x96xf32> -> vector<2x96xf32>
    %613 = vector.extract_strided_slice %611 {offsets = [0, 0], sizes = [2, 64], strides = [1, 1]} : vector<2x96xf32> to vector<2x64xf32>
    %614 = vector.extract_strided_slice %612 {offsets = [0, 0], sizes = [2, 64], strides = [1, 1]} : vector<2x96xf32> to vector<2x64xf32>
    %615 = arith.addf %613, %614 : vector<2x64xf32>
    %616 = arith.negf %615 : vector<2x64xf32>
    %617 = math.exp %616 : vector<2x64xf32>
    %cst_141 = arith.constant 1.000000e+00 : f32
    %618 = vector.broadcast %cst_141 : f32 to vector<2x64xf32>
    %619 = arith.addf %618, %617 : vector<2x64xf32>
    %620 = arith.divf %618, %619 : vector<2x64xf32>
    %621 = vector.extract_strided_slice %620 {offsets = [0, 0], sizes = [2, 32], strides = [1, 1]} : vector<2x64xf32> to vector<2x32xf32>
    %622 = vector.extract_strided_slice %620 {offsets = [0, 32], sizes = [2, 32], strides = [1, 1]} : vector<2x64xf32> to vector<2x32xf32>
    %623 = vector.extract_strided_slice %611 {offsets = [0, 64], sizes = [2, 32], strides = [1, 1]} : vector<2x96xf32> to vector<2x32xf32>
    %624 = vector.extract_strided_slice %612 {offsets = [0, 64], sizes = [2, 32], strides = [1, 1]} : vector<2x96xf32> to vector<2x32xf32>
    %625 = arith.addf %624, %583 : vector<2x32xf32>
    %626 = arith.mulf %621, %625 : vector<2x32xf32>
    %627 = arith.addf %623, %626 : vector<2x32xf32>
    %628 = math.tanh %627 : vector<2x32xf32>
    %629 = arith.subf %609, %628 : vector<2x32xf32>
    %630 = arith.mulf %622, %629 : vector<2x32xf32>
    %631 = arith.addf %628, %630 : vector<2x32xf32>
    %c2_142 = arith.constant 2 : index
    %c0_143 = arith.constant 0 : index
    %632 = vector.load %arg24[%c2_142, %c0_143] : memref<16x32xf32, #tpu.memory_space<vmem>>, vector<2x32xf32>
    tpu.vector_store %arg24[%c2_142, %c0_143], %631 {strides = array<i32>} : memref<16x32xf32, #tpu.memory_space<vmem>>, vector<2x32xf32>,
    %633 = vector.extract_strided_slice %587 {offsets = [4, 0], sizes = [2, 96], strides = [1, 1]} : vector<16x96xf32> to vector<2x96xf32>
    %cst_144 = arith.constant dense<0.000000e+00> : vector<2x96xf32>
    %634 = tpu.matmul %631, %579, %cst_144 {dimension_numbers = #tpu.dot_dimension_numbers<[1], [0], [0], [1], [0, 0, 1, 1], [], []>} : vector<2x32xf32>, vector<32x96xf32>, vector<2x96xf32> -> vector<2x96xf32>
    %635 = vector.extract_strided_slice %633 {offsets = [0, 0], sizes = [2, 64], strides = [1, 1]} : vector<2x96xf32> to vector<2x64xf32>
    %636 = vector.extract_strided_slice %634 {offsets = [0, 0], sizes = [2, 64], strides = [1, 1]} : vector<2x96xf32> to vector<2x64xf32>
    %637 = arith.addf %635, %636 : vector<2x64xf32>
    %638 = arith.negf %637 : vector<2x64xf32>
    %639 = math.exp %638 : vector<2x64xf32>
    %cst_145 = arith.constant 1.000000e+00 : f32
    %640 = vector.broadcast %cst_145 : f32 to vector<2x64xf32>
    %641 = arith.addf %640, %639 : vector<2x64xf32>
    %642 = arith.divf %640, %641 : vector<2x64xf32>
    %643 = vector.extract_strided_slice %642 {offsets = [0, 0], sizes = [2, 32], strides = [1, 1]} : vector<2x64xf32> to vector<2x32xf32>
    %644 = vector.extract_strided_slice %642 {offsets = [0, 32], sizes = [2, 32], strides = [1, 1]} : vector<2x64xf32> to vector<2x32xf32>
    %645 = vector.extract_strided_slice %633 {offsets = [0, 64], sizes = [2, 32], strides = [1, 1]} : vector<2x96xf32> to vector<2x32xf32>
    %646 = vector.extract_strided_slice %634 {offsets = [0, 64], sizes = [2, 32], strides = [1, 1]} : vector<2x96xf32> to vector<2x32xf32>
    %647 = arith.addf %646, %583 : vector<2x32xf32>
    %648 = arith.mulf %643, %647 : vector<2x32xf32>
    %649 = arith.addf %645, %648 : vector<2x32xf32>
    %650 = math.tanh %649 : vector<2x32xf32>
    %651 = arith.subf %631, %650 : vector<2x32xf32>
    %652 = arith.mulf %644, %651 : vector<2x32xf32>
    %653 = arith.addf %650, %652 : vector<2x32xf32>
    %c4_146 = arith.constant 4 : index
    %c0_147 = arith.constant 0 : index
    %654 = vector.load %arg24[%c4_146, %c0_147] : memref<16x32xf32, #tpu.memory_space<vmem>>, vector<2x32xf32>
    tpu.vector_store %arg24[%c4_146, %c0_147], %653 {strides = array<i32>} : memref<16x32xf32, #tpu.memory_space<vmem>>, vector<2x32xf32>,
    %655 = vector.extract_strided_slice %587 {offsets = [6, 0], sizes = [2, 96], strides = [1, 1]} : vector<16x96xf32> to vector<2x96xf32>
    %cst_148 = arith.constant dense<0.000000e+00> : vector<2x96xf32>
    %656 = tpu.matmul %653, %579, %cst_148 {dimension_numbers = #tpu.dot_dimension_numbers<[1], [0], [0], [1], [0, 0, 1, 1], [], []>} : vector<2x32xf32>, vector<32x96xf32>, vector<2x96xf32> -> vector<2x96xf32>
    %657 = vector.extract_strided_slice %655 {offsets = [0, 0], sizes = [2, 64], strides = [1, 1]} : vector<2x96xf32> to vector<2x64xf32>
    %658 = vector.extract_strided_slice %656 {offsets = [0, 0], sizes = [2, 64], strides = [1, 1]} : vector<2x96xf32> to vector<2x64xf32>
    %659 = arith.addf %657, %658 : vector<2x64xf32>
    %660 = arith.negf %659 : vector<2x64xf32>
    %661 = math.exp %660 : vector<2x64xf32>
    %cst_149 = arith.constant 1.000000e+00 : f32
    %662 = vector.broadcast %cst_149 : f32 to vector<2x64xf32>
    %663 = arith.addf %662, %661 : vector<2x64xf32>
    %664 = arith.divf %662, %663 : vector<2x64xf32>
    %665 = vector.extract_strided_slice %664 {offsets = [0, 0], sizes = [2, 32], strides = [1, 1]} : vector<2x64xf32> to vector<2x32xf32>
    %666 = vector.extract_strided_slice %664 {offsets = [0, 32], sizes = [2, 32], strides = [1, 1]} : vector<2x64xf32> to vector<2x32xf32>
    %667 = vector.extract_strided_slice %655 {offsets = [0, 64], sizes = [2, 32], strides = [1, 1]} : vector<2x96xf32> to vector<2x32xf32>
    %668 = vector.extract_strided_slice %656 {offsets = [0, 64], sizes = [2, 32], strides = [1, 1]} : vector<2x96xf32> to vector<2x32xf32>
    %669 = arith.addf %668, %583 : vector<2x32xf32>
    %670 = arith.mulf %665, %669 : vector<2x32xf32>
    %671 = arith.addf %667, %670 : vector<2x32xf32>
    %672 = math.tanh %671 : vector<2x32xf32>
    %673 = arith.subf %653, %672 : vector<2x32xf32>
    %674 = arith.mulf %666, %673 : vector<2x32xf32>
    %675 = arith.addf %672, %674 : vector<2x32xf32>
    %c6_150 = arith.constant 6 : index
    %c0_151 = arith.constant 0 : index
    %676 = vector.load %arg24[%c6_150, %c0_151] : memref<16x32xf32, #tpu.memory_space<vmem>>, vector<2x32xf32>
    tpu.vector_store %arg24[%c6_150, %c0_151], %675 {strides = array<i32>} : memref<16x32xf32, #tpu.memory_space<vmem>>, vector<2x32xf32>,
    %677 = vector.extract_strided_slice %587 {offsets = [8, 0], sizes = [2, 96], strides = [1, 1]} : vector<16x96xf32> to vector<2x96xf32>
    %cst_152 = arith.constant dense<0.000000e+00> : vector<2x96xf32>
    %678 = tpu.matmul %675, %579, %cst_152 {dimension_numbers = #tpu.dot_dimension_numbers<[1], [0], [0], [1], [0, 0, 1, 1], [], []>} : vector<2x32xf32>, vector<32x96xf32>, vector<2x96xf32> -> vector<2x96xf32>
    %679 = vector.extract_strided_slice %677 {offsets = [0, 0], sizes = [2, 64], strides = [1, 1]} : vector<2x96xf32> to vector<2x64xf32>
    %680 = vector.extract_strided_slice %678 {offsets = [0, 0], sizes = [2, 64], strides = [1, 1]} : vector<2x96xf32> to vector<2x64xf32>
    %681 = arith.addf %679, %680 : vector<2x64xf32>
    %682 = arith.negf %681 : vector<2x64xf32>
    %683 = math.exp %682 : vector<2x64xf32>
    %cst_153 = arith.constant 1.000000e+00 : f32
    %684 = vector.broadcast %cst_153 : f32 to vector<2x64xf32>
    %685 = arith.addf %684, %683 : vector<2x64xf32>
    %686 = arith.divf %684, %685 : vector<2x64xf32>
    %687 = vector.extract_strided_slice %686 {offsets = [0, 0], sizes = [2, 32], strides = [1, 1]} : vector<2x64xf32> to vector<2x32xf32>
    %688 = vector.extract_strided_slice %686 {offsets = [0, 32], sizes = [2, 32], strides = [1, 1]} : vector<2x64xf32> to vector<2x32xf32>
    %689 = vector.extract_strided_slice %677 {offsets = [0, 64], sizes = [2, 32], strides = [1, 1]} : vector<2x96xf32> to vector<2x32xf32>
    %690 = vector.extract_strided_slice %678 {offsets = [0, 64], sizes = [2, 32], strides = [1, 1]} : vector<2x96xf32> to vector<2x32xf32>
    %691 = arith.addf %690, %583 : vector<2x32xf32>
    %692 = arith.mulf %687, %691 : vector<2x32xf32>
    %693 = arith.addf %689, %692 : vector<2x32xf32>
    %694 = math.tanh %693 : vector<2x32xf32>
    %695 = arith.subf %675, %694 : vector<2x32xf32>
    %696 = arith.mulf %688, %695 : vector<2x32xf32>
    %697 = arith.addf %694, %696 : vector<2x32xf32>
    %c8_154 = arith.constant 8 : index
    %c0_155 = arith.constant 0 : index
    %698 = vector.load %arg24[%c8_154, %c0_155] : memref<16x32xf32, #tpu.memory_space<vmem>>, vector<2x32xf32>
    tpu.vector_store %arg24[%c8_154, %c0_155], %697 {strides = array<i32>} : memref<16x32xf32, #tpu.memory_space<vmem>>, vector<2x32xf32>,
    %699 = vector.extract_strided_slice %587 {offsets = [10, 0], sizes = [2, 96], strides = [1, 1]} : vector<16x96xf32> to vector<2x96xf32>
    %cst_156 = arith.constant dense<0.000000e+00> : vector<2x96xf32>
    %700 = tpu.matmul %697, %579, %cst_156 {dimension_numbers = #tpu.dot_dimension_numbers<[1], [0], [0], [1], [0, 0, 1, 1], [], []>} : vector<2x32xf32>, vector<32x96xf32>, vector<2x96xf32> -> vector<2x96xf32>
    %701 = vector.extract_strided_slice %699 {offsets = [0, 0], sizes = [2, 64], strides = [1, 1]} : vector<2x96xf32> to vector<2x64xf32>
    %702 = vector.extract_strided_slice %700 {offsets = [0, 0], sizes = [2, 64], strides = [1, 1]} : vector<2x96xf32> to vector<2x64xf32>
    %703 = arith.addf %701, %702 : vector<2x64xf32>
    %704 = arith.negf %703 : vector<2x64xf32>
    %705 = math.exp %704 : vector<2x64xf32>
    %cst_157 = arith.constant 1.000000e+00 : f32
    %706 = vector.broadcast %cst_157 : f32 to vector<2x64xf32>
    %707 = arith.addf %706, %705 : vector<2x64xf32>
    %708 = arith.divf %706, %707 : vector<2x64xf32>
    %709 = vector.extract_strided_slice %708 {offsets = [0, 0], sizes = [2, 32], strides = [1, 1]} : vector<2x64xf32> to vector<2x32xf32>
    %710 = vector.extract_strided_slice %708 {offsets = [0, 32], sizes = [2, 32], strides = [1, 1]} : vector<2x64xf32> to vector<2x32xf32>
    %711 = vector.extract_strided_slice %699 {offsets = [0, 64], sizes = [2, 32], strides = [1, 1]} : vector<2x96xf32> to vector<2x32xf32>
    %712 = vector.extract_strided_slice %700 {offsets = [0, 64], sizes = [2, 32], strides = [1, 1]} : vector<2x96xf32> to vector<2x32xf32>
    %713 = arith.addf %712, %583 : vector<2x32xf32>
    %714 = arith.mulf %709, %713 : vector<2x32xf32>
    %715 = arith.addf %711, %714 : vector<2x32xf32>
    %716 = math.tanh %715 : vector<2x32xf32>
    %717 = arith.subf %697, %716 : vector<2x32xf32>
    %718 = arith.mulf %710, %717 : vector<2x32xf32>
    %719 = arith.addf %716, %718 : vector<2x32xf32>
    %c10_158 = arith.constant 10 : index
    %c0_159 = arith.constant 0 : index
    %720 = vector.load %arg24[%c10_158, %c0_159] : memref<16x32xf32, #tpu.memory_space<vmem>>, vector<2x32xf32>
    tpu.vector_store %arg24[%c10_158, %c0_159], %719 {strides = array<i32>} : memref<16x32xf32, #tpu.memory_space<vmem>>, vector<2x32xf32>,
    %721 = vector.extract_strided_slice %587 {offsets = [12, 0], sizes = [2, 96], strides = [1, 1]} : vector<16x96xf32> to vector<2x96xf32>
    %cst_160 = arith.constant dense<0.000000e+00> : vector<2x96xf32>
    %722 = tpu.matmul %719, %579, %cst_160 {dimension_numbers = #tpu.dot_dimension_numbers<[1], [0], [0], [1], [0, 0, 1, 1], [], []>} : vector<2x32xf32>, vector<32x96xf32>, vector<2x96xf32> -> vector<2x96xf32>
    %723 = vector.extract_strided_slice %721 {offsets = [0, 0], sizes = [2, 64], strides = [1, 1]} : vector<2x96xf32> to vector<2x64xf32>
    %724 = vector.extract_strided_slice %722 {offsets = [0, 0], sizes = [2, 64], strides = [1, 1]} : vector<2x96xf32> to vector<2x64xf32>
    %725 = arith.addf %723, %724 : vector<2x64xf32>
    %726 = arith.negf %725 : vector<2x64xf32>
    %727 = math.exp %726 : vector<2x64xf32>
    %cst_161 = arith.constant 1.000000e+00 : f32
    %728 = vector.broadcast %cst_161 : f32 to vector<2x64xf32>
    %729 = arith.addf %728, %727 : vector<2x64xf32>
    %730 = arith.divf %728, %729 : vector<2x64xf32>
    %731 = vector.extract_strided_slice %730 {offsets = [0, 0], sizes = [2, 32], strides = [1, 1]} : vector<2x64xf32> to vector<2x32xf32>
    %732 = vector.extract_strided_slice %730 {offsets = [0, 32], sizes = [2, 32], strides = [1, 1]} : vector<2x64xf32> to vector<2x32xf32>
    %733 = vector.extract_strided_slice %721 {offsets = [0, 64], sizes = [2, 32], strides = [1, 1]} : vector<2x96xf32> to vector<2x32xf32>
    %734 = vector.extract_strided_slice %722 {offsets = [0, 64], sizes = [2, 32], strides = [1, 1]} : vector<2x96xf32> to vector<2x32xf32>
    %735 = arith.addf %734, %583 : vector<2x32xf32>
    %736 = arith.mulf %731, %735 : vector<2x32xf32>
    %737 = arith.addf %733, %736 : vector<2x32xf32>
    %738 = math.tanh %737 : vector<2x32xf32>
    %739 = arith.subf %719, %738 : vector<2x32xf32>
    %740 = arith.mulf %732, %739 : vector<2x32xf32>
    %741 = arith.addf %738, %740 : vector<2x32xf32>
    %c12_162 = arith.constant 12 : index
    %c0_163 = arith.constant 0 : index
    %742 = vector.load %arg24[%c12_162, %c0_163] : memref<16x32xf32, #tpu.memory_space<vmem>>, vector<2x32xf32>
    tpu.vector_store %arg24[%c12_162, %c0_163], %741 {strides = array<i32>} : memref<16x32xf32, #tpu.memory_space<vmem>>, vector<2x32xf32>,
    %743 = vector.extract_strided_slice %587 {offsets = [14, 0], sizes = [2, 96], strides = [1, 1]} : vector<16x96xf32> to vector<2x96xf32>
    %cst_164 = arith.constant dense<0.000000e+00> : vector<2x96xf32>
    %744 = tpu.matmul %741, %579, %cst_164 {dimension_numbers = #tpu.dot_dimension_numbers<[1], [0], [0], [1], [0, 0, 1, 1], [], []>} : vector<2x32xf32>, vector<32x96xf32>, vector<2x96xf32> -> vector<2x96xf32>
    %745 = vector.extract_strided_slice %743 {offsets = [0, 0], sizes = [2, 64], strides = [1, 1]} : vector<2x96xf32> to vector<2x64xf32>
    %746 = vector.extract_strided_slice %744 {offsets = [0, 0], sizes = [2, 64], strides = [1, 1]} : vector<2x96xf32> to vector<2x64xf32>
    %747 = arith.addf %745, %746 : vector<2x64xf32>
    %748 = arith.negf %747 : vector<2x64xf32>
    %749 = math.exp %748 : vector<2x64xf32>
    %cst_165 = arith.constant 1.000000e+00 : f32
    %750 = vector.broadcast %cst_165 : f32 to vector<2x64xf32>
    %751 = arith.addf %750, %749 : vector<2x64xf32>
    %752 = arith.divf %750, %751 : vector<2x64xf32>
    %753 = vector.extract_strided_slice %752 {offsets = [0, 0], sizes = [2, 32], strides = [1, 1]} : vector<2x64xf32> to vector<2x32xf32>
    %754 = vector.extract_strided_slice %752 {offsets = [0, 32], sizes = [2, 32], strides = [1, 1]} : vector<2x64xf32> to vector<2x32xf32>
    %755 = vector.extract_strided_slice %743 {offsets = [0, 64], sizes = [2, 32], strides = [1, 1]} : vector<2x96xf32> to vector<2x32xf32>
    %756 = vector.extract_strided_slice %744 {offsets = [0, 64], sizes = [2, 32], strides = [1, 1]} : vector<2x96xf32> to vector<2x32xf32>
    %757 = arith.addf %756, %583 : vector<2x32xf32>
    %758 = arith.mulf %753, %757 : vector<2x32xf32>
    %759 = arith.addf %755, %758 : vector<2x32xf32>
    %760 = math.tanh %759 : vector<2x32xf32>
    %761 = arith.subf %741, %760 : vector<2x32xf32>
    %762 = arith.mulf %754, %761 : vector<2x32xf32>
    %763 = arith.addf %760, %762 : vector<2x32xf32>
    %c14_166 = arith.constant 14 : index
    %c0_167 = arith.constant 0 : index
    %764 = vector.load %arg24[%c14_166, %c0_167] : memref<16x32xf32, #tpu.memory_space<vmem>>, vector<2x32xf32>
    tpu.vector_store %arg24[%c14_166, %c0_167], %763 {strides = array<i32>} : memref<16x32xf32, #tpu.memory_space<vmem>>, vector<2x32xf32>,
    %c0_168 = arith.constant 0 : index
    %c0_169 = arith.constant 0 : index
    %765 = vector.load %arg17[%c0_168, %c0_169] : memref<32x96xf32, #tpu.memory_space<vmem>>, vector<32x96xf32>
    %c0_170 = arith.constant 0 : index
    %c0_171 = arith.constant 0 : index
    %766 = vector.load %arg18[%c0_170, %c0_171] : memref<32x96xf32, #tpu.memory_space<vmem>>, vector<32x96xf32>
    %c0_172 = arith.constant 0 : index
    %c0_173 = arith.constant 0 : index
    %767 = vector.load %arg19[%c0_172, %c0_173] : memref<1x96xf32, #tpu.memory_space<vmem>>, vector<1x96xf32>
    %c0_174 = arith.constant 0 : index
    %c0_175 = arith.constant 0 : index
    %768 = vector.load %arg20[%c0_174, %c0_175] : memref<1x32xf32, #tpu.memory_space<vmem>>, vector<1x32xf32>
    %769 = vector.shape_cast %768 : vector<1x32xf32> to vector<1x32xf32>
    %770 = vector.broadcast %769 : vector<1x32xf32> to vector<2x32xf32>
    %c0_176 = arith.constant 0 : index
    %c0_177 = arith.constant 0 : index
    %771 = vector.load %arg24[%c0_176, %c0_177] : memref<16x32xf32, #tpu.memory_space<vmem>>, vector<16x32xf32>
    %cst_178 = arith.constant dense<0.000000e+00> : vector<16x96xf32>
    %772 = tpu.matmul %771, %765, %cst_178 {dimension_numbers = #tpu.dot_dimension_numbers<[1], [0], [0], [1], [0, 0, 1, 1], [], []>} : vector<16x32xf32>, vector<32x96xf32>, vector<16x96xf32> -> vector<16x96xf32>
    %773 = vector.broadcast %767 : vector<1x96xf32> to vector<16x96xf32>
    %774 = arith.addf %772, %773 : vector<16x96xf32>
    %cst_179 = arith.constant 0.000000e+00 : f32
    %775 = vector.broadcast %cst_179 : f32 to vector<2x32xf32>
    %776 = vector.extract_strided_slice %774 {offsets = [0, 0], sizes = [2, 96], strides = [1, 1]} : vector<16x96xf32> to vector<2x96xf32>
    %cst_180 = arith.constant dense<0.000000e+00> : vector<2x96xf32>
    %777 = tpu.matmul %775, %766, %cst_180 {dimension_numbers = #tpu.dot_dimension_numbers<[1], [0], [0], [1], [0, 0, 1, 1], [], []>} : vector<2x32xf32>, vector<32x96xf32>, vector<2x96xf32> -> vector<2x96xf32>
    %778 = vector.extract_strided_slice %776 {offsets = [0, 0], sizes = [2, 64], strides = [1, 1]} : vector<2x96xf32> to vector<2x64xf32>
    %779 = vector.extract_strided_slice %777 {offsets = [0, 0], sizes = [2, 64], strides = [1, 1]} : vector<2x96xf32> to vector<2x64xf32>
    %780 = arith.addf %778, %779 : vector<2x64xf32>
    %781 = arith.negf %780 : vector<2x64xf32>
    %782 = math.exp %781 : vector<2x64xf32>
    %cst_181 = arith.constant 1.000000e+00 : f32
    %783 = vector.broadcast %cst_181 : f32 to vector<2x64xf32>
    %784 = arith.addf %783, %782 : vector<2x64xf32>
    %785 = arith.divf %783, %784 : vector<2x64xf32>
    %786 = vector.extract_strided_slice %785 {offsets = [0, 0], sizes = [2, 32], strides = [1, 1]} : vector<2x64xf32> to vector<2x32xf32>
    %787 = vector.extract_strided_slice %785 {offsets = [0, 32], sizes = [2, 32], strides = [1, 1]} : vector<2x64xf32> to vector<2x32xf32>
    %788 = vector.extract_strided_slice %776 {offsets = [0, 64], sizes = [2, 32], strides = [1, 1]} : vector<2x96xf32> to vector<2x32xf32>
    %789 = vector.extract_strided_slice %777 {offsets = [0, 64], sizes = [2, 32], strides = [1, 1]} : vector<2x96xf32> to vector<2x32xf32>
    %790 = arith.addf %789, %770 : vector<2x32xf32>
    %791 = arith.mulf %786, %790 : vector<2x32xf32>
    %792 = arith.addf %788, %791 : vector<2x32xf32>
    %793 = math.tanh %792 : vector<2x32xf32>
    %794 = arith.subf %775, %793 : vector<2x32xf32>
    %795 = arith.mulf %787, %794 : vector<2x32xf32>
    %796 = arith.addf %793, %795 : vector<2x32xf32>
    %797 = vector.extract_strided_slice %774 {offsets = [2, 0], sizes = [2, 96], strides = [1, 1]} : vector<16x96xf32> to vector<2x96xf32>
    %cst_182 = arith.constant dense<0.000000e+00> : vector<2x96xf32>
    %798 = tpu.matmul %796, %766, %cst_182 {dimension_numbers = #tpu.dot_dimension_numbers<[1], [0], [0], [1], [0, 0, 1, 1], [], []>} : vector<2x32xf32>, vector<32x96xf32>, vector<2x96xf32> -> vector<2x96xf32>
    %799 = vector.extract_strided_slice %797 {offsets = [0, 0], sizes = [2, 64], strides = [1, 1]} : vector<2x96xf32> to vector<2x64xf32>
    %800 = vector.extract_strided_slice %798 {offsets = [0, 0], sizes = [2, 64], strides = [1, 1]} : vector<2x96xf32> to vector<2x64xf32>
    %801 = arith.addf %799, %800 : vector<2x64xf32>
    %802 = arith.negf %801 : vector<2x64xf32>
    %803 = math.exp %802 : vector<2x64xf32>
    %cst_183 = arith.constant 1.000000e+00 : f32
    %804 = vector.broadcast %cst_183 : f32 to vector<2x64xf32>
    %805 = arith.addf %804, %803 : vector<2x64xf32>
    %806 = arith.divf %804, %805 : vector<2x64xf32>
    %807 = vector.extract_strided_slice %806 {offsets = [0, 0], sizes = [2, 32], strides = [1, 1]} : vector<2x64xf32> to vector<2x32xf32>
    %808 = vector.extract_strided_slice %806 {offsets = [0, 32], sizes = [2, 32], strides = [1, 1]} : vector<2x64xf32> to vector<2x32xf32>
    %809 = vector.extract_strided_slice %797 {offsets = [0, 64], sizes = [2, 32], strides = [1, 1]} : vector<2x96xf32> to vector<2x32xf32>
    %810 = vector.extract_strided_slice %798 {offsets = [0, 64], sizes = [2, 32], strides = [1, 1]} : vector<2x96xf32> to vector<2x32xf32>
    %811 = arith.addf %810, %770 : vector<2x32xf32>
    %812 = arith.mulf %807, %811 : vector<2x32xf32>
    %813 = arith.addf %809, %812 : vector<2x32xf32>
    %814 = math.tanh %813 : vector<2x32xf32>
    %815 = arith.subf %796, %814 : vector<2x32xf32>
    %816 = arith.mulf %808, %815 : vector<2x32xf32>
    %817 = arith.addf %814, %816 : vector<2x32xf32>
    %818 = vector.extract_strided_slice %774 {offsets = [4, 0], sizes = [2, 96], strides = [1, 1]} : vector<16x96xf32> to vector<2x96xf32>
    %cst_184 = arith.constant dense<0.000000e+00> : vector<2x96xf32>
    %819 = tpu.matmul %817, %766, %cst_184 {dimension_numbers = #tpu.dot_dimension_numbers<[1], [0], [0], [1], [0, 0, 1, 1], [], []>} : vector<2x32xf32>, vector<32x96xf32>, vector<2x96xf32> -> vector<2x96xf32>
    %820 = vector.extract_strided_slice %818 {offsets = [0, 0], sizes = [2, 64], strides = [1, 1]} : vector<2x96xf32> to vector<2x64xf32>
    %821 = vector.extract_strided_slice %819 {offsets = [0, 0], sizes = [2, 64], strides = [1, 1]} : vector<2x96xf32> to vector<2x64xf32>
    %822 = arith.addf %820, %821 : vector<2x64xf32>
    %823 = arith.negf %822 : vector<2x64xf32>
    %824 = math.exp %823 : vector<2x64xf32>
    %cst_185 = arith.constant 1.000000e+00 : f32
    %825 = vector.broadcast %cst_185 : f32 to vector<2x64xf32>
    %826 = arith.addf %825, %824 : vector<2x64xf32>
    %827 = arith.divf %825, %826 : vector<2x64xf32>
    %828 = vector.extract_strided_slice %827 {offsets = [0, 0], sizes = [2, 32], strides = [1, 1]} : vector<2x64xf32> to vector<2x32xf32>
    %829 = vector.extract_strided_slice %827 {offsets = [0, 32], sizes = [2, 32], strides = [1, 1]} : vector<2x64xf32> to vector<2x32xf32>
    %830 = vector.extract_strided_slice %818 {offsets = [0, 64], sizes = [2, 32], strides = [1, 1]} : vector<2x96xf32> to vector<2x32xf32>
    %831 = vector.extract_strided_slice %819 {offsets = [0, 64], sizes = [2, 32], strides = [1, 1]} : vector<2x96xf32> to vector<2x32xf32>
    %832 = arith.addf %831, %770 : vector<2x32xf32>
    %833 = arith.mulf %828, %832 : vector<2x32xf32>
    %834 = arith.addf %830, %833 : vector<2x32xf32>
    %835 = math.tanh %834 : vector<2x32xf32>
    %836 = arith.subf %817, %835 : vector<2x32xf32>
    %837 = arith.mulf %829, %836 : vector<2x32xf32>
    %838 = arith.addf %835, %837 : vector<2x32xf32>
    %839 = vector.extract_strided_slice %774 {offsets = [6, 0], sizes = [2, 96], strides = [1, 1]} : vector<16x96xf32> to vector<2x96xf32>
    %cst_186 = arith.constant dense<0.000000e+00> : vector<2x96xf32>
    %840 = tpu.matmul %838, %766, %cst_186 {dimension_numbers = #tpu.dot_dimension_numbers<[1], [0], [0], [1], [0, 0, 1, 1], [], []>} : vector<2x32xf32>, vector<32x96xf32>, vector<2x96xf32> -> vector<2x96xf32>
    %841 = vector.extract_strided_slice %839 {offsets = [0, 0], sizes = [2, 64], strides = [1, 1]} : vector<2x96xf32> to vector<2x64xf32>
    %842 = vector.extract_strided_slice %840 {offsets = [0, 0], sizes = [2, 64], strides = [1, 1]} : vector<2x96xf32> to vector<2x64xf32>
    %843 = arith.addf %841, %842 : vector<2x64xf32>
    %844 = arith.negf %843 : vector<2x64xf32>
    %845 = math.exp %844 : vector<2x64xf32>
    %cst_187 = arith.constant 1.000000e+00 : f32
    %846 = vector.broadcast %cst_187 : f32 to vector<2x64xf32>
    %847 = arith.addf %846, %845 : vector<2x64xf32>
    %848 = arith.divf %846, %847 : vector<2x64xf32>
    %849 = vector.extract_strided_slice %848 {offsets = [0, 0], sizes = [2, 32], strides = [1, 1]} : vector<2x64xf32> to vector<2x32xf32>
    %850 = vector.extract_strided_slice %848 {offsets = [0, 32], sizes = [2, 32], strides = [1, 1]} : vector<2x64xf32> to vector<2x32xf32>
    %851 = vector.extract_strided_slice %839 {offsets = [0, 64], sizes = [2, 32], strides = [1, 1]} : vector<2x96xf32> to vector<2x32xf32>
    %852 = vector.extract_strided_slice %840 {offsets = [0, 64], sizes = [2, 32], strides = [1, 1]} : vector<2x96xf32> to vector<2x32xf32>
    %853 = arith.addf %852, %770 : vector<2x32xf32>
    %854 = arith.mulf %849, %853 : vector<2x32xf32>
    %855 = arith.addf %851, %854 : vector<2x32xf32>
    %856 = math.tanh %855 : vector<2x32xf32>
    %857 = arith.subf %838, %856 : vector<2x32xf32>
    %858 = arith.mulf %850, %857 : vector<2x32xf32>
    %859 = arith.addf %856, %858 : vector<2x32xf32>
    %860 = vector.extract_strided_slice %774 {offsets = [8, 0], sizes = [2, 96], strides = [1, 1]} : vector<16x96xf32> to vector<2x96xf32>
    %cst_188 = arith.constant dense<0.000000e+00> : vector<2x96xf32>
    %861 = tpu.matmul %859, %766, %cst_188 {dimension_numbers = #tpu.dot_dimension_numbers<[1], [0], [0], [1], [0, 0, 1, 1], [], []>} : vector<2x32xf32>, vector<32x96xf32>, vector<2x96xf32> -> vector<2x96xf32>
    %862 = vector.extract_strided_slice %860 {offsets = [0, 0], sizes = [2, 64], strides = [1, 1]} : vector<2x96xf32> to vector<2x64xf32>
    %863 = vector.extract_strided_slice %861 {offsets = [0, 0], sizes = [2, 64], strides = [1, 1]} : vector<2x96xf32> to vector<2x64xf32>
    %864 = arith.addf %862, %863 : vector<2x64xf32>
    %865 = arith.negf %864 : vector<2x64xf32>
    %866 = math.exp %865 : vector<2x64xf32>
    %cst_189 = arith.constant 1.000000e+00 : f32
    %867 = vector.broadcast %cst_189 : f32 to vector<2x64xf32>
    %868 = arith.addf %867, %866 : vector<2x64xf32>
    %869 = arith.divf %867, %868 : vector<2x64xf32>
    %870 = vector.extract_strided_slice %869 {offsets = [0, 0], sizes = [2, 32], strides = [1, 1]} : vector<2x64xf32> to vector<2x32xf32>
    %871 = vector.extract_strided_slice %869 {offsets = [0, 32], sizes = [2, 32], strides = [1, 1]} : vector<2x64xf32> to vector<2x32xf32>
    %872 = vector.extract_strided_slice %860 {offsets = [0, 64], sizes = [2, 32], strides = [1, 1]} : vector<2x96xf32> to vector<2x32xf32>
    %873 = vector.extract_strided_slice %861 {offsets = [0, 64], sizes = [2, 32], strides = [1, 1]} : vector<2x96xf32> to vector<2x32xf32>
    %874 = arith.addf %873, %770 : vector<2x32xf32>
    %875 = arith.mulf %870, %874 : vector<2x32xf32>
    %876 = arith.addf %872, %875 : vector<2x32xf32>
    %877 = math.tanh %876 : vector<2x32xf32>
    %878 = arith.subf %859, %877 : vector<2x32xf32>
    %879 = arith.mulf %871, %878 : vector<2x32xf32>
    %880 = arith.addf %877, %879 : vector<2x32xf32>
    %881 = vector.extract_strided_slice %774 {offsets = [10, 0], sizes = [2, 96], strides = [1, 1]} : vector<16x96xf32> to vector<2x96xf32>
    %cst_190 = arith.constant dense<0.000000e+00> : vector<2x96xf32>
    %882 = tpu.matmul %880, %766, %cst_190 {dimension_numbers = #tpu.dot_dimension_numbers<[1], [0], [0], [1], [0, 0, 1, 1], [], []>} : vector<2x32xf32>, vector<32x96xf32>, vector<2x96xf32> -> vector<2x96xf32>
    %883 = vector.extract_strided_slice %881 {offsets = [0, 0], sizes = [2, 64], strides = [1, 1]} : vector<2x96xf32> to vector<2x64xf32>
    %884 = vector.extract_strided_slice %882 {offsets = [0, 0], sizes = [2, 64], strides = [1, 1]} : vector<2x96xf32> to vector<2x64xf32>
    %885 = arith.addf %883, %884 : vector<2x64xf32>
    %886 = arith.negf %885 : vector<2x64xf32>
    %887 = math.exp %886 : vector<2x64xf32>
    %cst_191 = arith.constant 1.000000e+00 : f32
    %888 = vector.broadcast %cst_191 : f32 to vector<2x64xf32>
    %889 = arith.addf %888, %887 : vector<2x64xf32>
    %890 = arith.divf %888, %889 : vector<2x64xf32>
    %891 = vector.extract_strided_slice %890 {offsets = [0, 0], sizes = [2, 32], strides = [1, 1]} : vector<2x64xf32> to vector<2x32xf32>
    %892 = vector.extract_strided_slice %890 {offsets = [0, 32], sizes = [2, 32], strides = [1, 1]} : vector<2x64xf32> to vector<2x32xf32>
    %893 = vector.extract_strided_slice %881 {offsets = [0, 64], sizes = [2, 32], strides = [1, 1]} : vector<2x96xf32> to vector<2x32xf32>
    %894 = vector.extract_strided_slice %882 {offsets = [0, 64], sizes = [2, 32], strides = [1, 1]} : vector<2x96xf32> to vector<2x32xf32>
    %895 = arith.addf %894, %770 : vector<2x32xf32>
    %896 = arith.mulf %891, %895 : vector<2x32xf32>
    %897 = arith.addf %893, %896 : vector<2x32xf32>
    %898 = math.tanh %897 : vector<2x32xf32>
    %899 = arith.subf %880, %898 : vector<2x32xf32>
    %900 = arith.mulf %892, %899 : vector<2x32xf32>
    %901 = arith.addf %898, %900 : vector<2x32xf32>
    %902 = vector.extract_strided_slice %774 {offsets = [12, 0], sizes = [2, 96], strides = [1, 1]} : vector<16x96xf32> to vector<2x96xf32>
    %cst_192 = arith.constant dense<0.000000e+00> : vector<2x96xf32>
    %903 = tpu.matmul %901, %766, %cst_192 {dimension_numbers = #tpu.dot_dimension_numbers<[1], [0], [0], [1], [0, 0, 1, 1], [], []>} : vector<2x32xf32>, vector<32x96xf32>, vector<2x96xf32> -> vector<2x96xf32>
    %904 = vector.extract_strided_slice %902 {offsets = [0, 0], sizes = [2, 64], strides = [1, 1]} : vector<2x96xf32> to vector<2x64xf32>
    %905 = vector.extract_strided_slice %903 {offsets = [0, 0], sizes = [2, 64], strides = [1, 1]} : vector<2x96xf32> to vector<2x64xf32>
    %906 = arith.addf %904, %905 : vector<2x64xf32>
    %907 = arith.negf %906 : vector<2x64xf32>
    %908 = math.exp %907 : vector<2x64xf32>
    %cst_193 = arith.constant 1.000000e+00 : f32
    %909 = vector.broadcast %cst_193 : f32 to vector<2x64xf32>
    %910 = arith.addf %909, %908 : vector<2x64xf32>
    %911 = arith.divf %909, %910 : vector<2x64xf32>
    %912 = vector.extract_strided_slice %911 {offsets = [0, 0], sizes = [2, 32], strides = [1, 1]} : vector<2x64xf32> to vector<2x32xf32>
    %913 = vector.extract_strided_slice %911 {offsets = [0, 32], sizes = [2, 32], strides = [1, 1]} : vector<2x64xf32> to vector<2x32xf32>
    %914 = vector.extract_strided_slice %902 {offsets = [0, 64], sizes = [2, 32], strides = [1, 1]} : vector<2x96xf32> to vector<2x32xf32>
    %915 = vector.extract_strided_slice %903 {offsets = [0, 64], sizes = [2, 32], strides = [1, 1]} : vector<2x96xf32> to vector<2x32xf32>
    %916 = arith.addf %915, %770 : vector<2x32xf32>
    %917 = arith.mulf %912, %916 : vector<2x32xf32>
    %918 = arith.addf %914, %917 : vector<2x32xf32>
    %919 = math.tanh %918 : vector<2x32xf32>
    %920 = arith.subf %901, %919 : vector<2x32xf32>
    %921 = arith.mulf %913, %920 : vector<2x32xf32>
    %922 = arith.addf %919, %921 : vector<2x32xf32>
    %923 = vector.extract_strided_slice %774 {offsets = [14, 0], sizes = [2, 96], strides = [1, 1]} : vector<16x96xf32> to vector<2x96xf32>
    %cst_194 = arith.constant dense<0.000000e+00> : vector<2x96xf32>
    %924 = tpu.matmul %922, %766, %cst_194 {dimension_numbers = #tpu.dot_dimension_numbers<[1], [0], [0], [1], [0, 0, 1, 1], [], []>} : vector<2x32xf32>, vector<32x96xf32>, vector<2x96xf32> -> vector<2x96xf32>
    %925 = vector.extract_strided_slice %923 {offsets = [0, 0], sizes = [2, 64], strides = [1, 1]} : vector<2x96xf32> to vector<2x64xf32>
    %926 = vector.extract_strided_slice %924 {offsets = [0, 0], sizes = [2, 64], strides = [1, 1]} : vector<2x96xf32> to vector<2x64xf32>
    %927 = arith.addf %925, %926 : vector<2x64xf32>
    %928 = arith.negf %927 : vector<2x64xf32>
    %929 = math.exp %928 : vector<2x64xf32>
    %cst_195 = arith.constant 1.000000e+00 : f32
    %930 = vector.broadcast %cst_195 : f32 to vector<2x64xf32>
    %931 = arith.addf %930, %929 : vector<2x64xf32>
    %932 = arith.divf %930, %931 : vector<2x64xf32>
    %933 = vector.extract_strided_slice %932 {offsets = [0, 0], sizes = [2, 32], strides = [1, 1]} : vector<2x64xf32> to vector<2x32xf32>
    %934 = vector.extract_strided_slice %932 {offsets = [0, 32], sizes = [2, 32], strides = [1, 1]} : vector<2x64xf32> to vector<2x32xf32>
    %935 = vector.extract_strided_slice %923 {offsets = [0, 64], sizes = [2, 32], strides = [1, 1]} : vector<2x96xf32> to vector<2x32xf32>
    %936 = vector.extract_strided_slice %924 {offsets = [0, 64], sizes = [2, 32], strides = [1, 1]} : vector<2x96xf32> to vector<2x32xf32>
    %937 = arith.addf %936, %770 : vector<2x32xf32>
    %938 = arith.mulf %933, %937 : vector<2x32xf32>
    %939 = arith.addf %935, %938 : vector<2x32xf32>
    %940 = math.tanh %939 : vector<2x32xf32>
    %941 = arith.subf %922, %940 : vector<2x32xf32>
    %942 = arith.mulf %934, %941 : vector<2x32xf32>
    %943 = arith.addf %940, %942 : vector<2x32xf32>
    %c0_196 = arith.constant 0 : index
    %c0_197 = arith.constant 0 : index
    %944 = vector.load %arg21[%c0_196, %c0_197] : memref<32x1xf32, #tpu.memory_space<vmem>>, vector<32x1xf32>
    %cst_198 = arith.constant dense<0.000000e+00> : vector<2x1xf32>
    %945 = tpu.matmul %943, %944, %cst_198 {dimension_numbers = #tpu.dot_dimension_numbers<[1], [0], [0], [1], [0, 0, 1, 1], [], []>} : vector<2x32xf32>, vector<32x1xf32>, vector<2x1xf32> -> vector<2x1xf32>
    %c0_199 = arith.constant 0 : index
    %c0_200 = arith.constant 0 : index
    %946 = vector.load %arg22[%c0_199, %c0_200] : memref<1x1xf32, #tpu.memory_space<vmem>>, vector<1x1xf32>
    %947 = vector.broadcast %946 : vector<1x1xf32> to vector<2x1xf32>
    %948 = arith.addf %945, %947 : vector<2x1xf32>
    %c0_201 = arith.constant 0 : index
    %c0_202 = arith.constant 0 : index
    %949 = vector.load %arg23[%c0_201, %c0_202] : memref<2x1xf32, #tpu.memory_space<vmem>>, vector<2x1xf32>
    tpu.vector_store %arg23[%c0_201, %c0_202], %948 {strides = array<i32>} : memref<2x1xf32, #tpu.memory_space<vmem>>, vector<2x1xf32>,
    return
  }
}

</mosaic_0001>

<llo_original>
// kernel: _gru_model_forward.1
$region0: #{_gru_model_forward.1}
  #allocation0 [shape = 'u32[]', space=smem, size = 0x4, offset = 0x4, fixed_abs, tag = 'smem constant byte address 0x4 - core index']
  #allocation1 [shape = 'u32[144,128]{1,0:T(1,128)}', space=vmem, size = 0x12000, scoped, tag = 'internal scratch']
  #allocation2 [shape = 'f32[16,32]{1,0:T(8,128)}', space=vmem, size = 0x2000, scoped, tag = 'scratch operand']
  #allocation3 [shape = 'f32[1,1]{1,0:T(1,128)S(1)}', space=vmem, size = 0x200, scoped, tag = 'scoped memory for _gru_model_forward.1']
  %s0 = inlined_call_operand.hbm [shape: f32[2,8,8], index: 0, kind: input, shape index: {}]
  %s1 = inlined_call_operand.hbm [shape: f32[8,96], index: 1, kind: input, shape index: {}]
  %s2 = inlined_call_operand.vmem [shape: f32[32,96], index: 2, kind: input, shape index: {}]
  %s3 = inlined_call_operand.vmem [shape: f32[1,96], index: 3, kind: input, shape index: {}]
  %s4 = inlined_call_operand.hbm [shape: f32[1,32], index: 4, kind: input, shape index: {}]
  %s5 = inlined_call_operand.vmem [shape: f32[32,96], index: 5, kind: input, shape index: {}]
  %s6 = inlined_call_operand.hbm [shape: f32[32,96], index: 6, kind: input, shape index: {}]
  %s7 = inlined_call_operand.hbm [shape: f32[1,96], index: 7, kind: input, shape index: {}]
  %s8 = inlined_call_operand.hbm [shape: f32[1,32], index: 8, kind: input, shape index: {}]
  %s9 = inlined_call_operand.hbm [shape: f32[32,96], index: 9, kind: input, shape index: {}]
  %s10 = inlined_call_operand.hbm [shape: f32[32,96], index: 10, kind: input, shape index: {}]
  %s11 = inlined_call_operand.hbm [shape: f32[1,96], index: 11, kind: input, shape index: {}]
  %s12 = inlined_call_operand.hbm [shape: f32[1,32], index: 12, kind: input, shape index: {}]
  %s13 = inlined_call_operand.vmem [shape: f32[32,96], index: 13, kind: input, shape index: {}]
  %s14 = inlined_call_operand.hbm [shape: f32[32,96], index: 14, kind: input, shape index: {}]
  %s15 = inlined_call_operand.hbm [shape: f32[1,96], index: 15, kind: input, shape index: {}]
  %s16 = inlined_call_operand.hbm [shape: f32[1,32], index: 16, kind: input, shape index: {}]
  %s17 = inlined_call_operand.hbm [shape: f32[32,96], index: 17, kind: input, shape index: {}]
  %s18 = inlined_call_operand.hbm [shape: f32[32,96], index: 18, kind: input, shape index: {}]
  %s19 = inlined_call_operand.vmem [shape: f32[1,96], index: 19, kind: input, shape index: {}]
  %s20 = inlined_call_operand.vmem [shape: f32[1,32], index: 20, kind: input, shape index: {}]
  %s21 = inlined_call_operand.vmem [shape: f32[32,1], index: 21, kind: input, shape index: {}]
  %s22 = inlined_call_operand.<no memory space> [shape: f32[1,1], index: 22, kind: input, shape index: {}]
  %s23 = inlined_call_operand.vmem [shape: f32[2,1], index: 23, kind: output, shape index: {}]
  %s24 = sld [smem:[#allocation0]]
  $region162: #{_gru_model_forward.1} parent=0
    _
  %s26 = ssub.s32 1, %s24
  %s27 = scalar_select 0, %s26, %s24
  %v28 = vstv %s22
  %29 = vst [vmem:[#allocation3] sm:$0x1] %v28
  $region1: #{_gru_model_forward.1} parent=0
    #allocation4 [shape = 'u8[8192]{0}', space=vmem, size = 0x2000, scoped, tag = 'input window, operand 0, single buffered']
    #allocation5 [shape = 's32[1]{0}', space=sflag, size = 0x4, scoped, tag = 'scoped memory for _gru_model_forward.1']
    #allocation6 [shape = 'u8[4096]{0}', space=vmem, size = 0x1000, scoped, tag = 'input window, operand 1, single buffered']
    #allocation7 [shape = 's32[1]{0}', space=sflag, size = 0x4, scoped, tag = 'scoped memory for _gru_model_forward.1']
    #allocation8 [shape = 'u8[512]{0}', space=vmem, size = 0x400, scoped, tag = 'input window, operand 4, single buffered']
    #allocation9 [shape = 'u8[16384]{0}', space=vmem, size = 0x4000, scoped, tag = 'input window, operand 6, single buffered']
    #allocation10 [shape = 's32[1]{0}', space=sflag, size = 0x4, scoped, tag = 'scoped memory for _gru_model_forward.1']
    #allocation11 [shape = 'u8[512]{0}', space=vmem, size = 0x400, scoped, tag = 'input window, operand 7, single buffered']
    #allocation12 [shape = 'u8[512]{0}', space=vmem, size = 0x400, scoped, tag = 'input window, operand 8, single buffered']
    #allocation13 [shape = 's32[1]{0}', space=sflag, size = 0x4, scoped, tag = 'scoped memory for _gru_model_forward.1']
    #allocation14 [shape = 'u8[16384]{0}', space=vmem, size = 0x4000, scoped, tag = 'input window, operand 9, single buffered']
    #allocation15 [shape = 'u8[16384]{0}', space=vmem, size = 0x4000, scoped, tag = 'input window, operand 10, single buffered']
    #allocation16 [shape = 's32[1]{0}', space=sflag, size = 0x4, scoped, tag = 'scoped memory for _gru_model_forward.1']
    #allocation17 [shape = 'u8[512]{0}', space=vmem, size = 0x400, scoped, tag = 'input window, operand 11, single buffered']
    #allocation18 [shape = 'u8[512]{0}', space=vmem, size = 0x400, scoped, tag = 'input window, operand 12, single buffered']
    #allocation19 [shape = 's32[1]{0}', space=sflag, size = 0x4, scoped, tag = 'scoped memory for _gru_model_forward.1']
    #allocation20 [shape = 'u8[16384]{0}', space=vmem, size = 0x4000, scoped, tag = 'input window, operand 14, single buffered']
    #allocation21 [shape = 'u8[512]{0}', space=vmem, size = 0x400, scoped, tag = 'input window, operand 15, single buffered']
    #allocation22 [shape = 's32[1]{0}', space=sflag, size = 0x4, scoped, tag = 'scoped memory for _gru_model_forward.1']
    #allocation23 [shape = 'u8[512]{0}', space=vmem, size = 0x400, scoped, tag = 'input window, operand 16, single buffered']
    #allocation24 [shape = 'u8[16384]{0}', space=vmem, size = 0x4000, scoped, tag = 'input window, operand 17, single buffered']
    #allocation25 [shape = 's32[1]{0}', space=sflag, size = 0x4, scoped, tag = 'scoped memory for _gru_model_forward.1']
    #allocation26 [shape = 'u8[16384]{0}', space=vmem, size = 0x4000, scoped, tag = 'input window, operand 18, single buffered']
    %30 = vsyncpa [#allocation5], 0
    %31 = vsyncpa [#allocation7], 0
    %32 = vsyncpa [#allocation10], 0
    %33 = vsyncpa [#allocation13], 0
    %34 = vsyncpa [#allocation16], 0
    %35 = vsyncpa [#allocation19], 0
    %36 = vsyncpa [#allocation22], 0
    %37 = vsyncpa [#allocation25], 0
    // Predicated region
    $region2: #{_gru_model_forward.1} parent=1 // pred_check
      _
    $region3: #{_gru_model_forward.1} parent=1 // pred_check_branch
      %39 = sbr.rel (0) target = $region5
    $region4: #{_gru_model_forward.1} parent=1 // pred_region
      %s41 = ssub.s32 256, 256
      %42 = vsyncadd [#allocation5], %s41
      %s43 = sshll.u32 [#allocation4], 4
      %s44 = int_to_ptr.vmem [resolvable:$true] %s43
      %49 = dma.hbm_to_vmem [thread:$0]  %s0, 256, %s44, [#allocation5], 128, 128, 8
    $region5: #{_gru_model_forward.1} parent=1 // pred_fallthru
      _
    // Predicated region
    $region6: #{_gru_model_forward.1} parent=1 // pred_check
      _
    $region7: #{_gru_model_forward.1} parent=1 // pred_check_branch
      %51 = sbr.rel (0) target = $region9
    $region8: #{_gru_model_forward.1} parent=1 // pred_region
      %s53 = ssub.s32 128, 128
      %54 = vsyncadd [#allocation7], %s53
      %s56 = sshll.u32 [#allocation6], 4
      %s57 = int_to_ptr.vmem [resolvable:$true] %s56
      %59 = dma.hbm_to_vmem [thread:$0]  %s1, 128, %s57, [#allocation7]
    $region9: #{_gru_model_forward.1} parent=1 // pred_fallthru
      _
    // Predicated region
    $region10: #{_gru_model_forward.1} parent=1 // pred_check
      _
    $region11: #{_gru_model_forward.1} parent=1 // pred_check_branch
      %61 = sbr.rel (0) target = $region13
    $region12: #{_gru_model_forward.1} parent=1 // pred_region
      _
    $region13: #{_gru_model_forward.1} parent=1 // pred_fallthru
      _
    // Predicated region
    $region14: #{_gru_model_forward.1} parent=1 // pred_check
      _
    $region15: #{_gru_model_forward.1} parent=1 // pred_check_branch
      %63 = sbr.rel (0) target = $region17
    $region16: #{_gru_model_forward.1} parent=1 // pred_region
      _
    $region17: #{_gru_model_forward.1} parent=1 // pred_fallthru
      _
    // Predicated region
    $region18: #{_gru_model_forward.1} parent=1 // pred_check
      _
    $region19: #{_gru_model_forward.1} parent=1 // pred_check_branch
      %65 = sbr.rel (0) target = $region21
    $region20: #{_gru_model_forward.1} parent=1 // pred_region
      %s67 = ssub.s32 16, 16
      %68 = vsyncadd [#allocation7], %s67
      %s70 = sshll.u32 [#allocation8], 4
      %s71 = int_to_ptr.vmem [resolvable:$true] %s70
      %73 = dma.hbm_to_vmem [thread:$0]  %s4, 16, %s71, [#allocation7]
    $region21: #{_gru_model_forward.1} parent=1 // pred_fallthru
      _
    // Predicated region
    $region22: #{_gru_model_forward.1} parent=1 // pred_check
      _
    $region23: #{_gru_model_forward.1} parent=1 // pred_check_branch
      %75 = sbr.rel (0) target = $region25
    $region24: #{_gru_model_forward.1} parent=1 // pred_region
      _
    $region25: #{_gru_model_forward.1} parent=1 // pred_fallthru
      _
    // Predicated region
    $region26: #{_gru_model_forward.1} parent=1 // pred_check
      _
    $region27: #{_gru_model_forward.1} parent=1 // pred_check_branch
      %77 = sbr.rel (0) target = $region29
    $region28: #{_gru_model_forward.1} parent=1 // pred_region
      %s79 = ssub.s32 512, 512
      %80 = vsyncadd [#allocation10], %s79
      %s81 = sshll.u32 [#allocation9], 4
      %s82 = int_to_ptr.vmem [resolvable:$true] %s81
      %87 = dma.hbm_to_vmem [thread:$0]  %s6, 512, %s82, [#allocation10], 128, 128, 8
    $region29: #{_gru_model_forward.1} parent=1 // pred_fallthru
      _
    // Predicated region
    $region30: #{_gru_model_forward.1} parent=1 // pred_check
      _
    $region31: #{_gru_model_forward.1} parent=1 // pred_check_branch
      %89 = sbr.rel (0) target = $region33
    $region32: #{_gru_model_forward.1} parent=1 // pred_region
      %s91 = ssub.s32 16, 16
      %92 = vsyncadd [#allocation10], %s91
      %s94 = sshll.u32 [#allocation11], 4
      %s95 = int_to_ptr.vmem [resolvable:$true] %s94
      %97 = dma.hbm_to_vmem [thread:$0]  %s7, 16, %s95, [#allocation10]
    $region33: #{_gru_model_forward.1} parent=1 // pred_fallthru
      _
    // Predicated region
    $region34: #{_gru_model_forward.1} parent=1 // pred_check
      _
    $region35: #{_gru_model_forward.1} parent=1 // pred_check_branch
      %99 = sbr.rel (0) target = $region37
    $region36: #{_gru_model_forward.1} parent=1 // pred_region
      %s101 = ssub.s32 16, 16
      %102 = vsyncadd [#allocation13], %s101
      %s104 = sshll.u32 [#allocation12], 4
      %s105 = int_to_ptr.vmem [resolvable:$true] %s104
      %107 = dma.hbm_to_vmem [thread:$0]  %s8, 16, %s105, [#allocation13]
    $region37: #{_gru_model_forward.1} parent=1 // pred_fallthru
      _
    // Predicated region
    $region38: #{_gru_model_forward.1} parent=1 // pred_check
      _
    $region39: #{_gru_model_forward.1} parent=1 // pred_check_branch
      %109 = sbr.rel (0) target = $region41
    $region40: #{_gru_model_forward.1} parent=1 // pred_region
      %s111 = ssub.s32 512, 512
      %112 = vsyncadd [#allocation13], %s111
      %s113 = sshll.u32 [#allocation14], 4
      %s114 = int_to_ptr.vmem [resolvable:$true] %s113
      %119 = dma.hbm_to_vmem [thread:$0]  %s9, 512, %s114, [#allocation13], 128, 128, 8
    $region41: #{_gru_model_forward.1} parent=1 // pred_fallthru
      _
    // Predicated region
    $region42: #{_gru_model_forward.1} parent=1 // pred_check
      _
    $region43: #{_gru_model_forward.1} parent=1 // pred_check_branch
      %121 = sbr.rel (0) target = $region45
    $region44: #{_gru_model_forward.1} parent=1 // pred_region
      %s123 = ssub.s32 512, 512
      %124 = vsyncadd [#allocation16], %s123
      %s125 = sshll.u32 [#allocation15], 4
      %s126 = int_to_ptr.vmem [resolvable:$true] %s125
      %131 = dma.hbm_to_vmem [thread:$0]  %s10, 512, %s126, [#allocation16], 128, 128, 8
    $region45: #{_gru_model_forward.1} parent=1 // pred_fallthru
      _
    // Predicated region
    $region46: #{_gru_model_forward.1} parent=1 // pred_check
      _
    $region47: #{_gru_model_forward.1} parent=1 // pred_check_branch
      %133 = sbr.rel (0) target = $region49
    $region48: #{_gru_model_forward.1} parent=1 // pred_region
      %s135 = ssub.s32 16, 16
      %136 = vsyncadd [#allocation16], %s135
      %s138 = sshll.u32 [#allocation17], 4
      %s139 = int_to_ptr.vmem [resolvable:$true] %s138
      %141 = dma.hbm_to_vmem [thread:$0]  %s11, 16, %s139, [#allocation16]
    $region49: #{_gru_model_forward.1} parent=1 // pred_fallthru
      _
    // Predicated region
    $region50: #{_gru_model_forward.1} parent=1 // pred_check
      _
    $region51: #{_gru_model_forward.1} parent=1 // pred_check_branch
      %143 = sbr.rel (0) target = $region53
    $region52: #{_gru_model_forward.1} parent=1 // pred_region
      %s145 = ssub.s32 16, 16
      %146 = vsyncadd [#allocation19], %s145
      %s148 = sshll.u32 [#allocation18], 4
      %s149 = int_to_ptr.vmem [resolvable:$true] %s148
      %151 = dma.hbm_to_vmem [thread:$0]  %s12, 16, %s149, [#allocation19]
    $region53: #{_gru_model_forward.1} parent=1 // pred_fallthru
      _
    // Predicated region
    $region54: #{_gru_model_forward.1} parent=1 // pred_check
      _
    $region55: #{_gru_model_forward.1} parent=1 // pred_check_branch
      %153 = sbr.rel (0) target = $region57
    $region56: #{_gru_model_forward.1} parent=1 // pred_region
      _
    $region57: #{_gru_model_forward.1} parent=1 // pred_fallthru
      _
    // Predicated region
    $region58: #{_gru_model_forward.1} parent=1 // pred_check
      _
    $region59: #{_gru_model_forward.1} parent=1 // pred_check_branch
      %155 = sbr.rel (0) target = $region61
    $region60: #{_gru_model_forward.1} parent=1 // pred_region
      %s157 = ssub.s32 512, 512
      %158 = vsyncadd [#allocation19], %s157
      %s159 = sshll.u32 [#allocation20], 4
      %s160 = int_to_ptr.vmem [resolvable:$true] %s159
      %165 = dma.hbm_to_vmem [thread:$0]  %s14, 512, %s160, [#allocation19], 128, 128, 8
    $region61: #{_gru_model_forward.1} parent=1 // pred_fallthru
      _
    // Predicated region
    $region62: #{_gru_model_forward.1} parent=1 // pred_check
      _
    $region63: #{_gru_model_forward.1} parent=1 // pred_check_branch
      %167 = sbr.rel (0) target = $region65
    $region64: #{_gru_model_forward.1} parent=1 // pred_region
      %s169 = ssub.s32 16, 16
      %170 = vsyncadd [#allocation22], %s169
      %s172 = sshll.u32 [#allocation21], 4
      %s173 = int_to_ptr.vmem [resolvable:$true] %s172
      %175 = dma.hbm_to_vmem [thread:$0]  %s15, 16, %s173, [#allocation22]
    $region65: #{_gru_model_forward.1} parent=1 // pred_fallthru
      _
    // Predicated region
    $region66: #{_gru_model_forward.1} parent=1 // pred_check
      _
    $region67: #{_gru_model_forward.1} parent=1 // pred_check_branch
      %177 = sbr.rel (0) target = $region69
    $region68: #{_gru_model_forward.1} parent=1 // pred_region
      %s179 = ssub.s32 16, 16
      %180 = vsyncadd [#allocation22], %s179
      %s182 = sshll.u32 [#allocation23], 4
      %s183 = int_to_ptr.vmem [resolvable:$true] %s182
      %185 = dma.hbm_to_vmem [thread:$0]  %s16, 16, %s183, [#allocation22]
    $region69: #{_gru_model_forward.1} parent=1 // pred_fallthru
      _
    // Predicated region
    $region70: #{_gru_model_forward.1} parent=1 // pred_check
      _
    $region71: #{_gru_model_forward.1} parent=1 // pred_check_branch
      %187 = sbr.rel (0) target = $region73
    $region72: #{_gru_model_forward.1} parent=1 // pred_region
      %s189 = ssub.s32 512, 512
      %190 = vsyncadd [#allocation25], %s189
      %s191 = sshll.u32 [#allocation24], 4
      %s192 = int_to_ptr.vmem [resolvable:$true] %s191
      %197 = dma.hbm_to_vmem [thread:$0]  %s17, 512, %s192, [#allocation25], 128, 128, 8
    $region73: #{_gru_model_forward.1} parent=1 // pred_fallthru
      _
    // Predicated region
    $region74: #{_gru_model_forward.1} parent=1 // pred_check
      _
    $region75: #{_gru_model_forward.1} parent=1 // pred_check_branch
      %199 = sbr.rel (0) target = $region77
    $region76: #{_gru_model_forward.1} parent=1 // pred_region
      %s201 = ssub.s32 512, 512
      %202 = vsyncadd [#allocation25], %s201
      %s203 = sshll.u32 [#allocation26], 4
      %s204 = int_to_ptr.vmem [resolvable:$true] %s203
      %209 = dma.hbm_to_vmem [thread:$0]  %s18, 512, %s204, [#allocation25], 128, 128, 8
    $region77: #{_gru_model_forward.1} parent=1 // pred_fallthru
      _
    // Predicated region
    $region78: #{_gru_model_forward.1} parent=1 // pred_check
      _
    $region79: #{_gru_model_forward.1} parent=1 // pred_check_branch
      %211 = sbr.rel (0) target = $region81
    $region80: #{_gru_model_forward.1} parent=1 // pred_region
      _
    $region81: #{_gru_model_forward.1} parent=1 // pred_fallthru
      _
    // Predicated region
    $region82: #{_gru_model_forward.1} parent=1 // pred_check
      _
    $region83: #{_gru_model_forward.1} parent=1 // pred_check_branch
      %213 = sbr.rel (0) target = $region85
    $region84: #{_gru_model_forward.1} parent=1 // pred_region
      _
    $region85: #{_gru_model_forward.1} parent=1 // pred_fallthru
      _
    // Predicated region
    $region86: #{_gru_model_forward.1} parent=1 // pred_check
      _
    $region87: #{_gru_model_forward.1} parent=1 // pred_check_branch
      %215 = sbr.rel (0) target = $region89
    $region88: #{_gru_model_forward.1} parent=1 // pred_region
      _
    $region89: #{_gru_model_forward.1} parent=1 // pred_fallthru
      _
    // Predicated region
    $region90: #{_gru_model_forward.1} parent=1 // pred_check
      _
    $region91: #{_gru_model_forward.1} parent=1 // pred_check_branch
      %217 = sbr.rel (0) target = $region93
    $region92: #{_gru_model_forward.1} parent=1 // pred_region
      _
    $region93: #{_gru_model_forward.1} parent=1 // pred_fallthru
      _
    // Predicated region
    $region94: #{_gru_model_forward.1} parent=1 // pred_check
      _
    $region95: #{_gru_model_forward.1} parent=1 // pred_check_branch
      %219 = sbr.rel (0) target = $region97
    $region96: #{_gru_model_forward.1} parent=1 // pred_region
      %220 = dma.done [#allocation5], 256
    $region97: #{_gru_model_forward.1} parent=1 // pred_fallthru
      _
    // Predicated region
    $region98: #{_gru_model_forward.1} parent=1 // pred_check
      _
    $region99: #{_gru_model_forward.1} parent=1 // pred_check_branch
      %222 = sbr.rel (0) target = $region101
    $region100: #{_gru_model_forward.1} parent=1 // pred_region
      %223 = dma.done [#allocation7], 128
    $region101: #{_gru_model_forward.1} parent=1 // pred_fallthru
      _
    // Predicated region
    $region102: #{_gru_model_forward.1} parent=1 // pred_check
      _
    $region103: #{_gru_model_forward.1} parent=1 // pred_check_branch
      %225 = sbr.rel (0) target = $region105
    $region104: #{_gru_model_forward.1} parent=1 // pred_region
      %226 = dma.done [#allocation7], 16
    $region105: #{_gru_model_forward.1} parent=1 // pred_fallthru
      _
    // Predicated region
    $region106: #{_gru_model_forward.1} parent=1 // pred_check
      _
    $region107: #{_gru_model_forward.1} parent=1 // pred_check_branch
      %228 = sbr.rel (0) target = $region109
    $region108: #{_gru_model_forward.1} parent=1 // pred_region
      %229 = dma.done [#allocation10], 512
    $region109: #{_gru_model_forward.1} parent=1 // pred_fallthru
      _
    // Predicated region
    $region110: #{_gru_model_forward.1} parent=1 // pred_check
      _
    $region111: #{_gru_model_forward.1} parent=1 // pred_check_branch
      %231 = sbr.rel (0) target = $region113
    $region112: #{_gru_model_forward.1} parent=1 // pred_region
      %232 = dma.done [#allocation10], 16
    $region113: #{_gru_model_forward.1} parent=1 // pred_fallthru
      _
    // Predicated region
    $region114: #{_gru_model_forward.1} parent=1 // pred_check
      _
    $region115: #{_gru_model_forward.1} parent=1 // pred_check_branch
      %234 = sbr.rel (0) target = $region117
    $region116: #{_gru_model_forward.1} parent=1 // pred_region
      %235 = dma.done [#allocation13], 16
    $region117: #{_gru_model_forward.1} parent=1 // pred_fallthru
      _
    // Predicated region
    $region118: #{_gru_model_forward.1} parent=1 // pred_check
      _
    $region119: #{_gru_model_forward.1} parent=1 // pred_check_branch
      %237 = sbr.rel (0) target = $region121
    $region120: #{_gru_model_forward.1} parent=1 // pred_region
      %238 = dma.done [#allocation13], 512
    $region121: #{_gru_model_forward.1} parent=1 // pred_fallthru
      _
    // Predicated region
    $region122: #{_gru_model_forward.1} parent=1 // pred_check
      _
    $region123: #{_gru_model_forward.1} parent=1 // pred_check_branch
      %240 = sbr.rel (0) target = $region125
    $region124: #{_gru_model_forward.1} parent=1 // pred_region
      %241 = dma.done [#allocation16], 512
    $region125: #{_gru_model_forward.1} parent=1 // pred_fallthru
      _
    // Predicated region
    $region126: #{_gru_model_forward.1} parent=1 // pred_check
      _
    $region127: #{_gru_model_forward.1} parent=1 // pred_check_branch
      %243 = sbr.rel (0) target = $region129
    $region128: #{_gru_model_forward.1} parent=1 // pred_region
      %244 = dma.done [#allocation16], 16
    $region129: #{_gru_model_forward.1} parent=1 // pred_fallthru
      _
    // Predicated region
    $region130: #{_gru_model_forward.1} parent=1 // pred_check
      _
    $region131: #{_gru_model_forward.1} parent=1 // pred_check_branch
      %246 = sbr.rel (0) target = $region133
    $region132: #{_gru_model_forward.1} parent=1 // pred_region
      %247 = dma.done [#allocation19], 16
    $region133: #{_gru_model_forward.1} parent=1 // pred_fallthru
      _
    // Predicated region
    $region134: #{_gru_model_forward.1} parent=1 // pred_check
      _
    $region135: #{_gru_model_forward.1} parent=1 // pred_check_branch
      %249 = sbr.rel (0) target = $region137
    $region136: #{_gru_model_forward.1} parent=1 // pred_region
      %250 = dma.done [#allocation19], 512
    $region137: #{_gru_model_forward.1} parent=1 // pred_fallthru
      _
    // Predicated region
    $region138: #{_gru_model_forward.1} parent=1 // pred_check
      _
    $region139: #{_gru_model_forward.1} parent=1 // pred_check_branch
      %252 = sbr.rel (0) target = $region141
    $region140: #{_gru_model_forward.1} parent=1 // pred_region
      %253 = dma.done [#allocation22], 16
    $region141: #{_gru_model_forward.1} parent=1 // pred_fallthru
      _
    // Predicated region
    $region142: #{_gru_model_forward.1} parent=1 // pred_check
      _
    $region143: #{_gru_model_forward.1} parent=1 // pred_check_branch
      %255 = sbr.rel (0) target = $region145
    $region144: #{_gru_model_forward.1} parent=1 // pred_region
      %256 = dma.done [#allocation22], 16
    $region145: #{_gru_model_forward.1} parent=1 // pred_fallthru
      _
    // Predicated region
    $region146: #{_gru_model_forward.1} parent=1 // pred_check
      _
    $region147: #{_gru_model_forward.1} parent=1 // pred_check_branch
      %258 = sbr.rel (0) target = $region149
    $region148: #{_gru_model_forward.1} parent=1 // pred_region
      %259 = dma.done [#allocation25], 512
    $region149: #{_gru_model_forward.1} parent=1 // pred_fallthru
      _
    // Predicated region
    $region150: #{_gru_model_forward.1} parent=1 // pred_check
      _
    $region151: #{_gru_model_forward.1} parent=1 // pred_check_branch
      %261 = sbr.rel (0) target = $region153
    $region152: #{_gru_model_forward.1} parent=1 // pred_region
      %262 = dma.done [#allocation25], 512
    $region153: #{_gru_model_forward.1} parent=1 // pred_fallthru
      _
    %v263 = vld [vmem:[#allocation4] sm:$0xff]
    %v264 = vld [vmem:[#allocation4 + $0x8] sm:$0xff]
    %v267 = vrot.slane %v264, 7
    %vm268 = vcmask 1041409
    %v269 = vsel %vm268, %v267, %v263
    %v271 = vrot.slane %v263, 7
    %v272 = vrot.slane %v264, 6
    %vm273 = vcmask 1043459
    %v274 = vsel %vm273, %v272, %v271
    %v276 = vrot.slane %v263, 6
    %v277 = vrot.slane %v264, 5
    %vm278 = vcmask 1045509
    %v279 = vsel %vm278, %v277, %v276
    %v281 = vrot.slane %v263, 5
    %v282 = vrot.slane %v264, 4
    %vm283 = vcmask 1047559
    %v284 = vsel %vm283, %v282, %v281
    %v286 = vrot.slane %v263, 4
    %v287 = vrot.slane %v264, 3
    %v288 = vsel %vm268, %v287, %v286
    %v290 = vrot.slane %v263, 3
    %v291 = vrot.slane %v264, 2
    %v292 = vsel %vm273, %v291, %v290
    %v294 = vrot.slane %v263, 2
    %v295 = vrot.slane %v264, 1
    %v296 = vsel %vm278, %v295, %v294
    %v298 = vrot.slane %v263, 1
    %v299 = vsel %vm283, %v264, %v298
    %vm301 = vcmask 1041408
    %v302 = vsel %vm301, %v269, %v274
    %vm303 = vcmask 1043456
    %v304 = vsel %vm303, %v302, %v279
    %vm305 = vcmask 1045504
    %v306 = vsel %vm305, %v304, %v284
    %v307 = vsel %vm301, %v288, %v292
    %v308 = vsel %vm303, %v307, %v296
    %v309 = vsel %vm305, %v308, %v299
    %v310 = vld [vmem:[#allocation6] sm:$0xff]
    %v311 = vld [vmem:[%s2] sm:$0xff]
    %v312 = vld [vmem:[%s2 + $0x8] sm:$0xff]
    %v313 = vld [vmem:[%s2 + $0x10] sm:$0xff]
    %v314 = vld [vmem:[%s2 + $0x18] sm:$0xff]
    %v315 = vld [vmem:[%s3] sm:$0x1]
    %v316 = vld [vmem:[#allocation8] sm:$0x1]
    %v318 = vlaneseq
    %v319 = vshrl.u32 %v318, 7
    %v320 = vsub.s32 0, %v319
    %v321 = vrot.slane %v316, %v320
    %v323 = vlaneseq
    %v324 = vshrl.u32 %v323, 7
    %v325 = vsub.s32 0, %v324
    %v326 = vrot.slane %v315, %v325
    %vm328 = vcmask 64512
    %v330 = vsel %vm328, %v306, 0
    %v333 = vsel %vm328, %v309, 0
    %335 = vmatprep.subr.mxu0 0.0
    %336 = vmatpush1.msra.mxu0 %v310
    %337 = vmatprep.subr.mxu0 0.0
    %338 = vmatpush1.msra.mxu0 0.0
    %339 = vmatprep.subr.mxu0 0.0
    %340 = vmatpush1.msra.mxu0 0.0
    %341 = vmatprep.subr.mxu0 0.0
    %342 = vmatpush1.msra.mxu0 0.0
    %343 = vmatprep.subr.mxu0 0.0
    %344 = vmatpush1.msra.mxu0 0.0
    %345 = vmatprep.subr.mxu0 0.0
    %346 = vmatpush1.msra.mxu0 0.0
    %347 = vmatprep.subr.mxu0 0.0
    %348 = vmatpush1.msra.mxu0 0.0
    %349 = vmatprep.subr.mxu0 0.0
    %350 = vmatpush1.msra.mxu0 0.0
    %351 = vmatprep.subr.mxu0 0.0
    %352 = vmatpush1.msra.mxu0 0.0
    %353 = vmatprep.subr.mxu0 0.0
    %354 = vmatpush1.msra.mxu0 0.0
    %355 = vmatprep.subr.mxu0 0.0
    %356 = vmatpush1.msra.mxu0 0.0
    %357 = vmatprep.subr.mxu0 0.0
    %358 = vmatpush1.msra.mxu0 0.0
    %359 = vmatprep.subr.mxu0 0.0
    %360 = vmatpush1.msra.mxu0 0.0
    %361 = vmatprep.subr.mxu0 0.0
    %362 = vmatpush1.msra.mxu0 0.0
    %363 = vmatprep.subr.mxu0 0.0
    %364 = vmatpush1.msra.mxu0 0.0
    %365 = vmatprep.subr.mxu0 0.0
    %366 = vmatpush1.msra.mxu0 0.0
    %367 = vmatprep.subr.mxu0 0.0
    %368 = vmatpush1.msra.mxu0 0.0
    %369 = vmatprep.subr.mxu0 0.0
    %370 = vmatpush1.msra.mxu0 0.0
    %371 = vmatprep.subr.mxu0 0.0
    %372 = vmatpush1.msra.mxu0 0.0
    %373 = vmatprep.subr.mxu0 0.0
    %374 = vmatpush1.msra.mxu0 0.0
    %375 = vmatprep.subr.mxu0 0.0
    %376 = vmatpush1.msra.mxu0 0.0
    %377 = vmatprep.subr.mxu0 0.0
    %378 = vmatpush1.msra.mxu0 0.0
    %379 = vmatprep.subr.mxu0 0.0
    %380 = vmatpush1.msra.mxu0 0.0
    %381 = vmatprep.subr.mxu0 0.0
    %382 = vmatpush1.msra.mxu0 0.0
    %383 = vmatprep.subr.mxu0 0.0
    %384 = vmatpush1.msra.mxu0 0.0
    %385 = vmatprep.subr.mxu0 0.0
    %386 = vmatpush1.msra.mxu0 0.0
    %387 = vmatprep.subr.mxu0 0.0
    %388 = vmatpush1.msra.mxu0 0.0
    %389 = vmatprep.subr.mxu0 0.0
    %390 = vmatpush1.msra.mxu0 0.0
    %391 = vmatprep.subr.mxu0 0.0
    %392 = vmatpush1.msra.mxu0 0.0
    %393 = vmatprep.subr.mxu0 0.0
    %394 = vmatpush1.msra.mxu0 0.0
    %395 = vmatprep.subr.mxu0 0.0
    %396 = vmatpush1.msra.mxu0 0.0
    %397 = vmatprep.subr.mxu0 0.0
    %398 = vmatpush1.msra.mxu0 0.0
    %399 = vmatprep.mubr.f32.mxu0 0.0
    %400 = vmatmul.mubr.f32.gmra.mrb[0].mxu0 %v330
    %v401 = vpop.f32.mrb[0].mxu0
    %v402 = vadd.f32 %v326, %v401
    %v403 = vpop.f32.mrb[0].mxu0
    %404 = vmatprep.mubr.f32.mxu0 0.0
    %405 = vmatmul.mubr.f32.gmra.mrb[0].mxu0 %v333
    %v406 = vpop.f32.mrb[0].mxu0
    %v407 = vadd.f32 %v326, %v406
    %v408 = vpop.f32.mrb[0].mxu0
    %409 = vdwg.mxu0
    %vm410 = vcmask 261120
    %v412 = vsel %vm410, 0.0, 0
    %414 = vmatprep.subr.mxu0 0.0
    %415 = vmatpush1.msra.mxu0 %v311
    %416 = vmatprep.subr.mxu0 0.0
    %417 = vmatpush1.msra.mxu0 %v312
    %418 = vmatprep.subr.mxu0 0.0
    %419 = vmatpush1.msra.mxu0 %v313
    %420 = vmatprep.subr.mxu0 0.0
    %421 = vmatpush1.msra.mxu0 %v314
    %422 = vmatprep.subr.mxu0 0.0
    %423 = vmatpush1.msra.mxu0 0.0
    %424 = vmatprep.subr.mxu0 0.0
    %425 = vmatpush1.msra.mxu0 0.0
    %426 = vmatprep.subr.mxu0 0.0
    %427 = vmatpush1.msra.mxu0 0.0
    %428 = vmatprep.subr.mxu0 0.0
    %429 = vmatpush1.msra.mxu0 0.0
    %430 = vmatprep.subr.mxu0 0.0
    %431 = vmatpush1.msra.mxu0 0.0
    %432 = vmatprep.subr.mxu0 0.0
    %433 = vmatpush1.msra.mxu0 0.0
    %434 = vmatprep.subr.mxu0 0.0
    %435 = vmatpush1.msra.mxu0 0.0
    %436 = vmatprep.subr.mxu0 0.0
    %437 = vmatpush1.msra.mxu0 0.0
    %438 = vmatprep.subr.mxu0 0.0
    %439 = vmatpush1.msra.mxu0 0.0
    %440 = vmatprep.subr.mxu0 0.0
    %441 = vmatpush1.msra.mxu0 0.0
    %442 = vmatprep.subr.mxu0 0.0
    %443 = vmatpush1.msra.mxu0 0.0
    %444 = vmatprep.subr.mxu0 0.0
    %445 = vmatpush1.msra.mxu0 0.0
    %446 = vmatprep.subr.mxu0 0.0
    %447 = vmatpush1.msra.mxu0 0.0
    %448 = vmatprep.subr.mxu0 0.0
    %449 = vmatpush1.msra.mxu0 0.0
    %450 = vmatprep.subr.mxu0 0.0
    %451 = vmatpush1.msra.mxu0 0.0
    %452 = vmatprep.subr.mxu0 0.0
    %453 = vmatpush1.msra.mxu0 0.0
    %454 = vmatprep.subr.mxu0 0.0
    %455 = vmatpush1.msra.mxu0 0.0
    %456 = vmatprep.subr.mxu0 0.0
    %457 = vmatpush1.msra.mxu0 0.0
    %458 = vmatprep.subr.mxu0 0.0
    %459 = vmatpush1.msra.mxu0 0.0
    %460 = vmatprep.subr.mxu0 0.0
    %461 = vmatpush1.msra.mxu0 0.0
    %462 = vmatprep.subr.mxu0 0.0
    %463 = vmatpush1.msra.mxu0 0.0
    %464 = vmatprep.subr.mxu0 0.0
    %465 = vmatpush1.msra.mxu0 0.0
    %466 = vmatprep.subr.mxu0 0.0
    %467 = vmatpush1.msra.mxu0 0.0
    %468 = vmatprep.subr.mxu0 0.0
    %469 = vmatpush1.msra.mxu0 0.0
    %470 = vmatprep.subr.mxu0 0.0
    %471 = vmatpush1.msra.mxu0 0.0
    %472 = vmatprep.subr.mxu0 0.0
    %473 = vmatpush1.msra.mxu0 0.0
    %474 = vmatprep.subr.mxu0 0.0
    %475 = vmatpush1.msra.mxu0 0.0
    %476 = vmatprep.subr.mxu0 0.0
    %477 = vmatpush1.msra.mxu0 0.0
    %478 = vmatprep.mubr.f32.mxu0 0.0
    %479 = vmatmul.mubr.f32.gmra.mrb[0].mxu0 %v412
    %v480 = vpop.f32.mrb[0].mxu0
    %v481 = vadd.f32 0.0, %v480
    %v482 = vpop.f32.mrb[0].mxu0
    %483 = vdwg.mxu0
    %v484 = vadd.f32 %v402, %v481
    %v485 = vxor.u32 %v484, 2147483648
    %v486 = vmul.f32 %v485, 1.442695
    %v487 = vpow.pop %v486
    %v488 = vadd.f32 %v487, 1.0
    %v489 = vrcp.pop %v488
    %v490 = vmul.f32 1.0, %v489
    %491 = vrot.lane.b32.xlu0 %v321, 64
    %v492 = vpop.permute.xlu0 %491
    %v494 = vadd.f32 %v481, %v492
    %496 = vrot.lane.b32.xlu0 %v494, 64
    %v497 = vpop.permute.xlu0 %496
    %v499 = vmul.f32 %v490, %v497
    %501 = vrot.lane.b32.xlu0 %v499, 64
    %v502 = vpop.permute.xlu0 %501
    %v504 = vadd.f32 %v402, %v502
    %v505 = vtanh.pop %v504
    %v506 = vsub.f32 0.0, %v505
    %508 = vrot.lane.b32.xlu0 %v506, 96
    %v509 = vpop.permute.xlu0 %508
    %v511 = vmul.f32 %v490, %v509
    %513 = vrot.lane.b32.xlu0 %v511, 32
    %v514 = vpop.permute.xlu0 %513
    %v516 = vadd.f32 %v505, %v514
    %518 = vrot.lane.b32.xlu0 %v516, 64
    %v519 = vpop.permute.xlu0 %518
    %vm521 = vcmask 254976
    %522 = vst.msk [vmem:[#allocation2] sm:$0x3] %vm521, %v519
    %v523 = vsel %vm410, %v519, 0
    %525 = vmatprep.subr.mxu0 0.0
    %526 = vmatpush1.msra.mxu0 %v311
    %527 = vmatprep.subr.mxu0 0.0
    %528 = vmatpush1.msra.mxu0 %v312
    %529 = vmatprep.subr.mxu0 0.0
    %530 = vmatpush1.msra.mxu0 %v313
    %531 = vmatprep.subr.mxu0 0.0
    %532 = vmatpush1.msra.mxu0 %v314
    %533 = vmatprep.subr.mxu0 0.0
    %534 = vmatpush1.msra.mxu0 0.0
    %535 = vmatprep.subr.mxu0 0.0
    %536 = vmatpush1.msra.mxu0 0.0
    %537 = vmatprep.subr.mxu0 0.0
    %538 = vmatpush1.msra.mxu0 0.0
    %539 = vmatprep.subr.mxu0 0.0
    %540 = vmatpush1.msra.mxu0 0.0
    %541 = vmatprep.subr.mxu0 0.0
    %542 = vmatpush1.msra.mxu0 0.0
    %543 = vmatprep.subr.mxu0 0.0
    %544 = vmatpush1.msra.mxu0 0.0
    %545 = vmatprep.subr.mxu0 0.0
    %546 = vmatpush1.msra.mxu0 0.0
    %547 = vmatprep.subr.mxu0 0.0
    %548 = vmatpush1.msra.mxu0 0.0
    %549 = vmatprep.subr.mxu0 0.0
    %550 = vmatpush1.msra.mxu0 0.0
    %551 = vmatprep.subr.mxu0 0.0
    %552 = vmatpush1.msra.mxu0 0.0
    %553 = vmatprep.subr.mxu0 0.0
    %554 = vmatpush1.msra.mxu0 0.0
    %555 = vmatprep.subr.mxu0 0.0
    %556 = vmatpush1.msra.mxu0 0.0
    %557 = vmatprep.subr.mxu0 0.0
    %558 = vmatpush1.msra.mxu0 0.0
    %559 = vmatprep.subr.mxu0 0.0
    %560 = vmatpush1.msra.mxu0 0.0
    %561 = vmatprep.subr.mxu0 0.0
    %562 = vmatpush1.msra.mxu0 0.0
    %563 = vmatprep.subr.mxu0 0.0
    %564 = vmatpush1.msra.mxu0 0.0
    %565 = vmatprep.subr.mxu0 0.0
    %566 = vmatpush1.msra.mxu0 0.0
    %567 = vmatprep.subr.mxu0 0.0
    %568 = vmatpush1.msra.mxu0 0.0
    %569 = vmatprep.subr.mxu0 0.0
    %570 = vmatpush1.msra.mxu0 0.0
    %571 = vmatprep.subr.mxu0 0.0
    %572 = vmatpush1.msra.mxu0 0.0
    %573 = vmatprep.subr.mxu0 0.0
    %574 = vmatpush1.msra.mxu0 0.0
    %575 = vmatprep.subr.mxu0 0.0
    %576 = vmatpush1.msra.mxu0 0.0
    %577 = vmatprep.subr.mxu0 0.0
    %578 = vmatpush1.msra.mxu0 0.0
    %579 = vmatprep.subr.mxu0 0.0
    %580 = vmatpush1.msra.mxu0 0.0
    %581 = vmatprep.subr.mxu0 0.0
    %582 = vmatpush1.msra.mxu0 0.0
    %583 = vmatprep.subr.mxu0 0.0
    %584 = vmatpush1.msra.mxu0 0.0
    %585 = vmatprep.subr.mxu0 0.0
    %586 = vmatpush1.msra.mxu0 0.0
    %587 = vmatprep.subr.mxu0 0.0
    %588 = vmatpush1.msra.mxu0 0.0
    %589 = vmatprep.mubr.f32.mxu0 0.0
    %590 = vmatmul.mubr.f32.gmra.mrb[0].mxu0 %v523
    %v591 = vpop.f32.mrb[0].mxu0
    %v592 = vadd.f32 0.0, %v591
    %v593 = vpop.f32.mrb[0].mxu0
    %594 = vdwg.mxu0
    %v596 = vrot.slane %v592, 6
    %v598 = vadd.f32 %v402, %v596
    %v599 = vxor.u32 %v598, 2147483648
    %v600 = vmul.f32 %v599, 1.442695
    %v601 = vpow.pop %v600
    %v602 = vadd.f32 %v601, 1.0
    %v603 = vrcp.pop %v602
    %v604 = vmul.f32 1.0, %v603
    %v605 = vadd.f32 %v592, %v492
    %v607 = vrot.slane %v605, 6
    %608 = vrot.lane.b32.xlu0 %v607, 64
    %v609 = vpop.permute.xlu0 %608
    %v611 = vmul.f32 %v604, %v609
    %613 = vrot.lane.b32.xlu0 %v611, 64
    %v614 = vpop.permute.xlu0 %613
    %v616 = vadd.f32 %v402, %v614
    %v617 = vtanh.pop %v616
    %v619 = vrot.slane %v617, 2
    %v621 = vsub.f32 %v516, %v619
    %v623 = vrot.slane %v621, 6
    %624 = vrot.lane.b32.xlu0 %v623, 96
    %v625 = vpop.permute.xlu0 %624
    %v627 = vmul.f32 %v604, %v625
    %629 = vrot.lane.b32.xlu0 %v627, 32
    %v630 = vpop.permute.xlu0 %629
    %v632 = vadd.f32 %v617, %v630
    %634 = vrot.lane.b32.xlu0 %v632, 64
    %v635 = vpop.permute.xlu0 %634
    %vm637 = vcmask 257026
    %638 = vst.msk [vmem:[#allocation2] sm:$0xc] %vm637, %v635
    %v639 = vrot.slane %v632, 2
    %640 = vrot.lane.b32.xlu0 %v639, 64
    %v641 = vpop.permute.xlu0 %640
    %v642 = vsel %vm410, %v641, 0
    %644 = vmatprep.subr.mxu0 0.0
    %645 = vmatpush1.msra.mxu0 %v311
    %646 = vmatprep.subr.mxu0 0.0
    %647 = vmatpush1.msra.mxu0 %v312
    %648 = vmatprep.subr.mxu0 0.0
    %649 = vmatpush1.msra.mxu0 %v313
    %650 = vmatprep.subr.mxu0 0.0
    %651 = vmatpush1.msra.mxu0 %v314
    %652 = vmatprep.subr.mxu0 0.0
    %653 = vmatpush1.msra.mxu0 0.0
    %654 = vmatprep.subr.mxu0 0.0
    %655 = vmatpush1.msra.mxu0 0.0
    %656 = vmatprep.subr.mxu0 0.0
    %657 = vmatpush1.msra.mxu0 0.0
    %658 = vmatprep.subr.mxu0 0.0
    %659 = vmatpush1.msra.mxu0 0.0
    %660 = vmatprep.subr.mxu0 0.0
    %661 = vmatpush1.msra.mxu0 0.0
    %662 = vmatprep.subr.mxu0 0.0
    %663 = vmatpush1.msra.mxu0 0.0
    %664 = vmatprep.subr.mxu0 0.0
    %665 = vmatpush1.msra.mxu0 0.0
    %666 = vmatprep.subr.mxu0 0.0
    %667 = vmatpush1.msra.mxu0 0.0
    %668 = vmatprep.subr.mxu0 0.0
    %669 = vmatpush1.msra.mxu0 0.0
    %670 = vmatprep.subr.mxu0 0.0
    %671 = vmatpush1.msra.mxu0 0.0
    %672 = vmatprep.subr.mxu0 0.0
    %673 = vmatpush1.msra.mxu0 0.0
    %674 = vmatprep.subr.mxu0 0.0
    %675 = vmatpush1.msra.mxu0 0.0
    %676 = vmatprep.subr.mxu0 0.0
    %677 = vmatpush1.msra.mxu0 0.0
    %678 = vmatprep.subr.mxu0 0.0
    %679 = vmatpush1.msra.mxu0 0.0
    %680 = vmatprep.subr.mxu0 0.0
    %681 = vmatpush1.msra.mxu0 0.0
    %682 = vmatprep.subr.mxu0 0.0
    %683 = vmatpush1.msra.mxu0 0.0
    %684 = vmatprep.subr.mxu0 0.0
    %685 = vmatpush1.msra.mxu0 0.0
    %686 = vmatprep.subr.mxu0 0.0
    %687 = vmatpush1.msra.mxu0 0.0
    %688 = vmatprep.subr.mxu0 0.0
    %689 = vmatpush1.msra.mxu0 0.0
    %690 = vmatprep.subr.mxu0 0.0
    %691 = vmatpush1.msra.mxu0 0.0
    %692 = vmatprep.subr.mxu0 0.0
    %693 = vmatpush1.msra.mxu0 0.0
    %694 = vmatprep.subr.mxu0 0.0
    %695 = vmatpush1.msra.mxu0 0.0
    %696 = vmatprep.subr.mxu0 0.0
    %697 = vmatpush1.msra.mxu0 0.0
    %698 = vmatprep.subr.mxu0 0.0
    %699 = vmatpush1.msra.mxu0 0.0
    %700 = vmatprep.subr.mxu0 0.0
    %701 = vmatpush1.msra.mxu0 0.0
    %702 = vmatprep.subr.mxu0 0.0
    %703 = vmatpush1.msra.mxu0 0.0
    %704 = vmatprep.subr.mxu0 0.0
    %705 = vmatpush1.msra.mxu0 0.0
    %706 = vmatprep.subr.mxu0 0.0
    %707 = vmatpush1.msra.mxu0 0.0
    %708 = vmatprep.mubr.f32.mxu0 0.0
    %709 = vmatmul.mubr.f32.gmra.mrb[0].mxu0 %v642
    %v710 = vpop.f32.mrb[0].mxu0
    %v711 = vadd.f32 0.0, %v710
    %v712 = vpop.f32.mrb[0].mxu0
    %713 = vdwg.mxu0
    %v715 = vrot.slane %v711, 4
    %v717 = vadd.f32 %v402, %v715
    %v718 = vxor.u32 %v717, 2147483648
    %v719 = vmul.f32 %v718, 1.442695
    %v720 = vpow.pop %v719
    %v721 = vadd.f32 %v720, 1.0
    %v722 = vrcp.pop %v721
    %v723 = vmul.f32 1.0, %v722
    %v724 = vadd.f32 %v711, %v492
    %v726 = vrot.slane %v724, 4
    %727 = vrot.lane.b32.xlu0 %v726, 64
    %v728 = vpop.permute.xlu0 %727
    %v730 = vmul.f32 %v723, %v728
    %732 = vrot.lane.b32.xlu0 %v730, 64
    %v733 = vpop.permute.xlu0 %732
    %v735 = vadd.f32 %v402, %v733
    %v736 = vtanh.pop %v735
    %v738 = vrot.slane %v736, 2
    %v740 = vsub.f32 %v632, %v738
    %v742 = vrot.slane %v740, 6
    %743 = vrot.lane.b32.xlu0 %v742, 96
    %v744 = vpop.permute.xlu0 %743
    %v746 = vmul.f32 %v723, %v744
    %748 = vrot.lane.b32.xlu0 %v746, 32
    %v749 = vpop.permute.xlu0 %748
    %v751 = vadd.f32 %v736, %v749
    %753 = vrot.lane.b32.xlu0 %v751, 64
    %v754 = vpop.permute.xlu0 %753
    %vm756 = vcmask 259076
    %757 = vst.msk [vmem:[#allocation2] sm:$0x30] %vm756, %v754
    %v758 = vrot.slane %v751, 4
    %759 = vrot.lane.b32.xlu0 %v758, 64
    %v760 = vpop.permute.xlu0 %759
    %v761 = vsel %vm410, %v760, 0
    %763 = vmatprep.subr.mxu0 0.0
    %764 = vmatpush1.msra.mxu0 %v311
    %765 = vmatprep.subr.mxu0 0.0
    %766 = vmatpush1.msra.mxu0 %v312
    %767 = vmatprep.subr.mxu0 0.0
    %768 = vmatpush1.msra.mxu0 %v313
    %769 = vmatprep.subr.mxu0 0.0
    %770 = vmatpush1.msra.mxu0 %v314
    %771 = vmatprep.subr.mxu0 0.0
    %772 = vmatpush1.msra.mxu0 0.0
    %773 = vmatprep.subr.mxu0 0.0
    %774 = vmatpush1.msra.mxu0 0.0
    %775 = vmatprep.subr.mxu0 0.0
    %776 = vmatpush1.msra.mxu0 0.0
    %777 = vmatprep.subr.mxu0 0.0
    %778 = vmatpush1.msra.mxu0 0.0
    %779 = vmatprep.subr.mxu0 0.0
    %780 = vmatpush1.msra.mxu0 0.0
    %781 = vmatprep.subr.mxu0 0.0
    %782 = vmatpush1.msra.mxu0 0.0
    %783 = vmatprep.subr.mxu0 0.0
    %784 = vmatpush1.msra.mxu0 0.0
    %785 = vmatprep.subr.mxu0 0.0
    %786 = vmatpush1.msra.mxu0 0.0
    %787 = vmatprep.subr.mxu0 0.0
    %788 = vmatpush1.msra.mxu0 0.0
    %789 = vmatprep.subr.mxu0 0.0
    %790 = vmatpush1.msra.mxu0 0.0
    %791 = vmatprep.subr.mxu0 0.0
    %792 = vmatpush1.msra.mxu0 0.0
    %793 = vmatprep.subr.mxu0 0.0
    %794 = vmatpush1.msra.mxu0 0.0
    %795 = vmatprep.subr.mxu0 0.0
    %796 = vmatpush1.msra.mxu0 0.0
    %797 = vmatprep.subr.mxu0 0.0
    %798 = vmatpush1.msra.mxu0 0.0
    %799 = vmatprep.subr.mxu0 0.0
    %800 = vmatpush1.msra.mxu0 0.0
    %801 = vmatprep.subr.mxu0 0.0
    %802 = vmatpush1.msra.mxu0 0.0
    %803 = vmatprep.subr.mxu0 0.0
    %804 = vmatpush1.msra.mxu0 0.0
    %805 = vmatprep.subr.mxu0 0.0
    %806 = vmatpush1.msra.mxu0 0.0
    %807 = vmatprep.subr.mxu0 0.0
    %808 = vmatpush1.msra.mxu0 0.0
    %809 = vmatprep.subr.mxu0 0.0
    %810 = vmatpush1.msra.mxu0 0.0
    %811 = vmatprep.subr.mxu0 0.0
    %812 = vmatpush1.msra.mxu0 0.0
    %813 = vmatprep.subr.mxu0 0.0
    %814 = vmatpush1.msra.mxu0 0.0
    %815 = vmatprep.subr.mxu0 0.0
    %816 = vmatpush1.msra.mxu0 0.0
    %817 = vmatprep.subr.mxu0 0.0
    %818 = vmatpush1.msra.mxu0 0.0
    %819 = vmatprep.subr.mxu0 0.0
    %820 = vmatpush1.msra.mxu0 0.0
    %821 = vmatprep.subr.mxu0 0.0
    %822 = vmatpush1.msra.mxu0 0.0
    %823 = vmatprep.subr.mxu0 0.0
    %824 = vmatpush1.msra.mxu0 0.0
    %825 = vmatprep.subr.mxu0 0.0
    %826 = vmatpush1.msra.mxu0 0.0
    %827 = vmatprep.mubr.f32.mxu0 0.0
    %828 = vmatmul.mubr.f32.gmra.mrb[0].mxu0 %v761
    %v829 = vpop.f32.mrb[0].mxu0
    %v830 = vadd.f32 0.0, %v829
    %v831 = vpop.f32.mrb[0].mxu0
    %832 = vdwg.mxu0
    %v834 = vrot.slane %v830, 2
    %v836 = vadd.f32 %v402, %v834
    %v837 = vxor.u32 %v836, 2147483648
    %v838 = vmul.f32 %v837, 1.442695
    %v839 = vpow.pop %v838
    %v840 = vadd.f32 %v839, 1.0
    %v841 = vrcp.pop %v840
    %v842 = vmul.f32 1.0, %v841
    %v843 = vadd.f32 %v830, %v492
    %v845 = vrot.slane %v843, 2
    %846 = vrot.lane.b32.xlu0 %v845, 64
    %v847 = vpop.permute.xlu0 %846
    %v849 = vmul.f32 %v842, %v847
    %851 = vrot.lane.b32.xlu0 %v849, 64
    %v852 = vpop.permute.xlu0 %851
    %v854 = vadd.f32 %v402, %v852
    %v855 = vtanh.pop %v854
    %v857 = vrot.slane %v855, 2
    %v859 = vsub.f32 %v751, %v857
    %v861 = vrot.slane %v859, 6
    %862 = vrot.lane.b32.xlu0 %v861, 96
    %v863 = vpop.permute.xlu0 %862
    %v865 = vmul.f32 %v842, %v863
    %867 = vrot.lane.b32.xlu0 %v865, 32
    %v868 = vpop.permute.xlu0 %867
    %v870 = vadd.f32 %v855, %v868
    %872 = vrot.lane.b32.xlu0 %v870, 64
    %v873 = vpop.permute.xlu0 %872
    %vm875 = vcmask 261126
    %876 = vst.msk [vmem:[#allocation2] sm:$0xc0] %vm875, %v873
    %v877 = vrot.slane %v870, 6
    %878 = vrot.lane.b32.xlu0 %v877, 64
    %v879 = vpop.permute.xlu0 %878
    %v880 = vsel %vm410, %v879, 0
    %882 = vmatprep.subr.mxu0 0.0
    %883 = vmatpush1.msra.mxu0 %v311
    %884 = vmatprep.subr.mxu0 0.0
    %885 = vmatpush1.msra.mxu0 %v312
    %886 = vmatprep.subr.mxu0 0.0
    %887 = vmatpush1.msra.mxu0 %v313
    %888 = vmatprep.subr.mxu0 0.0
    %889 = vmatpush1.msra.mxu0 %v314
    %890 = vmatprep.subr.mxu0 0.0
    %891 = vmatpush1.msra.mxu0 0.0
    %892 = vmatprep.subr.mxu0 0.0
    %893 = vmatpush1.msra.mxu0 0.0
    %894 = vmatprep.subr.mxu0 0.0
    %895 = vmatpush1.msra.mxu0 0.0
    %896 = vmatprep.subr.mxu0 0.0
    %897 = vmatpush1.msra.mxu0 0.0
    %898 = vmatprep.subr.mxu0 0.0
    %899 = vmatpush1.msra.mxu0 0.0
    %900 = vmatprep.subr.mxu0 0.0
    %901 = vmatpush1.msra.mxu0 0.0
    %902 = vmatprep.subr.mxu0 0.0
    %903 = vmatpush1.msra.mxu0 0.0
    %904 = vmatprep.subr.mxu0 0.0
    %905 = vmatpush1.msra.mxu0 0.0
    %906 = vmatprep.subr.mxu0 0.0
    %907 = vmatpush1.msra.mxu0 0.0
    %908 = vmatprep.subr.mxu0 0.0
    %909 = vmatpush1.msra.mxu0 0.0
    %910 = vmatprep.subr.mxu0 0.0
    %911 = vmatpush1.msra.mxu0 0.0
    %912 = vmatprep.subr.mxu0 0.0
    %913 = vmatpush1.msra.mxu0 0.0
    %914 = vmatprep.subr.mxu0 0.0
    %915 = vmatpush1.msra.mxu0 0.0
    %916 = vmatprep.subr.mxu0 0.0
    %917 = vmatpush1.msra.mxu0 0.0
    %918 = vmatprep.subr.mxu0 0.0
    %919 = vmatpush1.msra.mxu0 0.0
    %920 = vmatprep.subr.mxu0 0.0
    %921 = vmatpush1.msra.mxu0 0.0
    %922 = vmatprep.subr.mxu0 0.0
    %923 = vmatpush1.msra.mxu0 0.0
    %924 = vmatprep.subr.mxu0 0.0
    %925 = vmatpush1.msra.mxu0 0.0
    %926 = vmatprep.subr.mxu0 0.0
    %927 = vmatpush1.msra.mxu0 0.0
    %928 = vmatprep.subr.mxu0 0.0
    %929 = vmatpush1.msra.mxu0 0.0
    %930 = vmatprep.subr.mxu0 0.0
    %931 = vmatpush1.msra.mxu0 0.0
    %932 = vmatprep.subr.mxu0 0.0
    %933 = vmatpush1.msra.mxu0 0.0
    %934 = vmatprep.subr.mxu0 0.0
    %935 = vmatpush1.msra.mxu0 0.0
    %936 = vmatprep.subr.mxu0 0.0
    %937 = vmatpush1.msra.mxu0 0.0
    %938 = vmatprep.subr.mxu0 0.0
    %939 = vmatpush1.msra.mxu0 0.0
    %940 = vmatprep.subr.mxu0 0.0
    %941 = vmatpush1.msra.mxu0 0.0
    %942 = vmatprep.subr.mxu0 0.0
    %943 = vmatpush1.msra.mxu0 0.0
    %944 = vmatprep.subr.mxu0 0.0
    %945 = vmatpush1.msra.mxu0 0.0
    %946 = vmatprep.mubr.f32.mxu0 0.0
    %947 = vmatmul.mubr.f32.gmra.mrb[0].mxu0 %v880
    %v948 = vpop.f32.mrb[0].mxu0
    %v949 = vadd.f32 0.0, %v948
    %v950 = vpop.f32.mrb[0].mxu0
    %951 = vdwg.mxu0
    %v952 = vadd.f32 %v407, %v949
    %v953 = vxor.u32 %v952, 2147483648
    %v954 = vmul.f32 %v953, 1.442695
    %v955 = vpow.pop %v954
    %v956 = vadd.f32 %v955, 1.0
    %v957 = vrcp.pop %v956
    %v958 = vmul.f32 1.0, %v957
    %v959 = vadd.f32 %v949, %v492
    %961 = vrot.lane.b32.xlu0 %v959, 64
    %v962 = vpop.permute.xlu0 %961
    %v964 = vmul.f32 %v958, %v962
    %966 = vrot.lane.b32.xlu0 %v964, 64
    %v967 = vpop.permute.xlu0 %966
    %v969 = vadd.f32 %v407, %v967
    %v970 = vtanh.pop %v969
    %v972 = vrot.slane %v970, 2
    %v974 = vsub.f32 %v870, %v972
    %v976 = vrot.slane %v974, 6
    %977 = vrot.lane.b32.xlu0 %v976, 96
    %v978 = vpop.permute.xlu0 %977
    %v980 = vmul.f32 %v958, %v978
    %982 = vrot.lane.b32.xlu0 %v980, 32
    %v983 = vpop.permute.xlu0 %982
    %v985 = vadd.f32 %v970, %v983
    %987 = vrot.lane.b32.xlu0 %v985, 64
    %v988 = vpop.permute.xlu0 %987
    %990 = vst.msk [vmem:[#allocation2 + $0x8] sm:$0x3] %vm521, %v988
    %v991 = vsel %vm410, %v988, 0
    %993 = vmatprep.subr.mxu0 0.0
    %994 = vmatpush1.msra.mxu0 %v311
    %995 = vmatprep.subr.mxu0 0.0
    %996 = vmatpush1.msra.mxu0 %v312
    %997 = vmatprep.subr.mxu0 0.0
    %998 = vmatpush1.msra.mxu0 %v313
    %999 = vmatprep.subr.mxu0 0.0
    %1000 = vmatpush1.msra.mxu0 %v314
    %1001 = vmatprep.subr.mxu0 0.0
    %1002 = vmatpush1.msra.mxu0 0.0
    %1003 = vmatprep.subr.mxu0 0.0
    %1004 = vmatpush1.msra.mxu0 0.0
    %1005 = vmatprep.subr.mxu0 0.0
    %1006 = vmatpush1.msra.mxu0 0.0
    %1007 = vmatprep.subr.mxu0 0.0
    %1008 = vmatpush1.msra.mxu0 0.0
    %1009 = vmatprep.subr.mxu0 0.0
    %1010 = vmatpush1.msra.mxu0 0.0
    %1011 = vmatprep.subr.mxu0 0.0
    %1012 = vmatpush1.msra.mxu0 0.0
    %1013 = vmatprep.subr.mxu0 0.0
    %1014 = vmatpush1.msra.mxu0 0.0
    %1015 = vmatprep.subr.mxu0 0.0
    %1016 = vmatpush1.msra.mxu0 0.0
    %1017 = vmatprep.subr.mxu0 0.0
    %1018 = vmatpush1.msra.mxu0 0.0
    %1019 = vmatprep.subr.mxu0 0.0
    %1020 = vmatpush1.msra.mxu0 0.0
    %1021 = vmatprep.subr.mxu0 0.0
    %1022 = vmatpush1.msra.mxu0 0.0
    %1023 = vmatprep.subr.mxu0 0.0
    %1024 = vmatpush1.msra.mxu0 0.0
    %1025 = vmatprep.subr.mxu0 0.0
    %1026 = vmatpush1.msra.mxu0 0.0
    %1027 = vmatprep.subr.mxu0 0.0
    %1028 = vmatpush1.msra.mxu0 0.0
    %1029 = vmatprep.subr.mxu0 0.0
    %1030 = vmatpush1.msra.mxu0 0.0
    %1031 = vmatprep.subr.mxu0 0.0
    %1032 = vmatpush1.msra.mxu0 0.0
    %1033 = vmatprep.subr.mxu0 0.0
    %1034 = vmatpush1.msra.mxu0 0.0
    %1035 = vmatprep.subr.mxu0 0.0
    %1036 = vmatpush1.msra.mxu0 0.0
    %1037 = vmatprep.subr.mxu0 0.0
    %1038 = vmatpush1.msra.mxu0 0.0
    %1039 = vmatprep.subr.mxu0 0.0
    %1040 = vmatpush1.msra.mxu0 0.0
    %1041 = vmatprep.subr.mxu0 0.0
    %1042 = vmatpush1.msra.mxu0 0.0
    %1043 = vmatprep.subr.mxu0 0.0
    %1044 = vmatpush1.msra.mxu0 0.0
    %1045 = vmatprep.subr.mxu0 0.0
    %1046 = vmatpush1.msra.mxu0 0.0
    %1047 = vmatprep.subr.mxu0 0.0
    %1048 = vmatpush1.msra.mxu0 0.0
    %1049 = vmatprep.subr.mxu0 0.0
    %1050 = vmatpush1.msra.mxu0 0.0
    %1051 = vmatprep.subr.mxu0 0.0
    %1052 = vmatpush1.msra.mxu0 0.0
    %1053 = vmatprep.subr.mxu0 0.0
    %1054 = vmatpush1.msra.mxu0 0.0
    %1055 = vmatprep.subr.mxu0 0.0
    %1056 = vmatpush1.msra.mxu0 0.0
    %1057 = vmatprep.mubr.f32.mxu0 0.0
    %1058 = vmatmul.mubr.f32.gmra.mrb[0].mxu0 %v991
    %v1059 = vpop.f32.mrb[0].mxu0
    %v1060 = vadd.f32 0.0, %v1059
    %v1061 = vpop.f32.mrb[0].mxu0
    %1062 = vdwg.mxu0
    %v1064 = vrot.slane %v1060, 6
    %v1066 = vadd.f32 %v407, %v1064
    %v1067 = vxor.u32 %v1066, 2147483648
    %v1068 = vmul.f32 %v1067, 1.442695
    %v1069 = vpow.pop %v1068
    %v1070 = vadd.f32 %v1069, 1.0
    %v1071 = vrcp.pop %v1070
    %v1072 = vmul.f32 1.0, %v1071
    %v1073 = vadd.f32 %v1060, %v492
    %v1075 = vrot.slane %v1073, 6
    %1076 = vrot.lane.b32.xlu0 %v1075, 64
    %v1077 = vpop.permute.xlu0 %1076
    %v1079 = vmul.f32 %v1072, %v1077
    %1081 = vrot.lane.b32.xlu0 %v1079, 64
    %v1082 = vpop.permute.xlu0 %1081
    %v1084 = vadd.f32 %v407, %v1082
    %v1085 = vtanh.pop %v1084
    %v1087 = vrot.slane %v1085, 2
    %v1089 = vsub.f32 %v985, %v1087
    %v1091 = vrot.slane %v1089, 6
    %1092 = vrot.lane.b32.xlu0 %v1091, 96
    %v1093 = vpop.permute.xlu0 %1092
    %v1095 = vmul.f32 %v1072, %v1093
    %1097 = vrot.lane.b32.xlu0 %v1095, 32
    %v1098 = vpop.permute.xlu0 %1097
    %v1100 = vadd.f32 %v1085, %v1098
    %1102 = vrot.lane.b32.xlu0 %v1100, 64
    %v1103 = vpop.permute.xlu0 %1102
    %1105 = vst.msk [vmem:[#allocation2 + $0x8] sm:$0xc] %vm637, %v1103
    %v1106 = vrot.slane %v1100, 2
    %1107 = vrot.lane.b32.xlu0 %v1106, 64
    %v1108 = vpop.permute.xlu0 %1107
    %v1109 = vsel %vm410, %v1108, 0
    %1111 = vmatprep.subr.mxu0 0.0
    %1112 = vmatpush1.msra.mxu0 %v311
    %1113 = vmatprep.subr.mxu0 0.0
    %1114 = vmatpush1.msra.mxu0 %v312
    %1115 = vmatprep.subr.mxu0 0.0
    %1116 = vmatpush1.msra.mxu0 %v313
    %1117 = vmatprep.subr.mxu0 0.0
    %1118 = vmatpush1.msra.mxu0 %v314
    %1119 = vmatprep.subr.mxu0 0.0
    %1120 = vmatpush1.msra.mxu0 0.0
    %1121 = vmatprep.subr.mxu0 0.0
    %1122 = vmatpush1.msra.mxu0 0.0
    %1123 = vmatprep.subr.mxu0 0.0
    %1124 = vmatpush1.msra.mxu0 0.0
    %1125 = vmatprep.subr.mxu0 0.0
    %1126 = vmatpush1.msra.mxu0 0.0
    %1127 = vmatprep.subr.mxu0 0.0
    %1128 = vmatpush1.msra.mxu0 0.0
    %1129 = vmatprep.subr.mxu0 0.0
    %1130 = vmatpush1.msra.mxu0 0.0
    %1131 = vmatprep.subr.mxu0 0.0
    %1132 = vmatpush1.msra.mxu0 0.0
    %1133 = vmatprep.subr.mxu0 0.0
    %1134 = vmatpush1.msra.mxu0 0.0
    %1135 = vmatprep.subr.mxu0 0.0
    %1136 = vmatpush1.msra.mxu0 0.0
    %1137 = vmatprep.subr.mxu0 0.0
    %1138 = vmatpush1.msra.mxu0 0.0
    %1139 = vmatprep.subr.mxu0 0.0
    %1140 = vmatpush1.msra.mxu0 0.0
    %1141 = vmatprep.subr.mxu0 0.0
    %1142 = vmatpush1.msra.mxu0 0.0
    %1143 = vmatprep.subr.mxu0 0.0
    %1144 = vmatpush1.msra.mxu0 0.0
    %1145 = vmatprep.subr.mxu0 0.0
    %1146 = vmatpush1.msra.mxu0 0.0
    %1147 = vmatprep.subr.mxu0 0.0
    %1148 = vmatpush1.msra.mxu0 0.0
    %1149 = vmatprep.subr.mxu0 0.0
    %1150 = vmatpush1.msra.mxu0 0.0
    %1151 = vmatprep.subr.mxu0 0.0
    %1152 = vmatpush1.msra.mxu0 0.0
    %1153 = vmatprep.subr.mxu0 0.0
    %1154 = vmatpush1.msra.mxu0 0.0
    %1155 = vmatprep.subr.mxu0 0.0
    %1156 = vmatpush1.msra.mxu0 0.0
    %1157 = vmatprep.subr.mxu0 0.0
    %1158 = vmatpush1.msra.mxu0 0.0
    %1159 = vmatprep.subr.mxu0 0.0
    %1160 = vmatpush1.msra.mxu0 0.0
    %1161 = vmatprep.subr.mxu0 0.0
    %1162 = vmatpush1.msra.mxu0 0.0
    %1163 = vmatprep.subr.mxu0 0.0
    %1164 = vmatpush1.msra.mxu0 0.0
    %1165 = vmatprep.subr.mxu0 0.0
    %1166 = vmatpush1.msra.mxu0 0.0
    %1167 = vmatprep.subr.mxu0 0.0
    %1168 = vmatpush1.msra.mxu0 0.0
    %1169 = vmatprep.subr.mxu0 0.0
    %1170 = vmatpush1.msra.mxu0 0.0
    %1171 = vmatprep.subr.mxu0 0.0
    %1172 = vmatpush1.msra.mxu0 0.0
    %1173 = vmatprep.subr.mxu0 0.0
    %1174 = vmatpush1.msra.mxu0 0.0
    %1175 = vmatprep.mubr.f32.mxu0 0.0
    %1176 = vmatmul.mubr.f32.gmra.mrb[0].mxu0 %v1109
    %v1177 = vpop.f32.mrb[0].mxu0
    %v1178 = vadd.f32 0.0, %v1177
    %v1179 = vpop.f32.mrb[0].mxu0
    %1180 = vdwg.mxu0
    %v1182 = vrot.slane %v1178, 4
    %v1184 = vadd.f32 %v407, %v1182
    %v1185 = vxor.u32 %v1184, 2147483648
    %v1186 = vmul.f32 %v1185, 1.442695
    %v1187 = vpow.pop %v1186
    %v1188 = vadd.f32 %v1187, 1.0
    %v1189 = vrcp.pop %v1188
    %v1190 = vmul.f32 1.0, %v1189
    %v1191 = vadd.f32 %v1178, %v492
    %v1193 = vrot.slane %v1191, 4
    %1194 = vrot.lane.b32.xlu0 %v1193, 64
    %v1195 = vpop.permute.xlu0 %1194
    %v1197 = vmul.f32 %v1190, %v1195
    %1199 = vrot.lane.b32.xlu0 %v1197, 64
    %v1200 = vpop.permute.xlu0 %1199
    %v1202 = vadd.f32 %v407, %v1200
    %v1203 = vtanh.pop %v1202
    %v1205 = vrot.slane %v1203, 2
    %v1207 = vsub.f32 %v1100, %v1205
    %v1209 = vrot.slane %v1207, 6
    %1210 = vrot.lane.b32.xlu0 %v1209, 96
    %v1211 = vpop.permute.xlu0 %1210
    %v1213 = vmul.f32 %v1190, %v1211
    %1215 = vrot.lane.b32.xlu0 %v1213, 32
    %v1216 = vpop.permute.xlu0 %1215
    %v1218 = vadd.f32 %v1203, %v1216
    %1220 = vrot.lane.b32.xlu0 %v1218, 64
    %v1221 = vpop.permute.xlu0 %1220
    %1223 = vst.msk [vmem:[#allocation2 + $0x8] sm:$0x30] %vm756, %v1221
    %v1224 = vrot.slane %v1218, 4
    %1225 = vrot.lane.b32.xlu0 %v1224, 64
    %v1226 = vpop.permute.xlu0 %1225
    %v1227 = vsel %vm410, %v1226, 0
    %1229 = vmatprep.subr.mxu0 0.0
    %1230 = vmatpush1.msra.mxu0 %v311
    %1231 = vmatprep.subr.mxu0 0.0
    %1232 = vmatpush1.msra.mxu0 %v312
    %1233 = vmatprep.subr.mxu0 0.0
    %1234 = vmatpush1.msra.mxu0 %v313
    %1235 = vmatprep.subr.mxu0 0.0
    %1236 = vmatpush1.msra.mxu0 %v314
    %1237 = vmatprep.subr.mxu0 0.0
    %1238 = vmatpush1.msra.mxu0 0.0
    %1239 = vmatprep.subr.mxu0 0.0
    %1240 = vmatpush1.msra.mxu0 0.0
    %1241 = vmatprep.subr.mxu0 0.0
    %1242 = vmatpush1.msra.mxu0 0.0
    %1243 = vmatprep.subr.mxu0 0.0
    %1244 = vmatpush1.msra.mxu0 0.0
    %1245 = vmatprep.subr.mxu0 0.0
    %1246 = vmatpush1.msra.mxu0 0.0
    %1247 = vmatprep.subr.mxu0 0.0
    %1248 = vmatpush1.msra.mxu0 0.0
    %1249 = vmatprep.subr.mxu0 0.0
    %1250 = vmatpush1.msra.mxu0 0.0
    %1251 = vmatprep.subr.mxu0 0.0
    %1252 = vmatpush1.msra.mxu0 0.0
    %1253 = vmatprep.subr.mxu0 0.0
    %1254 = vmatpush1.msra.mxu0 0.0
    %1255 = vmatprep.subr.mxu0 0.0
    %1256 = vmatpush1.msra.mxu0 0.0
    %1257 = vmatprep.subr.mxu0 0.0
    %1258 = vmatpush1.msra.mxu0 0.0
    %1259 = vmatprep.subr.mxu0 0.0
    %1260 = vmatpush1.msra.mxu0 0.0
    %1261 = vmatprep.subr.mxu0 0.0
    %1262 = vmatpush1.msra.mxu0 0.0
    %1263 = vmatprep.subr.mxu0 0.0
    %1264 = vmatpush1.msra.mxu0 0.0
    %1265 = vmatprep.subr.mxu0 0.0
    %1266 = vmatpush1.msra.mxu0 0.0
    %1267 = vmatprep.subr.mxu0 0.0
    %1268 = vmatpush1.msra.mxu0 0.0
    %1269 = vmatprep.subr.mxu0 0.0
    %1270 = vmatpush1.msra.mxu0 0.0
    %1271 = vmatprep.subr.mxu0 0.0
    %1272 = vmatpush1.msra.mxu0 0.0
    %1273 = vmatprep.subr.mxu0 0.0
    %1274 = vmatpush1.msra.mxu0 0.0
    %1275 = vmatprep.subr.mxu0 0.0
    %1276 = vmatpush1.msra.mxu0 0.0
    %1277 = vmatprep.subr.mxu0 0.0
    %1278 = vmatpush1.msra.mxu0 0.0
    %1279 = vmatprep.subr.mxu0 0.0
    %1280 = vmatpush1.msra.mxu0 0.0
    %1281 = vmatprep.subr.mxu0 0.0
    %1282 = vmatpush1.msra.mxu0 0.0
    %1283 = vmatprep.subr.mxu0 0.0
    %1284 = vmatpush1.msra.mxu0 0.0
    %1285 = vmatprep.subr.mxu0 0.0
    %1286 = vmatpush1.msra.mxu0 0.0
    %1287 = vmatprep.subr.mxu0 0.0
    %1288 = vmatpush1.msra.mxu0 0.0
    %1289 = vmatprep.subr.mxu0 0.0
    %1290 = vmatpush1.msra.mxu0 0.0
    %1291 = vmatprep.subr.mxu0 0.0
    %1292 = vmatpush1.msra.mxu0 0.0
    %1293 = vmatprep.mubr.f32.mxu0 0.0
    %1294 = vmatmul.mubr.f32.gmra.mrb[0].mxu0 %v1227
    %v1295 = vpop.f32.mrb[0].mxu0
    %v1296 = vadd.f32 0.0, %v1295
    %v1297 = vpop.f32.mrb[0].mxu0
    %1298 = vdwg.mxu0
    %v1300 = vrot.slane %v1296, 2
    %v1302 = vadd.f32 %v407, %v1300
    %v1303 = vxor.u32 %v1302, 2147483648
    %v1304 = vmul.f32 %v1303, 1.442695
    %v1305 = vpow.pop %v1304
    %v1306 = vadd.f32 %v1305, 1.0
    %v1307 = vrcp.pop %v1306
    %v1308 = vmul.f32 1.0, %v1307
    %v1309 = vadd.f32 %v1296, %v492
    %v1311 = vrot.slane %v1309, 2
    %1312 = vrot.lane.b32.xlu0 %v1311, 64
    %v1313 = vpop.permute.xlu0 %1312
    %v1315 = vmul.f32 %v1308, %v1313
    %1317 = vrot.lane.b32.xlu0 %v1315, 64
    %v1318 = vpop.permute.xlu0 %1317
    %v1320 = vadd.f32 %v407, %v1318
    %v1321 = vtanh.pop %v1320
    %v1323 = vrot.slane %v1321, 2
    %v1325 = vsub.f32 %v1218, %v1323
    %v1327 = vrot.slane %v1325, 6
    %1328 = vrot.lane.b32.xlu0 %v1327, 96
    %v1329 = vpop.permute.xlu0 %1328
    %v1331 = vmul.f32 %v1308, %v1329
    %1333 = vrot.lane.b32.xlu0 %v1331, 32
    %v1334 = vpop.permute.xlu0 %1333
    %v1336 = vadd.f32 %v1321, %v1334
    %1338 = vrot.lane.b32.xlu0 %v1336, 64
    %v1339 = vpop.permute.xlu0 %1338
    %1341 = vst.msk [vmem:[#allocation2 + $0x8] sm:$0xc0] %vm875, %v1339
    %v1342 = vld [vmem:[%s5] sm:$0xff]
    %v1343 = vld [vmem:[%s5 + $0x8] sm:$0xff]
    %v1344 = vld [vmem:[%s5 + $0x10] sm:$0xff]
    %v1345 = vld [vmem:[%s5 + $0x18] sm:$0xff]
    %v1346 = vld [vmem:[#allocation9] sm:$0xff]
    %v1347 = vld [vmem:[#allocation9 + $0x8] sm:$0xff]
    %v1348 = vld [vmem:[#allocation9 + $0x10] sm:$0xff]
    %v1349 = vld [vmem:[#allocation9 + $0x18] sm:$0xff]
    %v1350 = vld [vmem:[#allocation11] sm:$0x1]
    %v1351 = vld [vmem:[#allocation12] sm:$0x1]
    %v1353 = vlaneseq
    %v1354 = vshrl.u32 %v1353, 7
    %v1355 = vsub.s32 0, %v1354
    %v1356 = vrot.slane %v1351, %v1355
    %v1357 = vld [vmem:[#allocation2] sm:$0xff]
    %v1358 = vld [vmem:[#allocation2 + $0x8] sm:$0xff]
    %v1360 = vlaneseq
    %v1361 = vshrl.u32 %v1360, 7
    %v1362 = vsub.s32 0, %v1361
    %v1363 = vrot.slane %v1350, %v1362
    %v1366 = vsel %vm410, %v1357, 0
    %v1369 = vsel %vm410, %v1358, 0
    %1371 = vmatprep.subr.mxu0 0.0
    %1372 = vmatpush1.msra.mxu0 %v1342
    %1373 = vmatprep.subr.mxu0 0.0
    %1374 = vmatpush1.msra.mxu0 %v1343
    %1375 = vmatprep.subr.mxu0 0.0
    %1376 = vmatpush1.msra.mxu0 %v1344
    %1377 = vmatprep.subr.mxu0 0.0
    %1378 = vmatpush1.msra.mxu0 %v1345
    %1379 = vmatprep.subr.mxu0 0.0
    %1380 = vmatpush1.msra.mxu0 0.0
    %1381 = vmatprep.subr.mxu0 0.0
    %1382 = vmatpush1.msra.mxu0 0.0
    %1383 = vmatprep.subr.mxu0 0.0
    %1384 = vmatpush1.msra.mxu0 0.0
    %1385 = vmatprep.subr.mxu0 0.0
    %1386 = vmatpush1.msra.mxu0 0.0
    %1387 = vmatprep.subr.mxu0 0.0
    %1388 = vmatpush1.msra.mxu0 0.0
    %1389 = vmatprep.subr.mxu0 0.0
    %1390 = vmatpush1.msra.mxu0 0.0
    %1391 = vmatprep.subr.mxu0 0.0
    %1392 = vmatpush1.msra.mxu0 0.0
    %1393 = vmatprep.subr.mxu0 0.0
    %1394 = vmatpush1.msra.mxu0 0.0
    %1395 = vmatprep.subr.mxu0 0.0
    %1396 = vmatpush1.msra.mxu0 0.0
    %1397 = vmatprep.subr.mxu0 0.0
    %1398 = vmatpush1.msra.mxu0 0.0
    %1399 = vmatprep.subr.mxu0 0.0
    %1400 = vmatpush1.msra.mxu0 0.0
    %1401 = vmatprep.subr.mxu0 0.0
    %1402 = vmatpush1.msra.mxu0 0.0
    %1403 = vmatprep.subr.mxu0 0.0
    %1404 = vmatpush1.msra.mxu0 0.0
    %1405 = vmatprep.subr.mxu0 0.0
    %1406 = vmatpush1.msra.mxu0 0.0
    %1407 = vmatprep.subr.mxu0 0.0
    %1408 = vmatpush1.msra.mxu0 0.0
    %1409 = vmatprep.subr.mxu0 0.0
    %1410 = vmatpush1.msra.mxu0 0.0
    %1411 = vmatprep.subr.mxu0 0.0
    %1412 = vmatpush1.msra.mxu0 0.0
    %1413 = vmatprep.subr.mxu0 0.0
    %1414 = vmatpush1.msra.mxu0 0.0
    %1415 = vmatprep.subr.mxu0 0.0
    %1416 = vmatpush1.msra.mxu0 0.0
    %1417 = vmatprep.subr.mxu0 0.0
    %1418 = vmatpush1.msra.mxu0 0.0
    %1419 = vmatprep.subr.mxu0 0.0
    %1420 = vmatpush1.msra.mxu0 0.0
    %1421 = vmatprep.subr.mxu0 0.0
    %1422 = vmatpush1.msra.mxu0 0.0
    %1423 = vmatprep.subr.mxu0 0.0
    %1424 = vmatpush1.msra.mxu0 0.0
    %1425 = vmatprep.subr.mxu0 0.0
    %1426 = vmatpush1.msra.mxu0 0.0
    %1427 = vmatprep.subr.mxu0 0.0
    %1428 = vmatpush1.msra.mxu0 0.0
    %1429 = vmatprep.subr.mxu0 0.0
    %1430 = vmatpush1.msra.mxu0 0.0
    %1431 = vmatprep.subr.mxu0 0.0
    %1432 = vmatpush1.msra.mxu0 0.0
    %1433 = vmatprep.subr.mxu0 0.0
    %1434 = vmatpush1.msra.mxu0 0.0
    %1435 = vmatprep.mubr.f32.mxu0 0.0
    %1436 = vmatmul.mubr.f32.gmra.mrb[0].mxu0 %v1366
    %v1437 = vpop.f32.mrb[0].mxu0
    %v1438 = vadd.f32 %v1363, %v1437
    %v1439 = vpop.f32.mrb[0].mxu0
    %1440 = vmatprep.mubr.f32.mxu0 0.0
    %1441 = vmatmul.mubr.f32.gmra.mrb[0].mxu0 %v1369
    %v1442 = vpop.f32.mrb[0].mxu0
    %v1443 = vadd.f32 %v1363, %v1442
    %v1444 = vpop.f32.mrb[0].mxu0
    %1445 = vdwg.mxu0
    %1446 = vmatprep.subr.mxu0 0.0
    %1447 = vmatpush1.msra.mxu0 %v1346
    %1448 = vmatprep.subr.mxu0 0.0
    %1449 = vmatpush1.msra.mxu0 %v1347
    %1450 = vmatprep.subr.mxu0 0.0
    %1451 = vmatpush1.msra.mxu0 %v1348
    %1452 = vmatprep.subr.mxu0 0.0
    %1453 = vmatpush1.msra.mxu0 %v1349
    %1454 = vmatprep.subr.mxu0 0.0
    %1455 = vmatpush1.msra.mxu0 0.0
    %1456 = vmatprep.subr.mxu0 0.0
    %1457 = vmatpush1.msra.mxu0 0.0
    %1458 = vmatprep.subr.mxu0 0.0
    %1459 = vmatpush1.msra.mxu0 0.0
    %1460 = vmatprep.subr.mxu0 0.0
    %1461 = vmatpush1.msra.mxu0 0.0
    %1462 = vmatprep.subr.mxu0 0.0
    %1463 = vmatpush1.msra.mxu0 0.0
    %1464 = vmatprep.subr.mxu0 0.0
    %1465 = vmatpush1.msra.mxu0 0.0
    %1466 = vmatprep.subr.mxu0 0.0
    %1467 = vmatpush1.msra.mxu0 0.0
    %1468 = vmatprep.subr.mxu0 0.0
    %1469 = vmatpush1.msra.mxu0 0.0
    %1470 = vmatprep.subr.mxu0 0.0
    %1471 = vmatpush1.msra.mxu0 0.0
    %1472 = vmatprep.subr.mxu0 0.0
    %1473 = vmatpush1.msra.mxu0 0.0
    %1474 = vmatprep.subr.mxu0 0.0
    %1475 = vmatpush1.msra.mxu0 0.0
    %1476 = vmatprep.subr.mxu0 0.0
    %1477 = vmatpush1.msra.mxu0 0.0
    %1478 = vmatprep.subr.mxu0 0.0
    %1479 = vmatpush1.msra.mxu0 0.0
    %1480 = vmatprep.subr.mxu0 0.0
    %1481 = vmatpush1.msra.mxu0 0.0
    %1482 = vmatprep.subr.mxu0 0.0
    %1483 = vmatpush1.msra.mxu0 0.0
    %1484 = vmatprep.subr.mxu0 0.0
    %1485 = vmatpush1.msra.mxu0 0.0
    %1486 = vmatprep.subr.mxu0 0.0
    %1487 = vmatpush1.msra.mxu0 0.0
    %1488 = vmatprep.subr.mxu0 0.0
    %1489 = vmatpush1.msra.mxu0 0.0
    %1490 = vmatprep.subr.mxu0 0.0
    %1491 = vmatpush1.msra.mxu0 0.0
    %1492 = vmatprep.subr.mxu0 0.0
    %1493 = vmatpush1.msra.mxu0 0.0
    %1494 = vmatprep.subr.mxu0 0.0
    %1495 = vmatpush1.msra.mxu0 0.0
    %1496 = vmatprep.subr.mxu0 0.0
    %1497 = vmatpush1.msra.mxu0 0.0
    %1498 = vmatprep.subr.mxu0 0.0
    %1499 = vmatpush1.msra.mxu0 0.0
    %1500 = vmatprep.subr.mxu0 0.0
    %1501 = vmatpush1.msra.mxu0 0.0
    %1502 = vmatprep.subr.mxu0 0.0
    %1503 = vmatpush1.msra.mxu0 0.0
    %1504 = vmatprep.subr.mxu0 0.0
    %1505 = vmatpush1.msra.mxu0 0.0
    %1506 = vmatprep.subr.mxu0 0.0
    %1507 = vmatpush1.msra.mxu0 0.0
    %1508 = vmatprep.subr.mxu0 0.0
    %1509 = vmatpush1.msra.mxu0 0.0
    %1510 = vmatprep.mubr.f32.mxu0 0.0
    %1511 = vmatmul.mubr.f32.gmra.mrb[0].mxu0 %v412
    %v1512 = vpop.f32.mrb[0].mxu0
    %v1513 = vadd.f32 0.0, %v1512
    %v1514 = vpop.f32.mrb[0].mxu0
    %1515 = vdwg.mxu0
    %v1516 = vadd.f32 %v1438, %v1513
    %v1517 = vxor.u32 %v1516, 2147483648
    %v1518 = vmul.f32 %v1517, 1.442695
    %v1519 = vpow.pop %v1518
    %v1520 = vadd.f32 %v1519, 1.0
    %v1521 = vrcp.pop %v1520
    %v1522 = vmul.f32 1.0, %v1521
    %1523 = vrot.lane.b32.xlu0 %v1356, 64
    %v1524 = vpop.permute.xlu0 %1523
    %v1526 = vadd.f32 %v1513, %v1524
    %1528 = vrot.lane.b32.xlu0 %v1526, 64
    %v1529 = vpop.permute.xlu0 %1528
    %v1531 = vmul.f32 %v1522, %v1529
    %1533 = vrot.lane.b32.xlu0 %v1531, 64
    %v1534 = vpop.permute.xlu0 %1533
    %v1536 = vadd.f32 %v1438, %v1534
    %v1537 = vtanh.pop %v1536
    %v1538 = vsub.f32 0.0, %v1537
    %1540 = vrot.lane.b32.xlu0 %v1538, 96
    %v1541 = vpop.permute.xlu0 %1540
    %v1543 = vmul.f32 %v1522, %v1541
    %1545 = vrot.lane.b32.xlu0 %v1543, 32
    %v1546 = vpop.permute.xlu0 %1545
    %v1548 = vadd.f32 %v1537, %v1546
    %1550 = vrot.lane.b32.xlu0 %v1548, 64
    %v1551 = vpop.permute.xlu0 %1550
    %1553 = vst.msk [vmem:[#allocation2] sm:$0x3] %vm521, %v1551
    %v1554 = vsel %vm410, %v1551, 0
    %1556 = vmatprep.subr.mxu0 0.0
    %1557 = vmatpush1.msra.mxu0 %v1346
    %1558 = vmatprep.subr.mxu0 0.0
    %1559 = vmatpush1.msra.mxu0 %v1347
    %1560 = vmatprep.subr.mxu0 0.0
    %1561 = vmatpush1.msra.mxu0 %v1348
    %1562 = vmatprep.subr.mxu0 0.0
    %1563 = vmatpush1.msra.mxu0 %v1349
    %1564 = vmatprep.subr.mxu0 0.0
    %1565 = vmatpush1.msra.mxu0 0.0
    %1566 = vmatprep.subr.mxu0 0.0
    %1567 = vmatpush1.msra.mxu0 0.0
    %1568 = vmatprep.subr.mxu0 0.0
    %1569 = vmatpush1.msra.mxu0 0.0
    %1570 = vmatprep.subr.mxu0 0.0
    %1571 = vmatpush1.msra.mxu0 0.0
    %1572 = vmatprep.subr.mxu0 0.0
    %1573 = vmatpush1.msra.mxu0 0.0
    %1574 = vmatprep.subr.mxu0 0.0
    %1575 = vmatpush1.msra.mxu0 0.0
    %1576 = vmatprep.subr.mxu0 0.0
    %1577 = vmatpush1.msra.mxu0 0.0
    %1578 = vmatprep.subr.mxu0 0.0
    %1579 = vmatpush1.msra.mxu0 0.0
    %1580 = vmatprep.subr.mxu0 0.0
    %1581 = vmatpush1.msra.mxu0 0.0
    %1582 = vmatprep.subr.mxu0 0.0
    %1583 = vmatpush1.msra.mxu0 0.0
    %1584 = vmatprep.subr.mxu0 0.0
    %1585 = vmatpush1.msra.mxu0 0.0
    %1586 = vmatprep.subr.mxu0 0.0
    %1587 = vmatpush1.msra.mxu0 0.0
    %1588 = vmatprep.subr.mxu0 0.0
    %1589 = vmatpush1.msra.mxu0 0.0
    %1590 = vmatprep.subr.mxu0 0.0
    %1591 = vmatpush1.msra.mxu0 0.0
    %1592 = vmatprep.subr.mxu0 0.0
    %1593 = vmatpush1.msra.mxu0 0.0
    %1594 = vmatprep.subr.mxu0 0.0
    %1595 = vmatpush1.msra.mxu0 0.0
    %1596 = vmatprep.subr.mxu0 0.0
    %1597 = vmatpush1.msra.mxu0 0.0
    %1598 = vmatprep.subr.mxu0 0.0
    %1599 = vmatpush1.msra.mxu0 0.0
    %1600 = vmatprep.subr.mxu0 0.0
    %1601 = vmatpush1.msra.mxu0 0.0
    %1602 = vmatprep.subr.mxu0 0.0
    %1603 = vmatpush1.msra.mxu0 0.0
    %1604 = vmatprep.subr.mxu0 0.0
    %1605 = vmatpush1.msra.mxu0 0.0
    %1606 = vmatprep.subr.mxu0 0.0
    %1607 = vmatpush1.msra.mxu0 0.0
    %1608 = vmatprep.subr.mxu0 0.0
    %1609 = vmatpush1.msra.mxu0 0.0
    %1610 = vmatprep.subr.mxu0 0.0
    %1611 = vmatpush1.msra.mxu0 0.0
    %1612 = vmatprep.subr.mxu0 0.0
    %1613 = vmatpush1.msra.mxu0 0.0
    %1614 = vmatprep.subr.mxu0 0.0
    %1615 = vmatpush1.msra.mxu0 0.0
    %1616 = vmatprep.subr.mxu0 0.0
    %1617 = vmatpush1.msra.mxu0 0.0
    %1618 = vmatprep.subr.mxu0 0.0
    %1619 = vmatpush1.msra.mxu0 0.0
    %1620 = vmatprep.mubr.f32.mxu0 0.0
    %1621 = vmatmul.mubr.f32.gmra.mrb[0].mxu0 %v1554
    %v1622 = vpop.f32.mrb[0].mxu0
    %v1623 = vadd.f32 0.0, %v1622
    %v1624 = vpop.f32.mrb[0].mxu0
    %1625 = vdwg.mxu0
    %v1627 = vrot.slane %v1623, 6
    %v1629 = vadd.f32 %v1438, %v1627
    %v1630 = vxor.u32 %v1629, 2147483648
    %v1631 = vmul.f32 %v1630, 1.442695
    %v1632 = vpow.pop %v1631
    %v1633 = vadd.f32 %v1632, 1.0
    %v1634 = vrcp.pop %v1633
    %v1635 = vmul.f32 1.0, %v1634
    %v1636 = vadd.f32 %v1623, %v1524
    %v1638 = vrot.slane %v1636, 6
    %1639 = vrot.lane.b32.xlu0 %v1638, 64
    %v1640 = vpop.permute.xlu0 %1639
    %v1642 = vmul.f32 %v1635, %v1640
    %1644 = vrot.lane.b32.xlu0 %v1642, 64
    %v1645 = vpop.permute.xlu0 %1644
    %v1647 = vadd.f32 %v1438, %v1645
    %v1648 = vtanh.pop %v1647
    %v1650 = vrot.slane %v1648, 2
    %v1652 = vsub.f32 %v1548, %v1650
    %v1654 = vrot.slane %v1652, 6
    %1655 = vrot.lane.b32.xlu0 %v1654, 96
    %v1656 = vpop.permute.xlu0 %1655
    %v1658 = vmul.f32 %v1635, %v1656
    %1660 = vrot.lane.b32.xlu0 %v1658, 32
    %v1661 = vpop.permute.xlu0 %1660
    %v1663 = vadd.f32 %v1648, %v1661
    %1665 = vrot.lane.b32.xlu0 %v1663, 64
    %v1666 = vpop.permute.xlu0 %1665
    %1668 = vst.msk [vmem:[#allocation2] sm:$0xc] %vm637, %v1666
    %v1669 = vrot.slane %v1663, 2
    %1670 = vrot.lane.b32.xlu0 %v1669, 64
    %v1671 = vpop.permute.xlu0 %1670
    %v1672 = vsel %vm410, %v1671, 0
    %1674 = vmatprep.subr.mxu0 0.0
    %1675 = vmatpush1.msra.mxu0 %v1346
    %1676 = vmatprep.subr.mxu0 0.0
    %1677 = vmatpush1.msra.mxu0 %v1347
    %1678 = vmatprep.subr.mxu0 0.0
    %1679 = vmatpush1.msra.mxu0 %v1348
    %1680 = vmatprep.subr.mxu0 0.0
    %1681 = vmatpush1.msra.mxu0 %v1349
    %1682 = vmatprep.subr.mxu0 0.0
    %1683 = vmatpush1.msra.mxu0 0.0
    %1684 = vmatprep.subr.mxu0 0.0
    %1685 = vmatpush1.msra.mxu0 0.0
    %1686 = vmatprep.subr.mxu0 0.0
    %1687 = vmatpush1.msra.mxu0 0.0
    %1688 = vmatprep.subr.mxu0 0.0
    %1689 = vmatpush1.msra.mxu0 0.0
    %1690 = vmatprep.subr.mxu0 0.0
    %1691 = vmatpush1.msra.mxu0 0.0
    %1692 = vmatprep.subr.mxu0 0.0
    %1693 = vmatpush1.msra.mxu0 0.0
    %1694 = vmatprep.subr.mxu0 0.0
    %1695 = vmatpush1.msra.mxu0 0.0
    %1696 = vmatprep.subr.mxu0 0.0
    %1697 = vmatpush1.msra.mxu0 0.0
    %1698 = vmatprep.subr.mxu0 0.0
    %1699 = vmatpush1.msra.mxu0 0.0
    %1700 = vmatprep.subr.mxu0 0.0
    %1701 = vmatpush1.msra.mxu0 0.0
    %1702 = vmatprep.subr.mxu0 0.0
    %1703 = vmatpush1.msra.mxu0 0.0
    %1704 = vmatprep.subr.mxu0 0.0
    %1705 = vmatpush1.msra.mxu0 0.0
    %1706 = vmatprep.subr.mxu0 0.0
    %1707 = vmatpush1.msra.mxu0 0.0
    %1708 = vmatprep.subr.mxu0 0.0
    %1709 = vmatpush1.msra.mxu0 0.0
    %1710 = vmatprep.subr.mxu0 0.0
    %1711 = vmatpush1.msra.mxu0 0.0
    %1712 = vmatprep.subr.mxu0 0.0
    %1713 = vmatpush1.msra.mxu0 0.0
    %1714 = vmatprep.subr.mxu0 0.0
    %1715 = vmatpush1.msra.mxu0 0.0
    %1716 = vmatprep.subr.mxu0 0.0
    %1717 = vmatpush1.msra.mxu0 0.0
    %1718 = vmatprep.subr.mxu0 0.0
    %1719 = vmatpush1.msra.mxu0 0.0
    %1720 = vmatprep.subr.mxu0 0.0
    %1721 = vmatpush1.msra.mxu0 0.0
    %1722 = vmatprep.subr.mxu0 0.0
    %1723 = vmatpush1.msra.mxu0 0.0
    %1724 = vmatprep.subr.mxu0 0.0
    %1725 = vmatpush1.msra.mxu0 0.0
    %1726 = vmatprep.subr.mxu0 0.0
    %1727 = vmatpush1.msra.mxu0 0.0
    %1728 = vmatprep.subr.mxu0 0.0
    %1729 = vmatpush1.msra.mxu0 0.0
    %1730 = vmatprep.subr.mxu0 0.0
    %1731 = vmatpush1.msra.mxu0 0.0
    %1732 = vmatprep.subr.mxu0 0.0
    %1733 = vmatpush1.msra.mxu0 0.0
    %1734 = vmatprep.subr.mxu0 0.0
    %1735 = vmatpush1.msra.mxu0 0.0
    %1736 = vmatprep.subr.mxu0 0.0
    %1737 = vmatpush1.msra.mxu0 0.0
    %1738 = vmatprep.mubr.f32.mxu0 0.0
    %1739 = vmatmul.mubr.f32.gmra.mrb[0].mxu0 %v1672
    %v1740 = vpop.f32.mrb[0].mxu0
    %v1741 = vadd.f32 0.0, %v1740
    %v1742 = vpop.f32.mrb[0].mxu0
    %1743 = vdwg.mxu0
    %v1745 = vrot.slane %v1741, 4
    %v1747 = vadd.f32 %v1438, %v1745
    %v1748 = vxor.u32 %v1747, 2147483648
    %v1749 = vmul.f32 %v1748, 1.442695
    %v1750 = vpow.pop %v1749
    %v1751 = vadd.f32 %v1750, 1.0
    %v1752 = vrcp.pop %v1751
    %v1753 = vmul.f32 1.0, %v1752
    %v1754 = vadd.f32 %v1741, %v1524
    %v1756 = vrot.slane %v1754, 4
    %1757 = vrot.lane.b32.xlu0 %v1756, 64
    %v1758 = vpop.permute.xlu0 %1757
    %v1760 = vmul.f32 %v1753, %v1758
    %1762 = vrot.lane.b32.xlu0 %v1760, 64
    %v1763 = vpop.permute.xlu0 %1762
    %v1765 = vadd.f32 %v1438, %v1763
    %v1766 = vtanh.pop %v1765
    %v1768 = vrot.slane %v1766, 2
    %v1770 = vsub.f32 %v1663, %v1768
    %v1772 = vrot.slane %v1770, 6
    %1773 = vrot.lane.b32.xlu0 %v1772, 96
    %v1774 = vpop.permute.xlu0 %1773
    %v1776 = vmul.f32 %v1753, %v1774
    %1778 = vrot.lane.b32.xlu0 %v1776, 32
    %v1779 = vpop.permute.xlu0 %1778
    %v1781 = vadd.f32 %v1766, %v1779
    %1783 = vrot.lane.b32.xlu0 %v1781, 64
    %v1784 = vpop.permute.xlu0 %1783
    %1786 = vst.msk [vmem:[#allocation2] sm:$0x30] %vm756, %v1784
    %v1787 = vrot.slane %v1781, 4
    %1788 = vrot.lane.b32.xlu0 %v1787, 64
    %v1789 = vpop.permute.xlu0 %1788
    %v1790 = vsel %vm410, %v1789, 0
    %1792 = vmatprep.subr.mxu0 0.0
    %1793 = vmatpush1.msra.mxu0 %v1346
    %1794 = vmatprep.subr.mxu0 0.0
    %1795 = vmatpush1.msra.mxu0 %v1347
    %1796 = vmatprep.subr.mxu0 0.0
    %1797 = vmatpush1.msra.mxu0 %v1348
    %1798 = vmatprep.subr.mxu0 0.0
    %1799 = vmatpush1.msra.mxu0 %v1349
    %1800 = vmatprep.subr.mxu0 0.0
    %1801 = vmatpush1.msra.mxu0 0.0
    %1802 = vmatprep.subr.mxu0 0.0
    %1803 = vmatpush1.msra.mxu0 0.0
    %1804 = vmatprep.subr.mxu0 0.0
    %1805 = vmatpush1.msra.mxu0 0.0
    %1806 = vmatprep.subr.mxu0 0.0
    %1807 = vmatpush1.msra.mxu0 0.0
    %1808 = vmatprep.subr.mxu0 0.0
    %1809 = vmatpush1.msra.mxu0 0.0
    %1810 = vmatprep.subr.mxu0 0.0
    %1811 = vmatpush1.msra.mxu0 0.0
    %1812 = vmatprep.subr.mxu0 0.0
    %1813 = vmatpush1.msra.mxu0 0.0
    %1814 = vmatprep.subr.mxu0 0.0
    %1815 = vmatpush1.msra.mxu0 0.0
    %1816 = vmatprep.subr.mxu0 0.0
    %1817 = vmatpush1.msra.mxu0 0.0
    %1818 = vmatprep.subr.mxu0 0.0
    %1819 = vmatpush1.msra.mxu0 0.0
    %1820 = vmatprep.subr.mxu0 0.0
    %1821 = vmatpush1.msra.mxu0 0.0
    %1822 = vmatprep.subr.mxu0 0.0
    %1823 = vmatpush1.msra.mxu0 0.0
    %1824 = vmatprep.subr.mxu0 0.0
    %1825 = vmatpush1.msra.mxu0 0.0
    %1826 = vmatprep.subr.mxu0 0.0
    %1827 = vmatpush1.msra.mxu0 0.0
    %1828 = vmatprep.subr.mxu0 0.0
    %1829 = vmatpush1.msra.mxu0 0.0
    %1830 = vmatprep.subr.mxu0 0.0
    %1831 = vmatpush1.msra.mxu0 0.0
    %1832 = vmatprep.subr.mxu0 0.0
    %1833 = vmatpush1.msra.mxu0 0.0
    %1834 = vmatprep.subr.mxu0 0.0
    %1835 = vmatpush1.msra.mxu0 0.0
    %1836 = vmatprep.subr.mxu0 0.0
    %1837 = vmatpush1.msra.mxu0 0.0
    %1838 = vmatprep.subr.mxu0 0.0
    %1839 = vmatpush1.msra.mxu0 0.0
    %1840 = vmatprep.subr.mxu0 0.0
    %1841 = vmatpush1.msra.mxu0 0.0
    %1842 = vmatprep.subr.mxu0 0.0
    %1843 = vmatpush1.msra.mxu0 0.0
    %1844 = vmatprep.subr.mxu0 0.0
    %1845 = vmatpush1.msra.mxu0 0.0
    %1846 = vmatprep.subr.mxu0 0.0
    %1847 = vmatpush1.msra.mxu0 0.0
    %1848 = vmatprep.subr.mxu0 0.0
    %1849 = vmatpush1.msra.mxu0 0.0
    %1850 = vmatprep.subr.mxu0 0.0
    %1851 = vmatpush1.msra.mxu0 0.0
    %1852 = vmatprep.subr.mxu0 0.0
    %1853 = vmatpush1.msra.mxu0 0.0
    %1854 = vmatprep.subr.mxu0 0.0
    %1855 = vmatpush1.msra.mxu0 0.0
    %1856 = vmatprep.mubr.f32.mxu0 0.0
    %1857 = vmatmul.mubr.f32.gmra.mrb[0].mxu0 %v1790
    %v1858 = vpop.f32.mrb[0].mxu0
    %v1859 = vadd.f32 0.0, %v1858
    %v1860 = vpop.f32.mrb[0].mxu0
    %1861 = vdwg.mxu0
    %v1863 = vrot.slane %v1859, 2
    %v1865 = vadd.f32 %v1438, %v1863
    %v1866 = vxor.u32 %v1865, 2147483648
    %v1867 = vmul.f32 %v1866, 1.442695
    %v1868 = vpow.pop %v1867
    %v1869 = vadd.f32 %v1868, 1.0
    %v1870 = vrcp.pop %v1869
    %v1871 = vmul.f32 1.0, %v1870
    %v1872 = vadd.f32 %v1859, %v1524
    %v1874 = vrot.slane %v1872, 2
    %1875 = vrot.lane.b32.xlu0 %v1874, 64
    %v1876 = vpop.permute.xlu0 %1875
    %v1878 = vmul.f32 %v1871, %v1876
    %1880 = vrot.lane.b32.xlu0 %v1878, 64
    %v1881 = vpop.permute.xlu0 %1880
    %v1883 = vadd.f32 %v1438, %v1881
    %v1884 = vtanh.pop %v1883
    %v1886 = vrot.slane %v1884, 2
    %v1888 = vsub.f32 %v1781, %v1886
    %v1890 = vrot.slane %v1888, 6
    %1891 = vrot.lane.b32.xlu0 %v1890, 96
    %v1892 = vpop.permute.xlu0 %1891
    %v1894 = vmul.f32 %v1871, %v1892
    %1896 = vrot.lane.b32.xlu0 %v1894, 32
    %v1897 = vpop.permute.xlu0 %1896
    %v1899 = vadd.f32 %v1884, %v1897
    %1901 = vrot.lane.b32.xlu0 %v1899, 64
    %v1902 = vpop.permute.xlu0 %1901
    %1904 = vst.msk [vmem:[#allocation2] sm:$0xc0] %vm875, %v1902
    %v1905 = vrot.slane %v1899, 6
    %1906 = vrot.lane.b32.xlu0 %v1905, 64
    %v1907 = vpop.permute.xlu0 %1906
    %v1908 = vsel %vm410, %v1907, 0
    %1910 = vmatprep.subr.mxu0 0.0
    %1911 = vmatpush1.msra.mxu0 %v1346
    %1912 = vmatprep.subr.mxu0 0.0
    %1913 = vmatpush1.msra.mxu0 %v1347
    %1914 = vmatprep.subr.mxu0 0.0
    %1915 = vmatpush1.msra.mxu0 %v1348
    %1916 = vmatprep.subr.mxu0 0.0
    %1917 = vmatpush1.msra.mxu0 %v1349
    %1918 = vmatprep.subr.mxu0 0.0
    %1919 = vmatpush1.msra.mxu0 0.0
    %1920 = vmatprep.subr.mxu0 0.0
    %1921 = vmatpush1.msra.mxu0 0.0
    %1922 = vmatprep.subr.mxu0 0.0
    %1923 = vmatpush1.msra.mxu0 0.0
    %1924 = vmatprep.subr.mxu0 0.0
    %1925 = vmatpush1.msra.mxu0 0.0
    %1926 = vmatprep.subr.mxu0 0.0
    %1927 = vmatpush1.msra.mxu0 0.0
    %1928 = vmatprep.subr.mxu0 0.0
    %1929 = vmatpush1.msra.mxu0 0.0
    %1930 = vmatprep.subr.mxu0 0.0
    %1931 = vmatpush1.msra.mxu0 0.0
    %1932 = vmatprep.subr.mxu0 0.0
    %1933 = vmatpush1.msra.mxu0 0.0
    %1934 = vmatprep.subr.mxu0 0.0
    %1935 = vmatpush1.msra.mxu0 0.0
    %1936 = vmatprep.subr.mxu0 0.0
    %1937 = vmatpush1.msra.mxu0 0.0
    %1938 = vmatprep.subr.mxu0 0.0
    %1939 = vmatpush1.msra.mxu0 0.0
    %1940 = vmatprep.subr.mxu0 0.0
    %1941 = vmatpush1.msra.mxu0 0.0
    %1942 = vmatprep.subr.mxu0 0.0
    %1943 = vmatpush1.msra.mxu0 0.0
    %1944 = vmatprep.subr.mxu0 0.0
    %1945 = vmatpush1.msra.mxu0 0.0
    %1946 = vmatprep.subr.mxu0 0.0
    %1947 = vmatpush1.msra.mxu0 0.0
    %1948 = vmatprep.subr.mxu0 0.0
    %1949 = vmatpush1.msra.mxu0 0.0
    %1950 = vmatprep.subr.mxu0 0.0
    %1951 = vmatpush1.msra.mxu0 0.0
    %1952 = vmatprep.subr.mxu0 0.0
    %1953 = vmatpush1.msra.mxu0 0.0
    %1954 = vmatprep.subr.mxu0 0.0
    %1955 = vmatpush1.msra.mxu0 0.0
    %1956 = vmatprep.subr.mxu0 0.0
    %1957 = vmatpush1.msra.mxu0 0.0
    %1958 = vmatprep.subr.mxu0 0.0
    %1959 = vmatpush1.msra.mxu0 0.0
    %1960 = vmatprep.subr.mxu0 0.0
    %1961 = vmatpush1.msra.mxu0 0.0
    %1962 = vmatprep.subr.mxu0 0.0
    %1963 = vmatpush1.msra.mxu0 0.0
    %1964 = vmatprep.subr.mxu0 0.0
    %1965 = vmatpush1.msra.mxu0 0.0
    %1966 = vmatprep.subr.mxu0 0.0
    %1967 = vmatpush1.msra.mxu0 0.0
    %1968 = vmatprep.subr.mxu0 0.0
    %1969 = vmatpush1.msra.mxu0 0.0
    %1970 = vmatprep.subr.mxu0 0.0
    %1971 = vmatpush1.msra.mxu0 0.0
    %1972 = vmatprep.subr.mxu0 0.0
    %1973 = vmatpush1.msra.mxu0 0.0
    %1974 = vmatprep.mubr.f32.mxu0 0.0
    %1975 = vmatmul.mubr.f32.gmra.mrb[0].mxu0 %v1908
    %v1976 = vpop.f32.mrb[0].mxu0
    %v1977 = vadd.f32 0.0, %v1976
    %v1978 = vpop.f32.mrb[0].mxu0
    %1979 = vdwg.mxu0
    %v1980 = vadd.f32 %v1443, %v1977
    %v1981 = vxor.u32 %v1980, 2147483648
    %v1982 = vmul.f32 %v1981, 1.442695
    %v1983 = vpow.pop %v1982
    %v1984 = vadd.f32 %v1983, 1.0
    %v1985 = vrcp.pop %v1984
    %v1986 = vmul.f32 1.0, %v1985
    %v1987 = vadd.f32 %v1977, %v1524
    %1989 = vrot.lane.b32.xlu0 %v1987, 64
    %v1990 = vpop.permute.xlu0 %1989
    %v1992 = vmul.f32 %v1986, %v1990
    %1994 = vrot.lane.b32.xlu0 %v1992, 64
    %v1995 = vpop.permute.xlu0 %1994
    %v1997 = vadd.f32 %v1443, %v1995
    %v1998 = vtanh.pop %v1997
    %v2000 = vrot.slane %v1998, 2
    %v2002 = vsub.f32 %v1899, %v2000
    %v2004 = vrot.slane %v2002, 6
    %2005 = vrot.lane.b32.xlu0 %v2004, 96
    %v2006 = vpop.permute.xlu0 %2005
    %v2008 = vmul.f32 %v1986, %v2006
    %2010 = vrot.lane.b32.xlu0 %v2008, 32
    %v2011 = vpop.permute.xlu0 %2010
    %v2013 = vadd.f32 %v1998, %v2011
    %2015 = vrot.lane.b32.xlu0 %v2013, 64
    %v2016 = vpop.permute.xlu0 %2015
    %2018 = vst.msk [vmem:[#allocation2 + $0x8] sm:$0x3] %vm521, %v2016
    %v2019 = vsel %vm410, %v2016, 0
    %2021 = vmatprep.subr.mxu0 0.0
    %2022 = vmatpush1.msra.mxu0 %v1346
    %2023 = vmatprep.subr.mxu0 0.0
    %2024 = vmatpush1.msra.mxu0 %v1347
    %2025 = vmatprep.subr.mxu0 0.0
    %2026 = vmatpush1.msra.mxu0 %v1348
    %2027 = vmatprep.subr.mxu0 0.0
    %2028 = vmatpush1.msra.mxu0 %v1349
    %2029 = vmatprep.subr.mxu0 0.0
    %2030 = vmatpush1.msra.mxu0 0.0
    %2031 = vmatprep.subr.mxu0 0.0
    %2032 = vmatpush1.msra.mxu0 0.0
    %2033 = vmatprep.subr.mxu0 0.0
    %2034 = vmatpush1.msra.mxu0 0.0
    %2035 = vmatprep.subr.mxu0 0.0
    %2036 = vmatpush1.msra.mxu0 0.0
    %2037 = vmatprep.subr.mxu0 0.0
    %2038 = vmatpush1.msra.mxu0 0.0
    %2039 = vmatprep.subr.mxu0 0.0
    %2040 = vmatpush1.msra.mxu0 0.0
    %2041 = vmatprep.subr.mxu0 0.0
    %2042 = vmatpush1.msra.mxu0 0.0
    %2043 = vmatprep.subr.mxu0 0.0
    %2044 = vmatpush1.msra.mxu0 0.0
    %2045 = vmatprep.subr.mxu0 0.0
    %2046 = vmatpush1.msra.mxu0 0.0
    %2047 = vmatprep.subr.mxu0 0.0
    %2048 = vmatpush1.msra.mxu0 0.0
    %2049 = vmatprep.subr.mxu0 0.0
    %2050 = vmatpush1.msra.mxu0 0.0
    %2051 = vmatprep.subr.mxu0 0.0
    %2052 = vmatpush1.msra.mxu0 0.0
    %2053 = vmatprep.subr.mxu0 0.0
    %2054 = vmatpush1.msra.mxu0 0.0
    %2055 = vmatprep.subr.mxu0 0.0
    %2056 = vmatpush1.msra.mxu0 0.0
    %2057 = vmatprep.subr.mxu0 0.0
    %2058 = vmatpush1.msra.mxu0 0.0
    %2059 = vmatprep.subr.mxu0 0.0
    %2060 = vmatpush1.msra.mxu0 0.0
    %2061 = vmatprep.subr.mxu0 0.0
    %2062 = vmatpush1.msra.mxu0 0.0
    %2063 = vmatprep.subr.mxu0 0.0
    %2064 = vmatpush1.msra.mxu0 0.0
    %2065 = vmatprep.subr.mxu0 0.0
    %2066 = vmatpush1.msra.mxu0 0.0
    %2067 = vmatprep.subr.mxu0 0.0
    %2068 = vmatpush1.msra.mxu0 0.0
    %2069 = vmatprep.subr.mxu0 0.0
    %2070 = vmatpush1.msra.mxu0 0.0
    %2071 = vmatprep.subr.mxu0 0.0
    %2072 = vmatpush1.msra.mxu0 0.0
    %2073 = vmatprep.subr.mxu0 0.0
    %2074 = vmatpush1.msra.mxu0 0.0
    %2075 = vmatprep.subr.mxu0 0.0
    %2076 = vmatpush1.msra.mxu0 0.0
    %2077 = vmatprep.subr.mxu0 0.0
    %2078 = vmatpush1.msra.mxu0 0.0
    %2079 = vmatprep.subr.mxu0 0.0
    %2080 = vmatpush1.msra.mxu0 0.0
    %2081 = vmatprep.subr.mxu0 0.0
    %2082 = vmatpush1.msra.mxu0 0.0
    %2083 = vmatprep.subr.mxu0 0.0
    %2084 = vmatpush1.msra.mxu0 0.0
    %2085 = vmatprep.mubr.f32.mxu0 0.0
    %2086 = vmatmul.mubr.f32.gmra.mrb[0].mxu0 %v2019
    %v2087 = vpop.f32.mrb[0].mxu0
    %v2088 = vadd.f32 0.0, %v2087
    %v2089 = vpop.f32.mrb[0].mxu0
    %2090 = vdwg.mxu0
    %v2092 = vrot.slane %v2088, 6
    %v2094 = vadd.f32 %v1443, %v2092
    %v2095 = vxor.u32 %v2094, 2147483648
    %v2096 = vmul.f32 %v2095, 1.442695
    %v2097 = vpow.pop %v2096
    %v2098 = vadd.f32 %v2097, 1.0
    %v2099 = vrcp.pop %v2098
    %v2100 = vmul.f32 1.0, %v2099
    %v2101 = vadd.f32 %v2088, %v1524
    %v2103 = vrot.slane %v2101, 6
    %2104 = vrot.lane.b32.xlu0 %v2103, 64
    %v2105 = vpop.permute.xlu0 %2104
    %v2107 = vmul.f32 %v2100, %v2105
    %2109 = vrot.lane.b32.xlu0 %v2107, 64
    %v2110 = vpop.permute.xlu0 %2109
    %v2112 = vadd.f32 %v1443, %v2110
    %v2113 = vtanh.pop %v2112
    %v2115 = vrot.slane %v2113, 2
    %v2117 = vsub.f32 %v2013, %v2115
    %v2119 = vrot.slane %v2117, 6
    %2120 = vrot.lane.b32.xlu0 %v2119, 96
    %v2121 = vpop.permute.xlu0 %2120
    %v2123 = vmul.f32 %v2100, %v2121
    %2125 = vrot.lane.b32.xlu0 %v2123, 32
    %v2126 = vpop.permute.xlu0 %2125
    %v2128 = vadd.f32 %v2113, %v2126
    %2130 = vrot.lane.b32.xlu0 %v2128, 64
    %v2131 = vpop.permute.xlu0 %2130
    %2133 = vst.msk [vmem:[#allocation2 + $0x8] sm:$0xc] %vm637, %v2131
    %v2134 = vrot.slane %v2128, 2
    %2135 = vrot.lane.b32.xlu0 %v2134, 64
    %v2136 = vpop.permute.xlu0 %2135
    %v2137 = vsel %vm410, %v2136, 0
    %2139 = vmatprep.subr.mxu0 0.0
    %2140 = vmatpush1.msra.mxu0 %v1346
    %2141 = vmatprep.subr.mxu0 0.0
    %2142 = vmatpush1.msra.mxu0 %v1347
    %2143 = vmatprep.subr.mxu0 0.0
    %2144 = vmatpush1.msra.mxu0 %v1348
    %2145 = vmatprep.subr.mxu0 0.0
    %2146 = vmatpush1.msra.mxu0 %v1349
    %2147 = vmatprep.subr.mxu0 0.0
    %2148 = vmatpush1.msra.mxu0 0.0
    %2149 = vmatprep.subr.mxu0 0.0
    %2150 = vmatpush1.msra.mxu0 0.0
    %2151 = vmatprep.subr.mxu0 0.0
    %2152 = vmatpush1.msra.mxu0 0.0
    %2153 = vmatprep.subr.mxu0 0.0
    %2154 = vmatpush1.msra.mxu0 0.0
    %2155 = vmatprep.subr.mxu0 0.0
    %2156 = vmatpush1.msra.mxu0 0.0
    %2157 = vmatprep.subr.mxu0 0.0
    %2158 = vmatpush1.msra.mxu0 0.0
    %2159 = vmatprep.subr.mxu0 0.0
    %2160 = vmatpush1.msra.mxu0 0.0
    %2161 = vmatprep.subr.mxu0 0.0
    %2162 = vmatpush1.msra.mxu0 0.0
    %2163 = vmatprep.subr.mxu0 0.0
    %2164 = vmatpush1.msra.mxu0 0.0
    %2165 = vmatprep.subr.mxu0 0.0
    %2166 = vmatpush1.msra.mxu0 0.0
    %2167 = vmatprep.subr.mxu0 0.0
    %2168 = vmatpush1.msra.mxu0 0.0
    %2169 = vmatprep.subr.mxu0 0.0
    %2170 = vmatpush1.msra.mxu0 0.0
    %2171 = vmatprep.subr.mxu0 0.0
    %2172 = vmatpush1.msra.mxu0 0.0
    %2173 = vmatprep.subr.mxu0 0.0
    %2174 = vmatpush1.msra.mxu0 0.0
    %2175 = vmatprep.subr.mxu0 0.0
    %2176 = vmatpush1.msra.mxu0 0.0
    %2177 = vmatprep.subr.mxu0 0.0
    %2178 = vmatpush1.msra.mxu0 0.0
    %2179 = vmatprep.subr.mxu0 0.0
    %2180 = vmatpush1.msra.mxu0 0.0
    %2181 = vmatprep.subr.mxu0 0.0
    %2182 = vmatpush1.msra.mxu0 0.0
    %2183 = vmatprep.subr.mxu0 0.0
    %2184 = vmatpush1.msra.mxu0 0.0
    %2185 = vmatprep.subr.mxu0 0.0
    %2186 = vmatpush1.msra.mxu0 0.0
    %2187 = vmatprep.subr.mxu0 0.0
    %2188 = vmatpush1.msra.mxu0 0.0
    %2189 = vmatprep.subr.mxu0 0.0
    %2190 = vmatpush1.msra.mxu0 0.0
    %2191 = vmatprep.subr.mxu0 0.0
    %2192 = vmatpush1.msra.mxu0 0.0
    %2193 = vmatprep.subr.mxu0 0.0
    %2194 = vmatpush1.msra.mxu0 0.0
    %2195 = vmatprep.subr.mxu0 0.0
    %2196 = vmatpush1.msra.mxu0 0.0
    %2197 = vmatprep.subr.mxu0 0.0
    %2198 = vmatpush1.msra.mxu0 0.0
    %2199 = vmatprep.subr.mxu0 0.0
    %2200 = vmatpush1.msra.mxu0 0.0
    %2201 = vmatprep.subr.mxu0 0.0
    %2202 = vmatpush1.msra.mxu0 0.0
    %2203 = vmatprep.mubr.f32.mxu0 0.0
    %2204 = vmatmul.mubr.f32.gmra.mrb[0].mxu0 %v2137
    %v2205 = vpop.f32.mrb[0].mxu0
    %v2206 = vadd.f32 0.0, %v2205
    %v2207 = vpop.f32.mrb[0].mxu0
    %2208 = vdwg.mxu0
    %v2210 = vrot.slane %v2206, 4
    %v2212 = vadd.f32 %v1443, %v2210
    %v2213 = vxor.u32 %v2212, 2147483648
    %v2214 = vmul.f32 %v2213, 1.442695
    %v2215 = vpow.pop %v2214
    %v2216 = vadd.f32 %v2215, 1.0
    %v2217 = vrcp.pop %v2216
    %v2218 = vmul.f32 1.0, %v2217
    %v2219 = vadd.f32 %v2206, %v1524
    %v2221 = vrot.slane %v2219, 4
    %2222 = vrot.lane.b32.xlu0 %v2221, 64
    %v2223 = vpop.permute.xlu0 %2222
    %v2225 = vmul.f32 %v2218, %v2223
    %2227 = vrot.lane.b32.xlu0 %v2225, 64
    %v2228 = vpop.permute.xlu0 %2227
    %v2230 = vadd.f32 %v1443, %v2228
    %v2231 = vtanh.pop %v2230
    %v2233 = vrot.slane %v2231, 2
    %v2235 = vsub.f32 %v2128, %v2233
    %v2237 = vrot.slane %v2235, 6
    %2238 = vrot.lane.b32.xlu0 %v2237, 96
    %v2239 = vpop.permute.xlu0 %2238
    %v2241 = vmul.f32 %v2218, %v2239
    %2243 = vrot.lane.b32.xlu0 %v2241, 32
    %v2244 = vpop.permute.xlu0 %2243
    %v2246 = vadd.f32 %v2231, %v2244
    %2248 = vrot.lane.b32.xlu0 %v2246, 64
    %v2249 = vpop.permute.xlu0 %2248
    %2251 = vst.msk [vmem:[#allocation2 + $0x8] sm:$0x30] %vm756, %v2249
    %v2252 = vrot.slane %v2246, 4
    %2253 = vrot.lane.b32.xlu0 %v2252, 64
    %v2254 = vpop.permute.xlu0 %2253
    %v2255 = vsel %vm410, %v2254, 0
    %2257 = vmatprep.subr.mxu0 0.0
    %2258 = vmatpush1.msra.mxu0 %v1346
    %2259 = vmatprep.subr.mxu0 0.0
    %2260 = vmatpush1.msra.mxu0 %v1347
    %2261 = vmatprep.subr.mxu0 0.0
    %2262 = vmatpush1.msra.mxu0 %v1348
    %2263 = vmatprep.subr.mxu0 0.0
    %2264 = vmatpush1.msra.mxu0 %v1349
    %2265 = vmatprep.subr.mxu0 0.0
    %2266 = vmatpush1.msra.mxu0 0.0
    %2267 = vmatprep.subr.mxu0 0.0
    %2268 = vmatpush1.msra.mxu0 0.0
    %2269 = vmatprep.subr.mxu0 0.0
    %2270 = vmatpush1.msra.mxu0 0.0
    %2271 = vmatprep.subr.mxu0 0.0
    %2272 = vmatpush1.msra.mxu0 0.0
    %2273 = vmatprep.subr.mxu0 0.0
    %2274 = vmatpush1.msra.mxu0 0.0
    %2275 = vmatprep.subr.mxu0 0.0
    %2276 = vmatpush1.msra.mxu0 0.0
    %2277 = vmatprep.subr.mxu0 0.0
    %2278 = vmatpush1.msra.mxu0 0.0
    %2279 = vmatprep.subr.mxu0 0.0
    %2280 = vmatpush1.msra.mxu0 0.0
    %2281 = vmatprep.subr.mxu0 0.0
    %2282 = vmatpush1.msra.mxu0 0.0
    %2283 = vmatprep.subr.mxu0 0.0
    %2284 = vmatpush1.msra.mxu0 0.0
    %2285 = vmatprep.subr.mxu0 0.0
    %2286 = vmatpush1.msra.mxu0 0.0
    %2287 = vmatprep.subr.mxu0 0.0
    %2288 = vmatpush1.msra.mxu0 0.0
    %2289 = vmatprep.subr.mxu0 0.0
    %2290 = vmatpush1.msra.mxu0 0.0
    %2291 = vmatprep.subr.mxu0 0.0
    %2292 = vmatpush1.msra.mxu0 0.0
    %2293 = vmatprep.subr.mxu0 0.0
    %2294 = vmatpush1.msra.mxu0 0.0
    %2295 = vmatprep.subr.mxu0 0.0
    %2296 = vmatpush1.msra.mxu0 0.0
    %2297 = vmatprep.subr.mxu0 0.0
    %2298 = vmatpush1.msra.mxu0 0.0
    %2299 = vmatprep.subr.mxu0 0.0
    %2300 = vmatpush1.msra.mxu0 0.0
    %2301 = vmatprep.subr.mxu0 0.0
    %2302 = vmatpush1.msra.mxu0 0.0
    %2303 = vmatprep.subr.mxu0 0.0
    %2304 = vmatpush1.msra.mxu0 0.0
    %2305 = vmatprep.subr.mxu0 0.0
    %2306 = vmatpush1.msra.mxu0 0.0
    %2307 = vmatprep.subr.mxu0 0.0
    %2308 = vmatpush1.msra.mxu0 0.0
    %2309 = vmatprep.subr.mxu0 0.0
    %2310 = vmatpush1.msra.mxu0 0.0
    %2311 = vmatprep.subr.mxu0 0.0
    %2312 = vmatpush1.msra.mxu0 0.0
    %2313 = vmatprep.subr.mxu0 0.0
    %2314 = vmatpush1.msra.mxu0 0.0
    %2315 = vmatprep.subr.mxu0 0.0
    %2316 = vmatpush1.msra.mxu0 0.0
    %2317 = vmatprep.subr.mxu0 0.0
    %2318 = vmatpush1.msra.mxu0 0.0
    %2319 = vmatprep.subr.mxu0 0.0
    %2320 = vmatpush1.msra.mxu0 0.0
    %2321 = vmatprep.mubr.f32.mxu0 0.0
    %2322 = vmatmul.mubr.f32.gmra.mrb[0].mxu0 %v2255
    %v2323 = vpop.f32.mrb[0].mxu0
    %v2324 = vadd.f32 0.0, %v2323
    %v2325 = vpop.f32.mrb[0].mxu0
    %2326 = vdwg.mxu0
    %v2328 = vrot.slane %v2324, 2
    %v2330 = vadd.f32 %v1443, %v2328
    %v2331 = vxor.u32 %v2330, 2147483648
    %v2332 = vmul.f32 %v2331, 1.442695
    %v2333 = vpow.pop %v2332
    %v2334 = vadd.f32 %v2333, 1.0
    %v2335 = vrcp.pop %v2334
    %v2336 = vmul.f32 1.0, %v2335
    %v2337 = vadd.f32 %v2324, %v1524
    %v2339 = vrot.slane %v2337, 2
    %2340 = vrot.lane.b32.xlu0 %v2339, 64
    %v2341 = vpop.permute.xlu0 %2340
    %v2343 = vmul.f32 %v2336, %v2341
    %2345 = vrot.lane.b32.xlu0 %v2343, 64
    %v2346 = vpop.permute.xlu0 %2345
    %v2348 = vadd.f32 %v1443, %v2346
    %v2349 = vtanh.pop %v2348
    %v2351 = vrot.slane %v2349, 2
    %v2353 = vsub.f32 %v2246, %v2351
    %v2355 = vrot.slane %v2353, 6
    %2356 = vrot.lane.b32.xlu0 %v2355, 96
    %v2357 = vpop.permute.xlu0 %2356
    %v2359 = vmul.f32 %v2336, %v2357
    %2361 = vrot.lane.b32.xlu0 %v2359, 32
    %v2362 = vpop.permute.xlu0 %2361
    %v2364 = vadd.f32 %v2349, %v2362
    %2366 = vrot.lane.b32.xlu0 %v2364, 64
    %v2367 = vpop.permute.xlu0 %2366
    %2369 = vst.msk [vmem:[#allocation2 + $0x8] sm:$0xc0] %vm875, %v2367
    %v2370 = vld [vmem:[#allocation14] sm:$0xff]
    %v2371 = vld [vmem:[#allocation14 + $0x8] sm:$0xff]
    %v2372 = vld [vmem:[#allocation14 + $0x10] sm:$0xff]
    %v2373 = vld [vmem:[#allocation14 + $0x18] sm:$0xff]
    %v2374 = vld [vmem:[#allocation15] sm:$0xff]
    %v2375 = vld [vmem:[#allocation15 + $0x8] sm:$0xff]
    %v2376 = vld [vmem:[#allocation15 + $0x10] sm:$0xff]
    %v2377 = vld [vmem:[#allocation15 + $0x18] sm:$0xff]
    %v2378 = vld [vmem:[#allocation17] sm:$0x1]
    %v2379 = vld [vmem:[#allocation18] sm:$0x1]
    %v2381 = vlaneseq
    %v2382 = vshrl.u32 %v2381, 7
    %v2383 = vsub.s32 0, %v2382
    %v2384 = vrot.slane %v2379, %v2383
    %v2385 = vld [vmem:[#allocation2] sm:$0xff]
    %v2386 = vld [vmem:[#allocation2 + $0x8] sm:$0xff]
    %v2388 = vlaneseq
    %v2389 = vshrl.u32 %v2388, 7
    %v2390 = vsub.s32 0, %v2389
    %v2391 = vrot.slane %v2378, %v2390
    %v2394 = vsel %vm410, %v2385, 0
    %v2397 = vsel %vm410, %v2386, 0
    %2399 = vmatprep.subr.mxu0 0.0
    %2400 = vmatpush1.msra.mxu0 %v2370
    %2401 = vmatprep.subr.mxu0 0.0
    %2402 = vmatpush1.msra.mxu0 %v2371
    %2403 = vmatprep.subr.mxu0 0.0
    %2404 = vmatpush1.msra.mxu0 %v2372
    %2405 = vmatprep.subr.mxu0 0.0
    %2406 = vmatpush1.msra.mxu0 %v2373
    %2407 = vmatprep.subr.mxu0 0.0
    %2408 = vmatpush1.msra.mxu0 0.0
    %2409 = vmatprep.subr.mxu0 0.0
    %2410 = vmatpush1.msra.mxu0 0.0
    %2411 = vmatprep.subr.mxu0 0.0
    %2412 = vmatpush1.msra.mxu0 0.0
    %2413 = vmatprep.subr.mxu0 0.0
    %2414 = vmatpush1.msra.mxu0 0.0
    %2415 = vmatprep.subr.mxu0 0.0
    %2416 = vmatpush1.msra.mxu0 0.0
    %2417 = vmatprep.subr.mxu0 0.0
    %2418 = vmatpush1.msra.mxu0 0.0
    %2419 = vmatprep.subr.mxu0 0.0
    %2420 = vmatpush1.msra.mxu0 0.0
    %2421 = vmatprep.subr.mxu0 0.0
    %2422 = vmatpush1.msra.mxu0 0.0
    %2423 = vmatprep.subr.mxu0 0.0
    %2424 = vmatpush1.msra.mxu0 0.0
    %2425 = vmatprep.subr.mxu0 0.0
    %2426 = vmatpush1.msra.mxu0 0.0
    %2427 = vmatprep.subr.mxu0 0.0
    %2428 = vmatpush1.msra.mxu0 0.0
    %2429 = vmatprep.subr.mxu0 0.0
    %2430 = vmatpush1.msra.mxu0 0.0
    %2431 = vmatprep.subr.mxu0 0.0
    %2432 = vmatpush1.msra.mxu0 0.0
    %2433 = vmatprep.subr.mxu0 0.0
    %2434 = vmatpush1.msra.mxu0 0.0
    %2435 = vmatprep.subr.mxu0 0.0
    %2436 = vmatpush1.msra.mxu0 0.0
    %2437 = vmatprep.subr.mxu0 0.0
    %2438 = vmatpush1.msra.mxu0 0.0
    %2439 = vmatprep.subr.mxu0 0.0
    %2440 = vmatpush1.msra.mxu0 0.0
    %2441 = vmatprep.subr.mxu0 0.0
    %2442 = vmatpush1.msra.mxu0 0.0
    %2443 = vmatprep.subr.mxu0 0.0
    %2444 = vmatpush1.msra.mxu0 0.0
    %2445 = vmatprep.subr.mxu0 0.0
    %2446 = vmatpush1.msra.mxu0 0.0
    %2447 = vmatprep.subr.mxu0 0.0
    %2448 = vmatpush1.msra.mxu0 0.0
    %2449 = vmatprep.subr.mxu0 0.0
    %2450 = vmatpush1.msra.mxu0 0.0
    %2451 = vmatprep.subr.mxu0 0.0
    %2452 = vmatpush1.msra.mxu0 0.0
    %2453 = vmatprep.subr.mxu0 0.0
    %2454 = vmatpush1.msra.mxu0 0.0
    %2455 = vmatprep.subr.mxu0 0.0
    %2456 = vmatpush1.msra.mxu0 0.0
    %2457 = vmatprep.subr.mxu0 0.0
    %2458 = vmatpush1.msra.mxu0 0.0
    %2459 = vmatprep.subr.mxu0 0.0
    %2460 = vmatpush1.msra.mxu0 0.0
    %2461 = vmatprep.subr.mxu0 0.0
    %2462 = vmatpush1.msra.mxu0 0.0
    %2463 = vmatprep.mubr.f32.mxu0 0.0
    %2464 = vmatmul.mubr.f32.gmra.mrb[0].mxu0 %v2394
    %v2465 = vpop.f32.mrb[0].mxu0
    %v2466 = vadd.f32 %v2391, %v2465
    %v2467 = vpop.f32.mrb[0].mxu0
    %2468 = vmatprep.mubr.f32.mxu0 0.0
    %2469 = vmatmul.mubr.f32.gmra.mrb[0].mxu0 %v2397
    %v2470 = vpop.f32.mrb[0].mxu0
    %v2471 = vadd.f32 %v2391, %v2470
    %v2472 = vpop.f32.mrb[0].mxu0
    %2473 = vdwg.mxu0
    %2474 = vmatprep.subr.mxu0 0.0
    %2475 = vmatpush1.msra.mxu0 %v2374
    %2476 = vmatprep.subr.mxu0 0.0
    %2477 = vmatpush1.msra.mxu0 %v2375
    %2478 = vmatprep.subr.mxu0 0.0
    %2479 = vmatpush1.msra.mxu0 %v2376
    %2480 = vmatprep.subr.mxu0 0.0
    %2481 = vmatpush1.msra.mxu0 %v2377
    %2482 = vmatprep.subr.mxu0 0.0
    %2483 = vmatpush1.msra.mxu0 0.0
    %2484 = vmatprep.subr.mxu0 0.0
    %2485 = vmatpush1.msra.mxu0 0.0
    %2486 = vmatprep.subr.mxu0 0.0
    %2487 = vmatpush1.msra.mxu0 0.0
    %2488 = vmatprep.subr.mxu0 0.0
    %2489 = vmatpush1.msra.mxu0 0.0
    %2490 = vmatprep.subr.mxu0 0.0
    %2491 = vmatpush1.msra.mxu0 0.0
    %2492 = vmatprep.subr.mxu0 0.0
    %2493 = vmatpush1.msra.mxu0 0.0
    %2494 = vmatprep.subr.mxu0 0.0
    %2495 = vmatpush1.msra.mxu0 0.0
    %2496 = vmatprep.subr.mxu0 0.0
    %2497 = vmatpush1.msra.mxu0 0.0
    %2498 = vmatprep.subr.mxu0 0.0
    %2499 = vmatpush1.msra.mxu0 0.0
    %2500 = vmatprep.subr.mxu0 0.0
    %2501 = vmatpush1.msra.mxu0 0.0
    %2502 = vmatprep.subr.mxu0 0.0
    %2503 = vmatpush1.msra.mxu0 0.0
    %2504 = vmatprep.subr.mxu0 0.0
    %2505 = vmatpush1.msra.mxu0 0.0
    %2506 = vmatprep.subr.mxu0 0.0
    %2507 = vmatpush1.msra.mxu0 0.0
    %2508 = vmatprep.subr.mxu0 0.0
    %2509 = vmatpush1.msra.mxu0 0.0
    %2510 = vmatprep.subr.mxu0 0.0
    %2511 = vmatpush1.msra.mxu0 0.0
    %2512 = vmatprep.subr.mxu0 0.0
    %2513 = vmatpush1.msra.mxu0 0.0
    %2514 = vmatprep.subr.mxu0 0.0
    %2515 = vmatpush1.msra.mxu0 0.0
    %2516 = vmatprep.subr.mxu0 0.0
    %2517 = vmatpush1.msra.mxu0 0.0
    %2518 = vmatprep.subr.mxu0 0.0
    %2519 = vmatpush1.msra.mxu0 0.0
    %2520 = vmatprep.subr.mxu0 0.0
    %2521 = vmatpush1.msra.mxu0 0.0
    %2522 = vmatprep.subr.mxu0 0.0
    %2523 = vmatpush1.msra.mxu0 0.0
    %2524 = vmatprep.subr.mxu0 0.0
    %2525 = vmatpush1.msra.mxu0 0.0
    %2526 = vmatprep.subr.mxu0 0.0
    %2527 = vmatpush1.msra.mxu0 0.0
    %2528 = vmatprep.subr.mxu0 0.0
    %2529 = vmatpush1.msra.mxu0 0.0
    %2530 = vmatprep.subr.mxu0 0.0
    %2531 = vmatpush1.msra.mxu0 0.0
    %2532 = vmatprep.subr.mxu0 0.0
    %2533 = vmatpush1.msra.mxu0 0.0
    %2534 = vmatprep.subr.mxu0 0.0
    %2535 = vmatpush1.msra.mxu0 0.0
    %2536 = vmatprep.subr.mxu0 0.0
    %2537 = vmatpush1.msra.mxu0 0.0
    %2538 = vmatprep.mubr.f32.mxu0 0.0
    %2539 = vmatmul.mubr.f32.gmra.mrb[0].mxu0 %v412
    %v2540 = vpop.f32.mrb[0].mxu0
    %v2541 = vadd.f32 0.0, %v2540
    %v2542 = vpop.f32.mrb[0].mxu0
    %2543 = vdwg.mxu0
    %v2544 = vadd.f32 %v2466, %v2541
    %v2545 = vxor.u32 %v2544, 2147483648
    %v2546 = vmul.f32 %v2545, 1.442695
    %v2547 = vpow.pop %v2546
    %v2548 = vadd.f32 %v2547, 1.0
    %v2549 = vrcp.pop %v2548
    %v2550 = vmul.f32 1.0, %v2549
    %2551 = vrot.lane.b32.xlu0 %v2384, 64
    %v2552 = vpop.permute.xlu0 %2551
    %v2554 = vadd.f32 %v2541, %v2552
    %2556 = vrot.lane.b32.xlu0 %v2554, 64
    %v2557 = vpop.permute.xlu0 %2556
    %v2559 = vmul.f32 %v2550, %v2557
    %2561 = vrot.lane.b32.xlu0 %v2559, 64
    %v2562 = vpop.permute.xlu0 %2561
    %v2564 = vadd.f32 %v2466, %v2562
    %v2565 = vtanh.pop %v2564
    %v2566 = vsub.f32 0.0, %v2565
    %2568 = vrot.lane.b32.xlu0 %v2566, 96
    %v2569 = vpop.permute.xlu0 %2568
    %v2571 = vmul.f32 %v2550, %v2569
    %2573 = vrot.lane.b32.xlu0 %v2571, 32
    %v2574 = vpop.permute.xlu0 %2573
    %v2576 = vadd.f32 %v2565, %v2574
    %2578 = vrot.lane.b32.xlu0 %v2576, 64
    %v2579 = vpop.permute.xlu0 %2578
    %2581 = vst.msk [vmem:[#allocation2] sm:$0x3] %vm521, %v2579
    %v2582 = vsel %vm410, %v2579, 0
    %2584 = vmatprep.subr.mxu0 0.0
    %2585 = vmatpush1.msra.mxu0 %v2374
    %2586 = vmatprep.subr.mxu0 0.0
    %2587 = vmatpush1.msra.mxu0 %v2375
    %2588 = vmatprep.subr.mxu0 0.0
    %2589 = vmatpush1.msra.mxu0 %v2376
    %2590 = vmatprep.subr.mxu0 0.0
    %2591 = vmatpush1.msra.mxu0 %v2377
    %2592 = vmatprep.subr.mxu0 0.0
    %2593 = vmatpush1.msra.mxu0 0.0
    %2594 = vmatprep.subr.mxu0 0.0
    %2595 = vmatpush1.msra.mxu0 0.0
    %2596 = vmatprep.subr.mxu0 0.0
    %2597 = vmatpush1.msra.mxu0 0.0
    %2598 = vmatprep.subr.mxu0 0.0
    %2599 = vmatpush1.msra.mxu0 0.0
    %2600 = vmatprep.subr.mxu0 0.0
    %2601 = vmatpush1.msra.mxu0 0.0
    %2602 = vmatprep.subr.mxu0 0.0
    %2603 = vmatpush1.msra.mxu0 0.0
    %2604 = vmatprep.subr.mxu0 0.0
    %2605 = vmatpush1.msra.mxu0 0.0
    %2606 = vmatprep.subr.mxu0 0.0
    %2607 = vmatpush1.msra.mxu0 0.0
    %2608 = vmatprep.subr.mxu0 0.0
    %2609 = vmatpush1.msra.mxu0 0.0
    %2610 = vmatprep.subr.mxu0 0.0
    %2611 = vmatpush1.msra.mxu0 0.0
    %2612 = vmatprep.subr.mxu0 0.0
    %2613 = vmatpush1.msra.mxu0 0.0
    %2614 = vmatprep.subr.mxu0 0.0
    %2615 = vmatpush1.msra.mxu0 0.0
    %2616 = vmatprep.subr.mxu0 0.0
    %2617 = vmatpush1.msra.mxu0 0.0
    %2618 = vmatprep.subr.mxu0 0.0
    %2619 = vmatpush1.msra.mxu0 0.0
    %2620 = vmatprep.subr.mxu0 0.0
    %2621 = vmatpush1.msra.mxu0 0.0
    %2622 = vmatprep.subr.mxu0 0.0
    %2623 = vmatpush1.msra.mxu0 0.0
    %2624 = vmatprep.subr.mxu0 0.0
    %2625 = vmatpush1.msra.mxu0 0.0
    %2626 = vmatprep.subr.mxu0 0.0
    %2627 = vmatpush1.msra.mxu0 0.0
    %2628 = vmatprep.subr.mxu0 0.0
    %2629 = vmatpush1.msra.mxu0 0.0
    %2630 = vmatprep.subr.mxu0 0.0
    %2631 = vmatpush1.msra.mxu0 0.0
    %2632 = vmatprep.subr.mxu0 0.0
    %2633 = vmatpush1.msra.mxu0 0.0
    %2634 = vmatprep.subr.mxu0 0.0
    %2635 = vmatpush1.msra.mxu0 0.0
    %2636 = vmatprep.subr.mxu0 0.0
    %2637 = vmatpush1.msra.mxu0 0.0
    %2638 = vmatprep.subr.mxu0 0.0
    %2639 = vmatpush1.msra.mxu0 0.0
    %2640 = vmatprep.subr.mxu0 0.0
    %2641 = vmatpush1.msra.mxu0 0.0
    %2642 = vmatprep.subr.mxu0 0.0
    %2643 = vmatpush1.msra.mxu0 0.0
    %2644 = vmatprep.subr.mxu0 0.0
    %2645 = vmatpush1.msra.mxu0 0.0
    %2646 = vmatprep.subr.mxu0 0.0
    %2647 = vmatpush1.msra.mxu0 0.0
    %2648 = vmatprep.mubr.f32.mxu0 0.0
    %2649 = vmatmul.mubr.f32.gmra.mrb[0].mxu0 %v2582
    %v2650 = vpop.f32.mrb[0].mxu0
    %v2651 = vadd.f32 0.0, %v2650
    %v2652 = vpop.f32.mrb[0].mxu0
    %2653 = vdwg.mxu0
    %v2655 = vrot.slane %v2651, 6
    %v2657 = vadd.f32 %v2466, %v2655
    %v2658 = vxor.u32 %v2657, 2147483648
    %v2659 = vmul.f32 %v2658, 1.442695
    %v2660 = vpow.pop %v2659
    %v2661 = vadd.f32 %v2660, 1.0
    %v2662 = vrcp.pop %v2661
    %v2663 = vmul.f32 1.0, %v2662
    %v2664 = vadd.f32 %v2651, %v2552
    %v2666 = vrot.slane %v2664, 6
    %2667 = vrot.lane.b32.xlu0 %v2666, 64
    %v2668 = vpop.permute.xlu0 %2667
    %v2670 = vmul.f32 %v2663, %v2668
    %2672 = vrot.lane.b32.xlu0 %v2670, 64
    %v2673 = vpop.permute.xlu0 %2672
    %v2675 = vadd.f32 %v2466, %v2673
    %v2676 = vtanh.pop %v2675
    %v2678 = vrot.slane %v2676, 2
    %v2680 = vsub.f32 %v2576, %v2678
    %v2682 = vrot.slane %v2680, 6
    %2683 = vrot.lane.b32.xlu0 %v2682, 96
    %v2684 = vpop.permute.xlu0 %2683
    %v2686 = vmul.f32 %v2663, %v2684
    %2688 = vrot.lane.b32.xlu0 %v2686, 32
    %v2689 = vpop.permute.xlu0 %2688
    %v2691 = vadd.f32 %v2676, %v2689
    %2693 = vrot.lane.b32.xlu0 %v2691, 64
    %v2694 = vpop.permute.xlu0 %2693
    %2696 = vst.msk [vmem:[#allocation2] sm:$0xc] %vm637, %v2694
    %v2697 = vrot.slane %v2691, 2
    %2698 = vrot.lane.b32.xlu0 %v2697, 64
    %v2699 = vpop.permute.xlu0 %2698
    %v2700 = vsel %vm410, %v2699, 0
    %2702 = vmatprep.subr.mxu0 0.0
    %2703 = vmatpush1.msra.mxu0 %v2374
    %2704 = vmatprep.subr.mxu0 0.0
    %2705 = vmatpush1.msra.mxu0 %v2375
    %2706 = vmatprep.subr.mxu0 0.0
    %2707 = vmatpush1.msra.mxu0 %v2376
    %2708 = vmatprep.subr.mxu0 0.0
    %2709 = vmatpush1.msra.mxu0 %v2377
    %2710 = vmatprep.subr.mxu0 0.0
    %2711 = vmatpush1.msra.mxu0 0.0
    %2712 = vmatprep.subr.mxu0 0.0
    %2713 = vmatpush1.msra.mxu0 0.0
    %2714 = vmatprep.subr.mxu0 0.0
    %2715 = vmatpush1.msra.mxu0 0.0
    %2716 = vmatprep.subr.mxu0 0.0
    %2717 = vmatpush1.msra.mxu0 0.0
    %2718 = vmatprep.subr.mxu0 0.0
    %2719 = vmatpush1.msra.mxu0 0.0
    %2720 = vmatprep.subr.mxu0 0.0
    %2721 = vmatpush1.msra.mxu0 0.0
    %2722 = vmatprep.subr.mxu0 0.0
    %2723 = vmatpush1.msra.mxu0 0.0
    %2724 = vmatprep.subr.mxu0 0.0
    %2725 = vmatpush1.msra.mxu0 0.0
    %2726 = vmatprep.subr.mxu0 0.0
    %2727 = vmatpush1.msra.mxu0 0.0
    %2728 = vmatprep.subr.mxu0 0.0
    %2729 = vmatpush1.msra.mxu0 0.0
    %2730 = vmatprep.subr.mxu0 0.0
    %2731 = vmatpush1.msra.mxu0 0.0
    %2732 = vmatprep.subr.mxu0 0.0
    %2733 = vmatpush1.msra.mxu0 0.0
    %2734 = vmatprep.subr.mxu0 0.0
    %2735 = vmatpush1.msra.mxu0 0.0
    %2736 = vmatprep.subr.mxu0 0.0
    %2737 = vmatpush1.msra.mxu0 0.0
    %2738 = vmatprep.subr.mxu0 0.0
    %2739 = vmatpush1.msra.mxu0 0.0
    %2740 = vmatprep.subr.mxu0 0.0
    %2741 = vmatpush1.msra.mxu0 0.0
    %2742 = vmatprep.subr.mxu0 0.0
    %2743 = vmatpush1.msra.mxu0 0.0
    %2744 = vmatprep.subr.mxu0 0.0
    %2745 = vmatpush1.msra.mxu0 0.0
    %2746 = vmatprep.subr.mxu0 0.0
    %2747 = vmatpush1.msra.mxu0 0.0
    %2748 = vmatprep.subr.mxu0 0.0
    %2749 = vmatpush1.msra.mxu0 0.0
    %2750 = vmatprep.subr.mxu0 0.0
    %2751 = vmatpush1.msra.mxu0 0.0
    %2752 = vmatprep.subr.mxu0 0.0
    %2753 = vmatpush1.msra.mxu0 0.0
    %2754 = vmatprep.subr.mxu0 0.0
    %2755 = vmatpush1.msra.mxu0 0.0
    %2756 = vmatprep.subr.mxu0 0.0
    %2757 = vmatpush1.msra.mxu0 0.0
    %2758 = vmatprep.subr.mxu0 0.0
    %2759 = vmatpush1.msra.mxu0 0.0
    %2760 = vmatprep.subr.mxu0 0.0
    %2761 = vmatpush1.msra.mxu0 0.0
    %2762 = vmatprep.subr.mxu0 0.0
    %2763 = vmatpush1.msra.mxu0 0.0
    %2764 = vmatprep.subr.mxu0 0.0
    %2765 = vmatpush1.msra.mxu0 0.0
    %2766 = vmatprep.mubr.f32.mxu0 0.0
    %2767 = vmatmul.mubr.f32.gmra.mrb[0].mxu0 %v2700
    %v2768 = vpop.f32.mrb[0].mxu0
    %v2769 = vadd.f32 0.0, %v2768
    %v2770 = vpop.f32.mrb[0].mxu0
    %2771 = vdwg.mxu0
    %v2773 = vrot.slane %v2769, 4
    %v2775 = vadd.f32 %v2466, %v2773
    %v2776 = vxor.u32 %v2775, 2147483648
    %v2777 = vmul.f32 %v2776, 1.442695
    %v2778 = vpow.pop %v2777
    %v2779 = vadd.f32 %v2778, 1.0
    %v2780 = vrcp.pop %v2779
    %v2781 = vmul.f32 1.0, %v2780
    %v2782 = vadd.f32 %v2769, %v2552
    %v2784 = vrot.slane %v2782, 4
    %2785 = vrot.lane.b32.xlu0 %v2784, 64
    %v2786 = vpop.permute.xlu0 %2785
    %v2788 = vmul.f32 %v2781, %v2786
    %2790 = vrot.lane.b32.xlu0 %v2788, 64
    %v2791 = vpop.permute.xlu0 %2790
    %v2793 = vadd.f32 %v2466, %v2791
    %v2794 = vtanh.pop %v2793
    %v2796 = vrot.slane %v2794, 2
    %v2798 = vsub.f32 %v2691, %v2796
    %v2800 = vrot.slane %v2798, 6
    %2801 = vrot.lane.b32.xlu0 %v2800, 96
    %v2802 = vpop.permute.xlu0 %2801
    %v2804 = vmul.f32 %v2781, %v2802
    %2806 = vrot.lane.b32.xlu0 %v2804, 32
    %v2807 = vpop.permute.xlu0 %2806
    %v2809 = vadd.f32 %v2794, %v2807
    %2811 = vrot.lane.b32.xlu0 %v2809, 64
    %v2812 = vpop.permute.xlu0 %2811
    %2814 = vst.msk [vmem:[#allocation2] sm:$0x30] %vm756, %v2812
    %v2815 = vrot.slane %v2809, 4
    %2816 = vrot.lane.b32.xlu0 %v2815, 64
    %v2817 = vpop.permute.xlu0 %2816
    %v2818 = vsel %vm410, %v2817, 0
    %2820 = vmatprep.subr.mxu0 0.0
    %2821 = vmatpush1.msra.mxu0 %v2374
    %2822 = vmatprep.subr.mxu0 0.0
    %2823 = vmatpush1.msra.mxu0 %v2375
    %2824 = vmatprep.subr.mxu0 0.0
    %2825 = vmatpush1.msra.mxu0 %v2376
    %2826 = vmatprep.subr.mxu0 0.0
    %2827 = vmatpush1.msra.mxu0 %v2377
    %2828 = vmatprep.subr.mxu0 0.0
    %2829 = vmatpush1.msra.mxu0 0.0
    %2830 = vmatprep.subr.mxu0 0.0
    %2831 = vmatpush1.msra.mxu0 0.0
    %2832 = vmatprep.subr.mxu0 0.0
    %2833 = vmatpush1.msra.mxu0 0.0
    %2834 = vmatprep.subr.mxu0 0.0
    %2835 = vmatpush1.msra.mxu0 0.0
    %2836 = vmatprep.subr.mxu0 0.0
    %2837 = vmatpush1.msra.mxu0 0.0
    %2838 = vmatprep.subr.mxu0 0.0
    %2839 = vmatpush1.msra.mxu0 0.0
    %2840 = vmatprep.subr.mxu0 0.0
    %2841 = vmatpush1.msra.mxu0 0.0
    %2842 = vmatprep.subr.mxu0 0.0
    %2843 = vmatpush1.msra.mxu0 0.0
    %2844 = vmatprep.subr.mxu0 0.0
    %2845 = vmatpush1.msra.mxu0 0.0
    %2846 = vmatprep.subr.mxu0 0.0
    %2847 = vmatpush1.msra.mxu0 0.0
    %2848 = vmatprep.subr.mxu0 0.0
    %2849 = vmatpush1.msra.mxu0 0.0
    %2850 = vmatprep.subr.mxu0 0.0
    %2851 = vmatpush1.msra.mxu0 0.0
    %2852 = vmatprep.subr.mxu0 0.0
    %2853 = vmatpush1.msra.mxu0 0.0
    %2854 = vmatprep.subr.mxu0 0.0
    %2855 = vmatpush1.msra.mxu0 0.0
    %2856 = vmatprep.subr.mxu0 0.0
    %2857 = vmatpush1.msra.mxu0 0.0
    %2858 = vmatprep.subr.mxu0 0.0
    %2859 = vmatpush1.msra.mxu0 0.0
    %2860 = vmatprep.subr.mxu0 0.0
    %2861 = vmatpush1.msra.mxu0 0.0
    %2862 = vmatprep.subr.mxu0 0.0
    %2863 = vmatpush1.msra.mxu0 0.0
    %2864 = vmatprep.subr.mxu0 0.0
    %2865 = vmatpush1.msra.mxu0 0.0
    %2866 = vmatprep.subr.mxu0 0.0
    %2867 = vmatpush1.msra.mxu0 0.0
    %2868 = vmatprep.subr.mxu0 0.0
    %2869 = vmatpush1.msra.mxu0 0.0
    %2870 = vmatprep.subr.mxu0 0.0
    %2871 = vmatpush1.msra.mxu0 0.0
    %2872 = vmatprep.subr.mxu0 0.0
    %2873 = vmatpush1.msra.mxu0 0.0
    %2874 = vmatprep.subr.mxu0 0.0
    %2875 = vmatpush1.msra.mxu0 0.0
    %2876 = vmatprep.subr.mxu0 0.0
    %2877 = vmatpush1.msra.mxu0 0.0
    %2878 = vmatprep.subr.mxu0 0.0
    %2879 = vmatpush1.msra.mxu0 0.0
    %2880 = vmatprep.subr.mxu0 0.0
    %2881 = vmatpush1.msra.mxu0 0.0
    %2882 = vmatprep.subr.mxu0 0.0
    %2883 = vmatpush1.msra.mxu0 0.0
    %2884 = vmatprep.mubr.f32.mxu0 0.0
    %2885 = vmatmul.mubr.f32.gmra.mrb[0].mxu0 %v2818
    %v2886 = vpop.f32.mrb[0].mxu0
    %v2887 = vadd.f32 0.0, %v2886
    %v2888 = vpop.f32.mrb[0].mxu0
    %2889 = vdwg.mxu0
    %v2891 = vrot.slane %v2887, 2
    %v2893 = vadd.f32 %v2466, %v2891
    %v2894 = vxor.u32 %v2893, 2147483648
    %v2895 = vmul.f32 %v2894, 1.442695
    %v2896 = vpow.pop %v2895
    %v2897 = vadd.f32 %v2896, 1.0
    %v2898 = vrcp.pop %v2897
    %v2899 = vmul.f32 1.0, %v2898
    %v2900 = vadd.f32 %v2887, %v2552
    %v2902 = vrot.slane %v2900, 2
    %2903 = vrot.lane.b32.xlu0 %v2902, 64
    %v2904 = vpop.permute.xlu0 %2903
    %v2906 = vmul.f32 %v2899, %v2904
    %2908 = vrot.lane.b32.xlu0 %v2906, 64
    %v2909 = vpop.permute.xlu0 %2908
    %v2911 = vadd.f32 %v2466, %v2909
    %v2912 = vtanh.pop %v2911
    %v2914 = vrot.slane %v2912, 2
    %v2916 = vsub.f32 %v2809, %v2914
    %v2918 = vrot.slane %v2916, 6
    %2919 = vrot.lane.b32.xlu0 %v2918, 96
    %v2920 = vpop.permute.xlu0 %2919
    %v2922 = vmul.f32 %v2899, %v2920
    %2924 = vrot.lane.b32.xlu0 %v2922, 32
    %v2925 = vpop.permute.xlu0 %2924
    %v2927 = vadd.f32 %v2912, %v2925
    %2929 = vrot.lane.b32.xlu0 %v2927, 64
    %v2930 = vpop.permute.xlu0 %2929
    %2932 = vst.msk [vmem:[#allocation2] sm:$0xc0] %vm875, %v2930
    %v2933 = vrot.slane %v2927, 6
    %2934 = vrot.lane.b32.xlu0 %v2933, 64
    %v2935 = vpop.permute.xlu0 %2934
    %v2936 = vsel %vm410, %v2935, 0
    %2938 = vmatprep.subr.mxu0 0.0
    %2939 = vmatpush1.msra.mxu0 %v2374
    %2940 = vmatprep.subr.mxu0 0.0
    %2941 = vmatpush1.msra.mxu0 %v2375
    %2942 = vmatprep.subr.mxu0 0.0
    %2943 = vmatpush1.msra.mxu0 %v2376
    %2944 = vmatprep.subr.mxu0 0.0
    %2945 = vmatpush1.msra.mxu0 %v2377
    %2946 = vmatprep.subr.mxu0 0.0
    %2947 = vmatpush1.msra.mxu0 0.0
    %2948 = vmatprep.subr.mxu0 0.0
    %2949 = vmatpush1.msra.mxu0 0.0
    %2950 = vmatprep.subr.mxu0 0.0
    %2951 = vmatpush1.msra.mxu0 0.0
    %2952 = vmatprep.subr.mxu0 0.0
    %2953 = vmatpush1.msra.mxu0 0.0
    %2954 = vmatprep.subr.mxu0 0.0
    %2955 = vmatpush1.msra.mxu0 0.0
    %2956 = vmatprep.subr.mxu0 0.0
    %2957 = vmatpush1.msra.mxu0 0.0
    %2958 = vmatprep.subr.mxu0 0.0
    %2959 = vmatpush1.msra.mxu0 0.0
    %2960 = vmatprep.subr.mxu0 0.0
    %2961 = vmatpush1.msra.mxu0 0.0
    %2962 = vmatprep.subr.mxu0 0.0
    %2963 = vmatpush1.msra.mxu0 0.0
    %2964 = vmatprep.subr.mxu0 0.0
    %2965 = vmatpush1.msra.mxu0 0.0
    %2966 = vmatprep.subr.mxu0 0.0
    %2967 = vmatpush1.msra.mxu0 0.0
    %2968 = vmatprep.subr.mxu0 0.0
    %2969 = vmatpush1.msra.mxu0 0.0
    %2970 = vmatprep.subr.mxu0 0.0
    %2971 = vmatpush1.msra.mxu0 0.0
    %2972 = vmatprep.subr.mxu0 0.0
    %2973 = vmatpush1.msra.mxu0 0.0
    %2974 = vmatprep.subr.mxu0 0.0
    %2975 = vmatpush1.msra.mxu0 0.0
    %2976 = vmatprep.subr.mxu0 0.0
    %2977 = vmatpush1.msra.mxu0 0.0
    %2978 = vmatprep.subr.mxu0 0.0
    %2979 = vmatpush1.msra.mxu0 0.0
    %2980 = vmatprep.subr.mxu0 0.0
    %2981 = vmatpush1.msra.mxu0 0.0
    %2982 = vmatprep.subr.mxu0 0.0
    %2983 = vmatpush1.msra.mxu0 0.0
    %2984 = vmatprep.subr.mxu0 0.0
    %2985 = vmatpush1.msra.mxu0 0.0
    %2986 = vmatprep.subr.mxu0 0.0
    %2987 = vmatpush1.msra.mxu0 0.0
    %2988 = vmatprep.subr.mxu0 0.0
    %2989 = vmatpush1.msra.mxu0 0.0
    %2990 = vmatprep.subr.mxu0 0.0
    %2991 = vmatpush1.msra.mxu0 0.0
    %2992 = vmatprep.subr.mxu0 0.0
    %2993 = vmatpush1.msra.mxu0 0.0
    %2994 = vmatprep.subr.mxu0 0.0
    %2995 = vmatpush1.msra.mxu0 0.0
    %2996 = vmatprep.subr.mxu0 0.0
    %2997 = vmatpush1.msra.mxu0 0.0
    %2998 = vmatprep.subr.mxu0 0.0
    %2999 = vmatpush1.msra.mxu0 0.0
    %3000 = vmatprep.subr.mxu0 0.0
    %3001 = vmatpush1.msra.mxu0 0.0
    %3002 = vmatprep.mubr.f32.mxu0 0.0
    %3003 = vmatmul.mubr.f32.gmra.mrb[0].mxu0 %v2936
    %v3004 = vpop.f32.mrb[0].mxu0
    %v3005 = vadd.f32 0.0, %v3004
    %v3006 = vpop.f32.mrb[0].mxu0
    %3007 = vdwg.mxu0
    %v3008 = vadd.f32 %v2471, %v3005
    %v3009 = vxor.u32 %v3008, 2147483648
    %v3010 = vmul.f32 %v3009, 1.442695
    %v3011 = vpow.pop %v3010
    %v3012 = vadd.f32 %v3011, 1.0
    %v3013 = vrcp.pop %v3012
    %v3014 = vmul.f32 1.0, %v3013
    %v3015 = vadd.f32 %v3005, %v2552
    %3017 = vrot.lane.b32.xlu0 %v3015, 64
    %v3018 = vpop.permute.xlu0 %3017
    %v3020 = vmul.f32 %v3014, %v3018
    %3022 = vrot.lane.b32.xlu0 %v3020, 64
    %v3023 = vpop.permute.xlu0 %3022
    %v3025 = vadd.f32 %v2471, %v3023
    %v3026 = vtanh.pop %v3025
    %v3028 = vrot.slane %v3026, 2
    %v3030 = vsub.f32 %v2927, %v3028
    %v3032 = vrot.slane %v3030, 6
    %3033 = vrot.lane.b32.xlu0 %v3032, 96
    %v3034 = vpop.permute.xlu0 %3033
    %v3036 = vmul.f32 %v3014, %v3034
    %3038 = vrot.lane.b32.xlu0 %v3036, 32
    %v3039 = vpop.permute.xlu0 %3038
    %v3041 = vadd.f32 %v3026, %v3039
    %3043 = vrot.lane.b32.xlu0 %v3041, 64
    %v3044 = vpop.permute.xlu0 %3043
    %3046 = vst.msk [vmem:[#allocation2 + $0x8] sm:$0x3] %vm521, %v3044
    %v3047 = vsel %vm410, %v3044, 0
    %3049 = vmatprep.subr.mxu0 0.0
    %3050 = vmatpush1.msra.mxu0 %v2374
    %3051 = vmatprep.subr.mxu0 0.0
    %3052 = vmatpush1.msra.mxu0 %v2375
    %3053 = vmatprep.subr.mxu0 0.0
    %3054 = vmatpush1.msra.mxu0 %v2376
    %3055 = vmatprep.subr.mxu0 0.0
    %3056 = vmatpush1.msra.mxu0 %v2377
    %3057 = vmatprep.subr.mxu0 0.0
    %3058 = vmatpush1.msra.mxu0 0.0
    %3059 = vmatprep.subr.mxu0 0.0
    %3060 = vmatpush1.msra.mxu0 0.0
    %3061 = vmatprep.subr.mxu0 0.0
    %3062 = vmatpush1.msra.mxu0 0.0
    %3063 = vmatprep.subr.mxu0 0.0
    %3064 = vmatpush1.msra.mxu0 0.0
    %3065 = vmatprep.subr.mxu0 0.0
    %3066 = vmatpush1.msra.mxu0 0.0
    %3067 = vmatprep.subr.mxu0 0.0
    %3068 = vmatpush1.msra.mxu0 0.0
    %3069 = vmatprep.subr.mxu0 0.0
    %3070 = vmatpush1.msra.mxu0 0.0
    %3071 = vmatprep.subr.mxu0 0.0
    %3072 = vmatpush1.msra.mxu0 0.0
    %3073 = vmatprep.subr.mxu0 0.0
    %3074 = vmatpush1.msra.mxu0 0.0
    %3075 = vmatprep.subr.mxu0 0.0
    %3076 = vmatpush1.msra.mxu0 0.0
    %3077 = vmatprep.subr.mxu0 0.0
    %3078 = vmatpush1.msra.mxu0 0.0
    %3079 = vmatprep.subr.mxu0 0.0
    %3080 = vmatpush1.msra.mxu0 0.0
    %3081 = vmatprep.subr.mxu0 0.0
    %3082 = vmatpush1.msra.mxu0 0.0
    %3083 = vmatprep.subr.mxu0 0.0
    %3084 = vmatpush1.msra.mxu0 0.0
    %3085 = vmatprep.subr.mxu0 0.0
    %3086 = vmatpush1.msra.mxu0 0.0
    %3087 = vmatprep.subr.mxu0 0.0
    %3088 = vmatpush1.msra.mxu0 0.0
    %3089 = vmatprep.subr.mxu0 0.0
    %3090 = vmatpush1.msra.mxu0 0.0
    %3091 = vmatprep.subr.mxu0 0.0
    %3092 = vmatpush1.msra.mxu0 0.0
    %3093 = vmatprep.subr.mxu0 0.0
    %3094 = vmatpush1.msra.mxu0 0.0
    %3095 = vmatprep.subr.mxu0 0.0
    %3096 = vmatpush1.msra.mxu0 0.0
    %3097 = vmatprep.subr.mxu0 0.0
    %3098 = vmatpush1.msra.mxu0 0.0
    %3099 = vmatprep.subr.mxu0 0.0
    %3100 = vmatpush1.msra.mxu0 0.0
    %3101 = vmatprep.subr.mxu0 0.0
    %3102 = vmatpush1.msra.mxu0 0.0
    %3103 = vmatprep.subr.mxu0 0.0
    %3104 = vmatpush1.msra.mxu0 0.0
    %3105 = vmatprep.subr.mxu0 0.0
    %3106 = vmatpush1.msra.mxu0 0.0
    %3107 = vmatprep.subr.mxu0 0.0
    %3108 = vmatpush1.msra.mxu0 0.0
    %3109 = vmatprep.subr.mxu0 0.0
    %3110 = vmatpush1.msra.mxu0 0.0
    %3111 = vmatprep.subr.mxu0 0.0
    %3112 = vmatpush1.msra.mxu0 0.0
    %3113 = vmatprep.mubr.f32.mxu0 0.0
    %3114 = vmatmul.mubr.f32.gmra.mrb[0].mxu0 %v3047
    %v3115 = vpop.f32.mrb[0].mxu0
    %v3116 = vadd.f32 0.0, %v3115
    %v3117 = vpop.f32.mrb[0].mxu0
    %3118 = vdwg.mxu0
    %v3120 = vrot.slane %v3116, 6
    %v3122 = vadd.f32 %v2471, %v3120
    %v3123 = vxor.u32 %v3122, 2147483648
    %v3124 = vmul.f32 %v3123, 1.442695
    %v3125 = vpow.pop %v3124
    %v3126 = vadd.f32 %v3125, 1.0
    %v3127 = vrcp.pop %v3126
    %v3128 = vmul.f32 1.0, %v3127
    %v3129 = vadd.f32 %v3116, %v2552
    %v3131 = vrot.slane %v3129, 6
    %3132 = vrot.lane.b32.xlu0 %v3131, 64
    %v3133 = vpop.permute.xlu0 %3132
    %v3135 = vmul.f32 %v3128, %v3133
    %3137 = vrot.lane.b32.xlu0 %v3135, 64
    %v3138 = vpop.permute.xlu0 %3137
    %v3140 = vadd.f32 %v2471, %v3138
    %v3141 = vtanh.pop %v3140
    %v3143 = vrot.slane %v3141, 2
    %v3145 = vsub.f32 %v3041, %v3143
    %v3147 = vrot.slane %v3145, 6
    %3148 = vrot.lane.b32.xlu0 %v3147, 96
    %v3149 = vpop.permute.xlu0 %3148
    %v3151 = vmul.f32 %v3128, %v3149
    %3153 = vrot.lane.b32.xlu0 %v3151, 32
    %v3154 = vpop.permute.xlu0 %3153
    %v3156 = vadd.f32 %v3141, %v3154
    %3158 = vrot.lane.b32.xlu0 %v3156, 64
    %v3159 = vpop.permute.xlu0 %3158
    %3161 = vst.msk [vmem:[#allocation2 + $0x8] sm:$0xc] %vm637, %v3159
    %v3162 = vrot.slane %v3156, 2
    %3163 = vrot.lane.b32.xlu0 %v3162, 64
    %v3164 = vpop.permute.xlu0 %3163
    %v3165 = vsel %vm410, %v3164, 0
    %3167 = vmatprep.subr.mxu0 0.0
    %3168 = vmatpush1.msra.mxu0 %v2374
    %3169 = vmatprep.subr.mxu0 0.0
    %3170 = vmatpush1.msra.mxu0 %v2375
    %3171 = vmatprep.subr.mxu0 0.0
    %3172 = vmatpush1.msra.mxu0 %v2376
    %3173 = vmatprep.subr.mxu0 0.0
    %3174 = vmatpush1.msra.mxu0 %v2377
    %3175 = vmatprep.subr.mxu0 0.0
    %3176 = vmatpush1.msra.mxu0 0.0
    %3177 = vmatprep.subr.mxu0 0.0
    %3178 = vmatpush1.msra.mxu0 0.0
    %3179 = vmatprep.subr.mxu0 0.0
    %3180 = vmatpush1.msra.mxu0 0.0
    %3181 = vmatprep.subr.mxu0 0.0
    %3182 = vmatpush1.msra.mxu0 0.0
    %3183 = vmatprep.subr.mxu0 0.0
    %3184 = vmatpush1.msra.mxu0 0.0
    %3185 = vmatprep.subr.mxu0 0.0
    %3186 = vmatpush1.msra.mxu0 0.0
    %3187 = vmatprep.subr.mxu0 0.0
    %3188 = vmatpush1.msra.mxu0 0.0
    %3189 = vmatprep.subr.mxu0 0.0
    %3190 = vmatpush1.msra.mxu0 0.0
    %3191 = vmatprep.subr.mxu0 0.0
    %3192 = vmatpush1.msra.mxu0 0.0
    %3193 = vmatprep.subr.mxu0 0.0
    %3194 = vmatpush1.msra.mxu0 0.0
    %3195 = vmatprep.subr.mxu0 0.0
    %3196 = vmatpush1.msra.mxu0 0.0
    %3197 = vmatprep.subr.mxu0 0.0
    %3198 = vmatpush1.msra.mxu0 0.0
    %3199 = vmatprep.subr.mxu0 0.0
    %3200 = vmatpush1.msra.mxu0 0.0
    %3201 = vmatprep.subr.mxu0 0.0
    %3202 = vmatpush1.msra.mxu0 0.0
    %3203 = vmatprep.subr.mxu0 0.0
    %3204 = vmatpush1.msra.mxu0 0.0
    %3205 = vmatprep.subr.mxu0 0.0
    %3206 = vmatpush1.msra.mxu0 0.0
    %3207 = vmatprep.subr.mxu0 0.0
    %3208 = vmatpush1.msra.mxu0 0.0
    %3209 = vmatprep.subr.mxu0 0.0
    %3210 = vmatpush1.msra.mxu0 0.0
    %3211 = vmatprep.subr.mxu0 0.0
    %3212 = vmatpush1.msra.mxu0 0.0
    %3213 = vmatprep.subr.mxu0 0.0
    %3214 = vmatpush1.msra.mxu0 0.0
    %3215 = vmatprep.subr.mxu0 0.0
    %3216 = vmatpush1.msra.mxu0 0.0
    %3217 = vmatprep.subr.mxu0 0.0
    %3218 = vmatpush1.msra.mxu0 0.0
    %3219 = vmatprep.subr.mxu0 0.0
    %3220 = vmatpush1.msra.mxu0 0.0
    %3221 = vmatprep.subr.mxu0 0.0
    %3222 = vmatpush1.msra.mxu0 0.0
    %3223 = vmatprep.subr.mxu0 0.0
    %3224 = vmatpush1.msra.mxu0 0.0
    %3225 = vmatprep.subr.mxu0 0.0
    %3226 = vmatpush1.msra.mxu0 0.0
    %3227 = vmatprep.subr.mxu0 0.0
    %3228 = vmatpush1.msra.mxu0 0.0
    %3229 = vmatprep.subr.mxu0 0.0
    %3230 = vmatpush1.msra.mxu0 0.0
    %3231 = vmatprep.mubr.f32.mxu0 0.0
    %3232 = vmatmul.mubr.f32.gmra.mrb[0].mxu0 %v3165
    %v3233 = vpop.f32.mrb[0].mxu0
    %v3234 = vadd.f32 0.0, %v3233
    %v3235 = vpop.f32.mrb[0].mxu0
    %3236 = vdwg.mxu0
    %v3238 = vrot.slane %v3234, 4
    %v3240 = vadd.f32 %v2471, %v3238
    %v3241 = vxor.u32 %v3240, 2147483648
    %v3242 = vmul.f32 %v3241, 1.442695
    %v3243 = vpow.pop %v3242
    %v3244 = vadd.f32 %v3243, 1.0
    %v3245 = vrcp.pop %v3244
    %v3246 = vmul.f32 1.0, %v3245
    %v3247 = vadd.f32 %v3234, %v2552
    %v3249 = vrot.slane %v3247, 4
    %3250 = vrot.lane.b32.xlu0 %v3249, 64
    %v3251 = vpop.permute.xlu0 %3250
    %v3253 = vmul.f32 %v3246, %v3251
    %3255 = vrot.lane.b32.xlu0 %v3253, 64
    %v3256 = vpop.permute.xlu0 %3255
    %v3258 = vadd.f32 %v2471, %v3256
    %v3259 = vtanh.pop %v3258
    %v3261 = vrot.slane %v3259, 2
    %v3263 = vsub.f32 %v3156, %v3261
    %v3265 = vrot.slane %v3263, 6
    %3266 = vrot.lane.b32.xlu0 %v3265, 96
    %v3267 = vpop.permute.xlu0 %3266
    %v3269 = vmul.f32 %v3246, %v3267
    %3271 = vrot.lane.b32.xlu0 %v3269, 32
    %v3272 = vpop.permute.xlu0 %3271
    %v3274 = vadd.f32 %v3259, %v3272
    %3276 = vrot.lane.b32.xlu0 %v3274, 64
    %v3277 = vpop.permute.xlu0 %3276
    %3279 = vst.msk [vmem:[#allocation2 + $0x8] sm:$0x30] %vm756, %v3277
    %v3280 = vrot.slane %v3274, 4
    %3281 = vrot.lane.b32.xlu0 %v3280, 64
    %v3282 = vpop.permute.xlu0 %3281
    %v3283 = vsel %vm410, %v3282, 0
    %3285 = vmatprep.subr.mxu0 0.0
    %3286 = vmatpush1.msra.mxu0 %v2374
    %3287 = vmatprep.subr.mxu0 0.0
    %3288 = vmatpush1.msra.mxu0 %v2375
    %3289 = vmatprep.subr.mxu0 0.0
    %3290 = vmatpush1.msra.mxu0 %v2376
    %3291 = vmatprep.subr.mxu0 0.0
    %3292 = vmatpush1.msra.mxu0 %v2377
    %3293 = vmatprep.subr.mxu0 0.0
    %3294 = vmatpush1.msra.mxu0 0.0
    %3295 = vmatprep.subr.mxu0 0.0
    %3296 = vmatpush1.msra.mxu0 0.0
    %3297 = vmatprep.subr.mxu0 0.0
    %3298 = vmatpush1.msra.mxu0 0.0
    %3299 = vmatprep.subr.mxu0 0.0
    %3300 = vmatpush1.msra.mxu0 0.0
    %3301 = vmatprep.subr.mxu0 0.0
    %3302 = vmatpush1.msra.mxu0 0.0
    %3303 = vmatprep.subr.mxu0 0.0
    %3304 = vmatpush1.msra.mxu0 0.0
    %3305 = vmatprep.subr.mxu0 0.0
    %3306 = vmatpush1.msra.mxu0 0.0
    %3307 = vmatprep.subr.mxu0 0.0
    %3308 = vmatpush1.msra.mxu0 0.0
    %3309 = vmatprep.subr.mxu0 0.0
    %3310 = vmatpush1.msra.mxu0 0.0
    %3311 = vmatprep.subr.mxu0 0.0
    %3312 = vmatpush1.msra.mxu0 0.0
    %3313 = vmatprep.subr.mxu0 0.0
    %3314 = vmatpush1.msra.mxu0 0.0
    %3315 = vmatprep.subr.mxu0 0.0
    %3316 = vmatpush1.msra.mxu0 0.0
    %3317 = vmatprep.subr.mxu0 0.0
    %3318 = vmatpush1.msra.mxu0 0.0
    %3319 = vmatprep.subr.mxu0 0.0
    %3320 = vmatpush1.msra.mxu0 0.0
    %3321 = vmatprep.subr.mxu0 0.0
    %3322 = vmatpush1.msra.mxu0 0.0
    %3323 = vmatprep.subr.mxu0 0.0
    %3324 = vmatpush1.msra.mxu0 0.0
    %3325 = vmatprep.subr.mxu0 0.0
    %3326 = vmatpush1.msra.mxu0 0.0
    %3327 = vmatprep.subr.mxu0 0.0
    %3328 = vmatpush1.msra.mxu0 0.0
    %3329 = vmatprep.subr.mxu0 0.0
    %3330 = vmatpush1.msra.mxu0 0.0
    %3331 = vmatprep.subr.mxu0 0.0
    %3332 = vmatpush1.msra.mxu0 0.0
    %3333 = vmatprep.subr.mxu0 0.0
    %3334 = vmatpush1.msra.mxu0 0.0
    %3335 = vmatprep.subr.mxu0 0.0
    %3336 = vmatpush1.msra.mxu0 0.0
    %3337 = vmatprep.subr.mxu0 0.0
    %3338 = vmatpush1.msra.mxu0 0.0
    %3339 = vmatprep.subr.mxu0 0.0
    %3340 = vmatpush1.msra.mxu0 0.0
    %3341 = vmatprep.subr.mxu0 0.0
    %3342 = vmatpush1.msra.mxu0 0.0
    %3343 = vmatprep.subr.mxu0 0.0
    %3344 = vmatpush1.msra.mxu0 0.0
    %3345 = vmatprep.subr.mxu0 0.0
    %3346 = vmatpush1.msra.mxu0 0.0
    %3347 = vmatprep.subr.mxu0 0.0
    %3348 = vmatpush1.msra.mxu0 0.0
    %3349 = vmatprep.mubr.f32.mxu0 0.0
    %3350 = vmatmul.mubr.f32.gmra.mrb[0].mxu0 %v3283
    %v3351 = vpop.f32.mrb[0].mxu0
    %v3352 = vadd.f32 0.0, %v3351
    %v3353 = vpop.f32.mrb[0].mxu0
    %3354 = vdwg.mxu0
    %v3356 = vrot.slane %v3352, 2
    %v3358 = vadd.f32 %v2471, %v3356
    %v3359 = vxor.u32 %v3358, 2147483648
    %v3360 = vmul.f32 %v3359, 1.442695
    %v3361 = vpow.pop %v3360
    %v3362 = vadd.f32 %v3361, 1.0
    %v3363 = vrcp.pop %v3362
    %v3364 = vmul.f32 1.0, %v3363
    %v3365 = vadd.f32 %v3352, %v2552
    %v3367 = vrot.slane %v3365, 2
    %3368 = vrot.lane.b32.xlu0 %v3367, 64
    %v3369 = vpop.permute.xlu0 %3368
    %v3371 = vmul.f32 %v3364, %v3369
    %3373 = vrot.lane.b32.xlu0 %v3371, 64
    %v3374 = vpop.permute.xlu0 %3373
    %v3376 = vadd.f32 %v2471, %v3374
    %v3377 = vtanh.pop %v3376
    %v3379 = vrot.slane %v3377, 2
    %v3381 = vsub.f32 %v3274, %v3379
    %v3383 = vrot.slane %v3381, 6
    %3384 = vrot.lane.b32.xlu0 %v3383, 96
    %v3385 = vpop.permute.xlu0 %3384
    %v3387 = vmul.f32 %v3364, %v3385
    %3389 = vrot.lane.b32.xlu0 %v3387, 32
    %v3390 = vpop.permute.xlu0 %3389
    %v3392 = vadd.f32 %v3377, %v3390
    %3394 = vrot.lane.b32.xlu0 %v3392, 64
    %v3395 = vpop.permute.xlu0 %3394
    %3397 = vst.msk [vmem:[#allocation2 + $0x8] sm:$0xc0] %vm875, %v3395
    %v3398 = vld [vmem:[%s13] sm:$0xff]
    %v3399 = vld [vmem:[%s13 + $0x8] sm:$0xff]
    %v3400 = vld [vmem:[%s13 + $0x10] sm:$0xff]
    %v3401 = vld [vmem:[%s13 + $0x18] sm:$0xff]
    %v3402 = vld [vmem:[#allocation20] sm:$0xff]
    %v3403 = vld [vmem:[#allocation20 + $0x8] sm:$0xff]
    %v3404 = vld [vmem:[#allocation20 + $0x10] sm:$0xff]
    %v3405 = vld [vmem:[#allocation20 + $0x18] sm:$0xff]
    %v3406 = vld [vmem:[#allocation21] sm:$0x1]
    %v3407 = vld [vmem:[#allocation23] sm:$0x1]
    %v3409 = vlaneseq
    %v3410 = vshrl.u32 %v3409, 7
    %v3411 = vsub.s32 0, %v3410
    %v3412 = vrot.slane %v3407, %v3411
    %v3413 = vld [vmem:[#allocation2] sm:$0xff]
    %v3414 = vld [vmem:[#allocation2 + $0x8] sm:$0xff]
    %v3416 = vlaneseq
    %v3417 = vshrl.u32 %v3416, 7
    %v3418 = vsub.s32 0, %v3417
    %v3419 = vrot.slane %v3406, %v3418
    %v3422 = vsel %vm410, %v3413, 0
    %v3425 = vsel %vm410, %v3414, 0
    %3427 = vmatprep.subr.mxu0 0.0
    %3428 = vmatpush1.msra.mxu0 %v3398
    %3429 = vmatprep.subr.mxu0 0.0
    %3430 = vmatpush1.msra.mxu0 %v3399
    %3431 = vmatprep.subr.mxu0 0.0
    %3432 = vmatpush1.msra.mxu0 %v3400
    %3433 = vmatprep.subr.mxu0 0.0
    %3434 = vmatpush1.msra.mxu0 %v3401
    %3435 = vmatprep.subr.mxu0 0.0
    %3436 = vmatpush1.msra.mxu0 0.0
    %3437 = vmatprep.subr.mxu0 0.0
    %3438 = vmatpush1.msra.mxu0 0.0
    %3439 = vmatprep.subr.mxu0 0.0
    %3440 = vmatpush1.msra.mxu0 0.0
    %3441 = vmatprep.subr.mxu0 0.0
    %3442 = vmatpush1.msra.mxu0 0.0
    %3443 = vmatprep.subr.mxu0 0.0
    %3444 = vmatpush1.msra.mxu0 0.0
    %3445 = vmatprep.subr.mxu0 0.0
    %3446 = vmatpush1.msra.mxu0 0.0
    %3447 = vmatprep.subr.mxu0 0.0
    %3448 = vmatpush1.msra.mxu0 0.0
    %3449 = vmatprep.subr.mxu0 0.0
    %3450 = vmatpush1.msra.mxu0 0.0
    %3451 = vmatprep.subr.mxu0 0.0
    %3452 = vmatpush1.msra.mxu0 0.0
    %3453 = vmatprep.subr.mxu0 0.0
    %3454 = vmatpush1.msra.mxu0 0.0
    %3455 = vmatprep.subr.mxu0 0.0
    %3456 = vmatpush1.msra.mxu0 0.0
    %3457 = vmatprep.subr.mxu0 0.0
    %3458 = vmatpush1.msra.mxu0 0.0
    %3459 = vmatprep.subr.mxu0 0.0
    %3460 = vmatpush1.msra.mxu0 0.0
    %3461 = vmatprep.subr.mxu0 0.0
    %3462 = vmatpush1.msra.mxu0 0.0
    %3463 = vmatprep.subr.mxu0 0.0
    %3464 = vmatpush1.msra.mxu0 0.0
    %3465 = vmatprep.subr.mxu0 0.0
    %3466 = vmatpush1.msra.mxu0 0.0
    %3467 = vmatprep.subr.mxu0 0.0
    %3468 = vmatpush1.msra.mxu0 0.0
    %3469 = vmatprep.subr.mxu0 0.0
    %3470 = vmatpush1.msra.mxu0 0.0
    %3471 = vmatprep.subr.mxu0 0.0
    %3472 = vmatpush1.msra.mxu0 0.0
    %3473 = vmatprep.subr.mxu0 0.0
    %3474 = vmatpush1.msra.mxu0 0.0
    %3475 = vmatprep.subr.mxu0 0.0
    %3476 = vmatpush1.msra.mxu0 0.0
    %3477 = vmatprep.subr.mxu0 0.0
    %3478 = vmatpush1.msra.mxu0 0.0
    %3479 = vmatprep.subr.mxu0 0.0
    %3480 = vmatpush1.msra.mxu0 0.0
    %3481 = vmatprep.subr.mxu0 0.0
    %3482 = vmatpush1.msra.mxu0 0.0
    %3483 = vmatprep.subr.mxu0 0.0
    %3484 = vmatpush1.msra.mxu0 0.0
    %3485 = vmatprep.subr.mxu0 0.0
    %3486 = vmatpush1.msra.mxu0 0.0
    %3487 = vmatprep.subr.mxu0 0.0
    %3488 = vmatpush1.msra.mxu0 0.0
    %3489 = vmatprep.subr.mxu0 0.0
    %3490 = vmatpush1.msra.mxu0 0.0
    %3491 = vmatprep.mubr.f32.mxu0 0.0
    %3492 = vmatmul.mubr.f32.gmra.mrb[0].mxu0 %v3422
    %v3493 = vpop.f32.mrb[0].mxu0
    %v3494 = vadd.f32 %v3419, %v3493
    %v3495 = vpop.f32.mrb[0].mxu0
    %3496 = vmatprep.mubr.f32.mxu0 0.0
    %3497 = vmatmul.mubr.f32.gmra.mrb[0].mxu0 %v3425
    %v3498 = vpop.f32.mrb[0].mxu0
    %v3499 = vadd.f32 %v3419, %v3498
    %v3500 = vpop.f32.mrb[0].mxu0
    %3501 = vdwg.mxu0
    %3502 = vmatprep.subr.mxu0 0.0
    %3503 = vmatpush1.msra.mxu0 %v3402
    %3504 = vmatprep.subr.mxu0 0.0
    %3505 = vmatpush1.msra.mxu0 %v3403
    %3506 = vmatprep.subr.mxu0 0.0
    %3507 = vmatpush1.msra.mxu0 %v3404
    %3508 = vmatprep.subr.mxu0 0.0
    %3509 = vmatpush1.msra.mxu0 %v3405
    %3510 = vmatprep.subr.mxu0 0.0
    %3511 = vmatpush1.msra.mxu0 0.0
    %3512 = vmatprep.subr.mxu0 0.0
    %3513 = vmatpush1.msra.mxu0 0.0
    %3514 = vmatprep.subr.mxu0 0.0
    %3515 = vmatpush1.msra.mxu0 0.0
    %3516 = vmatprep.subr.mxu0 0.0
    %3517 = vmatpush1.msra.mxu0 0.0
    %3518 = vmatprep.subr.mxu0 0.0
    %3519 = vmatpush1.msra.mxu0 0.0
    %3520 = vmatprep.subr.mxu0 0.0
    %3521 = vmatpush1.msra.mxu0 0.0
    %3522 = vmatprep.subr.mxu0 0.0
    %3523 = vmatpush1.msra.mxu0 0.0
    %3524 = vmatprep.subr.mxu0 0.0
    %3525 = vmatpush1.msra.mxu0 0.0
    %3526 = vmatprep.subr.mxu0 0.0
    %3527 = vmatpush1.msra.mxu0 0.0
    %3528 = vmatprep.subr.mxu0 0.0
    %3529 = vmatpush1.msra.mxu0 0.0
    %3530 = vmatprep.subr.mxu0 0.0
    %3531 = vmatpush1.msra.mxu0 0.0
    %3532 = vmatprep.subr.mxu0 0.0
    %3533 = vmatpush1.msra.mxu0 0.0
    %3534 = vmatprep.subr.mxu0 0.0
    %3535 = vmatpush1.msra.mxu0 0.0
    %3536 = vmatprep.subr.mxu0 0.0
    %3537 = vmatpush1.msra.mxu0 0.0
    %3538 = vmatprep.subr.mxu0 0.0
    %3539 = vmatpush1.msra.mxu0 0.0
    %3540 = vmatprep.subr.mxu0 0.0
    %3541 = vmatpush1.msra.mxu0 0.0
    %3542 = vmatprep.subr.mxu0 0.0
    %3543 = vmatpush1.msra.mxu0 0.0
    %3544 = vmatprep.subr.mxu0 0.0
    %3545 = vmatpush1.msra.mxu0 0.0
    %3546 = vmatprep.subr.mxu0 0.0
    %3547 = vmatpush1.msra.mxu0 0.0
    %3548 = vmatprep.subr.mxu0 0.0
    %3549 = vmatpush1.msra.mxu0 0.0
    %3550 = vmatprep.subr.mxu0 0.0
    %3551 = vmatpush1.msra.mxu0 0.0
    %3552 = vmatprep.subr.mxu0 0.0
    %3553 = vmatpush1.msra.mxu0 0.0
    %3554 = vmatprep.subr.mxu0 0.0
    %3555 = vmatpush1.msra.mxu0 0.0
    %3556 = vmatprep.subr.mxu0 0.0
    %3557 = vmatpush1.msra.mxu0 0.0
    %3558 = vmatprep.subr.mxu0 0.0
    %3559 = vmatpush1.msra.mxu0 0.0
    %3560 = vmatprep.subr.mxu0 0.0
    %3561 = vmatpush1.msra.mxu0 0.0
    %3562 = vmatprep.subr.mxu0 0.0
    %3563 = vmatpush1.msra.mxu0 0.0
    %3564 = vmatprep.subr.mxu0 0.0
    %3565 = vmatpush1.msra.mxu0 0.0
    %3566 = vmatprep.mubr.f32.mxu0 0.0
    %3567 = vmatmul.mubr.f32.gmra.mrb[0].mxu0 %v412
    %v3568 = vpop.f32.mrb[0].mxu0
    %v3569 = vadd.f32 0.0, %v3568
    %v3570 = vpop.f32.mrb[0].mxu0
    %3571 = vdwg.mxu0
    %v3572 = vadd.f32 %v3494, %v3569
    %v3573 = vxor.u32 %v3572, 2147483648
    %v3574 = vmul.f32 %v3573, 1.442695
    %v3575 = vpow.pop %v3574
    %v3576 = vadd.f32 %v3575, 1.0
    %v3577 = vrcp.pop %v3576
    %v3578 = vmul.f32 1.0, %v3577
    %3579 = vrot.lane.b32.xlu0 %v3412, 64
    %v3580 = vpop.permute.xlu0 %3579
    %v3582 = vadd.f32 %v3569, %v3580
    %3584 = vrot.lane.b32.xlu0 %v3582, 64
    %v3585 = vpop.permute.xlu0 %3584
    %v3587 = vmul.f32 %v3578, %v3585
    %3589 = vrot.lane.b32.xlu0 %v3587, 64
    %v3590 = vpop.permute.xlu0 %3589
    %v3592 = vadd.f32 %v3494, %v3590
    %v3593 = vtanh.pop %v3592
    %v3594 = vsub.f32 0.0, %v3593
    %3596 = vrot.lane.b32.xlu0 %v3594, 96
    %v3597 = vpop.permute.xlu0 %3596
    %v3599 = vmul.f32 %v3578, %v3597
    %3601 = vrot.lane.b32.xlu0 %v3599, 32
    %v3602 = vpop.permute.xlu0 %3601
    %v3604 = vadd.f32 %v3593, %v3602
    %3606 = vrot.lane.b32.xlu0 %v3604, 64
    %v3607 = vpop.permute.xlu0 %3606
    %3609 = vst.msk [vmem:[#allocation2] sm:$0x3] %vm521, %v3607
    %v3610 = vsel %vm410, %v3607, 0
    %3612 = vmatprep.subr.mxu0 0.0
    %3613 = vmatpush1.msra.mxu0 %v3402
    %3614 = vmatprep.subr.mxu0 0.0
    %3615 = vmatpush1.msra.mxu0 %v3403
    %3616 = vmatprep.subr.mxu0 0.0
    %3617 = vmatpush1.msra.mxu0 %v3404
    %3618 = vmatprep.subr.mxu0 0.0
    %3619 = vmatpush1.msra.mxu0 %v3405
    %3620 = vmatprep.subr.mxu0 0.0
    %3621 = vmatpush1.msra.mxu0 0.0
    %3622 = vmatprep.subr.mxu0 0.0
    %3623 = vmatpush1.msra.mxu0 0.0
    %3624 = vmatprep.subr.mxu0 0.0
    %3625 = vmatpush1.msra.mxu0 0.0
    %3626 = vmatprep.subr.mxu0 0.0
    %3627 = vmatpush1.msra.mxu0 0.0
    %3628 = vmatprep.subr.mxu0 0.0
    %3629 = vmatpush1.msra.mxu0 0.0
    %3630 = vmatprep.subr.mxu0 0.0
    %3631 = vmatpush1.msra.mxu0 0.0
    %3632 = vmatprep.subr.mxu0 0.0
    %3633 = vmatpush1.msra.mxu0 0.0
    %3634 = vmatprep.subr.mxu0 0.0
    %3635 = vmatpush1.msra.mxu0 0.0
    %3636 = vmatprep.subr.mxu0 0.0
    %3637 = vmatpush1.msra.mxu0 0.0
    %3638 = vmatprep.subr.mxu0 0.0
    %3639 = vmatpush1.msra.mxu0 0.0
    %3640 = vmatprep.subr.mxu0 0.0
    %3641 = vmatpush1.msra.mxu0 0.0
    %3642 = vmatprep.subr.mxu0 0.0
    %3643 = vmatpush1.msra.mxu0 0.0
    %3644 = vmatprep.subr.mxu0 0.0
    %3645 = vmatpush1.msra.mxu0 0.0
    %3646 = vmatprep.subr.mxu0 0.0
    %3647 = vmatpush1.msra.mxu0 0.0
    %3648 = vmatprep.subr.mxu0 0.0
    %3649 = vmatpush1.msra.mxu0 0.0
    %3650 = vmatprep.subr.mxu0 0.0
    %3651 = vmatpush1.msra.mxu0 0.0
    %3652 = vmatprep.subr.mxu0 0.0
    %3653 = vmatpush1.msra.mxu0 0.0
    %3654 = vmatprep.subr.mxu0 0.0
    %3655 = vmatpush1.msra.mxu0 0.0
    %3656 = vmatprep.subr.mxu0 0.0
    %3657 = vmatpush1.msra.mxu0 0.0
    %3658 = vmatprep.subr.mxu0 0.0
    %3659 = vmatpush1.msra.mxu0 0.0
    %3660 = vmatprep.subr.mxu0 0.0
    %3661 = vmatpush1.msra.mxu0 0.0
    %3662 = vmatprep.subr.mxu0 0.0
    %3663 = vmatpush1.msra.mxu0 0.0
    %3664 = vmatprep.subr.mxu0 0.0
    %3665 = vmatpush1.msra.mxu0 0.0
    %3666 = vmatprep.subr.mxu0 0.0
    %3667 = vmatpush1.msra.mxu0 0.0
    %3668 = vmatprep.subr.mxu0 0.0
    %3669 = vmatpush1.msra.mxu0 0.0
    %3670 = vmatprep.subr.mxu0 0.0
    %3671 = vmatpush1.msra.mxu0 0.0
    %3672 = vmatprep.subr.mxu0 0.0
    %3673 = vmatpush1.msra.mxu0 0.0
    %3674 = vmatprep.subr.mxu0 0.0
    %3675 = vmatpush1.msra.mxu0 0.0
    %3676 = vmatprep.mubr.f32.mxu0 0.0
    %3677 = vmatmul.mubr.f32.gmra.mrb[0].mxu0 %v3610
    %v3678 = vpop.f32.mrb[0].mxu0
    %v3679 = vadd.f32 0.0, %v3678
    %v3680 = vpop.f32.mrb[0].mxu0
    %3681 = vdwg.mxu0
    %v3683 = vrot.slane %v3679, 6
    %v3685 = vadd.f32 %v3494, %v3683
    %v3686 = vxor.u32 %v3685, 2147483648
    %v3687 = vmul.f32 %v3686, 1.442695
    %v3688 = vpow.pop %v3687
    %v3689 = vadd.f32 %v3688, 1.0
    %v3690 = vrcp.pop %v3689
    %v3691 = vmul.f32 1.0, %v3690
    %v3692 = vadd.f32 %v3679, %v3580
    %v3694 = vrot.slane %v3692, 6
    %3695 = vrot.lane.b32.xlu0 %v3694, 64
    %v3696 = vpop.permute.xlu0 %3695
    %v3698 = vmul.f32 %v3691, %v3696
    %3700 = vrot.lane.b32.xlu0 %v3698, 64
    %v3701 = vpop.permute.xlu0 %3700
    %v3703 = vadd.f32 %v3494, %v3701
    %v3704 = vtanh.pop %v3703
    %v3706 = vrot.slane %v3704, 2
    %v3708 = vsub.f32 %v3604, %v3706
    %v3710 = vrot.slane %v3708, 6
    %3711 = vrot.lane.b32.xlu0 %v3710, 96
    %v3712 = vpop.permute.xlu0 %3711
    %v3714 = vmul.f32 %v3691, %v3712
    %3716 = vrot.lane.b32.xlu0 %v3714, 32
    %v3717 = vpop.permute.xlu0 %3716
    %v3719 = vadd.f32 %v3704, %v3717
    %3721 = vrot.lane.b32.xlu0 %v3719, 64
    %v3722 = vpop.permute.xlu0 %3721
    %3724 = vst.msk [vmem:[#allocation2] sm:$0xc] %vm637, %v3722
    %v3725 = vrot.slane %v3719, 2
    %3726 = vrot.lane.b32.xlu0 %v3725, 64
    %v3727 = vpop.permute.xlu0 %3726
    %v3728 = vsel %vm410, %v3727, 0
    %3730 = vmatprep.subr.mxu0 0.0
    %3731 = vmatpush1.msra.mxu0 %v3402
    %3732 = vmatprep.subr.mxu0 0.0
    %3733 = vmatpush1.msra.mxu0 %v3403
    %3734 = vmatprep.subr.mxu0 0.0
    %3735 = vmatpush1.msra.mxu0 %v3404
    %3736 = vmatprep.subr.mxu0 0.0
    %3737 = vmatpush1.msra.mxu0 %v3405
    %3738 = vmatprep.subr.mxu0 0.0
    %3739 = vmatpush1.msra.mxu0 0.0
    %3740 = vmatprep.subr.mxu0 0.0
    %3741 = vmatpush1.msra.mxu0 0.0
    %3742 = vmatprep.subr.mxu0 0.0
    %3743 = vmatpush1.msra.mxu0 0.0
    %3744 = vmatprep.subr.mxu0 0.0
    %3745 = vmatpush1.msra.mxu0 0.0
    %3746 = vmatprep.subr.mxu0 0.0
    %3747 = vmatpush1.msra.mxu0 0.0
    %3748 = vmatprep.subr.mxu0 0.0
    %3749 = vmatpush1.msra.mxu0 0.0
    %3750 = vmatprep.subr.mxu0 0.0
    %3751 = vmatpush1.msra.mxu0 0.0
    %3752 = vmatprep.subr.mxu0 0.0
    %3753 = vmatpush1.msra.mxu0 0.0
    %3754 = vmatprep.subr.mxu0 0.0
    %3755 = vmatpush1.msra.mxu0 0.0
    %3756 = vmatprep.subr.mxu0 0.0
    %3757 = vmatpush1.msra.mxu0 0.0
    %3758 = vmatprep.subr.mxu0 0.0
    %3759 = vmatpush1.msra.mxu0 0.0
    %3760 = vmatprep.subr.mxu0 0.0
    %3761 = vmatpush1.msra.mxu0 0.0
    %3762 = vmatprep.subr.mxu0 0.0
    %3763 = vmatpush1.msra.mxu0 0.0
    %3764 = vmatprep.subr.mxu0 0.0
    %3765 = vmatpush1.msra.mxu0 0.0
    %3766 = vmatprep.subr.mxu0 0.0
    %3767 = vmatpush1.msra.mxu0 0.0
    %3768 = vmatprep.subr.mxu0 0.0
    %3769 = vmatpush1.msra.mxu0 0.0
    %3770 = vmatprep.subr.mxu0 0.0
    %3771 = vmatpush1.msra.mxu0 0.0
    %3772 = vmatprep.subr.mxu0 0.0
    %3773 = vmatpush1.msra.mxu0 0.0
    %3774 = vmatprep.subr.mxu0 0.0
    %3775 = vmatpush1.msra.mxu0 0.0
    %3776 = vmatprep.subr.mxu0 0.0
    %3777 = vmatpush1.msra.mxu0 0.0
    %3778 = vmatprep.subr.mxu0 0.0
    %3779 = vmatpush1.msra.mxu0 0.0
    %3780 = vmatprep.subr.mxu0 0.0
    %3781 = vmatpush1.msra.mxu0 0.0
    %3782 = vmatprep.subr.mxu0 0.0
    %3783 = vmatpush1.msra.mxu0 0.0
    %3784 = vmatprep.subr.mxu0 0.0
    %3785 = vmatpush1.msra.mxu0 0.0
    %3786 = vmatprep.subr.mxu0 0.0
    %3787 = vmatpush1.msra.mxu0 0.0
    %3788 = vmatprep.subr.mxu0 0.0
    %3789 = vmatpush1.msra.mxu0 0.0
    %3790 = vmatprep.subr.mxu0 0.0
    %3791 = vmatpush1.msra.mxu0 0.0
    %3792 = vmatprep.subr.mxu0 0.0
    %3793 = vmatpush1.msra.mxu0 0.0
    %3794 = vmatprep.mubr.f32.mxu0 0.0
    %3795 = vmatmul.mubr.f32.gmra.mrb[0].mxu0 %v3728
    %v3796 = vpop.f32.mrb[0].mxu0
    %v3797 = vadd.f32 0.0, %v3796
    %v3798 = vpop.f32.mrb[0].mxu0
    %3799 = vdwg.mxu0
    %v3801 = vrot.slane %v3797, 4
    %v3803 = vadd.f32 %v3494, %v3801
    %v3804 = vxor.u32 %v3803, 2147483648
    %v3805 = vmul.f32 %v3804, 1.442695
    %v3806 = vpow.pop %v3805
    %v3807 = vadd.f32 %v3806, 1.0
    %v3808 = vrcp.pop %v3807
    %v3809 = vmul.f32 1.0, %v3808
    %v3810 = vadd.f32 %v3797, %v3580
    %v3812 = vrot.slane %v3810, 4
    %3813 = vrot.lane.b32.xlu0 %v3812, 64
    %v3814 = vpop.permute.xlu0 %3813
    %v3816 = vmul.f32 %v3809, %v3814
    %3818 = vrot.lane.b32.xlu0 %v3816, 64
    %v3819 = vpop.permute.xlu0 %3818
    %v3821 = vadd.f32 %v3494, %v3819
    %v3822 = vtanh.pop %v3821
    %v3824 = vrot.slane %v3822, 2
    %v3826 = vsub.f32 %v3719, %v3824
    %v3828 = vrot.slane %v3826, 6
    %3829 = vrot.lane.b32.xlu0 %v3828, 96
    %v3830 = vpop.permute.xlu0 %3829
    %v3832 = vmul.f32 %v3809, %v3830
    %3834 = vrot.lane.b32.xlu0 %v3832, 32
    %v3835 = vpop.permute.xlu0 %3834
    %v3837 = vadd.f32 %v3822, %v3835
    %3839 = vrot.lane.b32.xlu0 %v3837, 64
    %v3840 = vpop.permute.xlu0 %3839
    %3842 = vst.msk [vmem:[#allocation2] sm:$0x30] %vm756, %v3840
    %v3843 = vrot.slane %v3837, 4
    %3844 = vrot.lane.b32.xlu0 %v3843, 64
    %v3845 = vpop.permute.xlu0 %3844
    %v3846 = vsel %vm410, %v3845, 0
    %3848 = vmatprep.subr.mxu0 0.0
    %3849 = vmatpush1.msra.mxu0 %v3402
    %3850 = vmatprep.subr.mxu0 0.0
    %3851 = vmatpush1.msra.mxu0 %v3403
    %3852 = vmatprep.subr.mxu0 0.0
    %3853 = vmatpush1.msra.mxu0 %v3404
    %3854 = vmatprep.subr.mxu0 0.0
    %3855 = vmatpush1.msra.mxu0 %v3405
    %3856 = vmatprep.subr.mxu0 0.0
    %3857 = vmatpush1.msra.mxu0 0.0
    %3858 = vmatprep.subr.mxu0 0.0
    %3859 = vmatpush1.msra.mxu0 0.0
    %3860 = vmatprep.subr.mxu0 0.0
    %3861 = vmatpush1.msra.mxu0 0.0
    %3862 = vmatprep.subr.mxu0 0.0
    %3863 = vmatpush1.msra.mxu0 0.0
    %3864 = vmatprep.subr.mxu0 0.0
    %3865 = vmatpush1.msra.mxu0 0.0
    %3866 = vmatprep.subr.mxu0 0.0
    %3867 = vmatpush1.msra.mxu0 0.0
    %3868 = vmatprep.subr.mxu0 0.0
    %3869 = vmatpush1.msra.mxu0 0.0
    %3870 = vmatprep.subr.mxu0 0.0
    %3871 = vmatpush1.msra.mxu0 0.0
    %3872 = vmatprep.subr.mxu0 0.0
    %3873 = vmatpush1.msra.mxu0 0.0
    %3874 = vmatprep.subr.mxu0 0.0
    %3875 = vmatpush1.msra.mxu0 0.0
    %3876 = vmatprep.subr.mxu0 0.0
    %3877 = vmatpush1.msra.mxu0 0.0
    %3878 = vmatprep.subr.mxu0 0.0
    %3879 = vmatpush1.msra.mxu0 0.0
    %3880 = vmatprep.subr.mxu0 0.0
    %3881 = vmatpush1.msra.mxu0 0.0
    %3882 = vmatprep.subr.mxu0 0.0
    %3883 = vmatpush1.msra.mxu0 0.0
    %3884 = vmatprep.subr.mxu0 0.0
    %3885 = vmatpush1.msra.mxu0 0.0
    %3886 = vmatprep.subr.mxu0 0.0
    %3887 = vmatpush1.msra.mxu0 0.0
    %3888 = vmatprep.subr.mxu0 0.0
    %3889 = vmatpush1.msra.mxu0 0.0
    %3890 = vmatprep.subr.mxu0 0.0
    %3891 = vmatpush1.msra.mxu0 0.0
    %3892 = vmatprep.subr.mxu0 0.0
    %3893 = vmatpush1.msra.mxu0 0.0
    %3894 = vmatprep.subr.mxu0 0.0
    %3895 = vmatpush1.msra.mxu0 0.0
    %3896 = vmatprep.subr.mxu0 0.0
    %3897 = vmatpush1.msra.mxu0 0.0
    %3898 = vmatprep.subr.mxu0 0.0
    %3899 = vmatpush1.msra.mxu0 0.0
    %3900 = vmatprep.subr.mxu0 0.0
    %3901 = vmatpush1.msra.mxu0 0.0
    %3902 = vmatprep.subr.mxu0 0.0
    %3903 = vmatpush1.msra.mxu0 0.0
    %3904 = vmatprep.subr.mxu0 0.0
    %3905 = vmatpush1.msra.mxu0 0.0
    %3906 = vmatprep.subr.mxu0 0.0
    %3907 = vmatpush1.msra.mxu0 0.0
    %3908 = vmatprep.subr.mxu0 0.0
    %3909 = vmatpush1.msra.mxu0 0.0
    %3910 = vmatprep.subr.mxu0 0.0
    %3911 = vmatpush1.msra.mxu0 0.0
    %3912 = vmatprep.mubr.f32.mxu0 0.0
    %3913 = vmatmul.mubr.f32.gmra.mrb[0].mxu0 %v3846
    %v3914 = vpop.f32.mrb[0].mxu0
    %v3915 = vadd.f32 0.0, %v3914
    %v3916 = vpop.f32.mrb[0].mxu0
    %3917 = vdwg.mxu0
    %v3919 = vrot.slane %v3915, 2
    %v3921 = vadd.f32 %v3494, %v3919
    %v3922 = vxor.u32 %v3921, 2147483648
    %v3923 = vmul.f32 %v3922, 1.442695
    %v3924 = vpow.pop %v3923
    %v3925 = vadd.f32 %v3924, 1.0
    %v3926 = vrcp.pop %v3925
    %v3927 = vmul.f32 1.0, %v3926
    %v3928 = vadd.f32 %v3915, %v3580
    %v3930 = vrot.slane %v3928, 2
    %3931 = vrot.lane.b32.xlu0 %v3930, 64
    %v3932 = vpop.permute.xlu0 %3931
    %v3934 = vmul.f32 %v3927, %v3932
    %3936 = vrot.lane.b32.xlu0 %v3934, 64
    %v3937 = vpop.permute.xlu0 %3936
    %v3939 = vadd.f32 %v3494, %v3937
    %v3940 = vtanh.pop %v3939
    %v3942 = vrot.slane %v3940, 2
    %v3944 = vsub.f32 %v3837, %v3942
    %v3946 = vrot.slane %v3944, 6
    %3947 = vrot.lane.b32.xlu0 %v3946, 96
    %v3948 = vpop.permute.xlu0 %3947
    %v3950 = vmul.f32 %v3927, %v3948
    %3952 = vrot.lane.b32.xlu0 %v3950, 32
    %v3953 = vpop.permute.xlu0 %3952
    %v3955 = vadd.f32 %v3940, %v3953
    %3957 = vrot.lane.b32.xlu0 %v3955, 64
    %v3958 = vpop.permute.xlu0 %3957
    %3960 = vst.msk [vmem:[#allocation2] sm:$0xc0] %vm875, %v3958
    %v3961 = vrot.slane %v3955, 6
    %3962 = vrot.lane.b32.xlu0 %v3961, 64
    %v3963 = vpop.permute.xlu0 %3962
    %v3964 = vsel %vm410, %v3963, 0
    %3966 = vmatprep.subr.mxu0 0.0
    %3967 = vmatpush1.msra.mxu0 %v3402
    %3968 = vmatprep.subr.mxu0 0.0
    %3969 = vmatpush1.msra.mxu0 %v3403
    %3970 = vmatprep.subr.mxu0 0.0
    %3971 = vmatpush1.msra.mxu0 %v3404
    %3972 = vmatprep.subr.mxu0 0.0
    %3973 = vmatpush1.msra.mxu0 %v3405
    %3974 = vmatprep.subr.mxu0 0.0
    %3975 = vmatpush1.msra.mxu0 0.0
    %3976 = vmatprep.subr.mxu0 0.0
    %3977 = vmatpush1.msra.mxu0 0.0
    %3978 = vmatprep.subr.mxu0 0.0
    %3979 = vmatpush1.msra.mxu0 0.0
    %3980 = vmatprep.subr.mxu0 0.0
    %3981 = vmatpush1.msra.mxu0 0.0
    %3982 = vmatprep.subr.mxu0 0.0
    %3983 = vmatpush1.msra.mxu0 0.0
    %3984 = vmatprep.subr.mxu0 0.0
    %3985 = vmatpush1.msra.mxu0 0.0
    %3986 = vmatprep.subr.mxu0 0.0
    %3987 = vmatpush1.msra.mxu0 0.0
    %3988 = vmatprep.subr.mxu0 0.0
    %3989 = vmatpush1.msra.mxu0 0.0
    %3990 = vmatprep.subr.mxu0 0.0
    %3991 = vmatpush1.msra.mxu0 0.0
    %3992 = vmatprep.subr.mxu0 0.0
    %3993 = vmatpush1.msra.mxu0 0.0
    %3994 = vmatprep.subr.mxu0 0.0
    %3995 = vmatpush1.msra.mxu0 0.0
    %3996 = vmatprep.subr.mxu0 0.0
    %3997 = vmatpush1.msra.mxu0 0.0
    %3998 = vmatprep.subr.mxu0 0.0
    %3999 = vmatpush1.msra.mxu0 0.0
    %4000 = vmatprep.subr.mxu0 0.0
    %4001 = vmatpush1.msra.mxu0 0.0
    %4002 = vmatprep.subr.mxu0 0.0
    %4003 = vmatpush1.msra.mxu0 0.0
    %4004 = vmatprep.subr.mxu0 0.0
    %4005 = vmatpush1.msra.mxu0 0.0
    %4006 = vmatprep.subr.mxu0 0.0
    %4007 = vmatpush1.msra.mxu0 0.0
    %4008 = vmatprep.subr.mxu0 0.0
    %4009 = vmatpush1.msra.mxu0 0.0
    %4010 = vmatprep.subr.mxu0 0.0
    %4011 = vmatpush1.msra.mxu0 0.0
    %4012 = vmatprep.subr.mxu0 0.0
    %4013 = vmatpush1.msra.mxu0 0.0
    %4014 = vmatprep.subr.mxu0 0.0
    %4015 = vmatpush1.msra.mxu0 0.0
    %4016 = vmatprep.subr.mxu0 0.0
    %4017 = vmatpush1.msra.mxu0 0.0
    %4018 = vmatprep.subr.mxu0 0.0
    %4019 = vmatpush1.msra.mxu0 0.0
    %4020 = vmatprep.subr.mxu0 0.0
    %4021 = vmatpush1.msra.mxu0 0.0
    %4022 = vmatprep.subr.mxu0 0.0
    %4023 = vmatpush1.msra.mxu0 0.0
    %4024 = vmatprep.subr.mxu0 0.0
    %4025 = vmatpush1.msra.mxu0 0.0
    %4026 = vmatprep.subr.mxu0 0.0
    %4027 = vmatpush1.msra.mxu0 0.0
    %4028 = vmatprep.subr.mxu0 0.0
    %4029 = vmatpush1.msra.mxu0 0.0
    %4030 = vmatprep.mubr.f32.mxu0 0.0
    %4031 = vmatmul.mubr.f32.gmra.mrb[0].mxu0 %v3964
    %v4032 = vpop.f32.mrb[0].mxu0
    %v4033 = vadd.f32 0.0, %v4032
    %v4034 = vpop.f32.mrb[0].mxu0
    %4035 = vdwg.mxu0
    %v4036 = vadd.f32 %v3499, %v4033
    %v4037 = vxor.u32 %v4036, 2147483648
    %v4038 = vmul.f32 %v4037, 1.442695
    %v4039 = vpow.pop %v4038
    %v4040 = vadd.f32 %v4039, 1.0
    %v4041 = vrcp.pop %v4040
    %v4042 = vmul.f32 1.0, %v4041
    %v4043 = vadd.f32 %v4033, %v3580
    %4045 = vrot.lane.b32.xlu0 %v4043, 64
    %v4046 = vpop.permute.xlu0 %4045
    %v4048 = vmul.f32 %v4042, %v4046
    %4050 = vrot.lane.b32.xlu0 %v4048, 64
    %v4051 = vpop.permute.xlu0 %4050
    %v4053 = vadd.f32 %v3499, %v4051
    %v4054 = vtanh.pop %v4053
    %v4056 = vrot.slane %v4054, 2
    %v4058 = vsub.f32 %v3955, %v4056
    %v4060 = vrot.slane %v4058, 6
    %4061 = vrot.lane.b32.xlu0 %v4060, 96
    %v4062 = vpop.permute.xlu0 %4061
    %v4064 = vmul.f32 %v4042, %v4062
    %4066 = vrot.lane.b32.xlu0 %v4064, 32
    %v4067 = vpop.permute.xlu0 %4066
    %v4069 = vadd.f32 %v4054, %v4067
    %4071 = vrot.lane.b32.xlu0 %v4069, 64
    %v4072 = vpop.permute.xlu0 %4071
    %4074 = vst.msk [vmem:[#allocation2 + $0x8] sm:$0x3] %vm521, %v4072
    %v4075 = vsel %vm410, %v4072, 0
    %4077 = vmatprep.subr.mxu0 0.0
    %4078 = vmatpush1.msra.mxu0 %v3402
    %4079 = vmatprep.subr.mxu0 0.0
    %4080 = vmatpush1.msra.mxu0 %v3403
    %4081 = vmatprep.subr.mxu0 0.0
    %4082 = vmatpush1.msra.mxu0 %v3404
    %4083 = vmatprep.subr.mxu0 0.0
    %4084 = vmatpush1.msra.mxu0 %v3405
    %4085 = vmatprep.subr.mxu0 0.0
    %4086 = vmatpush1.msra.mxu0 0.0
    %4087 = vmatprep.subr.mxu0 0.0
    %4088 = vmatpush1.msra.mxu0 0.0
    %4089 = vmatprep.subr.mxu0 0.0
    %4090 = vmatpush1.msra.mxu0 0.0
    %4091 = vmatprep.subr.mxu0 0.0
    %4092 = vmatpush1.msra.mxu0 0.0
    %4093 = vmatprep.subr.mxu0 0.0
    %4094 = vmatpush1.msra.mxu0 0.0
    %4095 = vmatprep.subr.mxu0 0.0
    %4096 = vmatpush1.msra.mxu0 0.0
    %4097 = vmatprep.subr.mxu0 0.0
    %4098 = vmatpush1.msra.mxu0 0.0
    %4099 = vmatprep.subr.mxu0 0.0
    %4100 = vmatpush1.msra.mxu0 0.0
    %4101 = vmatprep.subr.mxu0 0.0
    %4102 = vmatpush1.msra.mxu0 0.0
    %4103 = vmatprep.subr.mxu0 0.0
    %4104 = vmatpush1.msra.mxu0 0.0
    %4105 = vmatprep.subr.mxu0 0.0
    %4106 = vmatpush1.msra.mxu0 0.0
    %4107 = vmatprep.subr.mxu0 0.0
    %4108 = vmatpush1.msra.mxu0 0.0
    %4109 = vmatprep.subr.mxu0 0.0
    %4110 = vmatpush1.msra.mxu0 0.0
    %4111 = vmatprep.subr.mxu0 0.0
    %4112 = vmatpush1.msra.mxu0 0.0
    %4113 = vmatprep.subr.mxu0 0.0
    %4114 = vmatpush1.msra.mxu0 0.0
    %4115 = vmatprep.subr.mxu0 0.0
    %4116 = vmatpush1.msra.mxu0 0.0
    %4117 = vmatprep.subr.mxu0 0.0
    %4118 = vmatpush1.msra.mxu0 0.0
    %4119 = vmatprep.subr.mxu0 0.0
    %4120 = vmatpush1.msra.mxu0 0.0
    %4121 = vmatprep.subr.mxu0 0.0
    %4122 = vmatpush1.msra.mxu0 0.0
    %4123 = vmatprep.subr.mxu0 0.0
    %4124 = vmatpush1.msra.mxu0 0.0
    %4125 = vmatprep.subr.mxu0 0.0
    %4126 = vmatpush1.msra.mxu0 0.0
    %4127 = vmatprep.subr.mxu0 0.0
    %4128 = vmatpush1.msra.mxu0 0.0
    %4129 = vmatprep.subr.mxu0 0.0
    %4130 = vmatpush1.msra.mxu0 0.0
    %4131 = vmatprep.subr.mxu0 0.0
    %4132 = vmatpush1.msra.mxu0 0.0
    %4133 = vmatprep.subr.mxu0 0.0
    %4134 = vmatpush1.msra.mxu0 0.0
    %4135 = vmatprep.subr.mxu0 0.0
    %4136 = vmatpush1.msra.mxu0 0.0
    %4137 = vmatprep.subr.mxu0 0.0
    %4138 = vmatpush1.msra.mxu0 0.0
    %4139 = vmatprep.subr.mxu0 0.0
    %4140 = vmatpush1.msra.mxu0 0.0
    %4141 = vmatprep.mubr.f32.mxu0 0.0
    %4142 = vmatmul.mubr.f32.gmra.mrb[0].mxu0 %v4075
    %v4143 = vpop.f32.mrb[0].mxu0
    %v4144 = vadd.f32 0.0, %v4143
    %v4145 = vpop.f32.mrb[0].mxu0
    %4146 = vdwg.mxu0
    %v4148 = vrot.slane %v4144, 6
    %v4150 = vadd.f32 %v3499, %v4148
    %v4151 = vxor.u32 %v4150, 2147483648
    %v4152 = vmul.f32 %v4151, 1.442695
    %v4153 = vpow.pop %v4152
    %v4154 = vadd.f32 %v4153, 1.0
    %v4155 = vrcp.pop %v4154
    %v4156 = vmul.f32 1.0, %v4155
    %v4157 = vadd.f32 %v4144, %v3580
    %v4159 = vrot.slane %v4157, 6
    %4160 = vrot.lane.b32.xlu0 %v4159, 64
    %v4161 = vpop.permute.xlu0 %4160
    %v4163 = vmul.f32 %v4156, %v4161
    %4165 = vrot.lane.b32.xlu0 %v4163, 64
    %v4166 = vpop.permute.xlu0 %4165
    %v4168 = vadd.f32 %v3499, %v4166
    %v4169 = vtanh.pop %v4168
    %v4171 = vrot.slane %v4169, 2
    %v4173 = vsub.f32 %v4069, %v4171
    %v4175 = vrot.slane %v4173, 6
    %4176 = vrot.lane.b32.xlu0 %v4175, 96
    %v4177 = vpop.permute.xlu0 %4176
    %v4179 = vmul.f32 %v4156, %v4177
    %4181 = vrot.lane.b32.xlu0 %v4179, 32
    %v4182 = vpop.permute.xlu0 %4181
    %v4184 = vadd.f32 %v4169, %v4182
    %4186 = vrot.lane.b32.xlu0 %v4184, 64
    %v4187 = vpop.permute.xlu0 %4186
    %4189 = vst.msk [vmem:[#allocation2 + $0x8] sm:$0xc] %vm637, %v4187
    %v4190 = vrot.slane %v4184, 2
    %4191 = vrot.lane.b32.xlu0 %v4190, 64
    %v4192 = vpop.permute.xlu0 %4191
    %v4193 = vsel %vm410, %v4192, 0
    %4195 = vmatprep.subr.mxu0 0.0
    %4196 = vmatpush1.msra.mxu0 %v3402
    %4197 = vmatprep.subr.mxu0 0.0
    %4198 = vmatpush1.msra.mxu0 %v3403
    %4199 = vmatprep.subr.mxu0 0.0
    %4200 = vmatpush1.msra.mxu0 %v3404
    %4201 = vmatprep.subr.mxu0 0.0
    %4202 = vmatpush1.msra.mxu0 %v3405
    %4203 = vmatprep.subr.mxu0 0.0
    %4204 = vmatpush1.msra.mxu0 0.0
    %4205 = vmatprep.subr.mxu0 0.0
    %4206 = vmatpush1.msra.mxu0 0.0
    %4207 = vmatprep.subr.mxu0 0.0
    %4208 = vmatpush1.msra.mxu0 0.0
    %4209 = vmatprep.subr.mxu0 0.0
    %4210 = vmatpush1.msra.mxu0 0.0
    %4211 = vmatprep.subr.mxu0 0.0
    %4212 = vmatpush1.msra.mxu0 0.0
    %4213 = vmatprep.subr.mxu0 0.0
    %4214 = vmatpush1.msra.mxu0 0.0
    %4215 = vmatprep.subr.mxu0 0.0
    %4216 = vmatpush1.msra.mxu0 0.0
    %4217 = vmatprep.subr.mxu0 0.0
    %4218 = vmatpush1.msra.mxu0 0.0
    %4219 = vmatprep.subr.mxu0 0.0
    %4220 = vmatpush1.msra.mxu0 0.0
    %4221 = vmatprep.subr.mxu0 0.0
    %4222 = vmatpush1.msra.mxu0 0.0
    %4223 = vmatprep.subr.mxu0 0.0
    %4224 = vmatpush1.msra.mxu0 0.0
    %4225 = vmatprep.subr.mxu0 0.0
    %4226 = vmatpush1.msra.mxu0 0.0
    %4227 = vmatprep.subr.mxu0 0.0
    %4228 = vmatpush1.msra.mxu0 0.0
    %4229 = vmatprep.subr.mxu0 0.0
    %4230 = vmatpush1.msra.mxu0 0.0
    %4231 = vmatprep.subr.mxu0 0.0
    %4232 = vmatpush1.msra.mxu0 0.0
    %4233 = vmatprep.subr.mxu0 0.0
    %4234 = vmatpush1.msra.mxu0 0.0
    %4235 = vmatprep.subr.mxu0 0.0
    %4236 = vmatpush1.msra.mxu0 0.0
    %4237 = vmatprep.subr.mxu0 0.0
    %4238 = vmatpush1.msra.mxu0 0.0
    %4239 = vmatprep.subr.mxu0 0.0
    %4240 = vmatpush1.msra.mxu0 0.0
    %4241 = vmatprep.subr.mxu0 0.0
    %4242 = vmatpush1.msra.mxu0 0.0
    %4243 = vmatprep.subr.mxu0 0.0
    %4244 = vmatpush1.msra.mxu0 0.0
    %4245 = vmatprep.subr.mxu0 0.0
    %4246 = vmatpush1.msra.mxu0 0.0
    %4247 = vmatprep.subr.mxu0 0.0
    %4248 = vmatpush1.msra.mxu0 0.0
    %4249 = vmatprep.subr.mxu0 0.0
    %4250 = vmatpush1.msra.mxu0 0.0
    %4251 = vmatprep.subr.mxu0 0.0
    %4252 = vmatpush1.msra.mxu0 0.0
    %4253 = vmatprep.subr.mxu0 0.0
    %4254 = vmatpush1.msra.mxu0 0.0
    %4255 = vmatprep.subr.mxu0 0.0
    %4256 = vmatpush1.msra.mxu0 0.0
    %4257 = vmatprep.subr.mxu0 0.0
    %4258 = vmatpush1.msra.mxu0 0.0
    %4259 = vmatprep.mubr.f32.mxu0 0.0
    %4260 = vmatmul.mubr.f32.gmra.mrb[0].mxu0 %v4193
    %v4261 = vpop.f32.mrb[0].mxu0
    %v4262 = vadd.f32 0.0, %v4261
    %v4263 = vpop.f32.mrb[0].mxu0
    %4264 = vdwg.mxu0
    %v4266 = vrot.slane %v4262, 4
    %v4268 = vadd.f32 %v3499, %v4266
    %v4269 = vxor.u32 %v4268, 2147483648
    %v4270 = vmul.f32 %v4269, 1.442695
    %v4271 = vpow.pop %v4270
    %v4272 = vadd.f32 %v4271, 1.0
    %v4273 = vrcp.pop %v4272
    %v4274 = vmul.f32 1.0, %v4273
    %v4275 = vadd.f32 %v4262, %v3580
    %v4277 = vrot.slane %v4275, 4
    %4278 = vrot.lane.b32.xlu0 %v4277, 64
    %v4279 = vpop.permute.xlu0 %4278
    %v4281 = vmul.f32 %v4274, %v4279
    %4283 = vrot.lane.b32.xlu0 %v4281, 64
    %v4284 = vpop.permute.xlu0 %4283
    %v4286 = vadd.f32 %v3499, %v4284
    %v4287 = vtanh.pop %v4286
    %v4289 = vrot.slane %v4287, 2
    %v4291 = vsub.f32 %v4184, %v4289
    %v4293 = vrot.slane %v4291, 6
    %4294 = vrot.lane.b32.xlu0 %v4293, 96
    %v4295 = vpop.permute.xlu0 %4294
    %v4297 = vmul.f32 %v4274, %v4295
    %4299 = vrot.lane.b32.xlu0 %v4297, 32
    %v4300 = vpop.permute.xlu0 %4299
    %v4302 = vadd.f32 %v4287, %v4300
    %4304 = vrot.lane.b32.xlu0 %v4302, 64
    %v4305 = vpop.permute.xlu0 %4304
    %4307 = vst.msk [vmem:[#allocation2 + $0x8] sm:$0x30] %vm756, %v4305
    %v4308 = vrot.slane %v4302, 4
    %4309 = vrot.lane.b32.xlu0 %v4308, 64
    %v4310 = vpop.permute.xlu0 %4309
    %v4311 = vsel %vm410, %v4310, 0
    %4313 = vmatprep.subr.mxu0 0.0
    %4314 = vmatpush1.msra.mxu0 %v3402
    %4315 = vmatprep.subr.mxu0 0.0
    %4316 = vmatpush1.msra.mxu0 %v3403
    %4317 = vmatprep.subr.mxu0 0.0
    %4318 = vmatpush1.msra.mxu0 %v3404
    %4319 = vmatprep.subr.mxu0 0.0
    %4320 = vmatpush1.msra.mxu0 %v3405
    %4321 = vmatprep.subr.mxu0 0.0
    %4322 = vmatpush1.msra.mxu0 0.0
    %4323 = vmatprep.subr.mxu0 0.0
    %4324 = vmatpush1.msra.mxu0 0.0
    %4325 = vmatprep.subr.mxu0 0.0
    %4326 = vmatpush1.msra.mxu0 0.0
    %4327 = vmatprep.subr.mxu0 0.0
    %4328 = vmatpush1.msra.mxu0 0.0
    %4329 = vmatprep.subr.mxu0 0.0
    %4330 = vmatpush1.msra.mxu0 0.0
    %4331 = vmatprep.subr.mxu0 0.0
    %4332 = vmatpush1.msra.mxu0 0.0
    %4333 = vmatprep.subr.mxu0 0.0
    %4334 = vmatpush1.msra.mxu0 0.0
    %4335 = vmatprep.subr.mxu0 0.0
    %4336 = vmatpush1.msra.mxu0 0.0
    %4337 = vmatprep.subr.mxu0 0.0
    %4338 = vmatpush1.msra.mxu0 0.0
    %4339 = vmatprep.subr.mxu0 0.0
    %4340 = vmatpush1.msra.mxu0 0.0
    %4341 = vmatprep.subr.mxu0 0.0
    %4342 = vmatpush1.msra.mxu0 0.0
    %4343 = vmatprep.subr.mxu0 0.0
    %4344 = vmatpush1.msra.mxu0 0.0
    %4345 = vmatprep.subr.mxu0 0.0
    %4346 = vmatpush1.msra.mxu0 0.0
    %4347 = vmatprep.subr.mxu0 0.0
    %4348 = vmatpush1.msra.mxu0 0.0
    %4349 = vmatprep.subr.mxu0 0.0
    %4350 = vmatpush1.msra.mxu0 0.0
    %4351 = vmatprep.subr.mxu0 0.0
    %4352 = vmatpush1.msra.mxu0 0.0
    %4353 = vmatprep.subr.mxu0 0.0
    %4354 = vmatpush1.msra.mxu0 0.0
    %4355 = vmatprep.subr.mxu0 0.0
    %4356 = vmatpush1.msra.mxu0 0.0
    %4357 = vmatprep.subr.mxu0 0.0
    %4358 = vmatpush1.msra.mxu0 0.0
    %4359 = vmatprep.subr.mxu0 0.0
    %4360 = vmatpush1.msra.mxu0 0.0
    %4361 = vmatprep.subr.mxu0 0.0
    %4362 = vmatpush1.msra.mxu0 0.0
    %4363 = vmatprep.subr.mxu0 0.0
    %4364 = vmatpush1.msra.mxu0 0.0
    %4365 = vmatprep.subr.mxu0 0.0
    %4366 = vmatpush1.msra.mxu0 0.0
    %4367 = vmatprep.subr.mxu0 0.0
    %4368 = vmatpush1.msra.mxu0 0.0
    %4369 = vmatprep.subr.mxu0 0.0
    %4370 = vmatpush1.msra.mxu0 0.0
    %4371 = vmatprep.subr.mxu0 0.0
    %4372 = vmatpush1.msra.mxu0 0.0
    %4373 = vmatprep.subr.mxu0 0.0
    %4374 = vmatpush1.msra.mxu0 0.0
    %4375 = vmatprep.subr.mxu0 0.0
    %4376 = vmatpush1.msra.mxu0 0.0
    %4377 = vmatprep.mubr.f32.mxu0 0.0
    %4378 = vmatmul.mubr.f32.gmra.mrb[0].mxu0 %v4311
    %v4379 = vpop.f32.mrb[0].mxu0
    %v4380 = vadd.f32 0.0, %v4379
    %v4381 = vpop.f32.mrb[0].mxu0
    %4382 = vdwg.mxu0
    %v4384 = vrot.slane %v4380, 2
    %v4386 = vadd.f32 %v3499, %v4384
    %v4387 = vxor.u32 %v4386, 2147483648
    %v4388 = vmul.f32 %v4387, 1.442695
    %v4389 = vpow.pop %v4388
    %v4390 = vadd.f32 %v4389, 1.0
    %v4391 = vrcp.pop %v4390
    %v4392 = vmul.f32 1.0, %v4391
    %v4393 = vadd.f32 %v4380, %v3580
    %v4395 = vrot.slane %v4393, 2
    %4396 = vrot.lane.b32.xlu0 %v4395, 64
    %v4397 = vpop.permute.xlu0 %4396
    %v4399 = vmul.f32 %v4392, %v4397
    %4401 = vrot.lane.b32.xlu0 %v4399, 64
    %v4402 = vpop.permute.xlu0 %4401
    %v4404 = vadd.f32 %v3499, %v4402
    %v4405 = vtanh.pop %v4404
    %v4407 = vrot.slane %v4405, 2
    %v4409 = vsub.f32 %v4302, %v4407
    %v4411 = vrot.slane %v4409, 6
    %4412 = vrot.lane.b32.xlu0 %v4411, 96
    %v4413 = vpop.permute.xlu0 %4412
    %v4415 = vmul.f32 %v4392, %v4413
    %4417 = vrot.lane.b32.xlu0 %v4415, 32
    %v4418 = vpop.permute.xlu0 %4417
    %v4420 = vadd.f32 %v4405, %v4418
    %4422 = vrot.lane.b32.xlu0 %v4420, 64
    %v4423 = vpop.permute.xlu0 %4422
    %4425 = vst.msk [vmem:[#allocation2 + $0x8] sm:$0xc0] %vm875, %v4423
    %v4426 = vld [vmem:[#allocation24] sm:$0xff]
    %v4427 = vld [vmem:[#allocation24 + $0x8] sm:$0xff]
    %v4428 = vld [vmem:[#allocation24 + $0x10] sm:$0xff]
    %v4429 = vld [vmem:[#allocation24 + $0x18] sm:$0xff]
    %v4430 = vld [vmem:[#allocation26] sm:$0xff]
    %v4431 = vld [vmem:[#allocation26 + $0x8] sm:$0xff]
    %v4432 = vld [vmem:[#allocation26 + $0x10] sm:$0xff]
    %v4433 = vld [vmem:[#allocation26 + $0x18] sm:$0xff]
    %v4434 = vld [vmem:[%s19] sm:$0x1]
    %v4435 = vld [vmem:[%s20] sm:$0x1]
    %v4437 = vlaneseq
    %v4438 = vshrl.u32 %v4437, 7
    %v4439 = vsub.s32 0, %v4438
    %v4440 = vrot.slane %v4435, %v4439
    %v4441 = vld [vmem:[#allocation2] sm:$0xff]
    %v4442 = vld [vmem:[#allocation2 + $0x8] sm:$0xff]
    %v4444 = vlaneseq
    %v4445 = vshrl.u32 %v4444, 7
    %v4446 = vsub.s32 0, %v4445
    %v4447 = vrot.slane %v4434, %v4446
    %v4450 = vsel %vm410, %v4441, 0
    %v4453 = vsel %vm410, %v4442, 0
    %4455 = vmatprep.subr.mxu0 0.0
    %4456 = vmatpush1.msra.mxu0 %v4426
    %4457 = vmatprep.subr.mxu0 0.0
    %4458 = vmatpush1.msra.mxu0 %v4427
    %4459 = vmatprep.subr.mxu0 0.0
    %4460 = vmatpush1.msra.mxu0 %v4428
    %4461 = vmatprep.subr.mxu0 0.0
    %4462 = vmatpush1.msra.mxu0 %v4429
    %4463 = vmatprep.subr.mxu0 0.0
    %4464 = vmatpush1.msra.mxu0 0.0
    %4465 = vmatprep.subr.mxu0 0.0
    %4466 = vmatpush1.msra.mxu0 0.0
    %4467 = vmatprep.subr.mxu0 0.0
    %4468 = vmatpush1.msra.mxu0 0.0
    %4469 = vmatprep.subr.mxu0 0.0
    %4470 = vmatpush1.msra.mxu0 0.0
    %4471 = vmatprep.subr.mxu0 0.0
    %4472 = vmatpush1.msra.mxu0 0.0
    %4473 = vmatprep.subr.mxu0 0.0
    %4474 = vmatpush1.msra.mxu0 0.0
    %4475 = vmatprep.subr.mxu0 0.0
    %4476 = vmatpush1.msra.mxu0 0.0
    %4477 = vmatprep.subr.mxu0 0.0
    %4478 = vmatpush1.msra.mxu0 0.0
    %4479 = vmatprep.subr.mxu0 0.0
    %4480 = vmatpush1.msra.mxu0 0.0
    %4481 = vmatprep.subr.mxu0 0.0
    %4482 = vmatpush1.msra.mxu0 0.0
    %4483 = vmatprep.subr.mxu0 0.0
    %4484 = vmatpush1.msra.mxu0 0.0
    %4485 = vmatprep.subr.mxu0 0.0
    %4486 = vmatpush1.msra.mxu0 0.0
    %4487 = vmatprep.subr.mxu0 0.0
    %4488 = vmatpush1.msra.mxu0 0.0
    %4489 = vmatprep.subr.mxu0 0.0
    %4490 = vmatpush1.msra.mxu0 0.0
    %4491 = vmatprep.subr.mxu0 0.0
    %4492 = vmatpush1.msra.mxu0 0.0
    %4493 = vmatprep.subr.mxu0 0.0
    %4494 = vmatpush1.msra.mxu0 0.0
    %4495 = vmatprep.subr.mxu0 0.0
    %4496 = vmatpush1.msra.mxu0 0.0
    %4497 = vmatprep.subr.mxu0 0.0
    %4498 = vmatpush1.msra.mxu0 0.0
    %4499 = vmatprep.subr.mxu0 0.0
    %4500 = vmatpush1.msra.mxu0 0.0
    %4501 = vmatprep.subr.mxu0 0.0
    %4502 = vmatpush1.msra.mxu0 0.0
    %4503 = vmatprep.subr.mxu0 0.0
    %4504 = vmatpush1.msra.mxu0 0.0
    %4505 = vmatprep.subr.mxu0 0.0
    %4506 = vmatpush1.msra.mxu0 0.0
    %4507 = vmatprep.subr.mxu0 0.0
    %4508 = vmatpush1.msra.mxu0 0.0
    %4509 = vmatprep.subr.mxu0 0.0
    %4510 = vmatpush1.msra.mxu0 0.0
    %4511 = vmatprep.subr.mxu0 0.0
    %4512 = vmatpush1.msra.mxu0 0.0
    %4513 = vmatprep.subr.mxu0 0.0
    %4514 = vmatpush1.msra.mxu0 0.0
    %4515 = vmatprep.subr.mxu0 0.0
    %4516 = vmatpush1.msra.mxu0 0.0
    %4517 = vmatprep.subr.mxu0 0.0
    %4518 = vmatpush1.msra.mxu0 0.0
    %4519 = vmatprep.mubr.f32.mxu0 0.0
    %4520 = vmatmul.mubr.f32.gmra.mrb[0].mxu0 %v4450
    %v4521 = vpop.f32.mrb[0].mxu0
    %v4522 = vadd.f32 %v4447, %v4521
    %v4523 = vpop.f32.mrb[0].mxu0
    %4524 = vmatprep.mubr.f32.mxu0 0.0
    %4525 = vmatmul.mubr.f32.gmra.mrb[0].mxu0 %v4453
    %v4526 = vpop.f32.mrb[0].mxu0
    %v4527 = vadd.f32 %v4447, %v4526
    %v4528 = vpop.f32.mrb[0].mxu0
    %4529 = vdwg.mxu0
    %4530 = vmatprep.subr.mxu0 0.0
    %4531 = vmatpush1.msra.mxu0 %v4430
    %4532 = vmatprep.subr.mxu0 0.0
    %4533 = vmatpush1.msra.mxu0 %v4431
    %4534 = vmatprep.subr.mxu0 0.0
    %4535 = vmatpush1.msra.mxu0 %v4432
    %4536 = vmatprep.subr.mxu0 0.0
    %4537 = vmatpush1.msra.mxu0 %v4433
    %4538 = vmatprep.subr.mxu0 0.0
    %4539 = vmatpush1.msra.mxu0 0.0
    %4540 = vmatprep.subr.mxu0 0.0
    %4541 = vmatpush1.msra.mxu0 0.0
    %4542 = vmatprep.subr.mxu0 0.0
    %4543 = vmatpush1.msra.mxu0 0.0
    %4544 = vmatprep.subr.mxu0 0.0
    %4545 = vmatpush1.msra.mxu0 0.0
    %4546 = vmatprep.subr.mxu0 0.0
    %4547 = vmatpush1.msra.mxu0 0.0
    %4548 = vmatprep.subr.mxu0 0.0
    %4549 = vmatpush1.msra.mxu0 0.0
    %4550 = vmatprep.subr.mxu0 0.0
    %4551 = vmatpush1.msra.mxu0 0.0
    %4552 = vmatprep.subr.mxu0 0.0
    %4553 = vmatpush1.msra.mxu0 0.0
    %4554 = vmatprep.subr.mxu0 0.0
    %4555 = vmatpush1.msra.mxu0 0.0
    %4556 = vmatprep.subr.mxu0 0.0
    %4557 = vmatpush1.msra.mxu0 0.0
    %4558 = vmatprep.subr.mxu0 0.0
    %4559 = vmatpush1.msra.mxu0 0.0
    %4560 = vmatprep.subr.mxu0 0.0
    %4561 = vmatpush1.msra.mxu0 0.0
    %4562 = vmatprep.subr.mxu0 0.0
    %4563 = vmatpush1.msra.mxu0 0.0
    %4564 = vmatprep.subr.mxu0 0.0
    %4565 = vmatpush1.msra.mxu0 0.0
    %4566 = vmatprep.subr.mxu0 0.0
    %4567 = vmatpush1.msra.mxu0 0.0
    %4568 = vmatprep.subr.mxu0 0.0
    %4569 = vmatpush1.msra.mxu0 0.0
    %4570 = vmatprep.subr.mxu0 0.0
    %4571 = vmatpush1.msra.mxu0 0.0
    %4572 = vmatprep.subr.mxu0 0.0
    %4573 = vmatpush1.msra.mxu0 0.0
    %4574 = vmatprep.subr.mxu0 0.0
    %4575 = vmatpush1.msra.mxu0 0.0
    %4576 = vmatprep.subr.mxu0 0.0
    %4577 = vmatpush1.msra.mxu0 0.0
    %4578 = vmatprep.subr.mxu0 0.0
    %4579 = vmatpush1.msra.mxu0 0.0
    %4580 = vmatprep.subr.mxu0 0.0
    %4581 = vmatpush1.msra.mxu0 0.0
    %4582 = vmatprep.subr.mxu0 0.0
    %4583 = vmatpush1.msra.mxu0 0.0
    %4584 = vmatprep.subr.mxu0 0.0
    %4585 = vmatpush1.msra.mxu0 0.0
    %4586 = vmatprep.subr.mxu0 0.0
    %4587 = vmatpush1.msra.mxu0 0.0
    %4588 = vmatprep.subr.mxu0 0.0
    %4589 = vmatpush1.msra.mxu0 0.0
    %4590 = vmatprep.subr.mxu0 0.0
    %4591 = vmatpush1.msra.mxu0 0.0
    %4592 = vmatprep.subr.mxu0 0.0
    %4593 = vmatpush1.msra.mxu0 0.0
    %4594 = vmatprep.mubr.f32.mxu0 0.0
    %4595 = vmatmul.mubr.f32.gmra.mrb[0].mxu0 %v412
    %v4596 = vpop.f32.mrb[0].mxu0
    %v4597 = vadd.f32 0.0, %v4596
    %v4598 = vpop.f32.mrb[0].mxu0
    %4599 = vdwg.mxu0
    %v4600 = vadd.f32 %v4522, %v4597
    %v4601 = vxor.u32 %v4600, 2147483648
    %v4602 = vmul.f32 %v4601, 1.442695
    %v4603 = vpow.pop %v4602
    %v4604 = vadd.f32 %v4603, 1.0
    %v4605 = vrcp.pop %v4604
    %v4606 = vmul.f32 1.0, %v4605
    %4607 = vrot.lane.b32.xlu0 %v4440, 64
    %v4608 = vpop.permute.xlu0 %4607
    %v4610 = vadd.f32 %v4597, %v4608
    %4612 = vrot.lane.b32.xlu0 %v4610, 64
    %v4613 = vpop.permute.xlu0 %4612
    %v4615 = vmul.f32 %v4606, %v4613
    %4617 = vrot.lane.b32.xlu0 %v4615, 64
    %v4618 = vpop.permute.xlu0 %4617
    %v4620 = vadd.f32 %v4522, %v4618
    %v4621 = vtanh.pop %v4620
    %v4622 = vsub.f32 0.0, %v4621
    %4624 = vrot.lane.b32.xlu0 %v4622, 96
    %v4625 = vpop.permute.xlu0 %4624
    %v4627 = vmul.f32 %v4606, %v4625
    %4629 = vrot.lane.b32.xlu0 %v4627, 32
    %v4630 = vpop.permute.xlu0 %4629
    %v4632 = vadd.f32 %v4621, %v4630
    %4634 = vrot.lane.b32.xlu0 %v4632, 64
    %v4635 = vpop.permute.xlu0 %4634
    %v4636 = vsel %vm410, %v4635, 0
    %4638 = vmatprep.subr.mxu0 0.0
    %4639 = vmatpush1.msra.mxu0 %v4430
    %4640 = vmatprep.subr.mxu0 0.0
    %4641 = vmatpush1.msra.mxu0 %v4431
    %4642 = vmatprep.subr.mxu0 0.0
    %4643 = vmatpush1.msra.mxu0 %v4432
    %4644 = vmatprep.subr.mxu0 0.0
    %4645 = vmatpush1.msra.mxu0 %v4433
    %4646 = vmatprep.subr.mxu0 0.0
    %4647 = vmatpush1.msra.mxu0 0.0
    %4648 = vmatprep.subr.mxu0 0.0
    %4649 = vmatpush1.msra.mxu0 0.0
    %4650 = vmatprep.subr.mxu0 0.0
    %4651 = vmatpush1.msra.mxu0 0.0
    %4652 = vmatprep.subr.mxu0 0.0
    %4653 = vmatpush1.msra.mxu0 0.0
    %4654 = vmatprep.subr.mxu0 0.0
    %4655 = vmatpush1.msra.mxu0 0.0
    %4656 = vmatprep.subr.mxu0 0.0
    %4657 = vmatpush1.msra.mxu0 0.0
    %4658 = vmatprep.subr.mxu0 0.0
    %4659 = vmatpush1.msra.mxu0 0.0
    %4660 = vmatprep.subr.mxu0 0.0
    %4661 = vmatpush1.msra.mxu0 0.0
    %4662 = vmatprep.subr.mxu0 0.0
    %4663 = vmatpush1.msra.mxu0 0.0
    %4664 = vmatprep.subr.mxu0 0.0
    %4665 = vmatpush1.msra.mxu0 0.0
    %4666 = vmatprep.subr.mxu0 0.0
    %4667 = vmatpush1.msra.mxu0 0.0
    %4668 = vmatprep.subr.mxu0 0.0
    %4669 = vmatpush1.msra.mxu0 0.0
    %4670 = vmatprep.subr.mxu0 0.0
    %4671 = vmatpush1.msra.mxu0 0.0
    %4672 = vmatprep.subr.mxu0 0.0
    %4673 = vmatpush1.msra.mxu0 0.0
    %4674 = vmatprep.subr.mxu0 0.0
    %4675 = vmatpush1.msra.mxu0 0.0
    %4676 = vmatprep.subr.mxu0 0.0
    %4677 = vmatpush1.msra.mxu0 0.0
    %4678 = vmatprep.subr.mxu0 0.0
    %4679 = vmatpush1.msra.mxu0 0.0
    %4680 = vmatprep.subr.mxu0 0.0
    %4681 = vmatpush1.msra.mxu0 0.0
    %4682 = vmatprep.subr.mxu0 0.0
    %4683 = vmatpush1.msra.mxu0 0.0
    %4684 = vmatprep.subr.mxu0 0.0
    %4685 = vmatpush1.msra.mxu0 0.0
    %4686 = vmatprep.subr.mxu0 0.0
    %4687 = vmatpush1.msra.mxu0 0.0
    %4688 = vmatprep.subr.mxu0 0.0
    %4689 = vmatpush1.msra.mxu0 0.0
    %4690 = vmatprep.subr.mxu0 0.0
    %4691 = vmatpush1.msra.mxu0 0.0
    %4692 = vmatprep.subr.mxu0 0.0
    %4693 = vmatpush1.msra.mxu0 0.0
    %4694 = vmatprep.subr.mxu0 0.0
    %4695 = vmatpush1.msra.mxu0 0.0
    %4696 = vmatprep.subr.mxu0 0.0
    %4697 = vmatpush1.msra.mxu0 0.0
    %4698 = vmatprep.subr.mxu0 0.0
    %4699 = vmatpush1.msra.mxu0 0.0
    %4700 = vmatprep.subr.mxu0 0.0
    %4701 = vmatpush1.msra.mxu0 0.0
    %4702 = vmatprep.mubr.f32.mxu0 0.0
    %4703 = vmatmul.mubr.f32.gmra.mrb[0].mxu0 %v4636
    %v4704 = vpop.f32.mrb[0].mxu0
    %v4705 = vadd.f32 0.0, %v4704
    %v4706 = vpop.f32.mrb[0].mxu0
    %4707 = vdwg.mxu0
    %v4709 = vrot.slane %v4705, 6
    %v4711 = vadd.f32 %v4522, %v4709
    %v4712 = vxor.u32 %v4711, 2147483648
    %v4713 = vmul.f32 %v4712, 1.442695
    %v4714 = vpow.pop %v4713
    %v4715 = vadd.f32 %v4714, 1.0
    %v4716 = vrcp.pop %v4715
    %v4717 = vmul.f32 1.0, %v4716
    %v4718 = vadd.f32 %v4705, %v4608
    %v4720 = vrot.slane %v4718, 6
    %4721 = vrot.lane.b32.xlu0 %v4720, 64
    %v4722 = vpop.permute.xlu0 %4721
    %v4724 = vmul.f32 %v4717, %v4722
    %4726 = vrot.lane.b32.xlu0 %v4724, 64
    %v4727 = vpop.permute.xlu0 %4726
    %v4729 = vadd.f32 %v4522, %v4727
    %v4730 = vtanh.pop %v4729
    %v4732 = vrot.slane %v4730, 2
    %v4734 = vsub.f32 %v4632, %v4732
    %v4736 = vrot.slane %v4734, 6
    %4737 = vrot.lane.b32.xlu0 %v4736, 96
    %v4738 = vpop.permute.xlu0 %4737
    %v4740 = vmul.f32 %v4717, %v4738
    %4742 = vrot.lane.b32.xlu0 %v4740, 32
    %v4743 = vpop.permute.xlu0 %4742
    %v4745 = vadd.f32 %v4730, %v4743
    %v4747 = vrot.slane %v4745, 2
    %4748 = vrot.lane.b32.xlu0 %v4747, 64
    %v4749 = vpop.permute.xlu0 %4748
    %v4750 = vsel %vm410, %v4749, 0
    %4752 = vmatprep.subr.mxu0 0.0
    %4753 = vmatpush1.msra.mxu0 %v4430
    %4754 = vmatprep.subr.mxu0 0.0
    %4755 = vmatpush1.msra.mxu0 %v4431
    %4756 = vmatprep.subr.mxu0 0.0
    %4757 = vmatpush1.msra.mxu0 %v4432
    %4758 = vmatprep.subr.mxu0 0.0
    %4759 = vmatpush1.msra.mxu0 %v4433
    %4760 = vmatprep.subr.mxu0 0.0
    %4761 = vmatpush1.msra.mxu0 0.0
    %4762 = vmatprep.subr.mxu0 0.0
    %4763 = vmatpush1.msra.mxu0 0.0
    %4764 = vmatprep.subr.mxu0 0.0
    %4765 = vmatpush1.msra.mxu0 0.0
    %4766 = vmatprep.subr.mxu0 0.0
    %4767 = vmatpush1.msra.mxu0 0.0
    %4768 = vmatprep.subr.mxu0 0.0
    %4769 = vmatpush1.msra.mxu0 0.0
    %4770 = vmatprep.subr.mxu0 0.0
    %4771 = vmatpush1.msra.mxu0 0.0
    %4772 = vmatprep.subr.mxu0 0.0
    %4773 = vmatpush1.msra.mxu0 0.0
    %4774 = vmatprep.subr.mxu0 0.0
    %4775 = vmatpush1.msra.mxu0 0.0
    %4776 = vmatprep.subr.mxu0 0.0
    %4777 = vmatpush1.msra.mxu0 0.0
    %4778 = vmatprep.subr.mxu0 0.0
    %4779 = vmatpush1.msra.mxu0 0.0
    %4780 = vmatprep.subr.mxu0 0.0
    %4781 = vmatpush1.msra.mxu0 0.0
    %4782 = vmatprep.subr.mxu0 0.0
    %4783 = vmatpush1.msra.mxu0 0.0
    %4784 = vmatprep.subr.mxu0 0.0
    %4785 = vmatpush1.msra.mxu0 0.0
    %4786 = vmatprep.subr.mxu0 0.0
    %4787 = vmatpush1.msra.mxu0 0.0
    %4788 = vmatprep.subr.mxu0 0.0
    %4789 = vmatpush1.msra.mxu0 0.0
    %4790 = vmatprep.subr.mxu0 0.0
    %4791 = vmatpush1.msra.mxu0 0.0
    %4792 = vmatprep.subr.mxu0 0.0
    %4793 = vmatpush1.msra.mxu0 0.0
    %4794 = vmatprep.subr.mxu0 0.0
    %4795 = vmatpush1.msra.mxu0 0.0
    %4796 = vmatprep.subr.mxu0 0.0
    %4797 = vmatpush1.msra.mxu0 0.0
    %4798 = vmatprep.subr.mxu0 0.0
    %4799 = vmatpush1.msra.mxu0 0.0
    %4800 = vmatprep.subr.mxu0 0.0
    %4801 = vmatpush1.msra.mxu0 0.0
    %4802 = vmatprep.subr.mxu0 0.0
    %4803 = vmatpush1.msra.mxu0 0.0
    %4804 = vmatprep.subr.mxu0 0.0
    %4805 = vmatpush1.msra.mxu0 0.0
    %4806 = vmatprep.subr.mxu0 0.0
    %4807 = vmatpush1.msra.mxu0 0.0
    %4808 = vmatprep.subr.mxu0 0.0
    %4809 = vmatpush1.msra.mxu0 0.0
    %4810 = vmatprep.subr.mxu0 0.0
    %4811 = vmatpush1.msra.mxu0 0.0
    %4812 = vmatprep.subr.mxu0 0.0
    %4813 = vmatpush1.msra.mxu0 0.0
    %4814 = vmatprep.subr.mxu0 0.0
    %4815 = vmatpush1.msra.mxu0 0.0
    %4816 = vmatprep.mubr.f32.mxu0 0.0
    %4817 = vmatmul.mubr.f32.gmra.mrb[0].mxu0 %v4750
    %v4818 = vpop.f32.mrb[0].mxu0
    %v4819 = vadd.f32 0.0, %v4818
    %v4820 = vpop.f32.mrb[0].mxu0
    %4821 = vdwg.mxu0
    %v4823 = vrot.slane %v4819, 4
    %v4825 = vadd.f32 %v4522, %v4823
    %v4826 = vxor.u32 %v4825, 2147483648
    %v4827 = vmul.f32 %v4826, 1.442695
    %v4828 = vpow.pop %v4827
    %v4829 = vadd.f32 %v4828, 1.0
    %v4830 = vrcp.pop %v4829
    %v4831 = vmul.f32 1.0, %v4830
    %v4832 = vadd.f32 %v4819, %v4608
    %v4834 = vrot.slane %v4832, 4
    %4835 = vrot.lane.b32.xlu0 %v4834, 64
    %v4836 = vpop.permute.xlu0 %4835
    %v4838 = vmul.f32 %v4831, %v4836
    %4840 = vrot.lane.b32.xlu0 %v4838, 64
    %v4841 = vpop.permute.xlu0 %4840
    %v4843 = vadd.f32 %v4522, %v4841
    %v4844 = vtanh.pop %v4843
    %v4846 = vrot.slane %v4844, 2
    %v4848 = vsub.f32 %v4745, %v4846
    %v4850 = vrot.slane %v4848, 6
    %4851 = vrot.lane.b32.xlu0 %v4850, 96
    %v4852 = vpop.permute.xlu0 %4851
    %v4854 = vmul.f32 %v4831, %v4852
    %4856 = vrot.lane.b32.xlu0 %v4854, 32
    %v4857 = vpop.permute.xlu0 %4856
    %v4859 = vadd.f32 %v4844, %v4857
    %v4861 = vrot.slane %v4859, 4
    %4862 = vrot.lane.b32.xlu0 %v4861, 64
    %v4863 = vpop.permute.xlu0 %4862
    %v4864 = vsel %vm410, %v4863, 0
    %4866 = vmatprep.subr.mxu0 0.0
    %4867 = vmatpush1.msra.mxu0 %v4430
    %4868 = vmatprep.subr.mxu0 0.0
    %4869 = vmatpush1.msra.mxu0 %v4431
    %4870 = vmatprep.subr.mxu0 0.0
    %4871 = vmatpush1.msra.mxu0 %v4432
    %4872 = vmatprep.subr.mxu0 0.0
    %4873 = vmatpush1.msra.mxu0 %v4433
    %4874 = vmatprep.subr.mxu0 0.0
    %4875 = vmatpush1.msra.mxu0 0.0
    %4876 = vmatprep.subr.mxu0 0.0
    %4877 = vmatpush1.msra.mxu0 0.0
    %4878 = vmatprep.subr.mxu0 0.0
    %4879 = vmatpush1.msra.mxu0 0.0
    %4880 = vmatprep.subr.mxu0 0.0
    %4881 = vmatpush1.msra.mxu0 0.0
    %4882 = vmatprep.subr.mxu0 0.0
    %4883 = vmatpush1.msra.mxu0 0.0
    %4884 = vmatprep.subr.mxu0 0.0
    %4885 = vmatpush1.msra.mxu0 0.0
    %4886 = vmatprep.subr.mxu0 0.0
    %4887 = vmatpush1.msra.mxu0 0.0
    %4888 = vmatprep.subr.mxu0 0.0
    %4889 = vmatpush1.msra.mxu0 0.0
    %4890 = vmatprep.subr.mxu0 0.0
    %4891 = vmatpush1.msra.mxu0 0.0
    %4892 = vmatprep.subr.mxu0 0.0
    %4893 = vmatpush1.msra.mxu0 0.0
    %4894 = vmatprep.subr.mxu0 0.0
    %4895 = vmatpush1.msra.mxu0 0.0
    %4896 = vmatprep.subr.mxu0 0.0
    %4897 = vmatpush1.msra.mxu0 0.0
    %4898 = vmatprep.subr.mxu0 0.0
    %4899 = vmatpush1.msra.mxu0 0.0
    %4900 = vmatprep.subr.mxu0 0.0
    %4901 = vmatpush1.msra.mxu0 0.0
    %4902 = vmatprep.subr.mxu0 0.0
    %4903 = vmatpush1.msra.mxu0 0.0
    %4904 = vmatprep.subr.mxu0 0.0
    %4905 = vmatpush1.msra.mxu0 0.0
    %4906 = vmatprep.subr.mxu0 0.0
    %4907 = vmatpush1.msra.mxu0 0.0
    %4908 = vmatprep.subr.mxu0 0.0
    %4909 = vmatpush1.msra.mxu0 0.0
    %4910 = vmatprep.subr.mxu0 0.0
    %4911 = vmatpush1.msra.mxu0 0.0
    %4912 = vmatprep.subr.mxu0 0.0
    %4913 = vmatpush1.msra.mxu0 0.0
    %4914 = vmatprep.subr.mxu0 0.0
    %4915 = vmatpush1.msra.mxu0 0.0
    %4916 = vmatprep.subr.mxu0 0.0
    %4917 = vmatpush1.msra.mxu0 0.0
    %4918 = vmatprep.subr.mxu0 0.0
    %4919 = vmatpush1.msra.mxu0 0.0
    %4920 = vmatprep.subr.mxu0 0.0
    %4921 = vmatpush1.msra.mxu0 0.0
    %4922 = vmatprep.subr.mxu0 0.0
    %4923 = vmatpush1.msra.mxu0 0.0
    %4924 = vmatprep.subr.mxu0 0.0
    %4925 = vmatpush1.msra.mxu0 0.0
    %4926 = vmatprep.subr.mxu0 0.0
    %4927 = vmatpush1.msra.mxu0 0.0
    %4928 = vmatprep.subr.mxu0 0.0
    %4929 = vmatpush1.msra.mxu0 0.0
    %4930 = vmatprep.mubr.f32.mxu0 0.0
    %4931 = vmatmul.mubr.f32.gmra.mrb[0].mxu0 %v4864
    %v4932 = vpop.f32.mrb[0].mxu0
    %v4933 = vadd.f32 0.0, %v4932
    %v4934 = vpop.f32.mrb[0].mxu0
    %4935 = vdwg.mxu0
    %v4937 = vrot.slane %v4933, 2
    %v4939 = vadd.f32 %v4522, %v4937
    %v4940 = vxor.u32 %v4939, 2147483648
    %v4941 = vmul.f32 %v4940, 1.442695
    %v4942 = vpow.pop %v4941
    %v4943 = vadd.f32 %v4942, 1.0
    %v4944 = vrcp.pop %v4943
    %v4945 = vmul.f32 1.0, %v4944
    %v4946 = vadd.f32 %v4933, %v4608
    %v4948 = vrot.slane %v4946, 2
    %4949 = vrot.lane.b32.xlu0 %v4948, 64
    %v4950 = vpop.permute.xlu0 %4949
    %v4952 = vmul.f32 %v4945, %v4950
    %4954 = vrot.lane.b32.xlu0 %v4952, 64
    %v4955 = vpop.permute.xlu0 %4954
    %v4957 = vadd.f32 %v4522, %v4955
    %v4958 = vtanh.pop %v4957
    %v4960 = vrot.slane %v4958, 2
    %v4962 = vsub.f32 %v4859, %v4960
    %v4964 = vrot.slane %v4962, 6
    %4965 = vrot.lane.b32.xlu0 %v4964, 96
    %v4966 = vpop.permute.xlu0 %4965
    %v4968 = vmul.f32 %v4945, %v4966
    %4970 = vrot.lane.b32.xlu0 %v4968, 32
    %v4971 = vpop.permute.xlu0 %4970
    %v4973 = vadd.f32 %v4958, %v4971
    %v4975 = vrot.slane %v4973, 6
    %4976 = vrot.lane.b32.xlu0 %v4975, 64
    %v4977 = vpop.permute.xlu0 %4976
    %v4978 = vsel %vm410, %v4977, 0
    %4980 = vmatprep.subr.mxu0 0.0
    %4981 = vmatpush1.msra.mxu0 %v4430
    %4982 = vmatprep.subr.mxu0 0.0
    %4983 = vmatpush1.msra.mxu0 %v4431
    %4984 = vmatprep.subr.mxu0 0.0
    %4985 = vmatpush1.msra.mxu0 %v4432
    %4986 = vmatprep.subr.mxu0 0.0
    %4987 = vmatpush1.msra.mxu0 %v4433
    %4988 = vmatprep.subr.mxu0 0.0
    %4989 = vmatpush1.msra.mxu0 0.0
    %4990 = vmatprep.subr.mxu0 0.0
    %4991 = vmatpush1.msra.mxu0 0.0
    %4992 = vmatprep.subr.mxu0 0.0
    %4993 = vmatpush1.msra.mxu0 0.0
    %4994 = vmatprep.subr.mxu0 0.0
    %4995 = vmatpush1.msra.mxu0 0.0
    %4996 = vmatprep.subr.mxu0 0.0
    %4997 = vmatpush1.msra.mxu0 0.0
    %4998 = vmatprep.subr.mxu0 0.0
    %4999 = vmatpush1.msra.mxu0 0.0
    %5000 = vmatprep.subr.mxu0 0.0
    %5001 = vmatpush1.msra.mxu0 0.0
    %5002 = vmatprep.subr.mxu0 0.0
    %5003 = vmatpush1.msra.mxu0 0.0
    %5004 = vmatprep.subr.mxu0 0.0
    %5005 = vmatpush1.msra.mxu0 0.0
    %5006 = vmatprep.subr.mxu0 0.0
    %5007 = vmatpush1.msra.mxu0 0.0
    %5008 = vmatprep.subr.mxu0 0.0
    %5009 = vmatpush1.msra.mxu0 0.0
    %5010 = vmatprep.subr.mxu0 0.0
    %5011 = vmatpush1.msra.mxu0 0.0
    %5012 = vmatprep.subr.mxu0 0.0
    %5013 = vmatpush1.msra.mxu0 0.0
    %5014 = vmatprep.subr.mxu0 0.0
    %5015 = vmatpush1.msra.mxu0 0.0
    %5016 = vmatprep.subr.mxu0 0.0
    %5017 = vmatpush1.msra.mxu0 0.0
    %5018 = vmatprep.subr.mxu0 0.0
    %5019 = vmatpush1.msra.mxu0 0.0
    %5020 = vmatprep.subr.mxu0 0.0
    %5021 = vmatpush1.msra.mxu0 0.0
    %5022 = vmatprep.subr.mxu0 0.0
    %5023 = vmatpush1.msra.mxu0 0.0
    %5024 = vmatprep.subr.mxu0 0.0
    %5025 = vmatpush1.msra.mxu0 0.0
    %5026 = vmatprep.subr.mxu0 0.0
    %5027 = vmatpush1.msra.mxu0 0.0
    %5028 = vmatprep.subr.mxu0 0.0
    %5029 = vmatpush1.msra.mxu0 0.0
    %5030 = vmatprep.subr.mxu0 0.0
    %5031 = vmatpush1.msra.mxu0 0.0
    %5032 = vmatprep.subr.mxu0 0.0
    %5033 = vmatpush1.msra.mxu0 0.0
    %5034 = vmatprep.subr.mxu0 0.0
    %5035 = vmatpush1.msra.mxu0 0.0
    %5036 = vmatprep.subr.mxu0 0.0
    %5037 = vmatpush1.msra.mxu0 0.0
    %5038 = vmatprep.subr.mxu0 0.0
    %5039 = vmatpush1.msra.mxu0 0.0
    %5040 = vmatprep.subr.mxu0 0.0
    %5041 = vmatpush1.msra.mxu0 0.0
    %5042 = vmatprep.subr.mxu0 0.0
    %5043 = vmatpush1.msra.mxu0 0.0
    %5044 = vmatprep.mubr.f32.mxu0 0.0
    %5045 = vmatmul.mubr.f32.gmra.mrb[0].mxu0 %v4978
    %v5046 = vpop.f32.mrb[0].mxu0
    %v5047 = vadd.f32 0.0, %v5046
    %v5048 = vpop.f32.mrb[0].mxu0
    %5049 = vdwg.mxu0
    %v5050 = vadd.f32 %v4527, %v5047
    %v5051 = vxor.u32 %v5050, 2147483648
    %v5052 = vmul.f32 %v5051, 1.442695
    %v5053 = vpow.pop %v5052
    %v5054 = vadd.f32 %v5053, 1.0
    %v5055 = vrcp.pop %v5054
    %v5056 = vmul.f32 1.0, %v5055
    %v5057 = vadd.f32 %v5047, %v4608
    %5059 = vrot.lane.b32.xlu0 %v5057, 64
    %v5060 = vpop.permute.xlu0 %5059
    %v5062 = vmul.f32 %v5056, %v5060
    %5064 = vrot.lane.b32.xlu0 %v5062, 64
    %v5065 = vpop.permute.xlu0 %5064
    %v5067 = vadd.f32 %v4527, %v5065
    %v5068 = vtanh.pop %v5067
    %v5070 = vrot.slane %v5068, 2
    %v5072 = vsub.f32 %v4973, %v5070
    %v5074 = vrot.slane %v5072, 6
    %5075 = vrot.lane.b32.xlu0 %v5074, 96
    %v5076 = vpop.permute.xlu0 %5075
    %v5078 = vmul.f32 %v5056, %v5076
    %5080 = vrot.lane.b32.xlu0 %v5078, 32
    %v5081 = vpop.permute.xlu0 %5080
    %v5083 = vadd.f32 %v5068, %v5081
    %5085 = vrot.lane.b32.xlu0 %v5083, 64
    %v5086 = vpop.permute.xlu0 %5085
    %v5087 = vsel %vm410, %v5086, 0
    %5089 = vmatprep.subr.mxu0 0.0
    %5090 = vmatpush1.msra.mxu0 %v4430
    %5091 = vmatprep.subr.mxu0 0.0
    %5092 = vmatpush1.msra.mxu0 %v4431
    %5093 = vmatprep.subr.mxu0 0.0
    %5094 = vmatpush1.msra.mxu0 %v4432
    %5095 = vmatprep.subr.mxu0 0.0
    %5096 = vmatpush1.msra.mxu0 %v4433
    %5097 = vmatprep.subr.mxu0 0.0
    %5098 = vmatpush1.msra.mxu0 0.0
    %5099 = vmatprep.subr.mxu0 0.0
    %5100 = vmatpush1.msra.mxu0 0.0
    %5101 = vmatprep.subr.mxu0 0.0
    %5102 = vmatpush1.msra.mxu0 0.0
    %5103 = vmatprep.subr.mxu0 0.0
    %5104 = vmatpush1.msra.mxu0 0.0
    %5105 = vmatprep.subr.mxu0 0.0
    %5106 = vmatpush1.msra.mxu0 0.0
    %5107 = vmatprep.subr.mxu0 0.0
    %5108 = vmatpush1.msra.mxu0 0.0
    %5109 = vmatprep.subr.mxu0 0.0
    %5110 = vmatpush1.msra.mxu0 0.0
    %5111 = vmatprep.subr.mxu0 0.0
    %5112 = vmatpush1.msra.mxu0 0.0
    %5113 = vmatprep.subr.mxu0 0.0
    %5114 = vmatpush1.msra.mxu0 0.0
    %5115 = vmatprep.subr.mxu0 0.0
    %5116 = vmatpush1.msra.mxu0 0.0
    %5117 = vmatprep.subr.mxu0 0.0
    %5118 = vmatpush1.msra.mxu0 0.0
    %5119 = vmatprep.subr.mxu0 0.0
    %5120 = vmatpush1.msra.mxu0 0.0
    %5121 = vmatprep.subr.mxu0 0.0
    %5122 = vmatpush1.msra.mxu0 0.0
    %5123 = vmatprep.subr.mxu0 0.0
    %5124 = vmatpush1.msra.mxu0 0.0
    %5125 = vmatprep.subr.mxu0 0.0
    %5126 = vmatpush1.msra.mxu0 0.0
    %5127 = vmatprep.subr.mxu0 0.0
    %5128 = vmatpush1.msra.mxu0 0.0
    %5129 = vmatprep.subr.mxu0 0.0
    %5130 = vmatpush1.msra.mxu0 0.0
    %5131 = vmatprep.subr.mxu0 0.0
    %5132 = vmatpush1.msra.mxu0 0.0
    %5133 = vmatprep.subr.mxu0 0.0
    %5134 = vmatpush1.msra.mxu0 0.0
    %5135 = vmatprep.subr.mxu0 0.0
    %5136 = vmatpush1.msra.mxu0 0.0
    %5137 = vmatprep.subr.mxu0 0.0
    %5138 = vmatpush1.msra.mxu0 0.0
    %5139 = vmatprep.subr.mxu0 0.0
    %5140 = vmatpush1.msra.mxu0 0.0
    %5141 = vmatprep.subr.mxu0 0.0
    %5142 = vmatpush1.msra.mxu0 0.0
    %5143 = vmatprep.subr.mxu0 0.0
    %5144 = vmatpush1.msra.mxu0 0.0
    %5145 = vmatprep.subr.mxu0 0.0
    %5146 = vmatpush1.msra.mxu0 0.0
    %5147 = vmatprep.subr.mxu0 0.0
    %5148 = vmatpush1.msra.mxu0 0.0
    %5149 = vmatprep.subr.mxu0 0.0
    %5150 = vmatpush1.msra.mxu0 0.0
    %5151 = vmatprep.subr.mxu0 0.0
    %5152 = vmatpush1.msra.mxu0 0.0
    %5153 = vmatprep.mubr.f32.mxu0 0.0
    %5154 = vmatmul.mubr.f32.gmra.mrb[0].mxu0 %v5087
    %v5155 = vpop.f32.mrb[0].mxu0
    %v5156 = vadd.f32 0.0, %v5155
    %v5157 = vpop.f32.mrb[0].mxu0
    %5158 = vdwg.mxu0
    %v5160 = vrot.slane %v5156, 6
    %v5162 = vadd.f32 %v4527, %v5160
    %v5163 = vxor.u32 %v5162, 2147483648
    %v5164 = vmul.f32 %v5163, 1.442695
    %v5165 = vpow.pop %v5164
    %v5166 = vadd.f32 %v5165, 1.0
    %v5167 = vrcp.pop %v5166
    %v5168 = vmul.f32 1.0, %v5167
    %v5169 = vadd.f32 %v5156, %v4608
    %v5171 = vrot.slane %v5169, 6
    %5172 = vrot.lane.b32.xlu0 %v5171, 64
    %v5173 = vpop.permute.xlu0 %5172
    %v5175 = vmul.f32 %v5168, %v5173
    %5177 = vrot.lane.b32.xlu0 %v5175, 64
    %v5178 = vpop.permute.xlu0 %5177
    %v5180 = vadd.f32 %v4527, %v5178
    %v5181 = vtanh.pop %v5180
    %v5183 = vrot.slane %v5181, 2
    %v5185 = vsub.f32 %v5083, %v5183
    %v5187 = vrot.slane %v5185, 6
    %5188 = vrot.lane.b32.xlu0 %v5187, 96
    %v5189 = vpop.permute.xlu0 %5188
    %v5191 = vmul.f32 %v5168, %v5189
    %5193 = vrot.lane.b32.xlu0 %v5191, 32
    %v5194 = vpop.permute.xlu0 %5193
    %v5196 = vadd.f32 %v5181, %v5194
    %v5198 = vrot.slane %v5196, 2
    %5199 = vrot.lane.b32.xlu0 %v5198, 64
    %v5200 = vpop.permute.xlu0 %5199
    %v5201 = vsel %vm410, %v5200, 0
    %5203 = vmatprep.subr.mxu0 0.0
    %5204 = vmatpush1.msra.mxu0 %v4430
    %5205 = vmatprep.subr.mxu0 0.0
    %5206 = vmatpush1.msra.mxu0 %v4431
    %5207 = vmatprep.subr.mxu0 0.0
    %5208 = vmatpush1.msra.mxu0 %v4432
    %5209 = vmatprep.subr.mxu0 0.0
    %5210 = vmatpush1.msra.mxu0 %v4433
    %5211 = vmatprep.subr.mxu0 0.0
    %5212 = vmatpush1.msra.mxu0 0.0
    %5213 = vmatprep.subr.mxu0 0.0
    %5214 = vmatpush1.msra.mxu0 0.0
    %5215 = vmatprep.subr.mxu0 0.0
    %5216 = vmatpush1.msra.mxu0 0.0
    %5217 = vmatprep.subr.mxu0 0.0
    %5218 = vmatpush1.msra.mxu0 0.0
    %5219 = vmatprep.subr.mxu0 0.0
    %5220 = vmatpush1.msra.mxu0 0.0
    %5221 = vmatprep.subr.mxu0 0.0
    %5222 = vmatpush1.msra.mxu0 0.0
    %5223 = vmatprep.subr.mxu0 0.0
    %5224 = vmatpush1.msra.mxu0 0.0
    %5225 = vmatprep.subr.mxu0 0.0
    %5226 = vmatpush1.msra.mxu0 0.0
    %5227 = vmatprep.subr.mxu0 0.0
    %5228 = vmatpush1.msra.mxu0 0.0
    %5229 = vmatprep.subr.mxu0 0.0
    %5230 = vmatpush1.msra.mxu0 0.0
    %5231 = vmatprep.subr.mxu0 0.0
    %5232 = vmatpush1.msra.mxu0 0.0
    %5233 = vmatprep.subr.mxu0 0.0
    %5234 = vmatpush1.msra.mxu0 0.0
    %5235 = vmatprep.subr.mxu0 0.0
    %5236 = vmatpush1.msra.mxu0 0.0
    %5237 = vmatprep.subr.mxu0 0.0
    %5238 = vmatpush1.msra.mxu0 0.0
    %5239 = vmatprep.subr.mxu0 0.0
    %5240 = vmatpush1.msra.mxu0 0.0
    %5241 = vmatprep.subr.mxu0 0.0
    %5242 = vmatpush1.msra.mxu0 0.0
    %5243 = vmatprep.subr.mxu0 0.0
    %5244 = vmatpush1.msra.mxu0 0.0
    %5245 = vmatprep.subr.mxu0 0.0
    %5246 = vmatpush1.msra.mxu0 0.0
    %5247 = vmatprep.subr.mxu0 0.0
    %5248 = vmatpush1.msra.mxu0 0.0
    %5249 = vmatprep.subr.mxu0 0.0
    %5250 = vmatpush1.msra.mxu0 0.0
    %5251 = vmatprep.subr.mxu0 0.0
    %5252 = vmatpush1.msra.mxu0 0.0
    %5253 = vmatprep.subr.mxu0 0.0
    %5254 = vmatpush1.msra.mxu0 0.0
    %5255 = vmatprep.subr.mxu0 0.0
    %5256 = vmatpush1.msra.mxu0 0.0
    %5257 = vmatprep.subr.mxu0 0.0
    %5258 = vmatpush1.msra.mxu0 0.0
    %5259 = vmatprep.subr.mxu0 0.0
    %5260 = vmatpush1.msra.mxu0 0.0
    %5261 = vmatprep.subr.mxu0 0.0
    %5262 = vmatpush1.msra.mxu0 0.0
    %5263 = vmatprep.subr.mxu0 0.0
    %5264 = vmatpush1.msra.mxu0 0.0
    %5265 = vmatprep.subr.mxu0 0.0
    %5266 = vmatpush1.msra.mxu0 0.0
    %5267 = vmatprep.mubr.f32.mxu0 0.0
    %5268 = vmatmul.mubr.f32.gmra.mrb[0].mxu0 %v5201
    %v5269 = vpop.f32.mrb[0].mxu0
    %v5270 = vadd.f32 0.0, %v5269
    %v5271 = vpop.f32.mrb[0].mxu0
    %5272 = vdwg.mxu0
    %v5274 = vrot.slane %v5270, 4
    %v5276 = vadd.f32 %v4527, %v5274
    %v5277 = vxor.u32 %v5276, 2147483648
    %v5278 = vmul.f32 %v5277, 1.442695
    %v5279 = vpow.pop %v5278
    %v5280 = vadd.f32 %v5279, 1.0
    %v5281 = vrcp.pop %v5280
    %v5282 = vmul.f32 1.0, %v5281
    %v5283 = vadd.f32 %v5270, %v4608
    %v5285 = vrot.slane %v5283, 4
    %5286 = vrot.lane.b32.xlu0 %v5285, 64
    %v5287 = vpop.permute.xlu0 %5286
    %v5289 = vmul.f32 %v5282, %v5287
    %5291 = vrot.lane.b32.xlu0 %v5289, 64
    %v5292 = vpop.permute.xlu0 %5291
    %v5294 = vadd.f32 %v4527, %v5292
    %v5295 = vtanh.pop %v5294
    %v5297 = vrot.slane %v5295, 2
    %v5299 = vsub.f32 %v5196, %v5297
    %v5301 = vrot.slane %v5299, 6
    %5302 = vrot.lane.b32.xlu0 %v5301, 96
    %v5303 = vpop.permute.xlu0 %5302
    %v5305 = vmul.f32 %v5282, %v5303
    %5307 = vrot.lane.b32.xlu0 %v5305, 32
    %v5308 = vpop.permute.xlu0 %5307
    %v5310 = vadd.f32 %v5295, %v5308
    %v5312 = vrot.slane %v5310, 4
    %5313 = vrot.lane.b32.xlu0 %v5312, 64
    %v5314 = vpop.permute.xlu0 %5313
    %v5315 = vsel %vm410, %v5314, 0
    %5317 = vmatprep.subr.mxu0 0.0
    %5318 = vmatpush1.msra.mxu0 %v4430
    %5319 = vmatprep.subr.mxu0 0.0
    %5320 = vmatpush1.msra.mxu0 %v4431
    %5321 = vmatprep.subr.mxu0 0.0
    %5322 = vmatpush1.msra.mxu0 %v4432
    %5323 = vmatprep.subr.mxu0 0.0
    %5324 = vmatpush1.msra.mxu0 %v4433
    %5325 = vmatprep.subr.mxu0 0.0
    %5326 = vmatpush1.msra.mxu0 0.0
    %5327 = vmatprep.subr.mxu0 0.0
    %5328 = vmatpush1.msra.mxu0 0.0
    %5329 = vmatprep.subr.mxu0 0.0
    %5330 = vmatpush1.msra.mxu0 0.0
    %5331 = vmatprep.subr.mxu0 0.0
    %5332 = vmatpush1.msra.mxu0 0.0
    %5333 = vmatprep.subr.mxu0 0.0
    %5334 = vmatpush1.msra.mxu0 0.0
    %5335 = vmatprep.subr.mxu0 0.0
    %5336 = vmatpush1.msra.mxu0 0.0
    %5337 = vmatprep.subr.mxu0 0.0
    %5338 = vmatpush1.msra.mxu0 0.0
    %5339 = vmatprep.subr.mxu0 0.0
    %5340 = vmatpush1.msra.mxu0 0.0
    %5341 = vmatprep.subr.mxu0 0.0
    %5342 = vmatpush1.msra.mxu0 0.0
    %5343 = vmatprep.subr.mxu0 0.0
    %5344 = vmatpush1.msra.mxu0 0.0
    %5345 = vmatprep.subr.mxu0 0.0
    %5346 = vmatpush1.msra.mxu0 0.0
    %5347 = vmatprep.subr.mxu0 0.0
    %5348 = vmatpush1.msra.mxu0 0.0
    %5349 = vmatprep.subr.mxu0 0.0
    %5350 = vmatpush1.msra.mxu0 0.0
    %5351 = vmatprep.subr.mxu0 0.0
    %5352 = vmatpush1.msra.mxu0 0.0
    %5353 = vmatprep.subr.mxu0 0.0
    %5354 = vmatpush1.msra.mxu0 0.0
    %5355 = vmatprep.subr.mxu0 0.0
    %5356 = vmatpush1.msra.mxu0 0.0
    %5357 = vmatprep.subr.mxu0 0.0
    %5358 = vmatpush1.msra.mxu0 0.0
    %5359 = vmatprep.subr.mxu0 0.0
    %5360 = vmatpush1.msra.mxu0 0.0
    %5361 = vmatprep.subr.mxu0 0.0
    %5362 = vmatpush1.msra.mxu0 0.0
    %5363 = vmatprep.subr.mxu0 0.0
    %5364 = vmatpush1.msra.mxu0 0.0
    %5365 = vmatprep.subr.mxu0 0.0
    %5366 = vmatpush1.msra.mxu0 0.0
    %5367 = vmatprep.subr.mxu0 0.0
    %5368 = vmatpush1.msra.mxu0 0.0
    %5369 = vmatprep.subr.mxu0 0.0
    %5370 = vmatpush1.msra.mxu0 0.0
    %5371 = vmatprep.subr.mxu0 0.0
    %5372 = vmatpush1.msra.mxu0 0.0
    %5373 = vmatprep.subr.mxu0 0.0
    %5374 = vmatpush1.msra.mxu0 0.0
    %5375 = vmatprep.subr.mxu0 0.0
    %5376 = vmatpush1.msra.mxu0 0.0
    %5377 = vmatprep.subr.mxu0 0.0
    %5378 = vmatpush1.msra.mxu0 0.0
    %5379 = vmatprep.subr.mxu0 0.0
    %5380 = vmatpush1.msra.mxu0 0.0
    %5381 = vmatprep.mubr.f32.mxu0 0.0
    %5382 = vmatmul.mubr.f32.gmra.mrb[0].mxu0 %v5315
    %v5383 = vpop.f32.mrb[0].mxu0
    %v5384 = vadd.f32 0.0, %v5383
    %v5385 = vpop.f32.mrb[0].mxu0
    %5386 = vdwg.mxu0
    %v5388 = vrot.slane %v5384, 2
    %v5390 = vadd.f32 %v4527, %v5388
    %v5391 = vxor.u32 %v5390, 2147483648
    %v5392 = vmul.f32 %v5391, 1.442695
    %v5393 = vpow.pop %v5392
    %v5394 = vadd.f32 %v5393, 1.0
    %v5395 = vrcp.pop %v5394
    %v5396 = vmul.f32 1.0, %v5395
    %v5397 = vadd.f32 %v5384, %v4608
    %v5399 = vrot.slane %v5397, 2
    %5400 = vrot.lane.b32.xlu0 %v5399, 64
    %v5401 = vpop.permute.xlu0 %5400
    %v5403 = vmul.f32 %v5396, %v5401
    %5405 = vrot.lane.b32.xlu0 %v5403, 64
    %v5406 = vpop.permute.xlu0 %5405
    %v5408 = vadd.f32 %v4527, %v5406
    %v5409 = vtanh.pop %v5408
    %v5411 = vrot.slane %v5409, 2
    %v5413 = vsub.f32 %v5310, %v5411
    %v5415 = vrot.slane %v5413, 6
    %5416 = vrot.lane.b32.xlu0 %v5415, 96
    %v5417 = vpop.permute.xlu0 %5416
    %v5419 = vmul.f32 %v5396, %v5417
    %5421 = vrot.lane.b32.xlu0 %v5419, 32
    %v5422 = vpop.permute.xlu0 %5421
    %v5424 = vadd.f32 %v5409, %v5422
    %v5425 = vld [vmem:[%s21] sm:$0xff]
    %v5426 = vld [vmem:[%s21 + $0x8] sm:$0xff]
    %v5427 = vld [vmem:[%s21 + $0x10] sm:$0xff]
    %v5428 = vld [vmem:[%s21 + $0x18] sm:$0xff]
    %v5429 = vld [vmem:[#allocation3] sm:$0x1]
    %v5431 = vlaneseq
    %v5432 = vshrl.u32 %v5431, 7
    %v5433 = vsub.s32 0, %v5432
    %v5434 = vrot.slane %v5429, %v5433
    %v5437 = vrot.slane %v5424, 6
    %5438 = vrot.lane.b32.xlu0 %v5437, 64
    %v5439 = vpop.permute.xlu0 %5438
    %v5440 = vsel %vm410, %v5439, 0
    %5442 = vmatprep.subr.mxu0 0.0
    %5443 = vmatpush1.msra.mxu0 %v5425
    %5444 = vmatprep.subr.mxu0 0.0
    %5445 = vmatpush1.msra.mxu0 %v5426
    %5446 = vmatprep.subr.mxu0 0.0
    %5447 = vmatpush1.msra.mxu0 %v5427
    %5448 = vmatprep.subr.mxu0 0.0
    %5449 = vmatpush1.msra.mxu0 %v5428
    %5450 = vmatprep.subr.mxu0 0.0
    %5451 = vmatpush1.msra.mxu0 0.0
    %5452 = vmatprep.subr.mxu0 0.0
    %5453 = vmatpush1.msra.mxu0 0.0
    %5454 = vmatprep.subr.mxu0 0.0
    %5455 = vmatpush1.msra.mxu0 0.0
    %5456 = vmatprep.subr.mxu0 0.0
    %5457 = vmatpush1.msra.mxu0 0.0
    %5458 = vmatprep.subr.mxu0 0.0
    %5459 = vmatpush1.msra.mxu0 0.0
    %5460 = vmatprep.subr.mxu0 0.0
    %5461 = vmatpush1.msra.mxu0 0.0
    %5462 = vmatprep.subr.mxu0 0.0
    %5463 = vmatpush1.msra.mxu0 0.0
    %5464 = vmatprep.subr.mxu0 0.0
    %5465 = vmatpush1.msra.mxu0 0.0
    %5466 = vmatprep.subr.mxu0 0.0
    %5467 = vmatpush1.msra.mxu0 0.0
    %5468 = vmatprep.subr.mxu0 0.0
    %5469 = vmatpush1.msra.mxu0 0.0
    %5470 = vmatprep.subr.mxu0 0.0
    %5471 = vmatpush1.msra.mxu0 0.0
    %5472 = vmatprep.subr.mxu0 0.0
    %5473 = vmatpush1.msra.mxu0 0.0
    %5474 = vmatprep.subr.mxu0 0.0
    %5475 = vmatpush1.msra.mxu0 0.0
    %5476 = vmatprep.subr.mxu0 0.0
    %5477 = vmatpush1.msra.mxu0 0.0
    %5478 = vmatprep.subr.mxu0 0.0
    %5479 = vmatpush1.msra.mxu0 0.0
    %5480 = vmatprep.subr.mxu0 0.0
    %5481 = vmatpush1.msra.mxu0 0.0
    %5482 = vmatprep.subr.mxu0 0.0
    %5483 = vmatpush1.msra.mxu0 0.0
    %5484 = vmatprep.subr.mxu0 0.0
    %5485 = vmatpush1.msra.mxu0 0.0
    %5486 = vmatprep.subr.mxu0 0.0
    %5487 = vmatpush1.msra.mxu0 0.0
    %5488 = vmatprep.subr.mxu0 0.0
    %5489 = vmatpush1.msra.mxu0 0.0
    %5490 = vmatprep.subr.mxu0 0.0
    %5491 = vmatpush1.msra.mxu0 0.0
    %5492 = vmatprep.subr.mxu0 0.0
    %5493 = vmatpush1.msra.mxu0 0.0
    %5494 = vmatprep.subr.mxu0 0.0
    %5495 = vmatpush1.msra.mxu0 0.0
    %5496 = vmatprep.subr.mxu0 0.0
    %5497 = vmatpush1.msra.mxu0 0.0
    %5498 = vmatprep.subr.mxu0 0.0
    %5499 = vmatpush1.msra.mxu0 0.0
    %5500 = vmatprep.subr.mxu0 0.0
    %5501 = vmatpush1.msra.mxu0 0.0
    %5502 = vmatprep.subr.mxu0 0.0
    %5503 = vmatpush1.msra.mxu0 0.0
    %5504 = vmatprep.subr.mxu0 0.0
    %5505 = vmatpush1.msra.mxu0 0.0
    %5506 = vmatprep.mubr.f32.mxu0 0.0
    %5507 = vmatmul.mubr.f32.gmra.mrb[0].mxu0 %v5440
    %v5508 = vpop.f32.mrb[0].mxu0
    %v5509 = vadd.f32 %v5434, %v5508
    %v5510 = vpop.f32.mrb[0].mxu0
    %5511 = vdwg.mxu0
    %vm5512 = vcmask 1024
    %5513 = vst.msk [vmem:[%s23] sm:$0x3] %vm5512, %v5509
    // Predicated region
    $region154: #{_gru_model_forward.1} parent=1 // pred_check
      _
    $region155: #{_gru_model_forward.1} parent=1 // pred_check_branch
      %5515 = sbr.rel (0) target = $region157
    $region156: #{_gru_model_forward.1} parent=1 // pred_region
      _
    $region157: #{_gru_model_forward.1} parent=1 // pred_fallthru
      _
    // Predicated region
    $region158: #{_gru_model_forward.1} parent=1 // pred_check
      _
    $region159: #{_gru_model_forward.1} parent=1 // pred_check_branch
      %5517 = sbr.rel (0) target = $region161
    $region160: #{_gru_model_forward.1} parent=1 // pred_region
      _
    $region161: #{_gru_model_forward.1} parent=1 // pred_fallthru
      _
    %5518 = vsyncpa [#allocation5], 1
    %5519 = vsyncpa [#allocation7], 1
    %5520 = vsyncpa [#allocation10], 1
    %5521 = vsyncpa [#allocation13], 1
    %5522 = vsyncpa [#allocation16], 1
    %5523 = vsyncpa [#allocation19], 1
    %5524 = vsyncpa [#allocation22], 1
    %5525 = vsyncpa [#allocation25], 1

</llo_original>
